<compile_context>
chip_gen: v6e
topology: v6e:2x2x1
jax: 0.10.0
libtpu: 0.0.40
codegen_flags: <defaults>
</compile_context>

<pallas_src>
import functools
import math

import jax
import jax.numpy as jnp
from jax.experimental import pallas as pl
from jax.experimental.pallas import tpu as pltpu

F32 = jnp.float32
BF16 = jnp.bfloat16
LN_EPS = 1e-5


def _round_up(x, m):
    return ((x + m - 1) // m) * m


# ----------------------------------------------------------------------------
# Fused transformer-block kernel (one grid step = Bb batch elements)
# ----------------------------------------------------------------------------
def _transformer_kernel(x_ref, ln1g_ref, ln1b_ref, wqkv_ref, bqkv_ref,
                        wproj_ref, bproj_ref, ln2g_ref, ln2b_ref,
                        wff1_ref, bff1_ref, wff2_ref, bff2_ref,
                        o_ref, *, num_heads, head_dim, hdp):
    Bb, S, C = x_ref.shape
    M = Bb * S
    x = x_ref[...].reshape(M, C)                      # f32, leading-dim merge

    def lnorm(v, g_ref, b_ref):
        # Two-pass LayerNorm (mean, then centered variance) over the real C.
        mu = jnp.mean(v, axis=-1, keepdims=True)
        xc = v - mu
        var = jnp.mean(xc * xc, axis=-1, keepdims=True)
        return xc * jax.lax.rsqrt(var + LN_EPS) * g_ref[...] + b_ref[...]

    # ------------------------------ MHA branch ------------------------------
    y = lnorm(x, ln1g_ref, ln1b_ref).astype(BF16)
    # Fused QKV projection: one MXU launch, N = 3*hdp.  The 1/sqrt(head_dim)
    # scale is folded into the Q weight/bias at pack time.
    qkv = jnp.dot(y, wqkv_ref[...], preferred_element_type=F32) + bqkv_ref[...]
    # 128-lane-aligned static splits (free vreg selection, no lane shifts).
    q = qkv[:, 0 * hdp:1 * hdp].reshape(Bb, S, hdp).astype(BF16)
    k = qkv[:, 1 * hdp:2 * hdp].reshape(Bb, S, hdp).astype(BF16)
    v = qkv[:, 2 * hdp:3 * hdp].reshape(Bb, S, hdp).astype(BF16)

    lane = jax.lax.broadcasted_iota(jnp.int32, (1, 1, hdp), 2)
    oh_all = jnp.zeros((Bb, S, hdp), F32)
    for h in range(num_heads):
        # bf16 lane mask selecting head h's head_dim columns.  Masked K/V make
        # the full-width contraction equal the per-head contraction exactly.
        m_h = ((lane >= h * head_dim) & (lane < (h + 1) * head_dim)).astype(BF16)
        kh = k * m_h
        vh = v * m_h
        s = jnp.einsum('bqd,bkd->bqk', q, kh, preferred_element_type=F32)
        mx = jnp.max(s, axis=-1, keepdims=True)
        p = jnp.exp(s - mx)
        l = jnp.sum(p, axis=-1, keepdims=True)
        p = (p * pl.reciprocal(l, approx=False)).astype(BF16)
        # Heads live in disjoint lane ranges -> plain VPU add combines them.
        oh_all = oh_all + jnp.einsum('bqk,bkd->bqd', p, vh,
                                     preferred_element_type=F32)

    # Single output projection after the head loop.  Padded rows of wproj are
    # zero, so the zero lanes of oh_all drop out exactly.
    att = jnp.dot(oh_all.reshape(M, hdp).astype(BF16), wproj_ref[...],
                  preferred_element_type=F32) + bproj_ref[...]
    x = x + att                                       # residual 1
    # TODO(synk): nn.Dropout layers have p=0 in the reference -> identity.

    # ------------------------------ FF branch -------------------------------
    y = lnorm(x, ln2g_ref, ln2b_ref).astype(BF16)
    h1 = jnp.dot(y, wff1_ref[...], preferred_element_type=F32) + bff1_ref[...]
    h1 = h1 * jax.nn.sigmoid(h1)                      # SiLU
    h2 = jnp.dot(h1.astype(BF16), wff2_ref[...],
                 preferred_element_type=F32) + bff2_ref[...]
    o_ref[...] = (x + h2).reshape(Bb, S, C)           # residual 2


# ----------------------------------------------------------------------------
# Parameter init (matches PyTorch nn.Linear / nn.LayerNorm shapes)
# ----------------------------------------------------------------------------
def init_transformer_params(key, embed_dim, latent_dim, num_heads=4, head_dim=8):
    hd = num_heads * head_dim
    ks = jax.random.split(key, 6)

    def linear_init(k, cin, cout):
        kw, kb = jax.random.split(k)
        bound = 1.0 / math.sqrt(cin)
        return {'w': jax.random.uniform(kw, (cout, cin), F32, -bound, bound),
                'b': jax.random.uniform(kb, (cout,), F32, -bound, bound)}

    def ln_init(k, c):
        kg, kb = jax.random.split(k)
        # PyTorch default is gamma=1, beta=0; perturb so the test is non-trivial.
        return {'g': 1.0 + 0.05 * jax.random.normal(kg, (c,), F32),
                'b': 0.02 * jax.random.normal(kb, (c,), F32)}

    return {
        'ln1': ln_init(ks[0], embed_dim),
        'qkv': linear_init(ks[1], embed_dim, 3 * hd),
        'proj': linear_init(ks[2], hd, embed_dim),
        'ln2': ln_init(ks[3], embed_dim),
        'ff1': linear_init(ks[4], embed_dim, latent_dim),
        'ff2': linear_init(ks[5], latent_dim, embed_dim),
    }


def pack_transformer_params(p, embed_dim, latent_dim, num_heads=4, head_dim=8):
    """Pack weights once: fuse QKV (N=3*hdp, 128-aligned sections), fold the
    attention scale into Q, pre-cast matmul weights to bf16."""
    C, L, hd = embed_dim, latent_dim, num_heads * head_dim
    hdp = _round_up(hd, 128)
    scale = 1.0 / math.sqrt(head_dim)

    wqkv_t = p['qkv']['w'].T                     # (C, 3*hd), cols = (three,h,d)
    bqkv = p['qkv']['b']

    def pad_w(w, cout_p):
        return jnp.zeros((w.shape[0], cout_p), F32).at[:, :w.shape[1]].set(w)

    def pad_b(b, cout_p):
        return jnp.zeros((1, cout_p), F32).at[0, :b.shape[0]].set(b)

    wq = wqkv_t[:, 0 * hd:1 * hd] * scale        # fold 1/sqrt(d) into Q
    wk = wqkv_t[:, 1 * hd:2 * hd]
    wv = wqkv_t[:, 2 * hd:3 * hd]
    bq = bqkv[0 * hd:1 * hd] * scale
    bk = bqkv[1 * hd:2 * hd]
    bv = bqkv[2 * hd:3 * hd]

    wqkv = jnp.concatenate([pad_w(wq, hdp), pad_w(wk, hdp), pad_w(wv, hdp)],
                           axis=1).astype(BF16)                    # (C, 3*hdp)
    bqkv_p = jnp.concatenate([pad_b(bq, hdp), pad_b(bk, hdp), pad_b(bv, hdp)],
                             axis=1)                               # (1, 3*hdp)

    wproj = jnp.zeros((hdp, C), F32).at[:hd, :].set(p['proj']['w'].T).astype(BF16)

    return dict(
        ln1g=p['ln1']['g'].reshape(1, C), ln1b=p['ln1']['b'].reshape(1, C),
        wqkv=wqkv, bqkv=bqkv_p,
        wproj=wproj, bproj=p['proj']['b'].reshape(1, C),
        ln2g=p['ln2']['g'].reshape(1, C), ln2b=p['ln2']['b'].reshape(1, C),
        wff1=p['ff1']['w'].T.astype(BF16), bff1=p['ff1']['b'].reshape(1, L),
        wff2=p['ff2']['w'].T.astype(BF16), bff2=p['ff2']['b'].reshape(1, C),
    )


_WEIGHT_ORDER = ('ln1g', 'ln1b', 'wqkv', 'bqkv', 'wproj', 'bproj',
                 'ln2g', 'ln2b', 'wff1', 'bff1', 'wff2', 'bff2')


def make_transformer(params, embed_dim, latent_dim, num_heads=4, head_dim=8):
    packed = pack_transformer_params(params, embed_dim, latent_dim,
                                     num_heads, head_dim)
    hdp = packed['wproj'].shape[0]
    C = embed_dim

    kernel = functools.partial(_transformer_kernel, num_heads=num_heads,
                               head_dim=head_dim, hdp=hdp)

    @jax.jit
    def fwd(x):                                  # x: (B, S, embed_dim) f32
        B, S, Cin = x.shape
        assert Cin == C
        x = x.astype(F32)
        # 1-2 fat grid steps: 2 when the batch splits evenly (keeps both v7x
        # TensorCores busy), else 1.  M = Bb*S fills the MXU rows and per-step
        # overhead is amortized.  No wrapper pad/slice: real (B,S,C) layout
        # end-to-end.
        G = 2 if (B % 2 == 0 and B >= 2) else 1
        Bb = B // G

        def rep(shape):                          # full, grid-invariant block
            return pl.BlockSpec(shape, lambda i: (0, 0))

        out = pl.pallas_call(
            kernel,
            out_shape=jax.ShapeDtypeStruct((B, S, C), F32),
            grid=(G,),
            in_specs=[pl.BlockSpec((Bb, S, C), lambda i: (i, 0, 0))] +
                     [rep(packed[n].shape) for n in _WEIGHT_ORDER],
            out_specs=pl.BlockSpec((Bb, S, C), lambda i: (i, 0, 0)),
            compiler_params=pltpu.CompilerParams(
                dimension_semantics=("parallel",)),
        )(x, *[packed[n] for n in _WEIGHT_ORDER])
        return out

    return fwd


# ----------------------------------------------------------------------------
# Pure-JAX reference (mirrors the PyTorch module, f32 end to end)
# ----------------------------------------------------------------------------
def transformer_reference(params, x, num_heads=4, head_dim=8):
    def ln(v, g, b):
        mu = jnp.mean(v, -1, keepdims=True)
        var = jnp.mean(jnp.square(v - mu), -1, keepdims=True)
        return (v - mu) / jnp.sqrt(var + LN_EPS) * g + b

    hd = num_heads * head_dim
    B, S, C = x.shape
    y = ln(x, params['ln1']['g'], params['ln1']['b'])
    qkv = y @ params['qkv']['w'].T + params['qkv']['b']
    qkv = qkv.reshape(B, S, 3, num_heads, head_dim)      # '(three h d)'
    q = jnp.transpose(qkv[:, :, 0], (0, 2, 1, 3))        # (B, H, S, D)
    k = jnp.transpose(qkv[:, :, 1], (0, 2, 1, 3))
    v = jnp.transpose(qkv[:, :, 2], (0, 2, 1, 3))
    s = jnp.einsum('bhsd,bhtd->bhst', q, k) / math.sqrt(head_dim)
    p = jax.nn.softmax(s, axis=-1)
    o = jnp.einsum('bhst,bhtd->bhsd', p, v)
    o = jnp.transpose(o, (0, 2, 1, 3)).reshape(B, S, hd)
    x = x + (o @ params['proj']['w'].T + params['proj']['b'])
    y = ln(x, params['ln2']['g'], params['ln2']['b'])
    y = y @ params['ff1']['w'].T + params['ff1']['b']
    y = y * jax.nn.sigmoid(y)
    y = y @ params['ff2']['w'].T + params['ff2']['b']
    return x + y


if __name__ == "__main__":
    # Shapes consistent with MobileViT usage of this block:
    # embed 64, latent 128 (=2*embed), 4 heads x head_dim 8.
    embed_dim, latent_dim = 64, 128
    num_heads, head_dim = 4, 8
    B, S = 8, 64

    key = jax.random.PRNGKey(0)
    kp, kx = jax.random.split(key)
    params = init_transformer_params(kp, embed_dim, latent_dim, num_heads, head_dim)
    x = jax.random.normal(kx, (B, S, embed_dim), F32)

    fwd = make_transformer(params, embed_dim, latent_dim, num_heads, head_dim)
    out = jax.block_until_ready(fwd(x))

    assert out.shape == (B, S, embed_dim), out.shape
    assert bool(jnp.all(jnp.isfinite(out)))

    ref = transformer_reference(params, x, num_heads, head_dim)
    max_err = float(jnp.max(jnp.abs(out - ref)))
    assert max_err < 0.15, f"max abs err vs f32 reference: {max_err}"

    print("KERNEL_OK")
</pallas_src>

<mosaic_0001>
module attributes {stable_mosaic.version = 11 : i64} {
  func.func @_transformer_kernel(%arg0: i32, %arg1: memref<4x64x64xf32, #tpu.memory_space<vmem>>, %arg2: memref<1x64xf32, #tpu.memory_space<vmem>>, %arg3: memref<1x64xf32, #tpu.memory_space<vmem>>, %arg4: memref<64x384xbf16, #tpu.memory_space<vmem>>, %arg5: memref<1x384xf32, #tpu.memory_space<vmem>>, %arg6: memref<128x64xbf16, #tpu.memory_space<vmem>>, %arg7: memref<1x64xf32, #tpu.memory_space<vmem>>, %arg8: memref<1x64xf32, #tpu.memory_space<vmem>>, %arg9: memref<1x64xf32, #tpu.memory_space<vmem>>, %arg10: memref<64x128xbf16, #tpu.memory_space<vmem>>, %arg11: memref<1x128xf32, #tpu.memory_space<vmem>>, %arg12: memref<128x64xbf16, #tpu.memory_space<vmem>>, %arg13: memref<1x64xf32, #tpu.memory_space<vmem>>, %arg14: memref<4x64x64xf32, #tpu.memory_space<vmem>>) attributes {dimension_semantics = [#tpu.dimension_semantics<parallel>], iteration_bounds = array<i64: 2>, scalar_prefetch = 0 : i64, scratch_operands = 0 : i64, tpu.core_type = #tpu.core_type<tc>, window_params = [{transform_indices = @transform_0, window_bounds = array<i64: 4, 64, 64>}, {pipeline_mode = #tpu.pipeline_mode<synchronous>, transform_indices = @transform_1, window_bounds = array<i64: 1, 64>}, {pipeline_mode = #tpu.pipeline_mode<synchronous>, transform_indices = @transform_2, window_bounds = array<i64: 1, 64>}, {pipeline_mode = #tpu.pipeline_mode<synchronous>, transform_indices = @transform_3, window_bounds = array<i64: 64, 384>}, {pipeline_mode = #tpu.pipeline_mode<synchronous>, transform_indices = @transform_4, window_bounds = array<i64: 1, 384>}, {pipeline_mode = #tpu.pipeline_mode<synchronous>, transform_indices = @transform_5, window_bounds = array<i64: 128, 64>}, {pipeline_mode = #tpu.pipeline_mode<synchronous>, transform_indices = @transform_6, window_bounds = array<i64: 1, 64>}, {pipeline_mode = #tpu.pipeline_mode<synchronous>, transform_indices = @transform_7, window_bounds = array<i64: 1, 64>}, {pipeline_mode = #tpu.pipeline_mode<synchronous>, transform_indices = @transform_8, window_bounds = array<i64: 1, 64>}, {pipeline_mode = #tpu.pipeline_mode<synchronous>, transform_indices = @transform_9, window_bounds = array<i64: 64, 128>}, {pipeline_mode = #tpu.pipeline_mode<synchronous>, transform_indices = @transform_10, window_bounds = array<i64: 1, 128>}, {pipeline_mode = #tpu.pipeline_mode<synchronous>, transform_indices = @transform_11, window_bounds = array<i64: 128, 64>}, {pipeline_mode = #tpu.pipeline_mode<synchronous>, transform_indices = @transform_12, window_bounds = array<i64: 1, 64>}, {transform_indices = @transform_13, window_bounds = array<i64: 4, 64, 64>}]} {
    %c0 = arith.constant 0 : index
    %c0_0 = arith.constant 0 : index
    %c0_1 = arith.constant 0 : index
    %0 = vector.load %arg1[%c0, %c0_0, %c0_1] : memref<4x64x64xf32, #tpu.memory_space<vmem>>, vector<4x64x64xf32>
    %1 = vector.shape_cast %0 : vector<4x64x64xf32> to vector<256x64xf32>
    %cst = arith.constant dense<0.000000e+00> : vector<256xf32>
    %2 = vector.multi_reduction <add>, %1, %cst [1] : vector<256x64xf32> to vector<256xf32>
    %3 = vector.shape_cast %2 : vector<256xf32> to vector<256x1xf32>
    %cst_2 = arith.constant 6.400000e+01 : f32
    %4 = vector.broadcast %cst_2 : f32 to vector<256x1xf32>
    %5 = arith.divf %3, %4 : vector<256x1xf32>
    %6 = vector.broadcast %5 : vector<256x1xf32> to vector<256x64xf32>
    %7 = arith.subf %1, %6 : vector<256x64xf32>
    %8 = arith.mulf %7, %7 : vector<256x64xf32>
    %cst_3 = arith.constant dense<0.000000e+00> : vector<256xf32>
    %9 = vector.multi_reduction <add>, %8, %cst_3 [1] : vector<256x64xf32> to vector<256xf32>
    %10 = vector.shape_cast %9 : vector<256xf32> to vector<256x1xf32>
    %cst_4 = arith.constant 6.400000e+01 : f32
    %11 = vector.broadcast %cst_4 : f32 to vector<256x1xf32>
    %12 = arith.divf %10, %11 : vector<256x1xf32>
    %cst_5 = arith.constant 9.99999974E-6 : f32
    %13 = vector.broadcast %cst_5 : f32 to vector<256x1xf32>
    %14 = arith.addf %12, %13 : vector<256x1xf32>
    %15 = math.rsqrt %14 : vector<256x1xf32>
    %16 = vector.broadcast %15 : vector<256x1xf32> to vector<256x64xf32>
    %17 = arith.mulf %7, %16 : vector<256x64xf32>
    %c0_6 = arith.constant 0 : index
    %c0_7 = arith.constant 0 : index
    %18 = vector.load %arg2[%c0_6, %c0_7] : memref<1x64xf32, #tpu.memory_space<vmem>>, vector<1x64xf32>
    %19 = vector.broadcast %18 : vector<1x64xf32> to vector<256x64xf32>
    %20 = arith.mulf %17, %19 : vector<256x64xf32>
    %c0_8 = arith.constant 0 : index
    %c0_9 = arith.constant 0 : index
    %21 = vector.load %arg3[%c0_8, %c0_9] : memref<1x64xf32, #tpu.memory_space<vmem>>, vector<1x64xf32>
    %22 = vector.broadcast %21 : vector<1x64xf32> to vector<256x64xf32>
    %23 = arith.addf %20, %22 : vector<256x64xf32>
    %24 = arith.truncf %23 : vector<256x64xf32> to vector<256x64xbf16>
    %c0_10 = arith.constant 0 : index
    %c0_11 = arith.constant 0 : index
    %25 = vector.load %arg4[%c0_10, %c0_11] : memref<64x384xbf16, #tpu.memory_space<vmem>>, vector<64x384xbf16>
    %cst_12 = arith.constant dense<0.000000e+00> : vector<256x384xf32>
    %26 = tpu.matmul %24, %25, %cst_12 {dimension_numbers = #tpu.dot_dimension_numbers<[1], [0], [0], [1], [0, 0, 1, 1], [], []>} : vector<256x64xbf16>, vector<64x384xbf16>, vector<256x384xf32> -> vector<256x384xf32>
    %c0_13 = arith.constant 0 : index
    %c0_14 = arith.constant 0 : index
    %27 = vector.load %arg5[%c0_13, %c0_14] : memref<1x384xf32, #tpu.memory_space<vmem>>, vector<1x384xf32>
    %28 = vector.broadcast %27 : vector<1x384xf32> to vector<256x384xf32>
    %29 = arith.addf %26, %28 : vector<256x384xf32>
    %30 = vector.extract_strided_slice %29 {offsets = [0, 0], sizes = [256, 128], strides = [1, 1]} : vector<256x384xf32> to vector<256x128xf32>
    %31 = vector.shape_cast %30 : vector<256x128xf32> to vector<4x64x128xf32>
    %32 = arith.truncf %31 : vector<4x64x128xf32> to vector<4x64x128xbf16>
    %33 = vector.extract_strided_slice %29 {offsets = [0, 128], sizes = [256, 128], strides = [1, 1]} : vector<256x384xf32> to vector<256x128xf32>
    %34 = vector.shape_cast %33 : vector<256x128xf32> to vector<4x64x128xf32>
    %35 = arith.truncf %34 : vector<4x64x128xf32> to vector<4x64x128xbf16>
    %36 = vector.extract_strided_slice %29 {offsets = [0, 256], sizes = [256, 128], strides = [1, 1]} : vector<256x384xf32> to vector<256x128xf32>
    %37 = vector.shape_cast %36 : vector<256x128xf32> to vector<4x64x128xf32>
    %38 = arith.truncf %37 : vector<4x64x128xf32> to vector<4x64x128xbf16>
    %39 = tpu.iota {dimensions = array<i32: 2>} : vector<1x1x128xi32>
    %cst_15 = arith.constant 0.000000e+00 : f32
    %40 = vector.broadcast %cst_15 : f32 to vector<4x64x128xf32>
    %c0_i32 = arith.constant 0 : i32
    %41 = vector.broadcast %c0_i32 : i32 to vector<1x1x128xi32>
    %42 = arith.cmpi sge, %39, %41 : vector<1x1x128xi32>
    %c8_i32 = arith.constant 8 : i32
    %43 = vector.broadcast %c8_i32 : i32 to vector<1x1x128xi32>
    %44 = arith.cmpi slt, %39, %43 : vector<1x1x128xi32>
    %45 = arith.andi %42, %44 : vector<1x1x128xi1>
    %46 = arith.extui %45 : vector<1x1x128xi1> to vector<1x1x128xi32>
    %47 = arith.sitofp %46 : vector<1x1x128xi32> to vector<1x1x128xf32>
    %48 = arith.truncf %47 : vector<1x1x128xf32> to vector<1x1x128xbf16>
    %49 = vector.broadcast %48 : vector<1x1x128xbf16> to vector<4x64x128xbf16>
    %50 = arith.mulf %35, %49 : vector<4x64x128xbf16>
    %51 = vector.broadcast %48 : vector<1x1x128xbf16> to vector<4x64x128xbf16>
    %52 = arith.mulf %38, %51 : vector<4x64x128xbf16>
    "tpu.trace_start"() <{level = 10 : i32, message = "bqd,bkd->bqk"}> : () -> ()
    %cst_16 = arith.constant dense<0.000000e+00> : vector<4x64x64xf32>
    %53 = tpu.matmul %32, %50, %cst_16 {dimension_numbers = #tpu.dot_dimension_numbers<[2], [2], [1], [1], [0, 0, 0, 1, 1, 1], [0], [0]>} : vector<4x64x128xbf16>, vector<4x64x128xbf16>, vector<4x64x64xf32> -> vector<4x64x64xf32>
    "tpu.trace_stop"() : () -> ()
    %cst_17 = arith.constant dense<0xFF800000> : vector<4x64xf32>
    %54 = vector.multi_reduction <maximumf>, %53, %cst_17 [2] : vector<4x64x64xf32> to vector<4x64xf32>
    %55 = vector.shape_cast %54 : vector<4x64xf32> to vector<4x64x1xf32>
    %56 = vector.broadcast %55 : vector<4x64x1xf32> to vector<4x64x64xf32>
    %57 = arith.subf %53, %56 : vector<4x64x64xf32>
    %58 = math.exp %57 : vector<4x64x64xf32>
    %cst_18 = arith.constant dense<0.000000e+00> : vector<4x64xf32>
    %59 = vector.multi_reduction <add>, %58, %cst_18 [2] : vector<4x64x64xf32> to vector<4x64xf32>
    %60 = vector.shape_cast %59 : vector<4x64xf32> to vector<4x64x1xf32>
    %61 = tpu.reciprocal %60 : vector<4x64x1xf32> -> vector<4x64x1xf32>
    %62 = vector.broadcast %61 : vector<4x64x1xf32> to vector<4x64x64xf32>
    %63 = arith.mulf %58, %62 : vector<4x64x64xf32>
    %64 = arith.truncf %63 : vector<4x64x64xf32> to vector<4x64x64xbf16>
    "tpu.trace_start"() <{level = 10 : i32, message = "bqk,bkd->bqd"}> : () -> ()
    %cst_19 = arith.constant dense<0.000000e+00> : vector<4x64x128xf32>
    %65 = tpu.matmul %64, %52, %cst_19 {dimension_numbers = #tpu.dot_dimension_numbers<[2], [1], [1], [2], [0, 0, 0, 1, 1, 2], [0], [0]>} : vector<4x64x64xbf16>, vector<4x64x128xbf16>, vector<4x64x128xf32> -> vector<4x64x128xf32>
    "tpu.trace_stop"() : () -> ()
    %66 = arith.addf %40, %65 : vector<4x64x128xf32>
    %c8_i32_20 = arith.constant 8 : i32
    %67 = vector.broadcast %c8_i32_20 : i32 to vector<1x1x128xi32>
    %68 = arith.cmpi sge, %39, %67 : vector<1x1x128xi32>
    %c16_i32 = arith.constant 16 : i32
    %69 = vector.broadcast %c16_i32 : i32 to vector<1x1x128xi32>
    %70 = arith.cmpi slt, %39, %69 : vector<1x1x128xi32>
    %71 = arith.andi %68, %70 : vector<1x1x128xi1>
    %72 = arith.extui %71 : vector<1x1x128xi1> to vector<1x1x128xi32>
    %73 = arith.sitofp %72 : vector<1x1x128xi32> to vector<1x1x128xf32>
    %74 = arith.truncf %73 : vector<1x1x128xf32> to vector<1x1x128xbf16>
    %75 = vector.broadcast %74 : vector<1x1x128xbf16> to vector<4x64x128xbf16>
    %76 = arith.mulf %35, %75 : vector<4x64x128xbf16>
    %77 = vector.broadcast %74 : vector<1x1x128xbf16> to vector<4x64x128xbf16>
    %78 = arith.mulf %38, %77 : vector<4x64x128xbf16>
    "tpu.trace_start"() <{level = 10 : i32, message = "bqd,bkd->bqk"}> : () -> ()
    %cst_21 = arith.constant dense<0.000000e+00> : vector<4x64x64xf32>
    %79 = tpu.matmul %32, %76, %cst_21 {dimension_numbers = #tpu.dot_dimension_numbers<[2], [2], [1], [1], [0, 0, 0, 1, 1, 1], [0], [0]>} : vector<4x64x128xbf16>, vector<4x64x128xbf16>, vector<4x64x64xf32> -> vector<4x64x64xf32>
    "tpu.trace_stop"() : () -> ()
    %cst_22 = arith.constant dense<0xFF800000> : vector<4x64xf32>
    %80 = vector.multi_reduction <maximumf>, %79, %cst_22 [2] : vector<4x64x64xf32> to vector<4x64xf32>
    %81 = vector.shape_cast %80 : vector<4x64xf32> to vector<4x64x1xf32>
    %82 = vector.broadcast %81 : vector<4x64x1xf32> to vector<4x64x64xf32>
    %83 = arith.subf %79, %82 : vector<4x64x64xf32>
    %84 = math.exp %83 : vector<4x64x64xf32>
    %cst_23 = arith.constant dense<0.000000e+00> : vector<4x64xf32>
    %85 = vector.multi_reduction <add>, %84, %cst_23 [2] : vector<4x64x64xf32> to vector<4x64xf32>
    %86 = vector.shape_cast %85 : vector<4x64xf32> to vector<4x64x1xf32>
    %87 = tpu.reciprocal %86 : vector<4x64x1xf32> -> vector<4x64x1xf32>
    %88 = vector.broadcast %87 : vector<4x64x1xf32> to vector<4x64x64xf32>
    %89 = arith.mulf %84, %88 : vector<4x64x64xf32>
    %90 = arith.truncf %89 : vector<4x64x64xf32> to vector<4x64x64xbf16>
    "tpu.trace_start"() <{level = 10 : i32, message = "bqk,bkd->bqd"}> : () -> ()
    %cst_24 = arith.constant dense<0.000000e+00> : vector<4x64x128xf32>
    %91 = tpu.matmul %90, %78, %cst_24 {dimension_numbers = #tpu.dot_dimension_numbers<[2], [1], [1], [2], [0, 0, 0, 1, 1, 2], [0], [0]>} : vector<4x64x64xbf16>, vector<4x64x128xbf16>, vector<4x64x128xf32> -> vector<4x64x128xf32>
    "tpu.trace_stop"() : () -> ()
    %92 = arith.addf %66, %91 : vector<4x64x128xf32>
    %c16_i32_25 = arith.constant 16 : i32
    %93 = vector.broadcast %c16_i32_25 : i32 to vector<1x1x128xi32>
    %94 = arith.cmpi sge, %39, %93 : vector<1x1x128xi32>
    %c24_i32 = arith.constant 24 : i32
    %95 = vector.broadcast %c24_i32 : i32 to vector<1x1x128xi32>
    %96 = arith.cmpi slt, %39, %95 : vector<1x1x128xi32>
    %97 = arith.andi %94, %96 : vector<1x1x128xi1>
    %98 = arith.extui %97 : vector<1x1x128xi1> to vector<1x1x128xi32>
    %99 = arith.sitofp %98 : vector<1x1x128xi32> to vector<1x1x128xf32>
    %100 = arith.truncf %99 : vector<1x1x128xf32> to vector<1x1x128xbf16>
    %101 = vector.broadcast %100 : vector<1x1x128xbf16> to vector<4x64x128xbf16>
    %102 = arith.mulf %35, %101 : vector<4x64x128xbf16>
    %103 = vector.broadcast %100 : vector<1x1x128xbf16> to vector<4x64x128xbf16>
    %104 = arith.mulf %38, %103 : vector<4x64x128xbf16>
    "tpu.trace_start"() <{level = 10 : i32, message = "bqd,bkd->bqk"}> : () -> ()
    %cst_26 = arith.constant dense<0.000000e+00> : vector<4x64x64xf32>
    %105 = tpu.matmul %32, %102, %cst_26 {dimension_numbers = #tpu.dot_dimension_numbers<[2], [2], [1], [1], [0, 0, 0, 1, 1, 1], [0], [0]>} : vector<4x64x128xbf16>, vector<4x64x128xbf16>, vector<4x64x64xf32> -> vector<4x64x64xf32>
    "tpu.trace_stop"() : () -> ()
    %cst_27 = arith.constant dense<0xFF800000> : vector<4x64xf32>
    %106 = vector.multi_reduction <maximumf>, %105, %cst_27 [2] : vector<4x64x64xf32> to vector<4x64xf32>
    %107 = vector.shape_cast %106 : vector<4x64xf32> to vector<4x64x1xf32>
    %108 = vector.broadcast %107 : vector<4x64x1xf32> to vector<4x64x64xf32>
    %109 = arith.subf %105, %108 : vector<4x64x64xf32>
    %110 = math.exp %109 : vector<4x64x64xf32>
    %cst_28 = arith.constant dense<0.000000e+00> : vector<4x64xf32>
    %111 = vector.multi_reduction <add>, %110, %cst_28 [2] : vector<4x64x64xf32> to vector<4x64xf32>
    %112 = vector.shape_cast %111 : vector<4x64xf32> to vector<4x64x1xf32>
    %113 = tpu.reciprocal %112 : vector<4x64x1xf32> -> vector<4x64x1xf32>
    %114 = vector.broadcast %113 : vector<4x64x1xf32> to vector<4x64x64xf32>
    %115 = arith.mulf %110, %114 : vector<4x64x64xf32>
    %116 = arith.truncf %115 : vector<4x64x64xf32> to vector<4x64x64xbf16>
    "tpu.trace_start"() <{level = 10 : i32, message = "bqk,bkd->bqd"}> : () -> ()
    %cst_29 = arith.constant dense<0.000000e+00> : vector<4x64x128xf32>
    %117 = tpu.matmul %116, %104, %cst_29 {dimension_numbers = #tpu.dot_dimension_numbers<[2], [1], [1], [2], [0, 0, 0, 1, 1, 2], [0], [0]>} : vector<4x64x64xbf16>, vector<4x64x128xbf16>, vector<4x64x128xf32> -> vector<4x64x128xf32>
    "tpu.trace_stop"() : () -> ()
    %118 = arith.addf %92, %117 : vector<4x64x128xf32>
    %c24_i32_30 = arith.constant 24 : i32
    %119 = vector.broadcast %c24_i32_30 : i32 to vector<1x1x128xi32>
    %120 = arith.cmpi sge, %39, %119 : vector<1x1x128xi32>
    %c32_i32 = arith.constant 32 : i32
    %121 = vector.broadcast %c32_i32 : i32 to vector<1x1x128xi32>
    %122 = arith.cmpi slt, %39, %121 : vector<1x1x128xi32>
    %123 = arith.andi %120, %122 : vector<1x1x128xi1>
    %124 = arith.extui %123 : vector<1x1x128xi1> to vector<1x1x128xi32>
    %125 = arith.sitofp %124 : vector<1x1x128xi32> to vector<1x1x128xf32>
    %126 = arith.truncf %125 : vector<1x1x128xf32> to vector<1x1x128xbf16>
    %127 = vector.broadcast %126 : vector<1x1x128xbf16> to vector<4x64x128xbf16>
    %128 = arith.mulf %35, %127 : vector<4x64x128xbf16>
    %129 = vector.broadcast %126 : vector<1x1x128xbf16> to vector<4x64x128xbf16>
    %130 = arith.mulf %38, %129 : vector<4x64x128xbf16>
    "tpu.trace_start"() <{level = 10 : i32, message = "bqd,bkd->bqk"}> : () -> ()
    %cst_31 = arith.constant dense<0.000000e+00> : vector<4x64x64xf32>
    %131 = tpu.matmul %32, %128, %cst_31 {dimension_numbers = #tpu.dot_dimension_numbers<[2], [2], [1], [1], [0, 0, 0, 1, 1, 1], [0], [0]>} : vector<4x64x128xbf16>, vector<4x64x128xbf16>, vector<4x64x64xf32> -> vector<4x64x64xf32>
    "tpu.trace_stop"() : () -> ()
    %cst_32 = arith.constant dense<0xFF800000> : vector<4x64xf32>
    %132 = vector.multi_reduction <maximumf>, %131, %cst_32 [2] : vector<4x64x64xf32> to vector<4x64xf32>
    %133 = vector.shape_cast %132 : vector<4x64xf32> to vector<4x64x1xf32>
    %134 = vector.broadcast %133 : vector<4x64x1xf32> to vector<4x64x64xf32>
    %135 = arith.subf %131, %134 : vector<4x64x64xf32>
    %136 = math.exp %135 : vector<4x64x64xf32>
    %cst_33 = arith.constant dense<0.000000e+00> : vector<4x64xf32>
    %137 = vector.multi_reduction <add>, %136, %cst_33 [2] : vector<4x64x64xf32> to vector<4x64xf32>
    %138 = vector.shape_cast %137 : vector<4x64xf32> to vector<4x64x1xf32>
    %139 = tpu.reciprocal %138 : vector<4x64x1xf32> -> vector<4x64x1xf32>
    %140 = vector.broadcast %139 : vector<4x64x1xf32> to vector<4x64x64xf32>
    %141 = arith.mulf %136, %140 : vector<4x64x64xf32>
    %142 = arith.truncf %141 : vector<4x64x64xf32> to vector<4x64x64xbf16>
    "tpu.trace_start"() <{level = 10 : i32, message = "bqk,bkd->bqd"}> : () -> ()
    %cst_34 = arith.constant dense<0.000000e+00> : vector<4x64x128xf32>
    %143 = tpu.matmul %142, %130, %cst_34 {dimension_numbers = #tpu.dot_dimension_numbers<[2], [1], [1], [2], [0, 0, 0, 1, 1, 2], [0], [0]>} : vector<4x64x64xbf16>, vector<4x64x128xbf16>, vector<4x64x128xf32> -> vector<4x64x128xf32>
    "tpu.trace_stop"() : () -> ()
    %144 = arith.addf %118, %143 : vector<4x64x128xf32>
    %145 = vector.shape_cast %144 : vector<4x64x128xf32> to vector<256x128xf32>
    %146 = arith.truncf %145 : vector<256x128xf32> to vector<256x128xbf16>
    %c0_35 = arith.constant 0 : index
    %c0_36 = arith.constant 0 : index
    %147 = vector.load %arg6[%c0_35, %c0_36] : memref<128x64xbf16, #tpu.memory_space<vmem>>, vector<128x64xbf16>
    %cst_37 = arith.constant dense<0.000000e+00> : vector<256x64xf32>
    %148 = tpu.matmul %146, %147, %cst_37 {dimension_numbers = #tpu.dot_dimension_numbers<[1], [0], [0], [1], [0, 0, 1, 1], [], []>} : vector<256x128xbf16>, vector<128x64xbf16>, vector<256x64xf32> -> vector<256x64xf32>
    %c0_38 = arith.constant 0 : index
    %c0_39 = arith.constant 0 : index
    %149 = vector.load %arg7[%c0_38, %c0_39] : memref<1x64xf32, #tpu.memory_space<vmem>>, vector<1x64xf32>
    %150 = vector.broadcast %149 : vector<1x64xf32> to vector<256x64xf32>
    %151 = arith.addf %148, %150 : vector<256x64xf32>
    %152 = arith.addf %1, %151 : vector<256x64xf32>
    %cst_40 = arith.constant dense<0.000000e+00> : vector<256xf32>
    %153 = vector.multi_reduction <add>, %152, %cst_40 [1] : vector<256x64xf32> to vector<256xf32>
    %154 = vector.shape_cast %153 : vector<256xf32> to vector<256x1xf32>
    %cst_41 = arith.constant 6.400000e+01 : f32
    %155 = vector.broadcast %cst_41 : f32 to vector<256x1xf32>
    %156 = arith.divf %154, %155 : vector<256x1xf32>
    %157 = vector.broadcast %156 : vector<256x1xf32> to vector<256x64xf32>
    %158 = arith.subf %152, %157 : vector<256x64xf32>
    %159 = arith.mulf %158, %158 : vector<256x64xf32>
    %cst_42 = arith.constant dense<0.000000e+00> : vector<256xf32>
    %160 = vector.multi_reduction <add>, %159, %cst_42 [1] : vector<256x64xf32> to vector<256xf32>
    %161 = vector.shape_cast %160 : vector<256xf32> to vector<256x1xf32>
    %cst_43 = arith.constant 6.400000e+01 : f32
    %162 = vector.broadcast %cst_43 : f32 to vector<256x1xf32>
    %163 = arith.divf %161, %162 : vector<256x1xf32>
    %cst_44 = arith.constant 9.99999974E-6 : f32
    %164 = vector.broadcast %cst_44 : f32 to vector<256x1xf32>
    %165 = arith.addf %163, %164 : vector<256x1xf32>
    %166 = math.rsqrt %165 : vector<256x1xf32>
    %167 = vector.broadcast %166 : vector<256x1xf32> to vector<256x64xf32>
    %168 = arith.mulf %158, %167 : vector<256x64xf32>
    %c0_45 = arith.constant 0 : index
    %c0_46 = arith.constant 0 : index
    %169 = vector.load %arg8[%c0_45, %c0_46] : memref<1x64xf32, #tpu.memory_space<vmem>>, vector<1x64xf32>
    %170 = vector.broadcast %169 : vector<1x64xf32> to vector<256x64xf32>
    %171 = arith.mulf %168, %170 : vector<256x64xf32>
    %c0_47 = arith.constant 0 : index
    %c0_48 = arith.constant 0 : index
    %172 = vector.load %arg9[%c0_47, %c0_48] : memref<1x64xf32, #tpu.memory_space<vmem>>, vector<1x64xf32>
    %173 = vector.broadcast %172 : vector<1x64xf32> to vector<256x64xf32>
    %174 = arith.addf %171, %173 : vector<256x64xf32>
    %175 = arith.truncf %174 : vector<256x64xf32> to vector<256x64xbf16>
    %c0_49 = arith.constant 0 : index
    %c0_50 = arith.constant 0 : index
    %176 = vector.load %arg10[%c0_49, %c0_50] : memref<64x128xbf16, #tpu.memory_space<vmem>>, vector<64x128xbf16>
    %cst_51 = arith.constant dense<0.000000e+00> : vector<256x128xf32>
    %177 = tpu.matmul %175, %176, %cst_51 {dimension_numbers = #tpu.dot_dimension_numbers<[1], [0], [0], [1], [0, 0, 1, 1], [], []>} : vector<256x64xbf16>, vector<64x128xbf16>, vector<256x128xf32> -> vector<256x128xf32>
    %c0_52 = arith.constant 0 : index
    %c0_53 = arith.constant 0 : index
    %178 = vector.load %arg11[%c0_52, %c0_53] : memref<1x128xf32, #tpu.memory_space<vmem>>, vector<1x128xf32>
    %179 = vector.broadcast %178 : vector<1x128xf32> to vector<256x128xf32>
    %180 = arith.addf %177, %179 : vector<256x128xf32>
    %181 = arith.negf %180 : vector<256x128xf32>
    %182 = math.exp %181 : vector<256x128xf32>
    %cst_54 = arith.constant 1.000000e+00 : f32
    %183 = vector.broadcast %cst_54 : f32 to vector<256x128xf32>
    %184 = arith.addf %183, %182 : vector<256x128xf32>
    %185 = arith.divf %183, %184 : vector<256x128xf32>
    %186 = arith.mulf %180, %185 : vector<256x128xf32>
    %187 = arith.truncf %186 : vector<256x128xf32> to vector<256x128xbf16>
    %c0_55 = arith.constant 0 : index
    %c0_56 = arith.constant 0 : index
    %188 = vector.load %arg12[%c0_55, %c0_56] : memref<128x64xbf16, #tpu.memory_space<vmem>>, vector<128x64xbf16>
    %cst_57 = arith.constant dense<0.000000e+00> : vector<256x64xf32>
    %189 = tpu.matmul %187, %188, %cst_57 {dimension_numbers = #tpu.dot_dimension_numbers<[1], [0], [0], [1], [0, 0, 1, 1], [], []>} : vector<256x128xbf16>, vector<128x64xbf16>, vector<256x64xf32> -> vector<256x64xf32>
    %c0_58 = arith.constant 0 : index
    %c0_59 = arith.constant 0 : index
    %190 = vector.load %arg13[%c0_58, %c0_59] : memref<1x64xf32, #tpu.memory_space<vmem>>, vector<1x64xf32>
    %191 = vector.broadcast %190 : vector<1x64xf32> to vector<256x64xf32>
    %192 = arith.addf %189, %191 : vector<256x64xf32>
    %193 = arith.addf %152, %192 : vector<256x64xf32>
    %194 = vector.shape_cast %193 : vector<256x64xf32> to vector<4x64x64xf32>
    %c0_60 = arith.constant 0 : index
    %c0_61 = arith.constant 0 : index
    %c0_62 = arith.constant 0 : index
    %195 = vector.load %arg14[%c0_60, %c0_61, %c0_62] : memref<4x64x64xf32, #tpu.memory_space<vmem>>, vector<4x64x64xf32>
    tpu.vector_store %arg14[%c0_60, %c0_61, %c0_62], %194 {strides = array<i32>} : memref<4x64x64xf32, #tpu.memory_space<vmem>>, vector<4x64x64xf32>,
    return
  }
  func.func @transform_0(%arg0: i32) -> (i32, i32, i32) {
    %c0_i32 = arith.constant 0 : i32
    %c0_i32_0 = arith.constant 0 : i32
    %c0_i32_1 = arith.constant 0 : i32
    return %arg0, %c0_i32, %c0_i32_0 : i32, i32, i32
  }
  func.func @transform_1(%arg0: i32) -> (i32, i32) {
    %c0_i32 = arith.constant 0 : i32
    %c0_i32_0 = arith.constant 0 : i32
    %c0_i32_1 = arith.constant 0 : i32
    return %c0_i32, %c0_i32_0 : i32, i32
  }
  func.func @transform_2(%arg0: i32) -> (i32, i32) {
    %c0_i32 = arith.constant 0 : i32
    %c0_i32_0 = arith.constant 0 : i32
    %c0_i32_1 = arith.constant 0 : i32
    return %c0_i32, %c0_i32_0 : i32, i32
  }
  func.func @transform_3(%arg0: i32) -> (i32, i32) {
    %c0_i32 = arith.constant 0 : i32
    %c0_i32_0 = arith.constant 0 : i32
    %c0_i32_1 = arith.constant 0 : i32
    return %c0_i32, %c0_i32_0 : i32, i32
  }
  func.func @transform_4(%arg0: i32) -> (i32, i32) {
    %c0_i32 = arith.constant 0 : i32
    %c0_i32_0 = arith.constant 0 : i32
    %c0_i32_1 = arith.constant 0 : i32
    return %c0_i32, %c0_i32_0 : i32, i32
  }
  func.func @transform_5(%arg0: i32) -> (i32, i32) {
    %c0_i32 = arith.constant 0 : i32
    %c0_i32_0 = arith.constant 0 : i32
    %c0_i32_1 = arith.constant 0 : i32
    return %c0_i32, %c0_i32_0 : i32, i32
  }
  func.func @transform_6(%arg0: i32) -> (i32, i32) {
    %c0_i32 = arith.constant 0 : i32
    %c0_i32_0 = arith.constant 0 : i32
    %c0_i32_1 = arith.constant 0 : i32
    return %c0_i32, %c0_i32_0 : i32, i32
  }
  func.func @transform_7(%arg0: i32) -> (i32, i32) {
    %c0_i32 = arith.constant 0 : i32
    %c0_i32_0 = arith.constant 0 : i32
    %c0_i32_1 = arith.constant 0 : i32
    return %c0_i32, %c0_i32_0 : i32, i32
  }
  func.func @transform_8(%arg0: i32) -> (i32, i32) {
    %c0_i32 = arith.constant 0 : i32
    %c0_i32_0 = arith.constant 0 : i32
    %c0_i32_1 = arith.constant 0 : i32
    return %c0_i32, %c0_i32_0 : i32, i32
  }
  func.func @transform_9(%arg0: i32) -> (i32, i32) {
    %c0_i32 = arith.constant 0 : i32
    %c0_i32_0 = arith.constant 0 : i32
    %c0_i32_1 = arith.constant 0 : i32
    return %c0_i32, %c0_i32_0 : i32, i32
  }
  func.func @transform_10(%arg0: i32) -> (i32, i32) {
    %c0_i32 = arith.constant 0 : i32
    %c0_i32_0 = arith.constant 0 : i32
    %c0_i32_1 = arith.constant 0 : i32
    return %c0_i32, %c0_i32_0 : i32, i32
  }
  func.func @transform_11(%arg0: i32) -> (i32, i32) {
    %c0_i32 = arith.constant 0 : i32
    %c0_i32_0 = arith.constant 0 : i32
    %c0_i32_1 = arith.constant 0 : i32
    return %c0_i32, %c0_i32_0 : i32, i32
  }
  func.func @transform_12(%arg0: i32) -> (i32, i32) {
    %c0_i32 = arith.constant 0 : i32
    %c0_i32_0 = arith.constant 0 : i32
    %c0_i32_1 = arith.constant 0 : i32
    return %c0_i32, %c0_i32_0 : i32, i32
  }
  func.func @transform_13(%arg0: i32) -> (i32, i32, i32) {
    %c0_i32 = arith.constant 0 : i32
    %c0_i32_0 = arith.constant 0 : i32
    %c0_i32_1 = arith.constant 0 : i32
    return %arg0, %c0_i32, %c0_i32_0 : i32, i32, i32
  }
}

</mosaic_0001>

<llo_original>
// kernel: fwd.1
$region0: #{fwd.1}
  #allocation0 [shape = 'u32[]', space=smem, size = 0x4, offset = 0x4, fixed_abs, tag = 'smem constant byte address 0x4 - core index']
  #allocation1 [shape = 'u32[144,128]{1,0:T(1,128)}', space=vmem, size = 0x12000, scoped, tag = 'internal scratch']
  %s0 = inlined_call_operand.hbm [shape: f32[8,64,64], index: 0, kind: input, shape index: {}]
  %s1 = inlined_call_operand.hbm [shape: f32[1,64], index: 1, kind: input, shape index: {}]
  %s2 = inlined_call_operand.hbm [shape: f32[1,64], index: 2, kind: input, shape index: {}]
  %s3 = inlined_call_operand.hbm [shape: bf16[64,384], index: 3, kind: input, shape index: {}]
  %s4 = inlined_call_operand.vmem [shape: f32[1,384], index: 4, kind: input, shape index: {}]
  %s5 = inlined_call_operand.hbm [shape: bf16[128,64], index: 5, kind: input, shape index: {}]
  %s6 = inlined_call_operand.vmem [shape: f32[1,64], index: 6, kind: input, shape index: {}]
  %s7 = inlined_call_operand.vmem [shape: f32[1,64], index: 7, kind: input, shape index: {}]
  %s8 = inlined_call_operand.vmem [shape: f32[1,64], index: 8, kind: input, shape index: {}]
  %s9 = inlined_call_operand.hbm [shape: bf16[64,128], index: 9, kind: input, shape index: {}]
  %s10 = inlined_call_operand.vmem [shape: f32[1,128], index: 10, kind: input, shape index: {}]
  %s11 = inlined_call_operand.hbm [shape: bf16[128,64], index: 11, kind: input, shape index: {}]
  %s12 = inlined_call_operand.vmem [shape: f32[1,64], index: 12, kind: input, shape index: {}]
  %s13 = inlined_call_operand.hbm [shape: f32[8,64,64], index: 13, kind: output, shape index: {}]
  %s14 = sld [smem:[#allocation0]]
  $region113: #{fwd.1} parent=0
    _
  %s16 = ssub.s32 1, %s14
  %s17 = scalar_select 0, %s16, %s14
  $region1: #{fwd.1} parent=0
    #allocation2 [shape = 'u8[262144]{0}', space=vmem, size = 0x40000, scoped, tag = 'input window, operand 0']
    #allocation3 [shape = 's32[2]{0}', space=sflag, size = 0x8, scoped, tag = 'scoped memory for fwd.1']
    #allocation4 [shape = 's32[2]{0}', space=sflag, size = 0x8, scoped, tag = 'scoped memory for fwd.1']
    #allocation5 [shape = 'u8[512]{0}', space=vmem, size = 0x400, scoped, tag = 'input window, operand 1, single buffered']
    #allocation6 [shape = 's32[1]{0}', space=sflag, size = 0x4, scoped, tag = 'scoped memory for fwd.1']
    #allocation7 [shape = 'u8[512]{0}', space=vmem, size = 0x400, scoped, tag = 'input window, operand 2, single buffered']
    #allocation8 [shape = 'u8[49152]{0}', space=vmem, size = 0xc000, scoped, tag = 'input window, operand 3, single buffered']
    #allocation9 [shape = 's32[1]{0}', space=sflag, size = 0x4, scoped, tag = 'scoped memory for fwd.1']
    #allocation10 [shape = 'u8[32768]{0}', space=vmem, size = 0x8000, scoped, tag = 'input window, operand 5, single buffered']
    #allocation11 [shape = 'u8[16384]{0}', space=vmem, size = 0x4000, scoped, tag = 'input window, operand 9, single buffered']
    #allocation12 [shape = 's32[1]{0}', space=sflag, size = 0x4, scoped, tag = 'scoped memory for fwd.1']
    #allocation13 [shape = 'u8[32768]{0}', space=vmem, size = 0x8000, scoped, tag = 'input window, operand 11, single buffered']
    #allocation14 [shape = 'u8[262144]{0}', space=vmem, size = 0x40000, scoped, tag = 'output window, operand 0']
    %18 = vsyncpa [#allocation3], 0
    %s19 = scalar_lea.sflag [#allocation3], 1
    %20 = vsyncpa %s19, 0
    %21 = vsyncpa [#allocation6], 0
    %22 = vsyncpa [#allocation9], 0
    %23 = vsyncpa [#allocation12], 0
    %24 = vsyncpa [#allocation4], 0
    %s25 = scalar_lea.sflag [#allocation4], 1
    %26 = vsyncpa %s25, 0
    loop: start=0, step=1, limit=4
    $region2: #{fwd.1} parent=1 // loop_pre_header
      _
    $region3: #{fwd.1} parent=1 // loop_header
      %s28 = sphi 0, %s32
      %p29 = scmp.ge.s32.totalorder %s28, 4
      %s38 = sphi 0, %s40
      %s41 = sphi 0, %s38
      %s42 = sphi 0, %s41
      %s58 = sphi 0, %s42
      %s62 = sphi 0, %s62
      %s64 = sphi 0, %s62
      %s65 = sphi 0, %s64
      %s79 = sphi 0, %s65
      %s83 = sphi 0, %s83
      %s85 = sphi 0, %s83
      %s86 = sphi 0, %s85
      %s100 = sphi 0, %s86
      %s104 = sphi 0, %s104
      %s106 = sphi 0, %s104
      %s107 = sphi 0, %s106
      %s121 = sphi 0, %s107
      %s125 = sphi 0, %s125
      %s127 = sphi 0, %s125
      %s128 = sphi 0, %s127
      %s142 = sphi 0, %s128
      %s146 = sphi 0, %s146
      %s148 = sphi 0, %s146
      %s149 = sphi 0, %s148
      %s163 = sphi 0, %s149
      %s167 = sphi 0, %s167
      %s169 = sphi 0, %s167
      %s170 = sphi 0, %s169
      %s184 = sphi 0, %s170
      %s188 = sphi 0, %s188
      %s190 = sphi 0, %s188
      %s191 = sphi 0, %s190
      %s205 = sphi 0, %s191
      %s209 = sphi 0, %s209
      %s211 = sphi 0, %s209
      %s212 = sphi 0, %s211
      %s226 = sphi 0, %s212
      %s230 = sphi 0, %s230
      %s232 = sphi 0, %s230
      %s233 = sphi 0, %s232
      %s247 = sphi 0, %s233
      %s251 = sphi 0, %s251
      %s253 = sphi 0, %s251
      %s254 = sphi 0, %s253
      %s268 = sphi 0, %s254
      %s272 = sphi 0, %s272
      %s274 = sphi 0, %s272
      %s275 = sphi 0, %s274
      %s289 = sphi 0, %s275
      %s293 = sphi 0, %s293
      %s295 = sphi 0, %s293
      %s296 = sphi 0, %s295
      %s310 = sphi 0, %s296
      %s316 = sphi 0, %s318
      %s319 = sphi 0, %s316
      %s320 = sphi 0, %s319
      %s336 = sphi 0, %s320
    $region4: #{fwd.1} parent=1 // loop_header_branch
      %31 = sbr.rel (%p29) target = $region8
    $region5: #{fwd.1} parent=1 // loop_body
      %s33 = ssub.s32 %s28, 1
      %s34 = ssub.s32 %s28, 2
      %s35 = sadd.s32 %s28, 1
      %s36 = ssub.s32 %s28, %s35
      %p37 = scmp.eq.s32.totalorder %s36, 0
      %s39 = sadd.s32 %s38, 1
      %s40 = scalar_select %p37, %s38, %s39
      %p43 = pneg %p37
      %p44 = scmp.eq.s32.totalorder %s28, 1
      %p45 = por %p43, %p44
      %p46 = scmp.ne.s32.totalorder %s38, %s41
      %p47 = scmp.eq.s32.totalorder %s28, 0
      %p48 = por %p46, %p47
      %p49 = scmp.ne.s32.totalorder %s38, %s41
      %p50 = scmp.eq.s32.totalorder %s33, 1
      %p51 = por %p49, %p50
      %p52 = scmp.ne.s32.totalorder %s41, %s42
      %p53 = scmp.eq.s32.totalorder %s33, 0
      %p54 = por %p52, %p53
      %p55 = scmp.ne.s32.totalorder %s41, %s42
      %p56 = scmp.eq.s32.totalorder %s34, 1
      %p57 = por %p55, %p56
      %p59 = scmp.ne.s32.totalorder %s42, %s58
      %p60 = scmp.eq.s32.totalorder %s34, 0
      %p61 = por %p59, %p60
      %s63 = sadd.s32 %s62, 1
      %p66 = scmp.eq.s32.totalorder %s28, 1
      %p67 = scmp.ne.s32.totalorder %s62, %s64
      %p68 = scmp.eq.s32.totalorder %s28, 0
      %p69 = por %p67, %p68
      %p70 = scmp.ne.s32.totalorder %s62, %s64
      %p71 = scmp.eq.s32.totalorder %s33, 1
      %p72 = por %p70, %p71
      %p73 = scmp.ne.s32.totalorder %s64, %s65
      %p74 = scmp.eq.s32.totalorder %s33, 0
      %p75 = por %p73, %p74
      %p76 = scmp.ne.s32.totalorder %s64, %s65
      %p77 = scmp.eq.s32.totalorder %s34, 1
      %p78 = por %p76, %p77
      %p80 = scmp.ne.s32.totalorder %s65, %s79
      %p81 = scmp.eq.s32.totalorder %s34, 0
      %p82 = por %p80, %p81
      %s84 = sadd.s32 %s83, 1
      %p87 = scmp.eq.s32.totalorder %s28, 1
      %p88 = scmp.ne.s32.totalorder %s83, %s85
      %p89 = scmp.eq.s32.totalorder %s28, 0
      %p90 = por %p88, %p89
      %p91 = scmp.ne.s32.totalorder %s83, %s85
      %p92 = scmp.eq.s32.totalorder %s33, 1
      %p93 = por %p91, %p92
      %p94 = scmp.ne.s32.totalorder %s85, %s86
      %p95 = scmp.eq.s32.totalorder %s33, 0
      %p96 = por %p94, %p95
      %p97 = scmp.ne.s32.totalorder %s85, %s86
      %p98 = scmp.eq.s32.totalorder %s34, 1
      %p99 = por %p97, %p98
      %p101 = scmp.ne.s32.totalorder %s86, %s100
      %p102 = scmp.eq.s32.totalorder %s34, 0
      %p103 = por %p101, %p102
      %s105 = sadd.s32 %s104, 1
      %p108 = scmp.eq.s32.totalorder %s28, 1
      %p109 = scmp.ne.s32.totalorder %s104, %s106
      %p110 = scmp.eq.s32.totalorder %s28, 0
      %p111 = por %p109, %p110
      %p112 = scmp.ne.s32.totalorder %s104, %s106
      %p113 = scmp.eq.s32.totalorder %s33, 1
      %p114 = por %p112, %p113
      %p115 = scmp.ne.s32.totalorder %s106, %s107
      %p116 = scmp.eq.s32.totalorder %s33, 0
      %p117 = por %p115, %p116
      %p118 = scmp.ne.s32.totalorder %s106, %s107
      %p119 = scmp.eq.s32.totalorder %s34, 1
      %p120 = por %p118, %p119
      %p122 = scmp.ne.s32.totalorder %s107, %s121
      %p123 = scmp.eq.s32.totalorder %s34, 0
      %p124 = por %p122, %p123
      %s126 = sadd.s32 %s125, 1
      %p129 = scmp.eq.s32.totalorder %s28, 1
      %p130 = scmp.ne.s32.totalorder %s125, %s127
      %p131 = scmp.eq.s32.totalorder %s28, 0
      %p132 = por %p130, %p131
      %p133 = scmp.ne.s32.totalorder %s125, %s127
      %p134 = scmp.eq.s32.totalorder %s33, 1
      %p135 = por %p133, %p134
      %p136 = scmp.ne.s32.totalorder %s127, %s128
      %p137 = scmp.eq.s32.totalorder %s33, 0
      %p138 = por %p136, %p137
      %p139 = scmp.ne.s32.totalorder %s127, %s128
      %p140 = scmp.eq.s32.totalorder %s34, 1
      %p141 = por %p139, %p140
      %p143 = scmp.ne.s32.totalorder %s128, %s142
      %p144 = scmp.eq.s32.totalorder %s34, 0
      %p145 = por %p143, %p144
      %s147 = sadd.s32 %s146, 1
      %p150 = scmp.eq.s32.totalorder %s28, 1
      %p151 = scmp.ne.s32.totalorder %s146, %s148
      %p152 = scmp.eq.s32.totalorder %s28, 0
      %p153 = por %p151, %p152
      %p154 = scmp.ne.s32.totalorder %s146, %s148
      %p155 = scmp.eq.s32.totalorder %s33, 1
      %p156 = por %p154, %p155
      %p157 = scmp.ne.s32.totalorder %s148, %s149
      %p158 = scmp.eq.s32.totalorder %s33, 0
      %p159 = por %p157, %p158
      %p160 = scmp.ne.s32.totalorder %s148, %s149
      %p161 = scmp.eq.s32.totalorder %s34, 1
      %p162 = por %p160, %p161
      %p164 = scmp.ne.s32.totalorder %s149, %s163
      %p165 = scmp.eq.s32.totalorder %s34, 0
      %p166 = por %p164, %p165
      %s168 = sadd.s32 %s167, 1
      %p171 = scmp.eq.s32.totalorder %s28, 1
      %p172 = scmp.ne.s32.totalorder %s167, %s169
      %p173 = scmp.eq.s32.totalorder %s28, 0
      %p174 = por %p172, %p173
      %p175 = scmp.ne.s32.totalorder %s167, %s169
      %p176 = scmp.eq.s32.totalorder %s33, 1
      %p177 = por %p175, %p176
      %p178 = scmp.ne.s32.totalorder %s169, %s170
      %p179 = scmp.eq.s32.totalorder %s33, 0
      %p180 = por %p178, %p179
      %p181 = scmp.ne.s32.totalorder %s169, %s170
      %p182 = scmp.eq.s32.totalorder %s34, 1
      %p183 = por %p181, %p182
      %p185 = scmp.ne.s32.totalorder %s170, %s184
      %p186 = scmp.eq.s32.totalorder %s34, 0
      %p187 = por %p185, %p186
      %s189 = sadd.s32 %s188, 1
      %p192 = scmp.eq.s32.totalorder %s28, 1
      %p193 = scmp.ne.s32.totalorder %s188, %s190
      %p194 = scmp.eq.s32.totalorder %s28, 0
      %p195 = por %p193, %p194
      %p196 = scmp.ne.s32.totalorder %s188, %s190
      %p197 = scmp.eq.s32.totalorder %s33, 1
      %p198 = por %p196, %p197
      %p199 = scmp.ne.s32.totalorder %s190, %s191
      %p200 = scmp.eq.s32.totalorder %s33, 0
      %p201 = por %p199, %p200
      %p202 = scmp.ne.s32.totalorder %s190, %s191
      %p203 = scmp.eq.s32.totalorder %s34, 1
      %p204 = por %p202, %p203
      %p206 = scmp.ne.s32.totalorder %s191, %s205
      %p207 = scmp.eq.s32.totalorder %s34, 0
      %p208 = por %p206, %p207
      %s210 = sadd.s32 %s209, 1
      %p213 = scmp.eq.s32.totalorder %s28, 1
      %p214 = scmp.ne.s32.totalorder %s209, %s211
      %p215 = scmp.eq.s32.totalorder %s28, 0
      %p216 = por %p214, %p215
      %p217 = scmp.ne.s32.totalorder %s209, %s211
      %p218 = scmp.eq.s32.totalorder %s33, 1
      %p219 = por %p217, %p218
      %p220 = scmp.ne.s32.totalorder %s211, %s212
      %p221 = scmp.eq.s32.totalorder %s33, 0
      %p222 = por %p220, %p221
      %p223 = scmp.ne.s32.totalorder %s211, %s212
      %p224 = scmp.eq.s32.totalorder %s34, 1
      %p225 = por %p223, %p224
      %p227 = scmp.ne.s32.totalorder %s212, %s226
      %p228 = scmp.eq.s32.totalorder %s34, 0
      %p229 = por %p227, %p228
      %s231 = sadd.s32 %s230, 1
      %p234 = scmp.eq.s32.totalorder %s28, 1
      %p235 = scmp.ne.s32.totalorder %s230, %s232
      %p236 = scmp.eq.s32.totalorder %s28, 0
      %p237 = por %p235, %p236
      %p238 = scmp.ne.s32.totalorder %s230, %s232
      %p239 = scmp.eq.s32.totalorder %s33, 1
      %p240 = por %p238, %p239
      %p241 = scmp.ne.s32.totalorder %s232, %s233
      %p242 = scmp.eq.s32.totalorder %s33, 0
      %p243 = por %p241, %p242
      %p244 = scmp.ne.s32.totalorder %s232, %s233
      %p245 = scmp.eq.s32.totalorder %s34, 1
      %p246 = por %p244, %p245
      %p248 = scmp.ne.s32.totalorder %s233, %s247
      %p249 = scmp.eq.s32.totalorder %s34, 0
      %p250 = por %p248, %p249
      %s252 = sadd.s32 %s251, 1
      %p255 = scmp.eq.s32.totalorder %s28, 1
      %p256 = scmp.ne.s32.totalorder %s251, %s253
      %p257 = scmp.eq.s32.totalorder %s28, 0
      %p258 = por %p256, %p257
      %p259 = scmp.ne.s32.totalorder %s251, %s253
      %p260 = scmp.eq.s32.totalorder %s33, 1
      %p261 = por %p259, %p260
      %p262 = scmp.ne.s32.totalorder %s253, %s254
      %p263 = scmp.eq.s32.totalorder %s33, 0
      %p264 = por %p262, %p263
      %p265 = scmp.ne.s32.totalorder %s253, %s254
      %p266 = scmp.eq.s32.totalorder %s34, 1
      %p267 = por %p265, %p266
      %p269 = scmp.ne.s32.totalorder %s254, %s268
      %p270 = scmp.eq.s32.totalorder %s34, 0
      %p271 = por %p269, %p270
      %s273 = sadd.s32 %s272, 1
      %p276 = scmp.eq.s32.totalorder %s28, 1
      %p277 = scmp.ne.s32.totalorder %s272, %s274
      %p278 = scmp.eq.s32.totalorder %s28, 0
      %p279 = por %p277, %p278
      %p280 = scmp.ne.s32.totalorder %s272, %s274
      %p281 = scmp.eq.s32.totalorder %s33, 1
      %p282 = por %p280, %p281
      %p283 = scmp.ne.s32.totalorder %s274, %s275
      %p284 = scmp.eq.s32.totalorder %s33, 0
      %p285 = por %p283, %p284
      %p286 = scmp.ne.s32.totalorder %s274, %s275
      %p287 = scmp.eq.s32.totalorder %s34, 1
      %p288 = por %p286, %p287
      %p290 = scmp.ne.s32.totalorder %s275, %s289
      %p291 = scmp.eq.s32.totalorder %s34, 0
      %p292 = por %p290, %p291
      %s294 = sadd.s32 %s293, 1
      %p297 = scmp.eq.s32.totalorder %s28, 1
      %p298 = scmp.ne.s32.totalorder %s293, %s295
      %p299 = scmp.eq.s32.totalorder %s28, 0
      %p300 = por %p298, %p299
      %p301 = scmp.ne.s32.totalorder %s293, %s295
      %p302 = scmp.eq.s32.totalorder %s33, 1
      %p303 = por %p301, %p302
      %p304 = scmp.ne.s32.totalorder %s295, %s296
      %p305 = scmp.eq.s32.totalorder %s33, 0
      %p306 = por %p304, %p305
      %p307 = scmp.ne.s32.totalorder %s295, %s296
      %p308 = scmp.eq.s32.totalorder %s34, 1
      %p309 = por %p307, %p308
      %p311 = scmp.ne.s32.totalorder %s296, %s310
      %p312 = scmp.eq.s32.totalorder %s34, 0
      %p313 = por %p311, %p312
      %s314 = ssub.s32 %s28, %s35
      %p315 = scmp.eq.s32.totalorder %s314, 0
      %s317 = sadd.s32 %s316, 1
      %s318 = scalar_select %p315, %s316, %s317
      %p321 = pneg %p315
      %p322 = scmp.eq.s32.totalorder %s28, 1
      %p323 = por %p321, %p322
      %p324 = scmp.ne.s32.totalorder %s316, %s319
      %p325 = scmp.eq.s32.totalorder %s28, 0
      %p326 = por %p324, %p325
      %p327 = scmp.ne.s32.totalorder %s316, %s319
      %p328 = scmp.eq.s32.totalorder %s33, 1
      %p329 = por %p327, %p328
      %p330 = scmp.ne.s32.totalorder %s319, %s320
      %p331 = scmp.eq.s32.totalorder %s33, 0
      %p332 = por %p330, %p331
      %p333 = scmp.ne.s32.totalorder %s319, %s320
      %p334 = scmp.eq.s32.totalorder %s34, 1
      %p335 = por %p333, %p334
      %p337 = scmp.ne.s32.totalorder %s320, %s336
      %p338 = scmp.eq.s32.totalorder %s34, 0
      %p339 = por %p337, %p338
      %p340 = scmp.le.s32.totalorder 1, %s28
      %p341 = scmp.lt.s32.totalorder %s28, 3
      %p342 = pnand %p340, %p341
      %p343 = pneg %p342
      // Predicated region
      $region9: #{fwd.1} parent=5 // pred_check
        _
      $region10: #{fwd.1} parent=5 // pred_check_branch
        %345 = sbr.rel (%p342) target = $region12
      $region11: #{fwd.1} parent=5 // pred_region
        %s346 = ssub.s32 %s28, 1
        // Predicated region
        $region13: #{fwd.1} parent=11 // pred_check
          %p347 = pneg %p75
        $region14: #{fwd.1} parent=11 // pred_check_branch
          %349 = sbr.rel (%p347) target = $region16
        $region15: #{fwd.1} parent=11 // pred_region
          %s351 = ssub.s32 16, 16
          %352 = vsyncadd [#allocation6], %s351
          %s354 = sshll.u32 [#allocation5], 4
          %s355 = int_to_ptr.vmem [resolvable:$true] %s354
          %357 = dma.hbm_to_vmem [thread:$0]  %s1, 16, %s355, [#allocation6]
        $region16: #{fwd.1} parent=11 // pred_fallthru
          _
        // Predicated region
        $region17: #{fwd.1} parent=11 // pred_check
          %p358 = pneg %p96
        $region18: #{fwd.1} parent=11 // pred_check_branch
          %360 = sbr.rel (%p358) target = $region20
        $region19: #{fwd.1} parent=11 // pred_region
          %s362 = ssub.s32 16, 16
          %363 = vsyncadd [#allocation6], %s362
          %s365 = sshll.u32 [#allocation7], 4
          %s366 = int_to_ptr.vmem [resolvable:$true] %s365
          %368 = dma.hbm_to_vmem [thread:$0]  %s2, 16, %s366, [#allocation6]
        $region20: #{fwd.1} parent=11 // pred_fallthru
          _
        // Predicated region
        $region21: #{fwd.1} parent=11 // pred_check
          %p369 = pneg %p117
        $region22: #{fwd.1} parent=11 // pred_check_branch
          %371 = sbr.rel (%p369) target = $region24
        $region23: #{fwd.1} parent=11 // pred_region
          %s373 = ssub.s32 1536, 1536
          %374 = vsyncadd [#allocation9], %s373
          %s375 = sshll.u32 [#allocation8], 4
          %s376 = int_to_ptr.vmem [resolvable:$true] %s375
          %381 = dma.hbm_to_vmem [thread:$0]  %s3, 1536, %s376, [#allocation9], 192, 192, 12
        $region24: #{fwd.1} parent=11 // pred_fallthru
          _
        // Predicated region
        $region25: #{fwd.1} parent=11 // pred_check
          %p382 = pneg %p138
        $region26: #{fwd.1} parent=11 // pred_check_branch
          %384 = sbr.rel (%p382) target = $region28
        $region27: #{fwd.1} parent=11 // pred_region
          _
        $region28: #{fwd.1} parent=11 // pred_fallthru
          _
        // Predicated region
        $region29: #{fwd.1} parent=11 // pred_check
          %p385 = pneg %p159
        $region30: #{fwd.1} parent=11 // pred_check_branch
          %387 = sbr.rel (%p385) target = $region32
        $region31: #{fwd.1} parent=11 // pred_region
          %s389 = ssub.s32 1024, 1024
          %390 = vsyncadd [#allocation9], %s389
          %s391 = sshll.u32 [#allocation10], 4
          %s392 = int_to_ptr.vmem [resolvable:$true] %s391
          %397 = dma.hbm_to_vmem [thread:$0]  %s5, 1024, %s392, [#allocation9], 64, 64, 4
        $region32: #{fwd.1} parent=11 // pred_fallthru
          _
        // Predicated region
        $region33: #{fwd.1} parent=11 // pred_check
          %p398 = pneg %p180
        $region34: #{fwd.1} parent=11 // pred_check_branch
          %400 = sbr.rel (%p398) target = $region36
        $region35: #{fwd.1} parent=11 // pred_region
          _
        $region36: #{fwd.1} parent=11 // pred_fallthru
          _
        // Predicated region
        $region37: #{fwd.1} parent=11 // pred_check
          %p401 = pneg %p201
        $region38: #{fwd.1} parent=11 // pred_check_branch
          %403 = sbr.rel (%p401) target = $region40
        $region39: #{fwd.1} parent=11 // pred_region
          _
        $region40: #{fwd.1} parent=11 // pred_fallthru
          _
        // Predicated region
        $region41: #{fwd.1} parent=11 // pred_check
          %p404 = pneg %p222
        $region42: #{fwd.1} parent=11 // pred_check_branch
          %406 = sbr.rel (%p404) target = $region44
        $region43: #{fwd.1} parent=11 // pred_region
          _
        $region44: #{fwd.1} parent=11 // pred_fallthru
          _
        // Predicated region
        $region45: #{fwd.1} parent=11 // pred_check
          %p407 = pneg %p243
        $region46: #{fwd.1} parent=11 // pred_check_branch
          %409 = sbr.rel (%p407) target = $region48
        $region47: #{fwd.1} parent=11 // pred_region
          %s411 = ssub.s32 512, 512
          %412 = vsyncadd [#allocation12], %s411
          %s413 = sshll.u32 [#allocation11], 4
          %s414 = int_to_ptr.vmem [resolvable:$true] %s413
          %419 = dma.hbm_to_vmem [thread:$0]  %s9, 512, %s414, [#allocation12], 64, 64, 4
        $region48: #{fwd.1} parent=11 // pred_fallthru
          _
        // Predicated region
        $region49: #{fwd.1} parent=11 // pred_check
          %p420 = pneg %p264
        $region50: #{fwd.1} parent=11 // pred_check_branch
          %422 = sbr.rel (%p420) target = $region52
        $region51: #{fwd.1} parent=11 // pred_region
          _
        $region52: #{fwd.1} parent=11 // pred_fallthru
          _
        // Predicated region
        $region53: #{fwd.1} parent=11 // pred_check
          %p423 = pneg %p285
        $region54: #{fwd.1} parent=11 // pred_check_branch
          %425 = sbr.rel (%p423) target = $region56
        $region55: #{fwd.1} parent=11 // pred_region
          %s427 = ssub.s32 1024, 1024
          %428 = vsyncadd [#allocation12], %s427
          %s429 = sshll.u32 [#allocation13], 4
          %s430 = int_to_ptr.vmem [resolvable:$true] %s429
          %435 = dma.hbm_to_vmem [thread:$0]  %s11, 1024, %s430, [#allocation12], 64, 64, 4
        $region56: #{fwd.1} parent=11 // pred_fallthru
          _
        // Predicated region
        $region57: #{fwd.1} parent=11 // pred_check
          %p436 = pneg %p306
        $region58: #{fwd.1} parent=11 // pred_check_branch
          %438 = sbr.rel (%p436) target = $region60
        $region59: #{fwd.1} parent=11 // pred_region
          _
        $region60: #{fwd.1} parent=11 // pred_fallthru
          _
      $region12: #{fwd.1} parent=5 // pred_fallthru
        _
      %p439 = scmp.lt.s32.totalorder %s28, 2
      // Predicated region
      $region61: #{fwd.1} parent=5 // pred_check
        %p440 = pneg %p439
      $region62: #{fwd.1} parent=5 // pred_check_branch
        %442 = sbr.rel (%p440) target = $region64
      $region63: #{fwd.1} parent=5 // pred_region
        // Predicated region
        $region65: #{fwd.1} parent=63 // pred_check
          %p443 = pneg %p48
        $region66: #{fwd.1} parent=63 // pred_check_branch
          %445 = sbr.rel (%p443) target = $region68
        $region67: #{fwd.1} parent=63 // pred_region
          %s446 = sand.u32 %s38, 1
          %s447 = scalar_lea.sflag [#allocation3], %s446
          %s448 = sand.u32 %s38, 1
          %s449 = smul.addr %s448, 256
          %s450 = scalar_lea.vmem [#allocation2], %s449
          %s451 = smul.u32 4, %s28
          %s453 = ssub.s32 4096, 4096
          %454 = vsyncadd %s447, %s453
          %s455 = smul.addr %s451, 8
          %s456 = smul.addr %s455, 128
          %s457 = scalar_lea.hbm %s0, %s456
          %s458 = sshll.u32 %s450, 4
          %s459 = int_to_ptr.vmem [resolvable:$true] %s458
          %464 = dma.hbm_to_vmem [thread:$0]  %s457, 4096, %s459, %s447, 128, 128, 8
        $region68: #{fwd.1} parent=63 // pred_fallthru
          _
      $region64: #{fwd.1} parent=5 // pred_fallthru
        _
      %p465 = scmp.le.s32.totalorder 1, %s28
      %p466 = scmp.lt.s32.totalorder %s28, 3
      %p467 = pnand %p465, %p466
      %p468 = pneg %p467
      // Predicated region
      $region69: #{fwd.1} parent=5 // pred_check
        _
      $region70: #{fwd.1} parent=5 // pred_check_branch
        %470 = sbr.rel (%p467) target = $region72
      $region71: #{fwd.1} parent=5 // pred_region
        %s471 = ssub.s32 %s28, 1
        %s472 = sand.u32 %s41, 1
        %s473 = scalar_lea.sflag [#allocation3], %s472
        %s474 = sand.u32 %s41, 1
        %s475 = smul.addr %s474, 256
        %s476 = scalar_lea.vmem [#allocation2], %s475
        // Predicated region
        $region73: #{fwd.1} parent=71 // pred_check
          %p477 = pneg %p54
        $region74: #{fwd.1} parent=71 // pred_check_branch
          %479 = sbr.rel (%p477) target = $region76
        $region75: #{fwd.1} parent=71 // pred_region
          %480 = dma.done %s473, 4096
        $region76: #{fwd.1} parent=71 // pred_fallthru
          _
        // Predicated region
        $region77: #{fwd.1} parent=71 // pred_check
          %p481 = pneg %p75
        $region78: #{fwd.1} parent=71 // pred_check_branch
          %483 = sbr.rel (%p481) target = $region80
        $region79: #{fwd.1} parent=71 // pred_region
          %484 = dma.done [#allocation6], 16
        $region80: #{fwd.1} parent=71 // pred_fallthru
          _
        // Predicated region
        $region81: #{fwd.1} parent=71 // pred_check
          %p485 = pneg %p96
        $region82: #{fwd.1} parent=71 // pred_check_branch
          %487 = sbr.rel (%p485) target = $region84
        $region83: #{fwd.1} parent=71 // pred_region
          %488 = dma.done [#allocation6], 16
        $region84: #{fwd.1} parent=71 // pred_fallthru
          _
        // Predicated region
        $region85: #{fwd.1} parent=71 // pred_check
          %p489 = pneg %p117
        $region86: #{fwd.1} parent=71 // pred_check_branch
          %491 = sbr.rel (%p489) target = $region88
        $region87: #{fwd.1} parent=71 // pred_region
          %492 = dma.done [#allocation9], 1536
        $region88: #{fwd.1} parent=71 // pred_fallthru
          _
        // Predicated region
        $region89: #{fwd.1} parent=71 // pred_check
          %p493 = pneg %p159
        $region90: #{fwd.1} parent=71 // pred_check_branch
          %495 = sbr.rel (%p493) target = $region92
        $region91: #{fwd.1} parent=71 // pred_region
          %496 = dma.done [#allocation9], 1024
        $region92: #{fwd.1} parent=71 // pred_fallthru
          _
        // Predicated region
        $region93: #{fwd.1} parent=71 // pred_check
          %p497 = pneg %p243
        $region94: #{fwd.1} parent=71 // pred_check_branch
          %499 = sbr.rel (%p497) target = $region96
        $region95: #{fwd.1} parent=71 // pred_region
          %500 = dma.done [#allocation12], 512
        $region96: #{fwd.1} parent=71 // pred_fallthru
          _
        // Predicated region
        $region97: #{fwd.1} parent=71 // pred_check
          %p501 = pneg %p285
        $region98: #{fwd.1} parent=71 // pred_check_branch
          %503 = sbr.rel (%p501) target = $region100
        $region99: #{fwd.1} parent=71 // pred_region
          %504 = dma.done [#allocation12], 1024
        $region100: #{fwd.1} parent=71 // pred_fallthru
          _
        %s505 = sand.u32 %s41, 1
        %s506 = scalar_lea.sflag [#allocation3], %s505
        %s507 = sand.u32 %s41, 1
        %s508 = smul.addr %s507, 256
        %s509 = scalar_lea.vmem [#allocation2], %s508
        %p510 = pneg %p54
        %p511 = pneg %p51
        %p512 = pneg %p75
        %p513 = pneg %p72
        %p514 = pneg %p96
        %p515 = pneg %p93
        %p516 = pneg %p117
        %p517 = pneg %p114
        %p518 = pneg %p138
        %p519 = pneg %p135
        %p520 = pneg %p159
        %p521 = pneg %p156
        %p522 = pneg %p180
        %p523 = pneg %p177
        %p524 = pneg %p201
        %p525 = pneg %p198
        %p526 = pneg %p222
        %p527 = pneg %p219
        %p528 = pneg %p243
        %p529 = pneg %p240
        %p530 = pneg %p264
        %p531 = pneg %p261
        %p532 = pneg %p285
        %p533 = pneg %p282
        %p534 = pneg %p306
        %p535 = pneg %p303
        %p536 = pneg %p332
        %p537 = pneg %p329
        %s538 = sand.u32 %s319, 1
        %s539 = scalar_lea.sflag [#allocation4], %s538
        %s540 = sand.u32 %s319, 1
        %s541 = smul.addr %s540, 256
        %s542 = scalar_lea.vmem [#allocation14], %s541
        %s543 = smul.u32 4, %s33
        %s544 = smul.u32 4, %s33
        %v546 = vld [vmem:[%s476] sm:$0xff]
        %v547 = vld [vmem:[%s476 + $0x8] sm:$0xff]
        %v548 = vld [vmem:[%s476 + $0x10] sm:$0xff]
        %v549 = vld [vmem:[%s476 + $0x18] sm:$0xff]
        %v550 = vld [vmem:[%s476 + $0x20] sm:$0xff]
        %v551 = vld [vmem:[%s476 + $0x28] sm:$0xff]
        %v552 = vld [vmem:[%s476 + $0x30] sm:$0xff]
        %v553 = vld [vmem:[%s476 + $0x38] sm:$0xff]
        %v554 = vld [vmem:[%s476 + $0x40] sm:$0xff]
        %v555 = vld [vmem:[%s476 + $0x48] sm:$0xff]
        %v556 = vld [vmem:[%s476 + $0x50] sm:$0xff]
        %v557 = vld [vmem:[%s476 + $0x58] sm:$0xff]
        %v558 = vld [vmem:[%s476 + $0x60] sm:$0xff]
        %v559 = vld [vmem:[%s476 + $0x68] sm:$0xff]
        %v560 = vld [vmem:[%s476 + $0x70] sm:$0xff]
        %v561 = vld [vmem:[%s476 + $0x78] sm:$0xff]
        %v562 = vld [vmem:[%s476 + $0x80] sm:$0xff]
        %v563 = vld [vmem:[%s476 + $0x88] sm:$0xff]
        %v564 = vld [vmem:[%s476 + $0x90] sm:$0xff]
        %v565 = vld [vmem:[%s476 + $0x98] sm:$0xff]
        %v566 = vld [vmem:[%s476 + $0xa0] sm:$0xff]
        %v567 = vld [vmem:[%s476 + $0xa8] sm:$0xff]
        %v568 = vld [vmem:[%s476 + $0xb0] sm:$0xff]
        %v569 = vld [vmem:[%s476 + $0xb8] sm:$0xff]
        %v570 = vld [vmem:[%s476 + $0xc0] sm:$0xff]
        %v571 = vld [vmem:[%s476 + $0xc8] sm:$0xff]
        %v572 = vld [vmem:[%s476 + $0xd0] sm:$0xff]
        %v573 = vld [vmem:[%s476 + $0xd8] sm:$0xff]
        %v574 = vld [vmem:[%s476 + $0xe0] sm:$0xff]
        %v575 = vld [vmem:[%s476 + $0xe8] sm:$0xff]
        %v576 = vld [vmem:[%s476 + $0xf0] sm:$0xff]
        %v577 = vld [vmem:[%s476 + $0xf8] sm:$0xff]
        %vm578 = vcmask 523264
        %v579 = vsel %vm578, %v546, 0.0
        %580 = vadd.xlane.f32.xlu0 %v579
        %v581 = vpop.xlane.xlu0 %580
        %v582 = vsel %vm578, %v547, 0.0
        %583 = vadd.xlane.f32.xlu0 %v582
        %v584 = vpop.xlane.xlu0 %583
        %v585 = vsel %vm578, %v548, 0.0
        %586 = vadd.xlane.f32.xlu0 %v585
        %v587 = vpop.xlane.xlu0 %586
        %v588 = vsel %vm578, %v549, 0.0
        %589 = vadd.xlane.f32.xlu0 %v588
        %v590 = vpop.xlane.xlu0 %589
        %v591 = vsel %vm578, %v550, 0.0
        %592 = vadd.xlane.f32.xlu0 %v591
        %v593 = vpop.xlane.xlu0 %592
        %v594 = vsel %vm578, %v551, 0.0
        %595 = vadd.xlane.f32.xlu0 %v594
        %v596 = vpop.xlane.xlu0 %595
        %v597 = vsel %vm578, %v552, 0.0
        %598 = vadd.xlane.f32.xlu0 %v597
        %v599 = vpop.xlane.xlu0 %598
        %v600 = vsel %vm578, %v553, 0.0
        %601 = vadd.xlane.f32.xlu0 %v600
        %v602 = vpop.xlane.xlu0 %601
        %v603 = vsel %vm578, %v554, 0.0
        %604 = vadd.xlane.f32.xlu0 %v603
        %v605 = vpop.xlane.xlu0 %604
        %v606 = vsel %vm578, %v555, 0.0
        %607 = vadd.xlane.f32.xlu0 %v606
        %v608 = vpop.xlane.xlu0 %607
        %v609 = vsel %vm578, %v556, 0.0
        %610 = vadd.xlane.f32.xlu0 %v609
        %v611 = vpop.xlane.xlu0 %610
        %v612 = vsel %vm578, %v557, 0.0
        %613 = vadd.xlane.f32.xlu0 %v612
        %v614 = vpop.xlane.xlu0 %613
        %v615 = vsel %vm578, %v558, 0.0
        %616 = vadd.xlane.f32.xlu0 %v615
        %v617 = vpop.xlane.xlu0 %616
        %v618 = vsel %vm578, %v559, 0.0
        %619 = vadd.xlane.f32.xlu0 %v618
        %v620 = vpop.xlane.xlu0 %619
        %v621 = vsel %vm578, %v560, 0.0
        %622 = vadd.xlane.f32.xlu0 %v621
        %v623 = vpop.xlane.xlu0 %622
        %v624 = vsel %vm578, %v561, 0.0
        %625 = vadd.xlane.f32.xlu0 %v624
        %v626 = vpop.xlane.xlu0 %625
        %v627 = vsel %vm578, %v562, 0.0
        %628 = vadd.xlane.f32.xlu0 %v627
        %v629 = vpop.xlane.xlu0 %628
        %v630 = vsel %vm578, %v563, 0.0
        %631 = vadd.xlane.f32.xlu0 %v630
        %v632 = vpop.xlane.xlu0 %631
        %v633 = vsel %vm578, %v564, 0.0
        %634 = vadd.xlane.f32.xlu0 %v633
        %v635 = vpop.xlane.xlu0 %634
        %v636 = vsel %vm578, %v565, 0.0
        %637 = vadd.xlane.f32.xlu0 %v636
        %v638 = vpop.xlane.xlu0 %637
        %v639 = vsel %vm578, %v566, 0.0
        %640 = vadd.xlane.f32.xlu0 %v639
        %v641 = vpop.xlane.xlu0 %640
        %v642 = vsel %vm578, %v567, 0.0
        %643 = vadd.xlane.f32.xlu0 %v642
        %v644 = vpop.xlane.xlu0 %643
        %v645 = vsel %vm578, %v568, 0.0
        %646 = vadd.xlane.f32.xlu0 %v645
        %v647 = vpop.xlane.xlu0 %646
        %v648 = vsel %vm578, %v569, 0.0
        %649 = vadd.xlane.f32.xlu0 %v648
        %v650 = vpop.xlane.xlu0 %649
        %v651 = vsel %vm578, %v570, 0.0
        %652 = vadd.xlane.f32.xlu0 %v651
        %v653 = vpop.xlane.xlu0 %652
        %v654 = vsel %vm578, %v571, 0.0
        %655 = vadd.xlane.f32.xlu0 %v654
        %v656 = vpop.xlane.xlu0 %655
        %v657 = vsel %vm578, %v572, 0.0
        %658 = vadd.xlane.f32.xlu0 %v657
        %v659 = vpop.xlane.xlu0 %658
        %v660 = vsel %vm578, %v573, 0.0
        %661 = vadd.xlane.f32.xlu0 %v660
        %v662 = vpop.xlane.xlu0 %661
        %v663 = vsel %vm578, %v574, 0.0
        %664 = vadd.xlane.f32.xlu0 %v663
        %v665 = vpop.xlane.xlu0 %664
        %v666 = vsel %vm578, %v575, 0.0
        %667 = vadd.xlane.f32.xlu0 %v666
        %v668 = vpop.xlane.xlu0 %667
        %v669 = vsel %vm578, %v576, 0.0
        %670 = vadd.xlane.f32.xlu0 %v669
        %v671 = vpop.xlane.xlu0 %670
        %v672 = vsel %vm578, %v577, 0.0
        %673 = vadd.xlane.f32.xlu0 %v672
        %v674 = vpop.xlane.xlu0 %673
        %v675 = vrcp.pop 64.0
        %v676 = vmul.f32 %v581, %v675
        %v677 = vmul.f32 %v584, %v675
        %v678 = vmul.f32 %v587, %v675
        %v679 = vmul.f32 %v590, %v675
        %v680 = vmul.f32 %v593, %v675
        %v681 = vmul.f32 %v596, %v675
        %v682 = vmul.f32 %v599, %v675
        %v683 = vmul.f32 %v602, %v675
        %v684 = vmul.f32 %v605, %v675
        %v685 = vmul.f32 %v608, %v675
        %v686 = vmul.f32 %v611, %v675
        %v687 = vmul.f32 %v614, %v675
        %v688 = vmul.f32 %v617, %v675
        %v689 = vmul.f32 %v620, %v675
        %v690 = vmul.f32 %v623, %v675
        %v691 = vmul.f32 %v626, %v675
        %v692 = vmul.f32 %v629, %v675
        %v693 = vmul.f32 %v632, %v675
        %v694 = vmul.f32 %v635, %v675
        %v695 = vmul.f32 %v638, %v675
        %v696 = vmul.f32 %v641, %v675
        %v697 = vmul.f32 %v644, %v675
        %v698 = vmul.f32 %v647, %v675
        %v699 = vmul.f32 %v650, %v675
        %v700 = vmul.f32 %v653, %v675
        %v701 = vmul.f32 %v656, %v675
        %v702 = vmul.f32 %v659, %v675
        %v703 = vmul.f32 %v662, %v675
        %v704 = vmul.f32 %v665, %v675
        %v705 = vmul.f32 %v668, %v675
        %v706 = vmul.f32 %v671, %v675
        %v707 = vmul.f32 %v674, %v675
        %v708 = vsub.f32 %v546, %v676
        %v709 = vsub.f32 %v547, %v677
        %v710 = vsub.f32 %v548, %v678
        %v711 = vsub.f32 %v549, %v679
        %v712 = vsub.f32 %v550, %v680
        %v713 = vsub.f32 %v551, %v681
        %v714 = vsub.f32 %v552, %v682
        %v715 = vsub.f32 %v553, %v683
        %v716 = vsub.f32 %v554, %v684
        %v717 = vsub.f32 %v555, %v685
        %v718 = vsub.f32 %v556, %v686
        %v719 = vsub.f32 %v557, %v687
        %v720 = vsub.f32 %v558, %v688
        %v721 = vsub.f32 %v559, %v689
        %v722 = vsub.f32 %v560, %v690
        %v723 = vsub.f32 %v561, %v691
        %v724 = vsub.f32 %v562, %v692
        %v725 = vsub.f32 %v563, %v693
        %v726 = vsub.f32 %v564, %v694
        %v727 = vsub.f32 %v565, %v695
        %v728 = vsub.f32 %v566, %v696
        %v729 = vsub.f32 %v567, %v697
        %v730 = vsub.f32 %v568, %v698
        %v731 = vsub.f32 %v569, %v699
        %v732 = vsub.f32 %v570, %v700
        %v733 = vsub.f32 %v571, %v701
        %v734 = vsub.f32 %v572, %v702
        %v735 = vsub.f32 %v573, %v703
        %v736 = vsub.f32 %v574, %v704
        %v737 = vsub.f32 %v575, %v705
        %v738 = vsub.f32 %v576, %v706
        %v739 = vsub.f32 %v577, %v707
        %v740 = vmul.f32 %v708, %v708
        %v741 = vmul.f32 %v709, %v709
        %v742 = vmul.f32 %v710, %v710
        %v743 = vmul.f32 %v711, %v711
        %v744 = vmul.f32 %v712, %v712
        %v745 = vmul.f32 %v713, %v713
        %v746 = vmul.f32 %v714, %v714
        %v747 = vmul.f32 %v715, %v715
        %v748 = vmul.f32 %v716, %v716
        %v749 = vmul.f32 %v717, %v717
        %v750 = vmul.f32 %v718, %v718
        %v751 = vmul.f32 %v719, %v719
        %v752 = vmul.f32 %v720, %v720
        %v753 = vmul.f32 %v721, %v721
        %v754 = vmul.f32 %v722, %v722
        %v755 = vmul.f32 %v723, %v723
        %v756 = vmul.f32 %v724, %v724
        %v757 = vmul.f32 %v725, %v725
        %v758 = vmul.f32 %v726, %v726
        %v759 = vmul.f32 %v727, %v727
        %v760 = vmul.f32 %v728, %v728
        %v761 = vmul.f32 %v729, %v729
        %v762 = vmul.f32 %v730, %v730
        %v763 = vmul.f32 %v731, %v731
        %v764 = vmul.f32 %v732, %v732
        %v765 = vmul.f32 %v733, %v733
        %v766 = vmul.f32 %v734, %v734
        %v767 = vmul.f32 %v735, %v735
        %v768 = vmul.f32 %v736, %v736
        %v769 = vmul.f32 %v737, %v737
        %v770 = vmul.f32 %v738, %v738
        %v771 = vmul.f32 %v739, %v739
        %v772 = vsel %vm578, %v740, 0.0
        %773 = vadd.xlane.f32.xlu0 %v772
        %v774 = vpop.xlane.xlu0 %773
        %v775 = vsel %vm578, %v741, 0.0
        %776 = vadd.xlane.f32.xlu0 %v775
        %v777 = vpop.xlane.xlu0 %776
        %v778 = vsel %vm578, %v742, 0.0
        %779 = vadd.xlane.f32.xlu0 %v778
        %v780 = vpop.xlane.xlu0 %779
        %v781 = vsel %vm578, %v743, 0.0
        %782 = vadd.xlane.f32.xlu0 %v781
        %v783 = vpop.xlane.xlu0 %782
        %v784 = vsel %vm578, %v744, 0.0
        %785 = vadd.xlane.f32.xlu0 %v784
        %v786 = vpop.xlane.xlu0 %785
        %v787 = vsel %vm578, %v745, 0.0
        %788 = vadd.xlane.f32.xlu0 %v787
        %v789 = vpop.xlane.xlu0 %788
        %v790 = vsel %vm578, %v746, 0.0
        %791 = vadd.xlane.f32.xlu0 %v790
        %v792 = vpop.xlane.xlu0 %791
        %v793 = vsel %vm578, %v747, 0.0
        %794 = vadd.xlane.f32.xlu0 %v793
        %v795 = vpop.xlane.xlu0 %794
        %v796 = vsel %vm578, %v748, 0.0
        %797 = vadd.xlane.f32.xlu0 %v796
        %v798 = vpop.xlane.xlu0 %797
        %v799 = vsel %vm578, %v749, 0.0
        %800 = vadd.xlane.f32.xlu0 %v799
        %v801 = vpop.xlane.xlu0 %800
        %v802 = vsel %vm578, %v750, 0.0
        %803 = vadd.xlane.f32.xlu0 %v802
        %v804 = vpop.xlane.xlu0 %803
        %v805 = vsel %vm578, %v751, 0.0
        %806 = vadd.xlane.f32.xlu0 %v805
        %v807 = vpop.xlane.xlu0 %806
        %v808 = vsel %vm578, %v752, 0.0
        %809 = vadd.xlane.f32.xlu0 %v808
        %v810 = vpop.xlane.xlu0 %809
        %v811 = vsel %vm578, %v753, 0.0
        %812 = vadd.xlane.f32.xlu0 %v811
        %v813 = vpop.xlane.xlu0 %812
        %v814 = vsel %vm578, %v754, 0.0
        %815 = vadd.xlane.f32.xlu0 %v814
        %v816 = vpop.xlane.xlu0 %815
        %v817 = vsel %vm578, %v755, 0.0
        %818 = vadd.xlane.f32.xlu0 %v817
        %v819 = vpop.xlane.xlu0 %818
        %v820 = vsel %vm578, %v756, 0.0
        %821 = vadd.xlane.f32.xlu0 %v820
        %v822 = vpop.xlane.xlu0 %821
        %v823 = vsel %vm578, %v757, 0.0
        %824 = vadd.xlane.f32.xlu0 %v823
        %v825 = vpop.xlane.xlu0 %824
        %v826 = vsel %vm578, %v758, 0.0
        %827 = vadd.xlane.f32.xlu0 %v826
        %v828 = vpop.xlane.xlu0 %827
        %v829 = vsel %vm578, %v759, 0.0
        %830 = vadd.xlane.f32.xlu0 %v829
        %v831 = vpop.xlane.xlu0 %830
        %v832 = vsel %vm578, %v760, 0.0
        %833 = vadd.xlane.f32.xlu0 %v832
        %v834 = vpop.xlane.xlu0 %833
        %v835 = vsel %vm578, %v761, 0.0
        %836 = vadd.xlane.f32.xlu0 %v835
        %v837 = vpop.xlane.xlu0 %836
        %v838 = vsel %vm578, %v762, 0.0
        %839 = vadd.xlane.f32.xlu0 %v838
        %v840 = vpop.xlane.xlu0 %839
        %v841 = vsel %vm578, %v763, 0.0
        %842 = vadd.xlane.f32.xlu0 %v841
        %v843 = vpop.xlane.xlu0 %842
        %v844 = vsel %vm578, %v764, 0.0
        %845 = vadd.xlane.f32.xlu0 %v844
        %v846 = vpop.xlane.xlu0 %845
        %v847 = vsel %vm578, %v765, 0.0
        %848 = vadd.xlane.f32.xlu0 %v847
        %v849 = vpop.xlane.xlu0 %848
        %v850 = vsel %vm578, %v766, 0.0
        %851 = vadd.xlane.f32.xlu0 %v850
        %v852 = vpop.xlane.xlu0 %851
        %v853 = vsel %vm578, %v767, 0.0
        %854 = vadd.xlane.f32.xlu0 %v853
        %v855 = vpop.xlane.xlu0 %854
        %v856 = vsel %vm578, %v768, 0.0
        %857 = vadd.xlane.f32.xlu0 %v856
        %v858 = vpop.xlane.xlu0 %857
        %v859 = vsel %vm578, %v769, 0.0
        %860 = vadd.xlane.f32.xlu0 %v859
        %v861 = vpop.xlane.xlu0 %860
        %v862 = vsel %vm578, %v770, 0.0
        %863 = vadd.xlane.f32.xlu0 %v862
        %v864 = vpop.xlane.xlu0 %863
        %v865 = vsel %vm578, %v771, 0.0
        %866 = vadd.xlane.f32.xlu0 %v865
        %v867 = vpop.xlane.xlu0 %866
        %v868 = vmul.f32 %v774, %v675
        %v869 = vmul.f32 %v777, %v675
        %v870 = vmul.f32 %v780, %v675
        %v871 = vmul.f32 %v783, %v675
        %v872 = vmul.f32 %v786, %v675
        %v873 = vmul.f32 %v789, %v675
        %v874 = vmul.f32 %v792, %v675
        %v875 = vmul.f32 %v795, %v675
        %v876 = vmul.f32 %v798, %v675
        %v877 = vmul.f32 %v801, %v675
        %v878 = vmul.f32 %v804, %v675
        %v879 = vmul.f32 %v807, %v675
        %v880 = vmul.f32 %v810, %v675
        %v881 = vmul.f32 %v813, %v675
        %v882 = vmul.f32 %v816, %v675
        %v883 = vmul.f32 %v819, %v675
        %v884 = vmul.f32 %v822, %v675
        %v885 = vmul.f32 %v825, %v675
        %v886 = vmul.f32 %v828, %v675
        %v887 = vmul.f32 %v831, %v675
        %v888 = vmul.f32 %v834, %v675
        %v889 = vmul.f32 %v837, %v675
        %v890 = vmul.f32 %v840, %v675
        %v891 = vmul.f32 %v843, %v675
        %v892 = vmul.f32 %v846, %v675
        %v893 = vmul.f32 %v849, %v675
        %v894 = vmul.f32 %v852, %v675
        %v895 = vmul.f32 %v855, %v675
        %v896 = vmul.f32 %v858, %v675
        %v897 = vmul.f32 %v861, %v675
        %v898 = vmul.f32 %v864, %v675
        %v899 = vmul.f32 %v867, %v675
        %v900 = vadd.f32 %v868, 1e-05
        %v901 = vadd.f32 %v869, 1e-05
        %v902 = vadd.f32 %v870, 1e-05
        %v903 = vadd.f32 %v871, 1e-05
        %v904 = vadd.f32 %v872, 1e-05
        %v905 = vadd.f32 %v873, 1e-05
        %v906 = vadd.f32 %v874, 1e-05
        %v907 = vadd.f32 %v875, 1e-05
        %v908 = vadd.f32 %v876, 1e-05
        %v909 = vadd.f32 %v877, 1e-05
        %v910 = vadd.f32 %v878, 1e-05
        %v911 = vadd.f32 %v879, 1e-05
        %v912 = vadd.f32 %v880, 1e-05
        %v913 = vadd.f32 %v881, 1e-05
        %v914 = vadd.f32 %v882, 1e-05
        %v915 = vadd.f32 %v883, 1e-05
        %v916 = vadd.f32 %v884, 1e-05
        %v917 = vadd.f32 %v885, 1e-05
        %v918 = vadd.f32 %v886, 1e-05
        %v919 = vadd.f32 %v887, 1e-05
        %v920 = vadd.f32 %v888, 1e-05
        %v921 = vadd.f32 %v889, 1e-05
        %v922 = vadd.f32 %v890, 1e-05
        %v923 = vadd.f32 %v891, 1e-05
        %v924 = vadd.f32 %v892, 1e-05
        %v925 = vadd.f32 %v893, 1e-05
        %v926 = vadd.f32 %v894, 1e-05
        %v927 = vadd.f32 %v895, 1e-05
        %v928 = vadd.f32 %v896, 1e-05
        %v929 = vadd.f32 %v897, 1e-05
        %v930 = vadd.f32 %v898, 1e-05
        %v931 = vadd.f32 %v899, 1e-05
        %v932 = vrsqrt.pop %v900
        %v933 = vrsqrt.pop %v901
        %v934 = vrsqrt.pop %v902
        %v935 = vrsqrt.pop %v903
        %v936 = vrsqrt.pop %v904
        %v937 = vrsqrt.pop %v905
        %v938 = vrsqrt.pop %v906
        %v939 = vrsqrt.pop %v907
        %v940 = vrsqrt.pop %v908
        %v941 = vrsqrt.pop %v909
        %v942 = vrsqrt.pop %v910
        %v943 = vrsqrt.pop %v911
        %v944 = vrsqrt.pop %v912
        %v945 = vrsqrt.pop %v913
        %v946 = vrsqrt.pop %v914
        %v947 = vrsqrt.pop %v915
        %v948 = vrsqrt.pop %v916
        %v949 = vrsqrt.pop %v917
        %v950 = vrsqrt.pop %v918
        %v951 = vrsqrt.pop %v919
        %v952 = vrsqrt.pop %v920
        %v953 = vrsqrt.pop %v921
        %v954 = vrsqrt.pop %v922
        %v955 = vrsqrt.pop %v923
        %v956 = vrsqrt.pop %v924
        %v957 = vrsqrt.pop %v925
        %v958 = vrsqrt.pop %v926
        %v959 = vrsqrt.pop %v927
        %v960 = vrsqrt.pop %v928
        %v961 = vrsqrt.pop %v929
        %v962 = vrsqrt.pop %v930
        %v963 = vrsqrt.pop %v931
        %v964 = vmul.f32 %v708, %v932
        %v965 = vmul.f32 %v709, %v933
        %v966 = vmul.f32 %v710, %v934
        %v967 = vmul.f32 %v711, %v935
        %v968 = vmul.f32 %v712, %v936
        %v969 = vmul.f32 %v713, %v937
        %v970 = vmul.f32 %v714, %v938
        %v971 = vmul.f32 %v715, %v939
        %v972 = vmul.f32 %v716, %v940
        %v973 = vmul.f32 %v717, %v941
        %v974 = vmul.f32 %v718, %v942
        %v975 = vmul.f32 %v719, %v943
        %v976 = vmul.f32 %v720, %v944
        %v977 = vmul.f32 %v721, %v945
        %v978 = vmul.f32 %v722, %v946
        %v979 = vmul.f32 %v723, %v947
        %v980 = vmul.f32 %v724, %v948
        %v981 = vmul.f32 %v725, %v949
        %v982 = vmul.f32 %v726, %v950
        %v983 = vmul.f32 %v727, %v951
        %v984 = vmul.f32 %v728, %v952
        %v985 = vmul.f32 %v729, %v953
        %v986 = vmul.f32 %v730, %v954
        %v987 = vmul.f32 %v731, %v955
        %v988 = vmul.f32 %v732, %v956
        %v989 = vmul.f32 %v733, %v957
        %v990 = vmul.f32 %v734, %v958
        %v991 = vmul.f32 %v735, %v959
        %v992 = vmul.f32 %v736, %v960
        %v993 = vmul.f32 %v737, %v961
        %v994 = vmul.f32 %v738, %v962
        %v995 = vmul.f32 %v739, %v963
        %v996 = vld [vmem:[#allocation5] sm:$0x1]
        %v998 = vlaneseq
        %v999 = vshrl.u32 %v998, 7
        %v1000 = vsub.s32 0, %v999
        %v1001 = vrot.slane %v996, %v1000
        %v1003 = vmul.f32 %v964, %v1001
        %v1004 = vmul.f32 %v965, %v1001
        %v1005 = vmul.f32 %v966, %v1001
        %v1006 = vmul.f32 %v967, %v1001
        %v1007 = vmul.f32 %v968, %v1001
        %v1008 = vmul.f32 %v969, %v1001
        %v1009 = vmul.f32 %v970, %v1001
        %v1010 = vmul.f32 %v971, %v1001
        %v1011 = vmul.f32 %v972, %v1001
        %v1012 = vmul.f32 %v973, %v1001
        %v1013 = vmul.f32 %v974, %v1001
        %v1014 = vmul.f32 %v975, %v1001
        %v1015 = vmul.f32 %v976, %v1001
        %v1016 = vmul.f32 %v977, %v1001
        %v1017 = vmul.f32 %v978, %v1001
        %v1018 = vmul.f32 %v979, %v1001
        %v1019 = vmul.f32 %v980, %v1001
        %v1020 = vmul.f32 %v981, %v1001
        %v1021 = vmul.f32 %v982, %v1001
        %v1022 = vmul.f32 %v983, %v1001
        %v1023 = vmul.f32 %v984, %v1001
        %v1024 = vmul.f32 %v985, %v1001
        %v1025 = vmul.f32 %v986, %v1001
        %v1026 = vmul.f32 %v987, %v1001
        %v1027 = vmul.f32 %v988, %v1001
        %v1028 = vmul.f32 %v989, %v1001
        %v1029 = vmul.f32 %v990, %v1001
        %v1030 = vmul.f32 %v991, %v1001
        %v1031 = vmul.f32 %v992, %v1001
        %v1032 = vmul.f32 %v993, %v1001
        %v1033 = vmul.f32 %v994, %v1001
        %v1034 = vmul.f32 %v995, %v1001
        %v1035 = vld [vmem:[#allocation7] sm:$0x1]
        %v1037 = vlaneseq
        %v1038 = vshrl.u32 %v1037, 7
        %v1039 = vsub.s32 0, %v1038
        %v1040 = vrot.slane %v1035, %v1039
        %v1042 = vadd.f32 %v1003, %v1040
        %v1043 = vadd.f32 %v1004, %v1040
        %v1044 = vadd.f32 %v1005, %v1040
        %v1045 = vadd.f32 %v1006, %v1040
        %v1046 = vadd.f32 %v1007, %v1040
        %v1047 = vadd.f32 %v1008, %v1040
        %v1048 = vadd.f32 %v1009, %v1040
        %v1049 = vadd.f32 %v1010, %v1040
        %v1050 = vadd.f32 %v1011, %v1040
        %v1051 = vadd.f32 %v1012, %v1040
        %v1052 = vadd.f32 %v1013, %v1040
        %v1053 = vadd.f32 %v1014, %v1040
        %v1054 = vadd.f32 %v1015, %v1040
        %v1055 = vadd.f32 %v1016, %v1040
        %v1056 = vadd.f32 %v1017, %v1040
        %v1057 = vadd.f32 %v1018, %v1040
        %v1058 = vadd.f32 %v1019, %v1040
        %v1059 = vadd.f32 %v1020, %v1040
        %v1060 = vadd.f32 %v1021, %v1040
        %v1061 = vadd.f32 %v1022, %v1040
        %v1062 = vadd.f32 %v1023, %v1040
        %v1063 = vadd.f32 %v1024, %v1040
        %v1064 = vadd.f32 %v1025, %v1040
        %v1065 = vadd.f32 %v1026, %v1040
        %v1066 = vadd.f32 %v1027, %v1040
        %v1067 = vadd.f32 %v1028, %v1040
        %v1068 = vadd.f32 %v1029, %v1040
        %v1069 = vadd.f32 %v1030, %v1040
        %v1070 = vadd.f32 %v1031, %v1040
        %v1071 = vadd.f32 %v1032, %v1040
        %v1072 = vadd.f32 %v1033, %v1040
        %v1073 = vadd.f32 %v1034, %v1040
        %v1074 = vpack.c.bf16 %v1043, %v1042
        %v1075 = vpack.c.bf16 %v1045, %v1044
        %v1076 = vpack.c.bf16 %v1047, %v1046
        %v1077 = vpack.c.bf16 %v1049, %v1048
        %v1078 = vpack.c.bf16 %v1051, %v1050
        %v1079 = vpack.c.bf16 %v1053, %v1052
        %v1080 = vpack.c.bf16 %v1055, %v1054
        %v1081 = vpack.c.bf16 %v1057, %v1056
        %v1082 = vpack.c.bf16 %v1059, %v1058
        %v1083 = vpack.c.bf16 %v1061, %v1060
        %v1084 = vpack.c.bf16 %v1063, %v1062
        %v1085 = vpack.c.bf16 %v1065, %v1064
        %v1086 = vpack.c.bf16 %v1067, %v1066
        %v1087 = vpack.c.bf16 %v1069, %v1068
        %v1088 = vpack.c.bf16 %v1071, %v1070
        %v1089 = vpack.c.bf16 %v1073, %v1072
        %v1090 = vld [vmem:[#allocation8] sm:$0xff]
        %v1091 = vld [vmem:[#allocation8 + $0x8] sm:$0xf]
        %v1092 = vld [vmem:[#allocation8 + $0xc] sm:$0xff]
        %v1093 = vld [vmem:[#allocation8 + $0x14] sm:$0xf]
        %v1094 = vld [vmem:[#allocation8 + $0x18] sm:$0xff]
        %v1095 = vld [vmem:[#allocation8 + $0x20] sm:$0xf]
        %v1096 = vld [vmem:[#allocation8 + $0x24] sm:$0xff]
        %v1097 = vld [vmem:[#allocation8 + $0x2c] sm:$0xf]
        %v1098 = vld [vmem:[#allocation8 + $0x30] sm:$0xff]
        %v1099 = vld [vmem:[#allocation8 + $0x38] sm:$0xf]
        %v1100 = vld [vmem:[#allocation8 + $0x3c] sm:$0xff]
        %v1101 = vld [vmem:[#allocation8 + $0x44] sm:$0xf]
        %v1102 = vld [vmem:[#allocation8 + $0x48] sm:$0xff]
        %v1103 = vld [vmem:[#allocation8 + $0x50] sm:$0xf]
        %v1104 = vld [vmem:[#allocation8 + $0x54] sm:$0xff]
        %v1105 = vld [vmem:[#allocation8 + $0x5c] sm:$0xf]
        %v1106 = vld [vmem:[%s4] sm:$0x7]
        %v1108 = vlaneseq
        %v1109 = vshrl.u32 %v1108, 7
        %v1110 = vsub.s32 0, %v1109
        %v1111 = vrot.slane %v1106, %v1110
        %v1112 = vlaneseq
        %v1113 = vshrl.u32 %v1112, 7
        %v1114 = vsub.s32 1, %v1113
        %v1115 = vrot.slane %v1106, %v1114
        %v1116 = vlaneseq
        %v1117 = vshrl.u32 %v1116, 7
        %v1118 = vsub.s32 2, %v1117
        %v1119 = vrot.slane %v1106, %v1118
        %v1139 = vunpack.c.l.b16 %v1090
        %v1140 = vunpack.c.h.b16 %v1090
        %v1141 = vunpack.c.l.b16 %v1091
        %v1142 = vunpack.c.l.b16 %v1092
        %v1143 = vunpack.c.h.b16 %v1092
        %v1144 = vunpack.c.l.b16 %v1093
        %v1145 = vunpack.c.l.b16 %v1094
        %v1146 = vunpack.c.h.b16 %v1094
        %v1147 = vunpack.c.l.b16 %v1095
        %v1148 = vunpack.c.l.b16 %v1096
        %v1149 = vunpack.c.h.b16 %v1096
        %v1150 = vunpack.c.l.b16 %v1097
        %v1151 = vunpack.c.l.b16 %v1098
        %v1152 = vunpack.c.h.b16 %v1098
        %v1153 = vunpack.c.l.b16 %v1099
        %v1154 = vunpack.c.l.b16 %v1100
        %v1155 = vunpack.c.h.b16 %v1100
        %v1156 = vunpack.c.l.b16 %v1101
        %v1157 = vunpack.c.l.b16 %v1102
        %v1158 = vunpack.c.h.b16 %v1102
        %v1159 = vunpack.c.l.b16 %v1103
        %v1160 = vunpack.c.l.b16 %v1104
        %v1161 = vunpack.c.h.b16 %v1104
        %v1162 = vunpack.c.l.b16 %v1105
        %v1163 = vpack.c.b16 %v1142, %v1139
        %v1164 = vpack.c.b16 %v1143, %v1140
        %v1165 = vpack.c.b16 %v1144, %v1141
        %v1166 = vpack.c.b16 %v1148, %v1145
        %v1167 = vpack.c.b16 %v1149, %v1146
        %v1168 = vpack.c.b16 %v1150, %v1147
        %v1169 = vpack.c.b16 %v1154, %v1151
        %v1170 = vpack.c.b16 %v1155, %v1152
        %v1171 = vpack.c.b16 %v1156, %v1153
        %v1172 = vpack.c.b16 %v1160, %v1157
        %v1173 = vpack.c.b16 %v1161, %v1158
        %v1174 = vpack.c.b16 %v1162, %v1159
        %v1188 = vsel %vm578, %v1074, 0
        %v1191 = vsel %vm578, %v1075, 0
        %v1194 = vsel %vm578, %v1076, 0
        %v1197 = vsel %vm578, %v1077, 0
        %v1200 = vsel %vm578, %v1078, 0
        %v1203 = vsel %vm578, %v1079, 0
        %v1206 = vsel %vm578, %v1080, 0
        %v1209 = vsel %vm578, %v1081, 0
        %v1212 = vsel %vm578, %v1082, 0
        %v1215 = vsel %vm578, %v1083, 0
        %v1218 = vsel %vm578, %v1084, 0
        %v1221 = vsel %vm578, %v1085, 0
        %v1224 = vsel %vm578, %v1086, 0
        %v1227 = vsel %vm578, %v1087, 0
        %v1230 = vsel %vm578, %v1088, 0
        %v1233 = vsel %vm578, %v1089, 0
        %1235 = vmatprep.subr.bf16.mxu0 0
        %1236 = vmatpush1.bf16.msra.mxu0 0
        %1237 = vmatprep.subr.bf16.mxu0 0
        %1238 = vmatpush1.bf16.msra.mxu0 0
        %1239 = vmatprep.subr.bf16.mxu0 0
        %1240 = vmatpush1.bf16.msra.mxu0 0
        %1241 = vmatprep.subr.bf16.mxu0 0
        %1242 = vmatpush1.bf16.msra.mxu0 0
        %1243 = vmatprep.subr.bf16.mxu0 %v1173
        %1244 = vmatpush1.bf16.msra.mxu0 %v1172
        %1245 = vmatprep.subr.bf16.mxu0 %v1170
        %1246 = vmatpush1.bf16.msra.mxu0 %v1169
        %1247 = vmatprep.subr.bf16.mxu0 %v1167
        %1248 = vmatpush1.bf16.msra.mxu0 %v1166
        %1249 = vmatprep.subr.bf16.mxu0 %v1164
        %1250 = vmatpush1.bf16.msra.mxu0 %v1163
        %1251 = vmatprep.subr.bf16.mxu0 0
        %1252 = vmatpush2.bf16.msra.mxu0 0
        %1253 = vmatprep.subr.bf16.mxu0 0
        %1254 = vmatpush2.bf16.msra.mxu0 0
        %1255 = vmatprep.subr.bf16.mxu0 0
        %1256 = vmatpush2.bf16.msra.mxu0 0
        %1257 = vmatprep.subr.bf16.mxu0 0
        %1258 = vmatpush2.bf16.msra.mxu0 0
        %1259 = vmatprep.subr.bf16.mxu0 0
        %1260 = vmatpush2.bf16.msra.mxu0 0
        %1261 = vmatprep.subr.bf16.mxu0 0
        %1262 = vmatpush2.bf16.msra.mxu0 0
        %1263 = vmatprep.subr.bf16.mxu0 0
        %1264 = vmatpush2.bf16.msra.mxu0 0
        %1265 = vmatprep.subr.bf16.mxu0 0
        %1266 = vmatpush2.bf16.msra.mxu0 0
        %1267 = vmatprep.mubr.bf16.mxu0 0
        %1268 = vmatmul.mubr.bf16.gmra.mxu0 %v1188
        %v1269 = vpop.f32.mrf.mxu0
        %v1270 = vadd.f32 %v1111, %v1269
        %v1271 = vpop.f32.mrf.mxu0
        %v1272 = vadd.f32 %v1115, %v1271
        %v1273 = vpop.f32.mrf.mxu0
        %v1274 = vadd.f32 %v1111, %v1273
        %v1275 = vpop.f32.mrf.mxu0
        %v1276 = vadd.f32 %v1115, %v1275
        %1277 = vmatprep.mubr.bf16.mxu0 0
        %1278 = vmatmul.mubr.bf16.gmra.mxu0 %v1191
        %v1279 = vpop.f32.mrf.mxu0
        %v1280 = vadd.f32 %v1111, %v1279
        %v1281 = vpop.f32.mrf.mxu0
        %v1282 = vadd.f32 %v1115, %v1281
        %v1283 = vpop.f32.mrf.mxu0
        %v1284 = vadd.f32 %v1111, %v1283
        %v1285 = vpop.f32.mrf.mxu0
        %v1286 = vadd.f32 %v1115, %v1285
        %1287 = vmatprep.mubr.bf16.mxu0 0
        %1288 = vmatmul.mubr.bf16.gmra.mxu0 %v1194
        %v1289 = vpop.f32.mrf.mxu0
        %v1290 = vadd.f32 %v1111, %v1289
        %v1291 = vpop.f32.mrf.mxu0
        %v1292 = vadd.f32 %v1115, %v1291
        %v1293 = vpop.f32.mrf.mxu0
        %v1294 = vadd.f32 %v1111, %v1293
        %v1295 = vpop.f32.mrf.mxu0
        %v1296 = vadd.f32 %v1115, %v1295
        %1297 = vmatprep.mubr.bf16.mxu0 0
        %1298 = vmatmul.mubr.bf16.gmra.mxu0 %v1197
        %v1299 = vpop.f32.mrf.mxu0
        %v1300 = vadd.f32 %v1111, %v1299
        %v1301 = vpop.f32.mrf.mxu0
        %v1302 = vadd.f32 %v1115, %v1301
        %v1303 = vpop.f32.mrf.mxu0
        %v1304 = vadd.f32 %v1111, %v1303
        %v1305 = vpop.f32.mrf.mxu0
        %v1306 = vadd.f32 %v1115, %v1305
        %1307 = vmatprep.mubr.bf16.mxu0 0
        %1308 = vmatmul.mubr.bf16.gmra.mxu0 %v1200
        %v1309 = vpop.f32.mrf.mxu0
        %v1310 = vadd.f32 %v1111, %v1309
        %v1311 = vpop.f32.mrf.mxu0
        %v1312 = vadd.f32 %v1115, %v1311
        %v1313 = vpop.f32.mrf.mxu0
        %v1314 = vadd.f32 %v1111, %v1313
        %v1315 = vpop.f32.mrf.mxu0
        %v1316 = vadd.f32 %v1115, %v1315
        %1317 = vmatprep.mubr.bf16.mxu0 0
        %1318 = vmatmul.mubr.bf16.gmra.mxu0 %v1203
        %v1319 = vpop.f32.mrf.mxu0
        %v1320 = vadd.f32 %v1111, %v1319
        %v1321 = vpop.f32.mrf.mxu0
        %v1322 = vadd.f32 %v1115, %v1321
        %v1323 = vpop.f32.mrf.mxu0
        %v1324 = vadd.f32 %v1111, %v1323
        %v1325 = vpop.f32.mrf.mxu0
        %v1326 = vadd.f32 %v1115, %v1325
        %1327 = vmatprep.mubr.bf16.mxu0 0
        %1328 = vmatmul.mubr.bf16.gmra.mxu0 %v1206
        %v1329 = vpop.f32.mrf.mxu0
        %v1330 = vadd.f32 %v1111, %v1329
        %v1331 = vpop.f32.mrf.mxu0
        %v1332 = vadd.f32 %v1115, %v1331
        %v1333 = vpop.f32.mrf.mxu0
        %v1334 = vadd.f32 %v1111, %v1333
        %v1335 = vpop.f32.mrf.mxu0
        %v1336 = vadd.f32 %v1115, %v1335
        %1337 = vmatprep.mubr.bf16.mxu0 0
        %1338 = vmatmul.mubr.bf16.gmra.mxu0 %v1209
        %v1339 = vpop.f32.mrf.mxu0
        %v1340 = vadd.f32 %v1111, %v1339
        %v1341 = vpop.f32.mrf.mxu0
        %v1342 = vadd.f32 %v1115, %v1341
        %v1343 = vpop.f32.mrf.mxu0
        %v1344 = vadd.f32 %v1111, %v1343
        %v1345 = vpop.f32.mrf.mxu0
        %v1346 = vadd.f32 %v1115, %v1345
        %1347 = vmatprep.mubr.bf16.mxu0 0
        %1348 = vmatmul.mubr.bf16.gmra.mxu0 %v1212
        %v1349 = vpop.f32.mrf.mxu0
        %v1350 = vadd.f32 %v1111, %v1349
        %v1351 = vpop.f32.mrf.mxu0
        %v1352 = vadd.f32 %v1115, %v1351
        %v1353 = vpop.f32.mrf.mxu0
        %v1354 = vadd.f32 %v1111, %v1353
        %v1355 = vpop.f32.mrf.mxu0
        %v1356 = vadd.f32 %v1115, %v1355
        %1357 = vmatprep.mubr.bf16.mxu0 0
        %1358 = vmatmul.mubr.bf16.gmra.mxu0 %v1215
        %v1359 = vpop.f32.mrf.mxu0
        %v1360 = vadd.f32 %v1111, %v1359
        %v1361 = vpop.f32.mrf.mxu0
        %v1362 = vadd.f32 %v1115, %v1361
        %v1363 = vpop.f32.mrf.mxu0
        %v1364 = vadd.f32 %v1111, %v1363
        %v1365 = vpop.f32.mrf.mxu0
        %v1366 = vadd.f32 %v1115, %v1365
        %1367 = vmatprep.mubr.bf16.mxu0 0
        %1368 = vmatmul.mubr.bf16.gmra.mxu0 %v1218
        %v1369 = vpop.f32.mrf.mxu0
        %v1370 = vadd.f32 %v1111, %v1369
        %v1371 = vpop.f32.mrf.mxu0
        %v1372 = vadd.f32 %v1115, %v1371
        %v1373 = vpop.f32.mrf.mxu0
        %v1374 = vadd.f32 %v1111, %v1373
        %v1375 = vpop.f32.mrf.mxu0
        %v1376 = vadd.f32 %v1115, %v1375
        %1377 = vmatprep.mubr.bf16.mxu0 0
        %1378 = vmatmul.mubr.bf16.gmra.mxu0 %v1221
        %v1379 = vpop.f32.mrf.mxu0
        %v1380 = vadd.f32 %v1111, %v1379
        %v1381 = vpop.f32.mrf.mxu0
        %v1382 = vadd.f32 %v1115, %v1381
        %v1383 = vpop.f32.mrf.mxu0
        %v1384 = vadd.f32 %v1111, %v1383
        %v1385 = vpop.f32.mrf.mxu0
        %v1386 = vadd.f32 %v1115, %v1385
        %1387 = vmatprep.mubr.bf16.mxu0 0
        %1388 = vmatmul.mubr.bf16.gmra.mxu0 %v1224
        %v1389 = vpop.f32.mrf.mxu0
        %v1390 = vadd.f32 %v1111, %v1389
        %v1391 = vpop.f32.mrf.mxu0
        %v1392 = vadd.f32 %v1115, %v1391
        %v1393 = vpop.f32.mrf.mxu0
        %v1394 = vadd.f32 %v1111, %v1393
        %v1395 = vpop.f32.mrf.mxu0
        %v1396 = vadd.f32 %v1115, %v1395
        %1397 = vmatprep.mubr.bf16.mxu0 0
        %1398 = vmatmul.mubr.bf16.gmra.mxu0 %v1227
        %v1399 = vpop.f32.mrf.mxu0
        %v1400 = vadd.f32 %v1111, %v1399
        %v1401 = vpop.f32.mrf.mxu0
        %v1402 = vadd.f32 %v1115, %v1401
        %v1403 = vpop.f32.mrf.mxu0
        %v1404 = vadd.f32 %v1111, %v1403
        %v1405 = vpop.f32.mrf.mxu0
        %v1406 = vadd.f32 %v1115, %v1405
        %1407 = vmatprep.mubr.bf16.mxu0 0
        %1408 = vmatmul.mubr.bf16.gmra.mxu0 %v1230
        %v1409 = vpop.f32.mrf.mxu0
        %v1410 = vadd.f32 %v1111, %v1409
        %v1411 = vpop.f32.mrf.mxu0
        %v1412 = vadd.f32 %v1115, %v1411
        %v1413 = vpop.f32.mrf.mxu0
        %v1414 = vadd.f32 %v1111, %v1413
        %v1415 = vpop.f32.mrf.mxu0
        %v1416 = vadd.f32 %v1115, %v1415
        %1417 = vmatprep.mubr.bf16.mxu0 0
        %1418 = vmatmul.mubr.bf16.gmra.mxu0 %v1233
        %v1419 = vpop.f32.mrf.mxu0
        %v1420 = vadd.f32 %v1111, %v1419
        %v1421 = vpop.f32.mrf.mxu0
        %v1422 = vadd.f32 %v1115, %v1421
        %v1423 = vpop.f32.mrf.mxu0
        %v1424 = vadd.f32 %v1111, %v1423
        %v1425 = vpop.f32.mrf.mxu0
        %v1426 = vadd.f32 %v1115, %v1425
        %1427 = vdwg.mxu0
        %1428 = vmatprep.subr.bf16.mxu0 0
        %1429 = vmatpush1.bf16.msra.mxu0 0
        %1430 = vmatprep.subr.bf16.mxu0 0
        %1431 = vmatpush1.bf16.msra.mxu0 0
        %1432 = vmatprep.subr.bf16.mxu0 0
        %1433 = vmatpush1.bf16.msra.mxu0 0
        %1434 = vmatprep.subr.bf16.mxu0 0
        %1435 = vmatpush1.bf16.msra.mxu0 0
        %1436 = vmatprep.subr.bf16.mxu0 0
        %1437 = vmatpush1.bf16.msra.mxu0 %v1174
        %1438 = vmatprep.subr.bf16.mxu0 0
        %1439 = vmatpush1.bf16.msra.mxu0 %v1171
        %1440 = vmatprep.subr.bf16.mxu0 0
        %1441 = vmatpush1.bf16.msra.mxu0 %v1168
        %1442 = vmatprep.subr.bf16.mxu0 0
        %1443 = vmatpush1.bf16.msra.mxu0 %v1165
        %1444 = vmatprep.subr.bf16.mxu0 0
        %1445 = vmatpush2.bf16.msra.mxu0 0
        %1446 = vmatprep.subr.bf16.mxu0 0
        %1447 = vmatpush2.bf16.msra.mxu0 0
        %1448 = vmatprep.subr.bf16.mxu0 0
        %1449 = vmatpush2.bf16.msra.mxu0 0
        %1450 = vmatprep.subr.bf16.mxu0 0
        %1451 = vmatpush2.bf16.msra.mxu0 0
        %1452 = vmatprep.subr.bf16.mxu0 0
        %1453 = vmatpush2.bf16.msra.mxu0 0
        %1454 = vmatprep.subr.bf16.mxu0 0
        %1455 = vmatpush2.bf16.msra.mxu0 0
        %1456 = vmatprep.subr.bf16.mxu0 0
        %1457 = vmatpush2.bf16.msra.mxu0 0
        %1458 = vmatprep.subr.bf16.mxu0 0
        %1459 = vmatpush2.bf16.msra.mxu0 0
        %1460 = vmatprep.mubr.bf16.mxu0 0
        %1461 = vmatmul.mubr.bf16.gmra.mxu0 %v1188
        %v1462 = vpop.f32.mrf.mxu0
        %v1463 = vadd.f32 %v1119, %v1462
        %v1464 = vpop.f32.mrf.mxu0
        %v1465 = vpop.f32.mrf.mxu0
        %v1466 = vadd.f32 %v1119, %v1465
        %v1467 = vpop.f32.mrf.mxu0
        %1468 = vmatprep.mubr.bf16.mxu0 0
        %1469 = vmatmul.mubr.bf16.gmra.mxu0 %v1191
        %v1470 = vpop.f32.mrf.mxu0
        %v1471 = vadd.f32 %v1119, %v1470
        %v1472 = vpop.f32.mrf.mxu0
        %v1473 = vpop.f32.mrf.mxu0
        %v1474 = vadd.f32 %v1119, %v1473
        %v1475 = vpop.f32.mrf.mxu0
        %1476 = vmatprep.mubr.bf16.mxu0 0
        %1477 = vmatmul.mubr.bf16.gmra.mxu0 %v1194
        %v1478 = vpop.f32.mrf.mxu0
        %v1479 = vadd.f32 %v1119, %v1478
        %v1480 = vpop.f32.mrf.mxu0
        %v1481 = vpop.f32.mrf.mxu0
        %v1482 = vadd.f32 %v1119, %v1481
        %v1483 = vpop.f32.mrf.mxu0
        %1484 = vmatprep.mubr.bf16.mxu0 0
        %1485 = vmatmul.mubr.bf16.gmra.mxu0 %v1197
        %v1486 = vpop.f32.mrf.mxu0
        %v1487 = vadd.f32 %v1119, %v1486
        %v1488 = vpop.f32.mrf.mxu0
        %v1489 = vpop.f32.mrf.mxu0
        %v1490 = vadd.f32 %v1119, %v1489
        %v1491 = vpop.f32.mrf.mxu0
        %1492 = vmatprep.mubr.bf16.mxu0 0
        %1493 = vmatmul.mubr.bf16.gmra.mxu0 %v1200
        %v1494 = vpop.f32.mrf.mxu0
        %v1495 = vadd.f32 %v1119, %v1494
        %v1496 = vpop.f32.mrf.mxu0
        %v1497 = vpop.f32.mrf.mxu0
        %v1498 = vadd.f32 %v1119, %v1497
        %v1499 = vpop.f32.mrf.mxu0
        %1500 = vmatprep.mubr.bf16.mxu0 0
        %1501 = vmatmul.mubr.bf16.gmra.mxu0 %v1203
        %v1502 = vpop.f32.mrf.mxu0
        %v1503 = vadd.f32 %v1119, %v1502
        %v1504 = vpop.f32.mrf.mxu0
        %v1505 = vpop.f32.mrf.mxu0
        %v1506 = vadd.f32 %v1119, %v1505
        %v1507 = vpop.f32.mrf.mxu0
        %1508 = vmatprep.mubr.bf16.mxu0 0
        %1509 = vmatmul.mubr.bf16.gmra.mxu0 %v1206
        %v1510 = vpop.f32.mrf.mxu0
        %v1511 = vadd.f32 %v1119, %v1510
        %v1512 = vpop.f32.mrf.mxu0
        %v1513 = vpop.f32.mrf.mxu0
        %v1514 = vadd.f32 %v1119, %v1513
        %v1515 = vpop.f32.mrf.mxu0
        %1516 = vmatprep.mubr.bf16.mxu0 0
        %1517 = vmatmul.mubr.bf16.gmra.mxu0 %v1209
        %v1518 = vpop.f32.mrf.mxu0
        %v1519 = vadd.f32 %v1119, %v1518
        %v1520 = vpop.f32.mrf.mxu0
        %v1521 = vpop.f32.mrf.mxu0
        %v1522 = vadd.f32 %v1119, %v1521
        %v1523 = vpop.f32.mrf.mxu0
        %1524 = vmatprep.mubr.bf16.mxu0 0
        %1525 = vmatmul.mubr.bf16.gmra.mxu0 %v1212
        %v1526 = vpop.f32.mrf.mxu0
        %v1527 = vadd.f32 %v1119, %v1526
        %v1528 = vpop.f32.mrf.mxu0
        %v1529 = vpop.f32.mrf.mxu0
        %v1530 = vadd.f32 %v1119, %v1529
        %v1531 = vpop.f32.mrf.mxu0
        %1532 = vmatprep.mubr.bf16.mxu0 0
        %1533 = vmatmul.mubr.bf16.gmra.mxu0 %v1215
        %v1534 = vpop.f32.mrf.mxu0
        %v1535 = vadd.f32 %v1119, %v1534
        %v1536 = vpop.f32.mrf.mxu0
        %v1537 = vpop.f32.mrf.mxu0
        %v1538 = vadd.f32 %v1119, %v1537
        %v1539 = vpop.f32.mrf.mxu0
        %1540 = vmatprep.mubr.bf16.mxu0 0
        %1541 = vmatmul.mubr.bf16.gmra.mxu0 %v1218
        %v1542 = vpop.f32.mrf.mxu0
        %v1543 = vadd.f32 %v1119, %v1542
        %v1544 = vpop.f32.mrf.mxu0
        %v1545 = vpop.f32.mrf.mxu0
        %v1546 = vadd.f32 %v1119, %v1545
        %v1547 = vpop.f32.mrf.mxu0
        %1548 = vmatprep.mubr.bf16.mxu0 0
        %1549 = vmatmul.mubr.bf16.gmra.mxu0 %v1221
        %v1550 = vpop.f32.mrf.mxu0
        %v1551 = vadd.f32 %v1119, %v1550
        %v1552 = vpop.f32.mrf.mxu0
        %v1553 = vpop.f32.mrf.mxu0
        %v1554 = vadd.f32 %v1119, %v1553
        %v1555 = vpop.f32.mrf.mxu0
        %1556 = vmatprep.mubr.bf16.mxu0 0
        %1557 = vmatmul.mubr.bf16.gmra.mxu0 %v1224
        %v1558 = vpop.f32.mrf.mxu0
        %v1559 = vadd.f32 %v1119, %v1558
        %v1560 = vpop.f32.mrf.mxu0
        %v1561 = vpop.f32.mrf.mxu0
        %v1562 = vadd.f32 %v1119, %v1561
        %v1563 = vpop.f32.mrf.mxu0
        %1564 = vmatprep.mubr.bf16.mxu0 0
        %1565 = vmatmul.mubr.bf16.gmra.mxu0 %v1227
        %v1566 = vpop.f32.mrf.mxu0
        %v1567 = vadd.f32 %v1119, %v1566
        %v1568 = vpop.f32.mrf.mxu0
        %v1569 = vpop.f32.mrf.mxu0
        %v1570 = vadd.f32 %v1119, %v1569
        %v1571 = vpop.f32.mrf.mxu0
        %1572 = vmatprep.mubr.bf16.mxu0 0
        %1573 = vmatmul.mubr.bf16.gmra.mxu0 %v1230
        %v1574 = vpop.f32.mrf.mxu0
        %v1575 = vadd.f32 %v1119, %v1574
        %v1576 = vpop.f32.mrf.mxu0
        %v1577 = vpop.f32.mrf.mxu0
        %v1578 = vadd.f32 %v1119, %v1577
        %v1579 = vpop.f32.mrf.mxu0
        %1580 = vmatprep.mubr.bf16.mxu0 0
        %1581 = vmatmul.mubr.bf16.gmra.mxu0 %v1233
        %v1582 = vpop.f32.mrf.mxu0
        %v1583 = vadd.f32 %v1119, %v1582
        %v1584 = vpop.f32.mrf.mxu0
        %v1585 = vpop.f32.mrf.mxu0
        %v1586 = vadd.f32 %v1119, %v1585
        %v1587 = vpop.f32.mrf.mxu0
        %1588 = vdwg.mxu0
        %v1589 = vpack.c.bf16 %v1274, %v1270
        %v1590 = vpack.c.bf16 %v1284, %v1280
        %v1591 = vpack.c.bf16 %v1294, %v1290
        %v1592 = vpack.c.bf16 %v1304, %v1300
        %v1593 = vpack.c.bf16 %v1314, %v1310
        %v1594 = vpack.c.bf16 %v1324, %v1320
        %v1595 = vpack.c.bf16 %v1334, %v1330
        %v1596 = vpack.c.bf16 %v1344, %v1340
        %v1597 = vpack.c.bf16 %v1354, %v1350
        %v1598 = vpack.c.bf16 %v1364, %v1360
        %v1599 = vpack.c.bf16 %v1374, %v1370
        %v1600 = vpack.c.bf16 %v1384, %v1380
        %v1601 = vpack.c.bf16 %v1394, %v1390
        %v1602 = vpack.c.bf16 %v1404, %v1400
        %v1603 = vpack.c.bf16 %v1414, %v1410
        %v1604 = vpack.c.bf16 %v1424, %v1420
        %v1605 = vpack.c.bf16 %v1276, %v1272
        %v1606 = vpack.c.bf16 %v1286, %v1282
        %v1607 = vpack.c.bf16 %v1296, %v1292
        %v1608 = vpack.c.bf16 %v1306, %v1302
        %v1609 = vpack.c.bf16 %v1316, %v1312
        %v1610 = vpack.c.bf16 %v1326, %v1322
        %v1611 = vpack.c.bf16 %v1336, %v1332
        %v1612 = vpack.c.bf16 %v1346, %v1342
        %v1613 = vpack.c.bf16 %v1356, %v1352
        %v1614 = vpack.c.bf16 %v1366, %v1362
        %v1615 = vpack.c.bf16 %v1376, %v1372
        %v1616 = vpack.c.bf16 %v1386, %v1382
        %v1617 = vpack.c.bf16 %v1396, %v1392
        %v1618 = vpack.c.bf16 %v1406, %v1402
        %v1619 = vpack.c.bf16 %v1416, %v1412
        %v1620 = vpack.c.bf16 %v1426, %v1422
        %v1621 = vpack.c.bf16 %v1466, %v1463
        %v1622 = vpack.c.bf16 %v1474, %v1471
        %v1623 = vpack.c.bf16 %v1482, %v1479
        %v1624 = vpack.c.bf16 %v1490, %v1487
        %v1625 = vpack.c.bf16 %v1498, %v1495
        %v1626 = vpack.c.bf16 %v1506, %v1503
        %v1627 = vpack.c.bf16 %v1514, %v1511
        %v1628 = vpack.c.bf16 %v1522, %v1519
        %v1629 = vpack.c.bf16 %v1530, %v1527
        %v1630 = vpack.c.bf16 %v1538, %v1535
        %v1631 = vpack.c.bf16 %v1546, %v1543
        %v1632 = vpack.c.bf16 %v1554, %v1551
        %v1633 = vpack.c.bf16 %v1562, %v1559
        %v1634 = vpack.c.bf16 %v1570, %v1567
        %v1635 = vpack.c.bf16 %v1578, %v1575
        %v1636 = vpack.c.bf16 %v1586, %v1583
        %v1637 = vlaneseq
        %v1638 = vand.u32 %v1637, 127
        %vm1639 = vcmp.ge.s32.totalorder %v1638, 0
        %vm1640 = vcmp.lt.s32.totalorder %v1638, 8
        %vm1641 = vmand %vm1639, %vm1640
        %v1642 = vsel %vm1641, 1, 0
        %v1643 = vcvt.s32.f32 %v1642
        %v1644 = vpack.c.bf16 %v1643, %v1643
        %v1645 = vmul.bf16 %v1605, %v1644
        %v1646 = vmul.bf16 %v1606, %v1644
        %v1647 = vmul.bf16 %v1607, %v1644
        %v1648 = vmul.bf16 %v1608, %v1644
        %v1649 = vmul.bf16 %v1609, %v1644
        %v1650 = vmul.bf16 %v1610, %v1644
        %v1651 = vmul.bf16 %v1611, %v1644
        %v1652 = vmul.bf16 %v1612, %v1644
        %v1653 = vmul.bf16 %v1613, %v1644
        %v1654 = vmul.bf16 %v1614, %v1644
        %v1655 = vmul.bf16 %v1615, %v1644
        %v1656 = vmul.bf16 %v1616, %v1644
        %v1657 = vmul.bf16 %v1617, %v1644
        %v1658 = vmul.bf16 %v1618, %v1644
        %v1659 = vmul.bf16 %v1619, %v1644
        %v1660 = vmul.bf16 %v1620, %v1644
        %v1661 = vmul.bf16 %v1621, %v1644
        %v1662 = vmul.bf16 %v1622, %v1644
        %v1663 = vmul.bf16 %v1623, %v1644
        %v1664 = vmul.bf16 %v1624, %v1644
        %v1665 = vmul.bf16 %v1625, %v1644
        %v1666 = vmul.bf16 %v1626, %v1644
        %v1667 = vmul.bf16 %v1627, %v1644
        %v1668 = vmul.bf16 %v1628, %v1644
        %v1669 = vmul.bf16 %v1629, %v1644
        %v1670 = vmul.bf16 %v1630, %v1644
        %v1671 = vmul.bf16 %v1631, %v1644
        %v1672 = vmul.bf16 %v1632, %v1644
        %v1673 = vmul.bf16 %v1633, %v1644
        %v1674 = vmul.bf16 %v1634, %v1644
        %v1675 = vmul.bf16 %v1635, %v1644
        %v1676 = vmul.bf16 %v1636, %v1644
        %1677 = vmatprep.subr.bf16.mxu0 0
        %1678 = vmatpush1.bf16.xpose.msra.mxu0 0
        %1679 = vmatprep.subr.bf16.mxu0 0
        %1680 = vmatpush1.bf16.xpose.msra.mxu0 0
        %1681 = vmatprep.subr.bf16.mxu0 0
        %1682 = vmatpush1.bf16.xpose.msra.mxu0 0
        %1683 = vmatprep.subr.bf16.mxu0 0
        %1684 = vmatpush1.bf16.xpose.msra.mxu0 0
        %1685 = vmatprep.subr.bf16.mxu0 0
        %1686 = vmatpush1.bf16.xpose.msra.mxu0 %v1648
        %1687 = vmatprep.subr.bf16.mxu0 0
        %1688 = vmatpush1.bf16.xpose.msra.mxu0 %v1647
        %1689 = vmatprep.subr.bf16.mxu0 0
        %1690 = vmatpush1.bf16.xpose.msra.mxu0 %v1646
        %1691 = vmatprep.subr.bf16.mxu0 0
        %1692 = vmatpush1.bf16.xpose.msra.mxu0 %v1645
        %1693 = vmatprep.subr.bf16.mxu0 0
        %1694 = vmatpush2.bf16.xpose.msra.mxu0 0
        %1695 = vmatprep.subr.bf16.mxu0 0
        %1696 = vmatpush2.bf16.xpose.msra.mxu0 0
        %1697 = vmatprep.subr.bf16.mxu0 0
        %1698 = vmatpush2.bf16.xpose.msra.mxu0 0
        %1699 = vmatprep.subr.bf16.mxu0 0
        %1700 = vmatpush2.bf16.xpose.msra.mxu0 0
        %1701 = vmatprep.subr.bf16.mxu0 0
        %1702 = vmatpush2.bf16.xpose.msra.mxu0 0
        %1703 = vmatprep.subr.bf16.mxu0 0
        %1704 = vmatpush2.bf16.xpose.msra.mxu0 0
        %1705 = vmatprep.subr.bf16.mxu0 0
        %1706 = vmatpush2.bf16.xpose.msra.mxu0 0
        %1707 = vmatprep.subr.bf16.mxu0 0
        %1708 = vmatpush2.bf16.xpose.msra.mxu0 0
        %1709 = vmatprep.mubr.bf16.mxu0 0
        %1710 = vmatmul.mubr.bf16.gmra.mxu0 %v1589
        %v1711 = vpop.f32.mrf.mxu0
        %v1712 = vadd.f32 0.0, %v1711
        %v1713 = vpop.f32.mrf.mxu0
        %v1714 = vpop.f32.mrf.mxu0
        %v1715 = vadd.f32 0.0, %v1714
        %v1716 = vpop.f32.mrf.mxu0
        %1717 = vmatprep.mubr.bf16.mxu0 0
        %1718 = vmatmul.mubr.bf16.gmra.mxu0 %v1590
        %v1719 = vpop.f32.mrf.mxu0
        %v1720 = vadd.f32 0.0, %v1719
        %v1721 = vpop.f32.mrf.mxu0
        %v1722 = vpop.f32.mrf.mxu0
        %v1723 = vadd.f32 0.0, %v1722
        %v1724 = vpop.f32.mrf.mxu0
        %1725 = vmatprep.mubr.bf16.mxu0 0
        %1726 = vmatmul.mubr.bf16.gmra.mxu0 %v1591
        %v1727 = vpop.f32.mrf.mxu0
        %v1728 = vadd.f32 0.0, %v1727
        %v1729 = vpop.f32.mrf.mxu0
        %v1730 = vpop.f32.mrf.mxu0
        %v1731 = vadd.f32 0.0, %v1730
        %v1732 = vpop.f32.mrf.mxu0
        %1733 = vmatprep.mubr.bf16.mxu0 0
        %1734 = vmatmul.mubr.bf16.gmra.mxu0 %v1592
        %v1735 = vpop.f32.mrf.mxu0
        %v1736 = vadd.f32 0.0, %v1735
        %v1737 = vpop.f32.mrf.mxu0
        %v1738 = vpop.f32.mrf.mxu0
        %v1739 = vadd.f32 0.0, %v1738
        %v1740 = vpop.f32.mrf.mxu0
        %1741 = vdwg.mxu0
        %1742 = vmatprep.subr.bf16.mxu0 0
        %1743 = vmatpush1.bf16.xpose.msra.mxu0 0
        %1744 = vmatprep.subr.bf16.mxu0 0
        %1745 = vmatpush1.bf16.xpose.msra.mxu0 0
        %1746 = vmatprep.subr.bf16.mxu0 0
        %1747 = vmatpush1.bf16.xpose.msra.mxu0 0
        %1748 = vmatprep.subr.bf16.mxu0 0
        %1749 = vmatpush1.bf16.xpose.msra.mxu0 0
        %1750 = vmatprep.subr.bf16.mxu0 0
        %1751 = vmatpush1.bf16.xpose.msra.mxu0 %v1652
        %1752 = vmatprep.subr.bf16.mxu0 0
        %1753 = vmatpush1.bf16.xpose.msra.mxu0 %v1651
        %1754 = vmatprep.subr.bf16.mxu0 0
        %1755 = vmatpush1.bf16.xpose.msra.mxu0 %v1650
        %1756 = vmatprep.subr.bf16.mxu0 0
        %1757 = vmatpush1.bf16.xpose.msra.mxu0 %v1649
        %1758 = vmatprep.subr.bf16.mxu0 0
        %1759 = vmatpush2.bf16.xpose.msra.mxu0 0
        %1760 = vmatprep.subr.bf16.mxu0 0
        %1761 = vmatpush2.bf16.xpose.msra.mxu0 0
        %1762 = vmatprep.subr.bf16.mxu0 0
        %1763 = vmatpush2.bf16.xpose.msra.mxu0 0
        %1764 = vmatprep.subr.bf16.mxu0 0
        %1765 = vmatpush2.bf16.xpose.msra.mxu0 0
        %1766 = vmatprep.subr.bf16.mxu0 0
        %1767 = vmatpush2.bf16.xpose.msra.mxu0 0
        %1768 = vmatprep.subr.bf16.mxu0 0
        %1769 = vmatpush2.bf16.xpose.msra.mxu0 0
        %1770 = vmatprep.subr.bf16.mxu0 0
        %1771 = vmatpush2.bf16.xpose.msra.mxu0 0
        %1772 = vmatprep.subr.bf16.mxu0 0
        %1773 = vmatpush2.bf16.xpose.msra.mxu0 0
        %1774 = vmatprep.mubr.bf16.mxu0 0
        %1775 = vmatmul.mubr.bf16.gmra.mxu0 %v1593
        %v1776 = vpop.f32.mrf.mxu0
        %v1777 = vadd.f32 0.0, %v1776
        %v1778 = vpop.f32.mrf.mxu0
        %v1779 = vpop.f32.mrf.mxu0
        %v1780 = vadd.f32 0.0, %v1779
        %v1781 = vpop.f32.mrf.mxu0
        %1782 = vmatprep.mubr.bf16.mxu0 0
        %1783 = vmatmul.mubr.bf16.gmra.mxu0 %v1594
        %v1784 = vpop.f32.mrf.mxu0
        %v1785 = vadd.f32 0.0, %v1784
        %v1786 = vpop.f32.mrf.mxu0
        %v1787 = vpop.f32.mrf.mxu0
        %v1788 = vadd.f32 0.0, %v1787
        %v1789 = vpop.f32.mrf.mxu0
        %1790 = vmatprep.mubr.bf16.mxu0 0
        %1791 = vmatmul.mubr.bf16.gmra.mxu0 %v1595
        %v1792 = vpop.f32.mrf.mxu0
        %v1793 = vadd.f32 0.0, %v1792
        %v1794 = vpop.f32.mrf.mxu0
        %v1795 = vpop.f32.mrf.mxu0
        %v1796 = vadd.f32 0.0, %v1795
        %v1797 = vpop.f32.mrf.mxu0
        %1798 = vmatprep.mubr.bf16.mxu0 0
        %1799 = vmatmul.mubr.bf16.gmra.mxu0 %v1596
        %v1800 = vpop.f32.mrf.mxu0
        %v1801 = vadd.f32 0.0, %v1800
        %v1802 = vpop.f32.mrf.mxu0
        %v1803 = vpop.f32.mrf.mxu0
        %v1804 = vadd.f32 0.0, %v1803
        %v1805 = vpop.f32.mrf.mxu0
        %1806 = vdwg.mxu0
        %1807 = vmatprep.subr.bf16.mxu0 0
        %1808 = vmatpush1.bf16.xpose.msra.mxu0 0
        %1809 = vmatprep.subr.bf16.mxu0 0
        %1810 = vmatpush1.bf16.xpose.msra.mxu0 0
        %1811 = vmatprep.subr.bf16.mxu0 0
        %1812 = vmatpush1.bf16.xpose.msra.mxu0 0
        %1813 = vmatprep.subr.bf16.mxu0 0
        %1814 = vmatpush1.bf16.xpose.msra.mxu0 0
        %1815 = vmatprep.subr.bf16.mxu0 0
        %1816 = vmatpush1.bf16.xpose.msra.mxu0 %v1656
        %1817 = vmatprep.subr.bf16.mxu0 0
        %1818 = vmatpush1.bf16.xpose.msra.mxu0 %v1655
        %1819 = vmatprep.subr.bf16.mxu0 0
        %1820 = vmatpush1.bf16.xpose.msra.mxu0 %v1654
        %1821 = vmatprep.subr.bf16.mxu0 0
        %1822 = vmatpush1.bf16.xpose.msra.mxu0 %v1653
        %1823 = vmatprep.subr.bf16.mxu0 0
        %1824 = vmatpush2.bf16.xpose.msra.mxu0 0
        %1825 = vmatprep.subr.bf16.mxu0 0
        %1826 = vmatpush2.bf16.xpose.msra.mxu0 0
        %1827 = vmatprep.subr.bf16.mxu0 0
        %1828 = vmatpush2.bf16.xpose.msra.mxu0 0
        %1829 = vmatprep.subr.bf16.mxu0 0
        %1830 = vmatpush2.bf16.xpose.msra.mxu0 0
        %1831 = vmatprep.subr.bf16.mxu0 0
        %1832 = vmatpush2.bf16.xpose.msra.mxu0 0
        %1833 = vmatprep.subr.bf16.mxu0 0
        %1834 = vmatpush2.bf16.xpose.msra.mxu0 0
        %1835 = vmatprep.subr.bf16.mxu0 0
        %1836 = vmatpush2.bf16.xpose.msra.mxu0 0
        %1837 = vmatprep.subr.bf16.mxu0 0
        %1838 = vmatpush2.bf16.xpose.msra.mxu0 0
        %1839 = vmatprep.mubr.bf16.mxu0 0
        %1840 = vmatmul.mubr.bf16.gmra.mxu0 %v1597
        %v1841 = vpop.f32.mrf.mxu0
        %v1842 = vadd.f32 0.0, %v1841
        %v1843 = vpop.f32.mrf.mxu0
        %v1844 = vpop.f32.mrf.mxu0
        %v1845 = vadd.f32 0.0, %v1844
        %v1846 = vpop.f32.mrf.mxu0
        %1847 = vmatprep.mubr.bf16.mxu0 0
        %1848 = vmatmul.mubr.bf16.gmra.mxu0 %v1598
        %v1849 = vpop.f32.mrf.mxu0
        %v1850 = vadd.f32 0.0, %v1849
        %v1851 = vpop.f32.mrf.mxu0
        %v1852 = vpop.f32.mrf.mxu0
        %v1853 = vadd.f32 0.0, %v1852
        %v1854 = vpop.f32.mrf.mxu0
        %1855 = vmatprep.mubr.bf16.mxu0 0
        %1856 = vmatmul.mubr.bf16.gmra.mxu0 %v1599
        %v1857 = vpop.f32.mrf.mxu0
        %v1858 = vadd.f32 0.0, %v1857
        %v1859 = vpop.f32.mrf.mxu0
        %v1860 = vpop.f32.mrf.mxu0
        %v1861 = vadd.f32 0.0, %v1860
        %v1862 = vpop.f32.mrf.mxu0
        %1863 = vmatprep.mubr.bf16.mxu0 0
        %1864 = vmatmul.mubr.bf16.gmra.mxu0 %v1600
        %v1865 = vpop.f32.mrf.mxu0
        %v1866 = vadd.f32 0.0, %v1865
        %v1867 = vpop.f32.mrf.mxu0
        %v1868 = vpop.f32.mrf.mxu0
        %v1869 = vadd.f32 0.0, %v1868
        %v1870 = vpop.f32.mrf.mxu0
        %1871 = vdwg.mxu0
        %1872 = vmatprep.subr.bf16.mxu0 0
        %1873 = vmatpush1.bf16.xpose.msra.mxu0 0
        %1874 = vmatprep.subr.bf16.mxu0 0
        %1875 = vmatpush1.bf16.xpose.msra.mxu0 0
        %1876 = vmatprep.subr.bf16.mxu0 0
        %1877 = vmatpush1.bf16.xpose.msra.mxu0 0
        %1878 = vmatprep.subr.bf16.mxu0 0
        %1879 = vmatpush1.bf16.xpose.msra.mxu0 0
        %1880 = vmatprep.subr.bf16.mxu0 0
        %1881 = vmatpush1.bf16.xpose.msra.mxu0 %v1660
        %1882 = vmatprep.subr.bf16.mxu0 0
        %1883 = vmatpush1.bf16.xpose.msra.mxu0 %v1659
        %1884 = vmatprep.subr.bf16.mxu0 0
        %1885 = vmatpush1.bf16.xpose.msra.mxu0 %v1658
        %1886 = vmatprep.subr.bf16.mxu0 0
        %1887 = vmatpush1.bf16.xpose.msra.mxu0 %v1657
        %1888 = vmatprep.subr.bf16.mxu0 0
        %1889 = vmatpush2.bf16.xpose.msra.mxu0 0
        %1890 = vmatprep.subr.bf16.mxu0 0
        %1891 = vmatpush2.bf16.xpose.msra.mxu0 0
        %1892 = vmatprep.subr.bf16.mxu0 0
        %1893 = vmatpush2.bf16.xpose.msra.mxu0 0
        %1894 = vmatprep.subr.bf16.mxu0 0
        %1895 = vmatpush2.bf16.xpose.msra.mxu0 0
        %1896 = vmatprep.subr.bf16.mxu0 0
        %1897 = vmatpush2.bf16.xpose.msra.mxu0 0
        %1898 = vmatprep.subr.bf16.mxu0 0
        %1899 = vmatpush2.bf16.xpose.msra.mxu0 0
        %1900 = vmatprep.subr.bf16.mxu0 0
        %1901 = vmatpush2.bf16.xpose.msra.mxu0 0
        %1902 = vmatprep.subr.bf16.mxu0 0
        %1903 = vmatpush2.bf16.xpose.msra.mxu0 0
        %1904 = vmatprep.mubr.bf16.mxu0 0
        %1905 = vmatmul.mubr.bf16.gmra.mxu0 %v1601
        %v1906 = vpop.f32.mrf.mxu0
        %v1907 = vadd.f32 0.0, %v1906
        %v1908 = vpop.f32.mrf.mxu0
        %v1909 = vpop.f32.mrf.mxu0
        %v1910 = vadd.f32 0.0, %v1909
        %v1911 = vpop.f32.mrf.mxu0
        %1912 = vmatprep.mubr.bf16.mxu0 0
        %1913 = vmatmul.mubr.bf16.gmra.mxu0 %v1602
        %v1914 = vpop.f32.mrf.mxu0
        %v1915 = vadd.f32 0.0, %v1914
        %v1916 = vpop.f32.mrf.mxu0
        %v1917 = vpop.f32.mrf.mxu0
        %v1918 = vadd.f32 0.0, %v1917
        %v1919 = vpop.f32.mrf.mxu0
        %1920 = vmatprep.mubr.bf16.mxu0 0
        %1921 = vmatmul.mubr.bf16.gmra.mxu0 %v1603
        %v1922 = vpop.f32.mrf.mxu0
        %v1923 = vadd.f32 0.0, %v1922
        %v1924 = vpop.f32.mrf.mxu0
        %v1925 = vpop.f32.mrf.mxu0
        %v1926 = vadd.f32 0.0, %v1925
        %v1927 = vpop.f32.mrf.mxu0
        %1928 = vmatprep.mubr.bf16.mxu0 0
        %1929 = vmatmul.mubr.bf16.gmra.mxu0 %v1604
        %v1930 = vpop.f32.mrf.mxu0
        %v1931 = vadd.f32 0.0, %v1930
        %v1932 = vpop.f32.mrf.mxu0
        %v1933 = vpop.f32.mrf.mxu0
        %v1934 = vadd.f32 0.0, %v1933
        %v1935 = vpop.f32.mrf.mxu0
        %1936 = vdwg.mxu0
        %v1937 = vsel %vm578, %v1712, -inf
        %1938 = vmax.xlane.f32.xlu0 %v1937
        %v1939 = vpop.xlane.xlu0 %1938
        %v1940 = vsel %vm578, %v1715, -inf
        %1941 = vmax.xlane.f32.xlu0 %v1940
        %v1942 = vpop.xlane.xlu0 %1941
        %v1943 = vsel %vm578, %v1720, -inf
        %1944 = vmax.xlane.f32.xlu0 %v1943
        %v1945 = vpop.xlane.xlu0 %1944
        %v1946 = vsel %vm578, %v1723, -inf
        %1947 = vmax.xlane.f32.xlu0 %v1946
        %v1948 = vpop.xlane.xlu0 %1947
        %v1949 = vsel %vm578, %v1728, -inf
        %1950 = vmax.xlane.f32.xlu0 %v1949
        %v1951 = vpop.xlane.xlu0 %1950
        %v1952 = vsel %vm578, %v1731, -inf
        %1953 = vmax.xlane.f32.xlu0 %v1952
        %v1954 = vpop.xlane.xlu0 %1953
        %v1955 = vsel %vm578, %v1736, -inf
        %1956 = vmax.xlane.f32.xlu0 %v1955
        %v1957 = vpop.xlane.xlu0 %1956
        %v1958 = vsel %vm578, %v1739, -inf
        %1959 = vmax.xlane.f32.xlu0 %v1958
        %v1960 = vpop.xlane.xlu0 %1959
        %v1961 = vsel %vm578, %v1777, -inf
        %1962 = vmax.xlane.f32.xlu0 %v1961
        %v1963 = vpop.xlane.xlu0 %1962
        %v1964 = vsel %vm578, %v1780, -inf
        %1965 = vmax.xlane.f32.xlu0 %v1964
        %v1966 = vpop.xlane.xlu0 %1965
        %v1967 = vsel %vm578, %v1785, -inf
        %1968 = vmax.xlane.f32.xlu0 %v1967
        %v1969 = vpop.xlane.xlu0 %1968
        %v1970 = vsel %vm578, %v1788, -inf
        %1971 = vmax.xlane.f32.xlu0 %v1970
        %v1972 = vpop.xlane.xlu0 %1971
        %v1973 = vsel %vm578, %v1793, -inf
        %1974 = vmax.xlane.f32.xlu0 %v1973
        %v1975 = vpop.xlane.xlu0 %1974
        %v1976 = vsel %vm578, %v1796, -inf
        %1977 = vmax.xlane.f32.xlu0 %v1976
        %v1978 = vpop.xlane.xlu0 %1977
        %v1979 = vsel %vm578, %v1801, -inf
        %1980 = vmax.xlane.f32.xlu0 %v1979
        %v1981 = vpop.xlane.xlu0 %1980
        %v1982 = vsel %vm578, %v1804, -inf
        %1983 = vmax.xlane.f32.xlu0 %v1982
        %v1984 = vpop.xlane.xlu0 %1983
        %v1985 = vsel %vm578, %v1842, -inf
        %1986 = vmax.xlane.f32.xlu0 %v1985
        %v1987 = vpop.xlane.xlu0 %1986
        %v1988 = vsel %vm578, %v1845, -inf
        %1989 = vmax.xlane.f32.xlu0 %v1988
        %v1990 = vpop.xlane.xlu0 %1989
        %v1991 = vsel %vm578, %v1850, -inf
        %1992 = vmax.xlane.f32.xlu0 %v1991
        %v1993 = vpop.xlane.xlu0 %1992
        %v1994 = vsel %vm578, %v1853, -inf
        %1995 = vmax.xlane.f32.xlu0 %v1994
        %v1996 = vpop.xlane.xlu0 %1995
        %v1997 = vsel %vm578, %v1858, -inf
        %1998 = vmax.xlane.f32.xlu0 %v1997
        %v1999 = vpop.xlane.xlu0 %1998
        %v2000 = vsel %vm578, %v1861, -inf
        %2001 = vmax.xlane.f32.xlu0 %v2000
        %v2002 = vpop.xlane.xlu0 %2001
        %v2003 = vsel %vm578, %v1866, -inf
        %2004 = vmax.xlane.f32.xlu0 %v2003
        %v2005 = vpop.xlane.xlu0 %2004
        %v2006 = vsel %vm578, %v1869, -inf
        %2007 = vmax.xlane.f32.xlu0 %v2006
        %v2008 = vpop.xlane.xlu0 %2007
        %v2009 = vsel %vm578, %v1907, -inf
        %2010 = vmax.xlane.f32.xlu0 %v2009
        %v2011 = vpop.xlane.xlu0 %2010
        %v2012 = vsel %vm578, %v1910, -inf
        %2013 = vmax.xlane.f32.xlu0 %v2012
        %v2014 = vpop.xlane.xlu0 %2013
        %v2015 = vsel %vm578, %v1915, -inf
        %2016 = vmax.xlane.f32.xlu0 %v2015
        %v2017 = vpop.xlane.xlu0 %2016
        %v2018 = vsel %vm578, %v1918, -inf
        %2019 = vmax.xlane.f32.xlu0 %v2018
        %v2020 = vpop.xlane.xlu0 %2019
        %v2021 = vsel %vm578, %v1923, -inf
        %2022 = vmax.xlane.f32.xlu0 %v2021
        %v2023 = vpop.xlane.xlu0 %2022
        %v2024 = vsel %vm578, %v1926, -inf
        %2025 = vmax.xlane.f32.xlu0 %v2024
        %v2026 = vpop.xlane.xlu0 %2025
        %v2027 = vsel %vm578, %v1931, -inf
        %2028 = vmax.xlane.f32.xlu0 %v2027
        %v2029 = vpop.xlane.xlu0 %2028
        %v2030 = vsel %vm578, %v1934, -inf
        %2031 = vmax.xlane.f32.xlu0 %v2030
        %v2032 = vpop.xlane.xlu0 %2031
        %v2033 = vsub.f32 %v1712, %v1939
        %v2034 = vsub.f32 %v1715, %v1942
        %v2035 = vsub.f32 %v1720, %v1945
        %v2036 = vsub.f32 %v1723, %v1948
        %v2037 = vsub.f32 %v1728, %v1951
        %v2038 = vsub.f32 %v1731, %v1954
        %v2039 = vsub.f32 %v1736, %v1957
        %v2040 = vsub.f32 %v1739, %v1960
        %v2041 = vsub.f32 %v1777, %v1963
        %v2042 = vsub.f32 %v1780, %v1966
        %v2043 = vsub.f32 %v1785, %v1969
        %v2044 = vsub.f32 %v1788, %v1972
        %v2045 = vsub.f32 %v1793, %v1975
        %v2046 = vsub.f32 %v1796, %v1978
        %v2047 = vsub.f32 %v1801, %v1981
        %v2048 = vsub.f32 %v1804, %v1984
        %v2049 = vsub.f32 %v1842, %v1987
        %v2050 = vsub.f32 %v1845, %v1990
        %v2051 = vsub.f32 %v1850, %v1993
        %v2052 = vsub.f32 %v1853, %v1996
        %v2053 = vsub.f32 %v1858, %v1999
        %v2054 = vsub.f32 %v1861, %v2002
        %v2055 = vsub.f32 %v1866, %v2005
        %v2056 = vsub.f32 %v1869, %v2008
        %v2057 = vsub.f32 %v1907, %v2011
        %v2058 = vsub.f32 %v1910, %v2014
        %v2059 = vsub.f32 %v1915, %v2017
        %v2060 = vsub.f32 %v1918, %v2020
        %v2061 = vsub.f32 %v1923, %v2023
        %v2062 = vsub.f32 %v1926, %v2026
        %v2063 = vsub.f32 %v1931, %v2029
        %v2064 = vsub.f32 %v1934, %v2032
        %v2065 = vmul.f32 %v2033, 1.442695
        %v2066 = vpow.pop %v2065
        %v2067 = vmul.f32 %v2034, 1.442695
        %v2068 = vpow.pop %v2067
        %v2069 = vmul.f32 %v2035, 1.442695
        %v2070 = vpow.pop %v2069
        %v2071 = vmul.f32 %v2036, 1.442695
        %v2072 = vpow.pop %v2071
        %v2073 = vmul.f32 %v2037, 1.442695
        %v2074 = vpow.pop %v2073
        %v2075 = vmul.f32 %v2038, 1.442695
        %v2076 = vpow.pop %v2075
        %v2077 = vmul.f32 %v2039, 1.442695
        %v2078 = vpow.pop %v2077
        %v2079 = vmul.f32 %v2040, 1.442695
        %v2080 = vpow.pop %v2079
        %v2081 = vmul.f32 %v2041, 1.442695
        %v2082 = vpow.pop %v2081
        %v2083 = vmul.f32 %v2042, 1.442695
        %v2084 = vpow.pop %v2083
        %v2085 = vmul.f32 %v2043, 1.442695
        %v2086 = vpow.pop %v2085
        %v2087 = vmul.f32 %v2044, 1.442695
        %v2088 = vpow.pop %v2087
        %v2089 = vmul.f32 %v2045, 1.442695
        %v2090 = vpow.pop %v2089
        %v2091 = vmul.f32 %v2046, 1.442695
        %v2092 = vpow.pop %v2091
        %v2093 = vmul.f32 %v2047, 1.442695
        %v2094 = vpow.pop %v2093
        %v2095 = vmul.f32 %v2048, 1.442695
        %v2096 = vpow.pop %v2095
        %v2097 = vmul.f32 %v2049, 1.442695
        %v2098 = vpow.pop %v2097
        %v2099 = vmul.f32 %v2050, 1.442695
        %v2100 = vpow.pop %v2099
        %v2101 = vmul.f32 %v2051, 1.442695
        %v2102 = vpow.pop %v2101
        %v2103 = vmul.f32 %v2052, 1.442695
        %v2104 = vpow.pop %v2103
        %v2105 = vmul.f32 %v2053, 1.442695
        %v2106 = vpow.pop %v2105
        %v2107 = vmul.f32 %v2054, 1.442695
        %v2108 = vpow.pop %v2107
        %v2109 = vmul.f32 %v2055, 1.442695
        %v2110 = vpow.pop %v2109
        %v2111 = vmul.f32 %v2056, 1.442695
        %v2112 = vpow.pop %v2111
        %v2113 = vmul.f32 %v2057, 1.442695
        %v2114 = vpow.pop %v2113
        %v2115 = vmul.f32 %v2058, 1.442695
        %v2116 = vpow.pop %v2115
        %v2117 = vmul.f32 %v2059, 1.442695
        %v2118 = vpow.pop %v2117
        %v2119 = vmul.f32 %v2060, 1.442695
        %v2120 = vpow.pop %v2119
        %v2121 = vmul.f32 %v2061, 1.442695
        %v2122 = vpow.pop %v2121
        %v2123 = vmul.f32 %v2062, 1.442695
        %v2124 = vpow.pop %v2123
        %v2125 = vmul.f32 %v2063, 1.442695
        %v2126 = vpow.pop %v2125
        %v2127 = vmul.f32 %v2064, 1.442695
        %v2128 = vpow.pop %v2127
        %v2129 = vsel %vm578, %v2066, 0.0
        %2130 = vadd.xlane.f32.xlu0 %v2129
        %v2131 = vpop.xlane.xlu0 %2130
        %v2132 = vsel %vm578, %v2068, 0.0
        %2133 = vadd.xlane.f32.xlu0 %v2132
        %v2134 = vpop.xlane.xlu0 %2133
        %v2135 = vsel %vm578, %v2070, 0.0
        %2136 = vadd.xlane.f32.xlu0 %v2135
        %v2137 = vpop.xlane.xlu0 %2136
        %v2138 = vsel %vm578, %v2072, 0.0
        %2139 = vadd.xlane.f32.xlu0 %v2138
        %v2140 = vpop.xlane.xlu0 %2139
        %v2141 = vsel %vm578, %v2074, 0.0
        %2142 = vadd.xlane.f32.xlu0 %v2141
        %v2143 = vpop.xlane.xlu0 %2142
        %v2144 = vsel %vm578, %v2076, 0.0
        %2145 = vadd.xlane.f32.xlu0 %v2144
        %v2146 = vpop.xlane.xlu0 %2145
        %v2147 = vsel %vm578, %v2078, 0.0
        %2148 = vadd.xlane.f32.xlu0 %v2147
        %v2149 = vpop.xlane.xlu0 %2148
        %v2150 = vsel %vm578, %v2080, 0.0
        %2151 = vadd.xlane.f32.xlu0 %v2150
        %v2152 = vpop.xlane.xlu0 %2151
        %v2153 = vsel %vm578, %v2082, 0.0
        %2154 = vadd.xlane.f32.xlu0 %v2153
        %v2155 = vpop.xlane.xlu0 %2154
        %v2156 = vsel %vm578, %v2084, 0.0
        %2157 = vadd.xlane.f32.xlu0 %v2156
        %v2158 = vpop.xlane.xlu0 %2157
        %v2159 = vsel %vm578, %v2086, 0.0
        %2160 = vadd.xlane.f32.xlu0 %v2159
        %v2161 = vpop.xlane.xlu0 %2160
        %v2162 = vsel %vm578, %v2088, 0.0
        %2163 = vadd.xlane.f32.xlu0 %v2162
        %v2164 = vpop.xlane.xlu0 %2163
        %v2165 = vsel %vm578, %v2090, 0.0
        %2166 = vadd.xlane.f32.xlu0 %v2165
        %v2167 = vpop.xlane.xlu0 %2166
        %v2168 = vsel %vm578, %v2092, 0.0
        %2169 = vadd.xlane.f32.xlu0 %v2168
        %v2170 = vpop.xlane.xlu0 %2169
        %v2171 = vsel %vm578, %v2094, 0.0
        %2172 = vadd.xlane.f32.xlu0 %v2171
        %v2173 = vpop.xlane.xlu0 %2172
        %v2174 = vsel %vm578, %v2096, 0.0
        %2175 = vadd.xlane.f32.xlu0 %v2174
        %v2176 = vpop.xlane.xlu0 %2175
        %v2177 = vsel %vm578, %v2098, 0.0
        %2178 = vadd.xlane.f32.xlu0 %v2177
        %v2179 = vpop.xlane.xlu0 %2178
        %v2180 = vsel %vm578, %v2100, 0.0
        %2181 = vadd.xlane.f32.xlu0 %v2180
        %v2182 = vpop.xlane.xlu0 %2181
        %v2183 = vsel %vm578, %v2102, 0.0
        %2184 = vadd.xlane.f32.xlu0 %v2183
        %v2185 = vpop.xlane.xlu0 %2184
        %v2186 = vsel %vm578, %v2104, 0.0
        %2187 = vadd.xlane.f32.xlu0 %v2186
        %v2188 = vpop.xlane.xlu0 %2187
        %v2189 = vsel %vm578, %v2106, 0.0
        %2190 = vadd.xlane.f32.xlu0 %v2189
        %v2191 = vpop.xlane.xlu0 %2190
        %v2192 = vsel %vm578, %v2108, 0.0
        %2193 = vadd.xlane.f32.xlu0 %v2192
        %v2194 = vpop.xlane.xlu0 %2193
        %v2195 = vsel %vm578, %v2110, 0.0
        %2196 = vadd.xlane.f32.xlu0 %v2195
        %v2197 = vpop.xlane.xlu0 %2196
        %v2198 = vsel %vm578, %v2112, 0.0
        %2199 = vadd.xlane.f32.xlu0 %v2198
        %v2200 = vpop.xlane.xlu0 %2199
        %v2201 = vsel %vm578, %v2114, 0.0
        %2202 = vadd.xlane.f32.xlu0 %v2201
        %v2203 = vpop.xlane.xlu0 %2202
        %v2204 = vsel %vm578, %v2116, 0.0
        %2205 = vadd.xlane.f32.xlu0 %v2204
        %v2206 = vpop.xlane.xlu0 %2205
        %v2207 = vsel %vm578, %v2118, 0.0
        %2208 = vadd.xlane.f32.xlu0 %v2207
        %v2209 = vpop.xlane.xlu0 %2208
        %v2210 = vsel %vm578, %v2120, 0.0
        %2211 = vadd.xlane.f32.xlu0 %v2210
        %v2212 = vpop.xlane.xlu0 %2211
        %v2213 = vsel %vm578, %v2122, 0.0
        %2214 = vadd.xlane.f32.xlu0 %v2213
        %v2215 = vpop.xlane.xlu0 %2214
        %v2216 = vsel %vm578, %v2124, 0.0
        %2217 = vadd.xlane.f32.xlu0 %v2216
        %v2218 = vpop.xlane.xlu0 %2217
        %v2219 = vsel %vm578, %v2126, 0.0
        %2220 = vadd.xlane.f32.xlu0 %v2219
        %v2221 = vpop.xlane.xlu0 %2220
        %v2222 = vsel %vm578, %v2128, 0.0
        %2223 = vadd.xlane.f32.xlu0 %v2222
        %v2224 = vpop.xlane.xlu0 %2223
        %v2225 = vrcp.pop %v2131
        %v2226 = vrcp.pop %v2134
        %v2227 = vrcp.pop %v2137
        %v2228 = vrcp.pop %v2140
        %v2229 = vrcp.pop %v2143
        %v2230 = vrcp.pop %v2146
        %v2231 = vrcp.pop %v2149
        %v2232 = vrcp.pop %v2152
        %v2233 = vrcp.pop %v2155
        %v2234 = vrcp.pop %v2158
        %v2235 = vrcp.pop %v2161
        %v2236 = vrcp.pop %v2164
        %v2237 = vrcp.pop %v2167
        %v2238 = vrcp.pop %v2170
        %v2239 = vrcp.pop %v2173
        %v2240 = vrcp.pop %v2176
        %v2241 = vrcp.pop %v2179
        %v2242 = vrcp.pop %v2182
        %v2243 = vrcp.pop %v2185
        %v2244 = vrcp.pop %v2188
        %v2245 = vrcp.pop %v2191
        %v2246 = vrcp.pop %v2194
        %v2247 = vrcp.pop %v2197
        %v2248 = vrcp.pop %v2200
        %v2249 = vrcp.pop %v2203
        %v2250 = vrcp.pop %v2206
        %v2251 = vrcp.pop %v2209
        %v2252 = vrcp.pop %v2212
        %v2253 = vrcp.pop %v2215
        %v2254 = vrcp.pop %v2218
        %v2255 = vrcp.pop %v2221
        %v2256 = vrcp.pop %v2224
        %v2257 = vmul.f32 %v2066, %v2225
        %v2258 = vmul.f32 %v2068, %v2226
        %v2259 = vmul.f32 %v2070, %v2227
        %v2260 = vmul.f32 %v2072, %v2228
        %v2261 = vmul.f32 %v2074, %v2229
        %v2262 = vmul.f32 %v2076, %v2230
        %v2263 = vmul.f32 %v2078, %v2231
        %v2264 = vmul.f32 %v2080, %v2232
        %v2265 = vmul.f32 %v2082, %v2233
        %v2266 = vmul.f32 %v2084, %v2234
        %v2267 = vmul.f32 %v2086, %v2235
        %v2268 = vmul.f32 %v2088, %v2236
        %v2269 = vmul.f32 %v2090, %v2237
        %v2270 = vmul.f32 %v2092, %v2238
        %v2271 = vmul.f32 %v2094, %v2239
        %v2272 = vmul.f32 %v2096, %v2240
        %v2273 = vmul.f32 %v2098, %v2241
        %v2274 = vmul.f32 %v2100, %v2242
        %v2275 = vmul.f32 %v2102, %v2243
        %v2276 = vmul.f32 %v2104, %v2244
        %v2277 = vmul.f32 %v2106, %v2245
        %v2278 = vmul.f32 %v2108, %v2246
        %v2279 = vmul.f32 %v2110, %v2247
        %v2280 = vmul.f32 %v2112, %v2248
        %v2281 = vmul.f32 %v2114, %v2249
        %v2282 = vmul.f32 %v2116, %v2250
        %v2283 = vmul.f32 %v2118, %v2251
        %v2284 = vmul.f32 %v2120, %v2252
        %v2285 = vmul.f32 %v2122, %v2253
        %v2286 = vmul.f32 %v2124, %v2254
        %v2287 = vmul.f32 %v2126, %v2255
        %v2288 = vmul.f32 %v2128, %v2256
        %v2289 = vpack.c.bf16 %v2258, %v2257
        %v2290 = vpack.c.bf16 %v2260, %v2259
        %v2291 = vpack.c.bf16 %v2262, %v2261
        %v2292 = vpack.c.bf16 %v2264, %v2263
        %v2293 = vpack.c.bf16 %v2266, %v2265
        %v2294 = vpack.c.bf16 %v2268, %v2267
        %v2295 = vpack.c.bf16 %v2270, %v2269
        %v2296 = vpack.c.bf16 %v2272, %v2271
        %v2297 = vpack.c.bf16 %v2274, %v2273
        %v2298 = vpack.c.bf16 %v2276, %v2275
        %v2299 = vpack.c.bf16 %v2278, %v2277
        %v2300 = vpack.c.bf16 %v2280, %v2279
        %v2301 = vpack.c.bf16 %v2282, %v2281
        %v2302 = vpack.c.bf16 %v2284, %v2283
        %v2303 = vpack.c.bf16 %v2286, %v2285
        %v2304 = vpack.c.bf16 %v2288, %v2287
        %vm2305 = vcmp.ge.s32.totalorder %v1638, 8
        %vm2306 = vcmp.lt.s32.totalorder %v1638, 16
        %vm2307 = vmand %vm2305, %vm2306
        %v2308 = vsel %vm2307, 1, 0
        %v2309 = vcvt.s32.f32 %v2308
        %v2310 = vpack.c.bf16 %v2309, %v2309
        %v2311 = vmul.bf16 %v1605, %v2310
        %v2312 = vmul.bf16 %v1606, %v2310
        %v2313 = vmul.bf16 %v1607, %v2310
        %v2314 = vmul.bf16 %v1608, %v2310
        %v2315 = vmul.bf16 %v1609, %v2310
        %v2316 = vmul.bf16 %v1610, %v2310
        %v2317 = vmul.bf16 %v1611, %v2310
        %v2318 = vmul.bf16 %v1612, %v2310
        %v2319 = vmul.bf16 %v1613, %v2310
        %v2320 = vmul.bf16 %v1614, %v2310
        %v2321 = vmul.bf16 %v1615, %v2310
        %v2322 = vmul.bf16 %v1616, %v2310
        %v2323 = vmul.bf16 %v1617, %v2310
        %v2324 = vmul.bf16 %v1618, %v2310
        %v2325 = vmul.bf16 %v1619, %v2310
        %v2326 = vmul.bf16 %v1620, %v2310
        %v2327 = vmul.bf16 %v1621, %v2310
        %v2328 = vmul.bf16 %v1622, %v2310
        %v2329 = vmul.bf16 %v1623, %v2310
        %v2330 = vmul.bf16 %v1624, %v2310
        %v2331 = vmul.bf16 %v1625, %v2310
        %v2332 = vmul.bf16 %v1626, %v2310
        %v2333 = vmul.bf16 %v1627, %v2310
        %v2334 = vmul.bf16 %v1628, %v2310
        %v2335 = vmul.bf16 %v1629, %v2310
        %v2336 = vmul.bf16 %v1630, %v2310
        %v2337 = vmul.bf16 %v1631, %v2310
        %v2338 = vmul.bf16 %v1632, %v2310
        %v2339 = vmul.bf16 %v1633, %v2310
        %v2340 = vmul.bf16 %v1634, %v2310
        %v2341 = vmul.bf16 %v1635, %v2310
        %v2342 = vmul.bf16 %v1636, %v2310
        %2343 = vmatprep.subr.bf16.mxu0 0
        %2344 = vmatpush1.bf16.xpose.msra.mxu0 0
        %2345 = vmatprep.subr.bf16.mxu0 0
        %2346 = vmatpush1.bf16.xpose.msra.mxu0 0
        %2347 = vmatprep.subr.bf16.mxu0 0
        %2348 = vmatpush1.bf16.xpose.msra.mxu0 0
        %2349 = vmatprep.subr.bf16.mxu0 0
        %2350 = vmatpush1.bf16.xpose.msra.mxu0 0
        %2351 = vmatprep.subr.bf16.mxu0 0
        %2352 = vmatpush1.bf16.xpose.msra.mxu0 %v2314
        %2353 = vmatprep.subr.bf16.mxu0 0
        %2354 = vmatpush1.bf16.xpose.msra.mxu0 %v2313
        %2355 = vmatprep.subr.bf16.mxu0 0
        %2356 = vmatpush1.bf16.xpose.msra.mxu0 %v2312
        %2357 = vmatprep.subr.bf16.mxu0 0
        %2358 = vmatpush1.bf16.xpose.msra.mxu0 %v2311
        %2359 = vmatprep.subr.bf16.mxu0 0
        %2360 = vmatpush2.bf16.xpose.msra.mxu0 0
        %2361 = vmatprep.subr.bf16.mxu0 0
        %2362 = vmatpush2.bf16.xpose.msra.mxu0 0
        %2363 = vmatprep.subr.bf16.mxu0 0
        %2364 = vmatpush2.bf16.xpose.msra.mxu0 0
        %2365 = vmatprep.subr.bf16.mxu0 0
        %2366 = vmatpush2.bf16.xpose.msra.mxu0 0
        %2367 = vmatprep.subr.bf16.mxu0 0
        %2368 = vmatpush2.bf16.xpose.msra.mxu0 0
        %2369 = vmatprep.subr.bf16.mxu0 0
        %2370 = vmatpush2.bf16.xpose.msra.mxu0 0
        %2371 = vmatprep.subr.bf16.mxu0 0
        %2372 = vmatpush2.bf16.xpose.msra.mxu0 0
        %2373 = vmatprep.subr.bf16.mxu0 0
        %2374 = vmatpush2.bf16.xpose.msra.mxu0 0
        %2375 = vmatprep.mubr.bf16.mxu0 0
        %2376 = vmatmul.mubr.bf16.gmra.mxu0 %v1589
        %v2377 = vpop.f32.mrf.mxu0
        %v2378 = vadd.f32 0.0, %v2377
        %v2379 = vpop.f32.mrf.mxu0
        %v2380 = vpop.f32.mrf.mxu0
        %v2381 = vadd.f32 0.0, %v2380
        %v2382 = vpop.f32.mrf.mxu0
        %2383 = vmatprep.mubr.bf16.mxu0 0
        %2384 = vmatmul.mubr.bf16.gmra.mxu0 %v1590
        %v2385 = vpop.f32.mrf.mxu0
        %v2386 = vadd.f32 0.0, %v2385
        %v2387 = vpop.f32.mrf.mxu0
        %v2388 = vpop.f32.mrf.mxu0
        %v2389 = vadd.f32 0.0, %v2388
        %v2390 = vpop.f32.mrf.mxu0
        %2391 = vmatprep.mubr.bf16.mxu0 0
        %2392 = vmatmul.mubr.bf16.gmra.mxu0 %v1591
        %v2393 = vpop.f32.mrf.mxu0
        %v2394 = vadd.f32 0.0, %v2393
        %v2395 = vpop.f32.mrf.mxu0
        %v2396 = vpop.f32.mrf.mxu0
        %v2397 = vadd.f32 0.0, %v2396
        %v2398 = vpop.f32.mrf.mxu0
        %2399 = vmatprep.mubr.bf16.mxu0 0
        %2400 = vmatmul.mubr.bf16.gmra.mxu0 %v1592
        %v2401 = vpop.f32.mrf.mxu0
        %v2402 = vadd.f32 0.0, %v2401
        %v2403 = vpop.f32.mrf.mxu0
        %v2404 = vpop.f32.mrf.mxu0
        %v2405 = vadd.f32 0.0, %v2404
        %v2406 = vpop.f32.mrf.mxu0
        %2407 = vdwg.mxu0
        %2408 = vmatprep.subr.bf16.mxu0 0
        %2409 = vmatpush1.bf16.xpose.msra.mxu0 0
        %2410 = vmatprep.subr.bf16.mxu0 0
        %2411 = vmatpush1.bf16.xpose.msra.mxu0 0
        %2412 = vmatprep.subr.bf16.mxu0 0
        %2413 = vmatpush1.bf16.xpose.msra.mxu0 0
        %2414 = vmatprep.subr.bf16.mxu0 0
        %2415 = vmatpush1.bf16.xpose.msra.mxu0 0
        %2416 = vmatprep.subr.bf16.mxu0 0
        %2417 = vmatpush1.bf16.xpose.msra.mxu0 %v2318
        %2418 = vmatprep.subr.bf16.mxu0 0
        %2419 = vmatpush1.bf16.xpose.msra.mxu0 %v2317
        %2420 = vmatprep.subr.bf16.mxu0 0
        %2421 = vmatpush1.bf16.xpose.msra.mxu0 %v2316
        %2422 = vmatprep.subr.bf16.mxu0 0
        %2423 = vmatpush1.bf16.xpose.msra.mxu0 %v2315
        %2424 = vmatprep.subr.bf16.mxu0 0
        %2425 = vmatpush2.bf16.xpose.msra.mxu0 0
        %2426 = vmatprep.subr.bf16.mxu0 0
        %2427 = vmatpush2.bf16.xpose.msra.mxu0 0
        %2428 = vmatprep.subr.bf16.mxu0 0
        %2429 = vmatpush2.bf16.xpose.msra.mxu0 0
        %2430 = vmatprep.subr.bf16.mxu0 0
        %2431 = vmatpush2.bf16.xpose.msra.mxu0 0
        %2432 = vmatprep.subr.bf16.mxu0 0
        %2433 = vmatpush2.bf16.xpose.msra.mxu0 0
        %2434 = vmatprep.subr.bf16.mxu0 0
        %2435 = vmatpush2.bf16.xpose.msra.mxu0 0
        %2436 = vmatprep.subr.bf16.mxu0 0
        %2437 = vmatpush2.bf16.xpose.msra.mxu0 0
        %2438 = vmatprep.subr.bf16.mxu0 0
        %2439 = vmatpush2.bf16.xpose.msra.mxu0 0
        %2440 = vmatprep.mubr.bf16.mxu0 0
        %2441 = vmatmul.mubr.bf16.gmra.mxu0 %v1593
        %v2442 = vpop.f32.mrf.mxu0
        %v2443 = vadd.f32 0.0, %v2442
        %v2444 = vpop.f32.mrf.mxu0
        %v2445 = vpop.f32.mrf.mxu0
        %v2446 = vadd.f32 0.0, %v2445
        %v2447 = vpop.f32.mrf.mxu0
        %2448 = vmatprep.mubr.bf16.mxu0 0
        %2449 = vmatmul.mubr.bf16.gmra.mxu0 %v1594
        %v2450 = vpop.f32.mrf.mxu0
        %v2451 = vadd.f32 0.0, %v2450
        %v2452 = vpop.f32.mrf.mxu0
        %v2453 = vpop.f32.mrf.mxu0
        %v2454 = vadd.f32 0.0, %v2453
        %v2455 = vpop.f32.mrf.mxu0
        %2456 = vmatprep.mubr.bf16.mxu0 0
        %2457 = vmatmul.mubr.bf16.gmra.mxu0 %v1595
        %v2458 = vpop.f32.mrf.mxu0
        %v2459 = vadd.f32 0.0, %v2458
        %v2460 = vpop.f32.mrf.mxu0
        %v2461 = vpop.f32.mrf.mxu0
        %v2462 = vadd.f32 0.0, %v2461
        %v2463 = vpop.f32.mrf.mxu0
        %2464 = vmatprep.mubr.bf16.mxu0 0
        %2465 = vmatmul.mubr.bf16.gmra.mxu0 %v1596
        %v2466 = vpop.f32.mrf.mxu0
        %v2467 = vadd.f32 0.0, %v2466
        %v2468 = vpop.f32.mrf.mxu0
        %v2469 = vpop.f32.mrf.mxu0
        %v2470 = vadd.f32 0.0, %v2469
        %v2471 = vpop.f32.mrf.mxu0
        %2472 = vdwg.mxu0
        %2473 = vmatprep.subr.bf16.mxu0 0
        %2474 = vmatpush1.bf16.xpose.msra.mxu0 0
        %2475 = vmatprep.subr.bf16.mxu0 0
        %2476 = vmatpush1.bf16.xpose.msra.mxu0 0
        %2477 = vmatprep.subr.bf16.mxu0 0
        %2478 = vmatpush1.bf16.xpose.msra.mxu0 0
        %2479 = vmatprep.subr.bf16.mxu0 0
        %2480 = vmatpush1.bf16.xpose.msra.mxu0 0
        %2481 = vmatprep.subr.bf16.mxu0 0
        %2482 = vmatpush1.bf16.xpose.msra.mxu0 %v2322
        %2483 = vmatprep.subr.bf16.mxu0 0
        %2484 = vmatpush1.bf16.xpose.msra.mxu0 %v2321
        %2485 = vmatprep.subr.bf16.mxu0 0
        %2486 = vmatpush1.bf16.xpose.msra.mxu0 %v2320
        %2487 = vmatprep.subr.bf16.mxu0 0
        %2488 = vmatpush1.bf16.xpose.msra.mxu0 %v2319
        %2489 = vmatprep.subr.bf16.mxu0 0
        %2490 = vmatpush2.bf16.xpose.msra.mxu0 0
        %2491 = vmatprep.subr.bf16.mxu0 0
        %2492 = vmatpush2.bf16.xpose.msra.mxu0 0
        %2493 = vmatprep.subr.bf16.mxu0 0
        %2494 = vmatpush2.bf16.xpose.msra.mxu0 0
        %2495 = vmatprep.subr.bf16.mxu0 0
        %2496 = vmatpush2.bf16.xpose.msra.mxu0 0
        %2497 = vmatprep.subr.bf16.mxu0 0
        %2498 = vmatpush2.bf16.xpose.msra.mxu0 0
        %2499 = vmatprep.subr.bf16.mxu0 0
        %2500 = vmatpush2.bf16.xpose.msra.mxu0 0
        %2501 = vmatprep.subr.bf16.mxu0 0
        %2502 = vmatpush2.bf16.xpose.msra.mxu0 0
        %2503 = vmatprep.subr.bf16.mxu0 0
        %2504 = vmatpush2.bf16.xpose.msra.mxu0 0
        %2505 = vmatprep.mubr.bf16.mxu0 0
        %2506 = vmatmul.mubr.bf16.gmra.mxu0 %v1597
        %v2507 = vpop.f32.mrf.mxu0
        %v2508 = vadd.f32 0.0, %v2507
        %v2509 = vpop.f32.mrf.mxu0
        %v2510 = vpop.f32.mrf.mxu0
        %v2511 = vadd.f32 0.0, %v2510
        %v2512 = vpop.f32.mrf.mxu0
        %2513 = vmatprep.mubr.bf16.mxu0 0
        %2514 = vmatmul.mubr.bf16.gmra.mxu0 %v1598
        %v2515 = vpop.f32.mrf.mxu0
        %v2516 = vadd.f32 0.0, %v2515
        %v2517 = vpop.f32.mrf.mxu0
        %v2518 = vpop.f32.mrf.mxu0
        %v2519 = vadd.f32 0.0, %v2518
        %v2520 = vpop.f32.mrf.mxu0
        %2521 = vmatprep.mubr.bf16.mxu0 0
        %2522 = vmatmul.mubr.bf16.gmra.mxu0 %v1599
        %v2523 = vpop.f32.mrf.mxu0
        %v2524 = vadd.f32 0.0, %v2523
        %v2525 = vpop.f32.mrf.mxu0
        %v2526 = vpop.f32.mrf.mxu0
        %v2527 = vadd.f32 0.0, %v2526
        %v2528 = vpop.f32.mrf.mxu0
        %2529 = vmatprep.mubr.bf16.mxu0 0
        %2530 = vmatmul.mubr.bf16.gmra.mxu0 %v1600
        %v2531 = vpop.f32.mrf.mxu0
        %v2532 = vadd.f32 0.0, %v2531
        %v2533 = vpop.f32.mrf.mxu0
        %v2534 = vpop.f32.mrf.mxu0
        %v2535 = vadd.f32 0.0, %v2534
        %v2536 = vpop.f32.mrf.mxu0
        %2537 = vdwg.mxu0
        %2538 = vmatprep.subr.bf16.mxu0 0
        %2539 = vmatpush1.bf16.xpose.msra.mxu0 0
        %2540 = vmatprep.subr.bf16.mxu0 0
        %2541 = vmatpush1.bf16.xpose.msra.mxu0 0
        %2542 = vmatprep.subr.bf16.mxu0 0
        %2543 = vmatpush1.bf16.xpose.msra.mxu0 0
        %2544 = vmatprep.subr.bf16.mxu0 0
        %2545 = vmatpush1.bf16.xpose.msra.mxu0 0
        %2546 = vmatprep.subr.bf16.mxu0 0
        %2547 = vmatpush1.bf16.xpose.msra.mxu0 %v2326
        %2548 = vmatprep.subr.bf16.mxu0 0
        %2549 = vmatpush1.bf16.xpose.msra.mxu0 %v2325
        %2550 = vmatprep.subr.bf16.mxu0 0
        %2551 = vmatpush1.bf16.xpose.msra.mxu0 %v2324
        %2552 = vmatprep.subr.bf16.mxu0 0
        %2553 = vmatpush1.bf16.xpose.msra.mxu0 %v2323
        %2554 = vmatprep.subr.bf16.mxu0 0
        %2555 = vmatpush2.bf16.xpose.msra.mxu0 0
        %2556 = vmatprep.subr.bf16.mxu0 0
        %2557 = vmatpush2.bf16.xpose.msra.mxu0 0
        %2558 = vmatprep.subr.bf16.mxu0 0
        %2559 = vmatpush2.bf16.xpose.msra.mxu0 0
        %2560 = vmatprep.subr.bf16.mxu0 0
        %2561 = vmatpush2.bf16.xpose.msra.mxu0 0
        %2562 = vmatprep.subr.bf16.mxu0 0
        %2563 = vmatpush2.bf16.xpose.msra.mxu0 0
        %2564 = vmatprep.subr.bf16.mxu0 0
        %2565 = vmatpush2.bf16.xpose.msra.mxu0 0
        %2566 = vmatprep.subr.bf16.mxu0 0
        %2567 = vmatpush2.bf16.xpose.msra.mxu0 0
        %2568 = vmatprep.subr.bf16.mxu0 0
        %2569 = vmatpush2.bf16.xpose.msra.mxu0 0
        %2570 = vmatprep.mubr.bf16.mxu0 0
        %2571 = vmatmul.mubr.bf16.gmra.mxu0 %v1601
        %v2572 = vpop.f32.mrf.mxu0
        %v2573 = vadd.f32 0.0, %v2572
        %v2574 = vpop.f32.mrf.mxu0
        %v2575 = vpop.f32.mrf.mxu0
        %v2576 = vadd.f32 0.0, %v2575
        %v2577 = vpop.f32.mrf.mxu0
        %2578 = vmatprep.mubr.bf16.mxu0 0
        %2579 = vmatmul.mubr.bf16.gmra.mxu0 %v1602
        %v2580 = vpop.f32.mrf.mxu0
        %v2581 = vadd.f32 0.0, %v2580
        %v2582 = vpop.f32.mrf.mxu0
        %v2583 = vpop.f32.mrf.mxu0
        %v2584 = vadd.f32 0.0, %v2583
        %v2585 = vpop.f32.mrf.mxu0
        %2586 = vmatprep.mubr.bf16.mxu0 0
        %2587 = vmatmul.mubr.bf16.gmra.mxu0 %v1603
        %v2588 = vpop.f32.mrf.mxu0
        %v2589 = vadd.f32 0.0, %v2588
        %v2590 = vpop.f32.mrf.mxu0
        %v2591 = vpop.f32.mrf.mxu0
        %v2592 = vadd.f32 0.0, %v2591
        %v2593 = vpop.f32.mrf.mxu0
        %2594 = vmatprep.mubr.bf16.mxu0 0
        %2595 = vmatmul.mubr.bf16.gmra.mxu0 %v1604
        %v2596 = vpop.f32.mrf.mxu0
        %v2597 = vadd.f32 0.0, %v2596
        %v2598 = vpop.f32.mrf.mxu0
        %v2599 = vpop.f32.mrf.mxu0
        %v2600 = vadd.f32 0.0, %v2599
        %v2601 = vpop.f32.mrf.mxu0
        %2602 = vdwg.mxu0
        %v2603 = vsel %vm578, %v2378, -inf
        %2604 = vmax.xlane.f32.xlu0 %v2603
        %v2605 = vpop.xlane.xlu0 %2604
        %v2606 = vsel %vm578, %v2381, -inf
        %2607 = vmax.xlane.f32.xlu0 %v2606
        %v2608 = vpop.xlane.xlu0 %2607
        %v2609 = vsel %vm578, %v2386, -inf
        %2610 = vmax.xlane.f32.xlu0 %v2609
        %v2611 = vpop.xlane.xlu0 %2610
        %v2612 = vsel %vm578, %v2389, -inf
        %2613 = vmax.xlane.f32.xlu0 %v2612
        %v2614 = vpop.xlane.xlu0 %2613
        %v2615 = vsel %vm578, %v2394, -inf
        %2616 = vmax.xlane.f32.xlu0 %v2615
        %v2617 = vpop.xlane.xlu0 %2616
        %v2618 = vsel %vm578, %v2397, -inf
        %2619 = vmax.xlane.f32.xlu0 %v2618
        %v2620 = vpop.xlane.xlu0 %2619
        %v2621 = vsel %vm578, %v2402, -inf
        %2622 = vmax.xlane.f32.xlu0 %v2621
        %v2623 = vpop.xlane.xlu0 %2622
        %v2624 = vsel %vm578, %v2405, -inf
        %2625 = vmax.xlane.f32.xlu0 %v2624
        %v2626 = vpop.xlane.xlu0 %2625
        %v2627 = vsel %vm578, %v2443, -inf
        %2628 = vmax.xlane.f32.xlu0 %v2627
        %v2629 = vpop.xlane.xlu0 %2628
        %v2630 = vsel %vm578, %v2446, -inf
        %2631 = vmax.xlane.f32.xlu0 %v2630
        %v2632 = vpop.xlane.xlu0 %2631
        %v2633 = vsel %vm578, %v2451, -inf
        %2634 = vmax.xlane.f32.xlu0 %v2633
        %v2635 = vpop.xlane.xlu0 %2634
        %v2636 = vsel %vm578, %v2454, -inf
        %2637 = vmax.xlane.f32.xlu0 %v2636
        %v2638 = vpop.xlane.xlu0 %2637
        %v2639 = vsel %vm578, %v2459, -inf
        %2640 = vmax.xlane.f32.xlu0 %v2639
        %v2641 = vpop.xlane.xlu0 %2640
        %v2642 = vsel %vm578, %v2462, -inf
        %2643 = vmax.xlane.f32.xlu0 %v2642
        %v2644 = vpop.xlane.xlu0 %2643
        %v2645 = vsel %vm578, %v2467, -inf
        %2646 = vmax.xlane.f32.xlu0 %v2645
        %v2647 = vpop.xlane.xlu0 %2646
        %v2648 = vsel %vm578, %v2470, -inf
        %2649 = vmax.xlane.f32.xlu0 %v2648
        %v2650 = vpop.xlane.xlu0 %2649
        %v2651 = vsel %vm578, %v2508, -inf
        %2652 = vmax.xlane.f32.xlu0 %v2651
        %v2653 = vpop.xlane.xlu0 %2652
        %v2654 = vsel %vm578, %v2511, -inf
        %2655 = vmax.xlane.f32.xlu0 %v2654
        %v2656 = vpop.xlane.xlu0 %2655
        %v2657 = vsel %vm578, %v2516, -inf
        %2658 = vmax.xlane.f32.xlu0 %v2657
        %v2659 = vpop.xlane.xlu0 %2658
        %v2660 = vsel %vm578, %v2519, -inf
        %2661 = vmax.xlane.f32.xlu0 %v2660
        %v2662 = vpop.xlane.xlu0 %2661
        %v2663 = vsel %vm578, %v2524, -inf
        %2664 = vmax.xlane.f32.xlu0 %v2663
        %v2665 = vpop.xlane.xlu0 %2664
        %v2666 = vsel %vm578, %v2527, -inf
        %2667 = vmax.xlane.f32.xlu0 %v2666
        %v2668 = vpop.xlane.xlu0 %2667
        %v2669 = vsel %vm578, %v2532, -inf
        %2670 = vmax.xlane.f32.xlu0 %v2669
        %v2671 = vpop.xlane.xlu0 %2670
        %v2672 = vsel %vm578, %v2535, -inf
        %2673 = vmax.xlane.f32.xlu0 %v2672
        %v2674 = vpop.xlane.xlu0 %2673
        %v2675 = vsel %vm578, %v2573, -inf
        %2676 = vmax.xlane.f32.xlu0 %v2675
        %v2677 = vpop.xlane.xlu0 %2676
        %v2678 = vsel %vm578, %v2576, -inf
        %2679 = vmax.xlane.f32.xlu0 %v2678
        %v2680 = vpop.xlane.xlu0 %2679
        %v2681 = vsel %vm578, %v2581, -inf
        %2682 = vmax.xlane.f32.xlu0 %v2681
        %v2683 = vpop.xlane.xlu0 %2682
        %v2684 = vsel %vm578, %v2584, -inf
        %2685 = vmax.xlane.f32.xlu0 %v2684
        %v2686 = vpop.xlane.xlu0 %2685
        %v2687 = vsel %vm578, %v2589, -inf
        %2688 = vmax.xlane.f32.xlu0 %v2687
        %v2689 = vpop.xlane.xlu0 %2688
        %v2690 = vsel %vm578, %v2592, -inf
        %2691 = vmax.xlane.f32.xlu0 %v2690
        %v2692 = vpop.xlane.xlu0 %2691
        %v2693 = vsel %vm578, %v2597, -inf
        %2694 = vmax.xlane.f32.xlu0 %v2693
        %v2695 = vpop.xlane.xlu0 %2694
        %v2696 = vsel %vm578, %v2600, -inf
        %2697 = vmax.xlane.f32.xlu0 %v2696
        %v2698 = vpop.xlane.xlu0 %2697
        %v2699 = vsub.f32 %v2378, %v2605
        %v2700 = vsub.f32 %v2381, %v2608
        %v2701 = vsub.f32 %v2386, %v2611
        %v2702 = vsub.f32 %v2389, %v2614
        %v2703 = vsub.f32 %v2394, %v2617
        %v2704 = vsub.f32 %v2397, %v2620
        %v2705 = vsub.f32 %v2402, %v2623
        %v2706 = vsub.f32 %v2405, %v2626
        %v2707 = vsub.f32 %v2443, %v2629
        %v2708 = vsub.f32 %v2446, %v2632
        %v2709 = vsub.f32 %v2451, %v2635
        %v2710 = vsub.f32 %v2454, %v2638
        %v2711 = vsub.f32 %v2459, %v2641
        %v2712 = vsub.f32 %v2462, %v2644
        %v2713 = vsub.f32 %v2467, %v2647
        %v2714 = vsub.f32 %v2470, %v2650
        %v2715 = vsub.f32 %v2508, %v2653
        %v2716 = vsub.f32 %v2511, %v2656
        %v2717 = vsub.f32 %v2516, %v2659
        %v2718 = vsub.f32 %v2519, %v2662
        %v2719 = vsub.f32 %v2524, %v2665
        %v2720 = vsub.f32 %v2527, %v2668
        %v2721 = vsub.f32 %v2532, %v2671
        %v2722 = vsub.f32 %v2535, %v2674
        %v2723 = vsub.f32 %v2573, %v2677
        %v2724 = vsub.f32 %v2576, %v2680
        %v2725 = vsub.f32 %v2581, %v2683
        %v2726 = vsub.f32 %v2584, %v2686
        %v2727 = vsub.f32 %v2589, %v2689
        %v2728 = vsub.f32 %v2592, %v2692
        %v2729 = vsub.f32 %v2597, %v2695
        %v2730 = vsub.f32 %v2600, %v2698
        %v2731 = vmul.f32 %v2699, 1.442695
        %v2732 = vpow.pop %v2731
        %v2733 = vmul.f32 %v2700, 1.442695
        %v2734 = vpow.pop %v2733
        %v2735 = vmul.f32 %v2701, 1.442695
        %v2736 = vpow.pop %v2735
        %v2737 = vmul.f32 %v2702, 1.442695
        %v2738 = vpow.pop %v2737
        %v2739 = vmul.f32 %v2703, 1.442695
        %v2740 = vpow.pop %v2739
        %v2741 = vmul.f32 %v2704, 1.442695
        %v2742 = vpow.pop %v2741
        %v2743 = vmul.f32 %v2705, 1.442695
        %v2744 = vpow.pop %v2743
        %v2745 = vmul.f32 %v2706, 1.442695
        %v2746 = vpow.pop %v2745
        %v2747 = vmul.f32 %v2707, 1.442695
        %v2748 = vpow.pop %v2747
        %v2749 = vmul.f32 %v2708, 1.442695
        %v2750 = vpow.pop %v2749
        %v2751 = vmul.f32 %v2709, 1.442695
        %v2752 = vpow.pop %v2751
        %v2753 = vmul.f32 %v2710, 1.442695
        %v2754 = vpow.pop %v2753
        %v2755 = vmul.f32 %v2711, 1.442695
        %v2756 = vpow.pop %v2755
        %v2757 = vmul.f32 %v2712, 1.442695
        %v2758 = vpow.pop %v2757
        %v2759 = vmul.f32 %v2713, 1.442695
        %v2760 = vpow.pop %v2759
        %v2761 = vmul.f32 %v2714, 1.442695
        %v2762 = vpow.pop %v2761
        %v2763 = vmul.f32 %v2715, 1.442695
        %v2764 = vpow.pop %v2763
        %v2765 = vmul.f32 %v2716, 1.442695
        %v2766 = vpow.pop %v2765
        %v2767 = vmul.f32 %v2717, 1.442695
        %v2768 = vpow.pop %v2767
        %v2769 = vmul.f32 %v2718, 1.442695
        %v2770 = vpow.pop %v2769
        %v2771 = vmul.f32 %v2719, 1.442695
        %v2772 = vpow.pop %v2771
        %v2773 = vmul.f32 %v2720, 1.442695
        %v2774 = vpow.pop %v2773
        %v2775 = vmul.f32 %v2721, 1.442695
        %v2776 = vpow.pop %v2775
        %v2777 = vmul.f32 %v2722, 1.442695
        %v2778 = vpow.pop %v2777
        %v2779 = vmul.f32 %v2723, 1.442695
        %v2780 = vpow.pop %v2779
        %v2781 = vmul.f32 %v2724, 1.442695
        %v2782 = vpow.pop %v2781
        %v2783 = vmul.f32 %v2725, 1.442695
        %v2784 = vpow.pop %v2783
        %v2785 = vmul.f32 %v2726, 1.442695
        %v2786 = vpow.pop %v2785
        %v2787 = vmul.f32 %v2727, 1.442695
        %v2788 = vpow.pop %v2787
        %v2789 = vmul.f32 %v2728, 1.442695
        %v2790 = vpow.pop %v2789
        %v2791 = vmul.f32 %v2729, 1.442695
        %v2792 = vpow.pop %v2791
        %v2793 = vmul.f32 %v2730, 1.442695
        %v2794 = vpow.pop %v2793
        %v2795 = vsel %vm578, %v2732, 0.0
        %2796 = vadd.xlane.f32.xlu0 %v2795
        %v2797 = vpop.xlane.xlu0 %2796
        %v2798 = vsel %vm578, %v2734, 0.0
        %2799 = vadd.xlane.f32.xlu0 %v2798
        %v2800 = vpop.xlane.xlu0 %2799
        %v2801 = vsel %vm578, %v2736, 0.0
        %2802 = vadd.xlane.f32.xlu0 %v2801
        %v2803 = vpop.xlane.xlu0 %2802
        %v2804 = vsel %vm578, %v2738, 0.0
        %2805 = vadd.xlane.f32.xlu0 %v2804
        %v2806 = vpop.xlane.xlu0 %2805
        %v2807 = vsel %vm578, %v2740, 0.0
        %2808 = vadd.xlane.f32.xlu0 %v2807
        %v2809 = vpop.xlane.xlu0 %2808
        %v2810 = vsel %vm578, %v2742, 0.0
        %2811 = vadd.xlane.f32.xlu0 %v2810
        %v2812 = vpop.xlane.xlu0 %2811
        %v2813 = vsel %vm578, %v2744, 0.0
        %2814 = vadd.xlane.f32.xlu0 %v2813
        %v2815 = vpop.xlane.xlu0 %2814
        %v2816 = vsel %vm578, %v2746, 0.0
        %2817 = vadd.xlane.f32.xlu0 %v2816
        %v2818 = vpop.xlane.xlu0 %2817
        %v2819 = vsel %vm578, %v2748, 0.0
        %2820 = vadd.xlane.f32.xlu0 %v2819
        %v2821 = vpop.xlane.xlu0 %2820
        %v2822 = vsel %vm578, %v2750, 0.0
        %2823 = vadd.xlane.f32.xlu0 %v2822
        %v2824 = vpop.xlane.xlu0 %2823
        %v2825 = vsel %vm578, %v2752, 0.0
        %2826 = vadd.xlane.f32.xlu0 %v2825
        %v2827 = vpop.xlane.xlu0 %2826
        %v2828 = vsel %vm578, %v2754, 0.0
        %2829 = vadd.xlane.f32.xlu0 %v2828
        %v2830 = vpop.xlane.xlu0 %2829
        %v2831 = vsel %vm578, %v2756, 0.0
        %2832 = vadd.xlane.f32.xlu0 %v2831
        %v2833 = vpop.xlane.xlu0 %2832
        %v2834 = vsel %vm578, %v2758, 0.0
        %2835 = vadd.xlane.f32.xlu0 %v2834
        %v2836 = vpop.xlane.xlu0 %2835
        %v2837 = vsel %vm578, %v2760, 0.0
        %2838 = vadd.xlane.f32.xlu0 %v2837
        %v2839 = vpop.xlane.xlu0 %2838
        %v2840 = vsel %vm578, %v2762, 0.0
        %2841 = vadd.xlane.f32.xlu0 %v2840
        %v2842 = vpop.xlane.xlu0 %2841
        %v2843 = vsel %vm578, %v2764, 0.0
        %2844 = vadd.xlane.f32.xlu0 %v2843
        %v2845 = vpop.xlane.xlu0 %2844
        %v2846 = vsel %vm578, %v2766, 0.0
        %2847 = vadd.xlane.f32.xlu0 %v2846
        %v2848 = vpop.xlane.xlu0 %2847
        %v2849 = vsel %vm578, %v2768, 0.0
        %2850 = vadd.xlane.f32.xlu0 %v2849
        %v2851 = vpop.xlane.xlu0 %2850
        %v2852 = vsel %vm578, %v2770, 0.0
        %2853 = vadd.xlane.f32.xlu0 %v2852
        %v2854 = vpop.xlane.xlu0 %2853
        %v2855 = vsel %vm578, %v2772, 0.0
        %2856 = vadd.xlane.f32.xlu0 %v2855
        %v2857 = vpop.xlane.xlu0 %2856
        %v2858 = vsel %vm578, %v2774, 0.0
        %2859 = vadd.xlane.f32.xlu0 %v2858
        %v2860 = vpop.xlane.xlu0 %2859
        %v2861 = vsel %vm578, %v2776, 0.0
        %2862 = vadd.xlane.f32.xlu0 %v2861
        %v2863 = vpop.xlane.xlu0 %2862
        %v2864 = vsel %vm578, %v2778, 0.0
        %2865 = vadd.xlane.f32.xlu0 %v2864
        %v2866 = vpop.xlane.xlu0 %2865
        %v2867 = vsel %vm578, %v2780, 0.0
        %2868 = vadd.xlane.f32.xlu0 %v2867
        %v2869 = vpop.xlane.xlu0 %2868
        %v2870 = vsel %vm578, %v2782, 0.0
        %2871 = vadd.xlane.f32.xlu0 %v2870
        %v2872 = vpop.xlane.xlu0 %2871
        %v2873 = vsel %vm578, %v2784, 0.0
        %2874 = vadd.xlane.f32.xlu0 %v2873
        %v2875 = vpop.xlane.xlu0 %2874
        %v2876 = vsel %vm578, %v2786, 0.0
        %2877 = vadd.xlane.f32.xlu0 %v2876
        %v2878 = vpop.xlane.xlu0 %2877
        %v2879 = vsel %vm578, %v2788, 0.0
        %2880 = vadd.xlane.f32.xlu0 %v2879
        %v2881 = vpop.xlane.xlu0 %2880
        %v2882 = vsel %vm578, %v2790, 0.0
        %2883 = vadd.xlane.f32.xlu0 %v2882
        %v2884 = vpop.xlane.xlu0 %2883
        %v2885 = vsel %vm578, %v2792, 0.0
        %2886 = vadd.xlane.f32.xlu0 %v2885
        %v2887 = vpop.xlane.xlu0 %2886
        %v2888 = vsel %vm578, %v2794, 0.0
        %2889 = vadd.xlane.f32.xlu0 %v2888
        %v2890 = vpop.xlane.xlu0 %2889
        %v2891 = vrcp.pop %v2797
        %v2892 = vrcp.pop %v2800
        %v2893 = vrcp.pop %v2803
        %v2894 = vrcp.pop %v2806
        %v2895 = vrcp.pop %v2809
        %v2896 = vrcp.pop %v2812
        %v2897 = vrcp.pop %v2815
        %v2898 = vrcp.pop %v2818
        %v2899 = vrcp.pop %v2821
        %v2900 = vrcp.pop %v2824
        %v2901 = vrcp.pop %v2827
        %v2902 = vrcp.pop %v2830
        %v2903 = vrcp.pop %v2833
        %v2904 = vrcp.pop %v2836
        %v2905 = vrcp.pop %v2839
        %v2906 = vrcp.pop %v2842
        %v2907 = vrcp.pop %v2845
        %v2908 = vrcp.pop %v2848
        %v2909 = vrcp.pop %v2851
        %v2910 = vrcp.pop %v2854
        %v2911 = vrcp.pop %v2857
        %v2912 = vrcp.pop %v2860
        %v2913 = vrcp.pop %v2863
        %v2914 = vrcp.pop %v2866
        %v2915 = vrcp.pop %v2869
        %v2916 = vrcp.pop %v2872
        %v2917 = vrcp.pop %v2875
        %v2918 = vrcp.pop %v2878
        %v2919 = vrcp.pop %v2881
        %v2920 = vrcp.pop %v2884
        %v2921 = vrcp.pop %v2887
        %v2922 = vrcp.pop %v2890
        %v2923 = vmul.f32 %v2732, %v2891
        %v2924 = vmul.f32 %v2734, %v2892
        %v2925 = vmul.f32 %v2736, %v2893
        %v2926 = vmul.f32 %v2738, %v2894
        %v2927 = vmul.f32 %v2740, %v2895
        %v2928 = vmul.f32 %v2742, %v2896
        %v2929 = vmul.f32 %v2744, %v2897
        %v2930 = vmul.f32 %v2746, %v2898
        %v2931 = vmul.f32 %v2748, %v2899
        %v2932 = vmul.f32 %v2750, %v2900
        %v2933 = vmul.f32 %v2752, %v2901
        %v2934 = vmul.f32 %v2754, %v2902
        %v2935 = vmul.f32 %v2756, %v2903
        %v2936 = vmul.f32 %v2758, %v2904
        %v2937 = vmul.f32 %v2760, %v2905
        %v2938 = vmul.f32 %v2762, %v2906
        %v2939 = vmul.f32 %v2764, %v2907
        %v2940 = vmul.f32 %v2766, %v2908
        %v2941 = vmul.f32 %v2768, %v2909
        %v2942 = vmul.f32 %v2770, %v2910
        %v2943 = vmul.f32 %v2772, %v2911
        %v2944 = vmul.f32 %v2774, %v2912
        %v2945 = vmul.f32 %v2776, %v2913
        %v2946 = vmul.f32 %v2778, %v2914
        %v2947 = vmul.f32 %v2780, %v2915
        %v2948 = vmul.f32 %v2782, %v2916
        %v2949 = vmul.f32 %v2784, %v2917
        %v2950 = vmul.f32 %v2786, %v2918
        %v2951 = vmul.f32 %v2788, %v2919
        %v2952 = vmul.f32 %v2790, %v2920
        %v2953 = vmul.f32 %v2792, %v2921
        %v2954 = vmul.f32 %v2794, %v2922
        %v2955 = vpack.c.bf16 %v2924, %v2923
        %v2956 = vpack.c.bf16 %v2926, %v2925
        %v2957 = vpack.c.bf16 %v2928, %v2927
        %v2958 = vpack.c.bf16 %v2930, %v2929
        %v2959 = vpack.c.bf16 %v2932, %v2931
        %v2960 = vpack.c.bf16 %v2934, %v2933
        %v2961 = vpack.c.bf16 %v2936, %v2935
        %v2962 = vpack.c.bf16 %v2938, %v2937
        %v2963 = vpack.c.bf16 %v2940, %v2939
        %v2964 = vpack.c.bf16 %v2942, %v2941
        %v2965 = vpack.c.bf16 %v2944, %v2943
        %v2966 = vpack.c.bf16 %v2946, %v2945
        %v2967 = vpack.c.bf16 %v2948, %v2947
        %v2968 = vpack.c.bf16 %v2950, %v2949
        %v2969 = vpack.c.bf16 %v2952, %v2951
        %v2970 = vpack.c.bf16 %v2954, %v2953
        %v2972 = vsel %vm578, %v2955, 0
        %v2975 = vsel %vm578, %v2956, 0
        %v2978 = vsel %vm578, %v2957, 0
        %v2981 = vsel %vm578, %v2958, 0
        %2983 = vmatprep.subr.bf16.mxu0 0
        %2984 = vmatpush1.bf16.msra.mxu0 0
        %2985 = vmatprep.subr.bf16.mxu0 0
        %2986 = vmatpush1.bf16.msra.mxu0 0
        %2987 = vmatprep.subr.bf16.mxu0 0
        %2988 = vmatpush1.bf16.msra.mxu0 0
        %2989 = vmatprep.subr.bf16.mxu0 0
        %2990 = vmatpush1.bf16.msra.mxu0 0
        %2991 = vmatprep.subr.bf16.mxu0 0
        %2992 = vmatpush1.bf16.msra.mxu0 %v2330
        %2993 = vmatprep.subr.bf16.mxu0 0
        %2994 = vmatpush1.bf16.msra.mxu0 %v2329
        %2995 = vmatprep.subr.bf16.mxu0 0
        %2996 = vmatpush1.bf16.msra.mxu0 %v2328
        %2997 = vmatprep.subr.bf16.mxu0 0
        %2998 = vmatpush1.bf16.msra.mxu0 %v2327
        %2999 = vmatprep.subr.bf16.mxu0 0
        %3000 = vmatpush2.bf16.msra.mxu0 0
        %3001 = vmatprep.subr.bf16.mxu0 0
        %3002 = vmatpush2.bf16.msra.mxu0 0
        %3003 = vmatprep.subr.bf16.mxu0 0
        %3004 = vmatpush2.bf16.msra.mxu0 0
        %3005 = vmatprep.subr.bf16.mxu0 0
        %3006 = vmatpush2.bf16.msra.mxu0 0
        %3007 = vmatprep.subr.bf16.mxu0 0
        %3008 = vmatpush2.bf16.msra.mxu0 0
        %3009 = vmatprep.subr.bf16.mxu0 0
        %3010 = vmatpush2.bf16.msra.mxu0 0
        %3011 = vmatprep.subr.bf16.mxu0 0
        %3012 = vmatpush2.bf16.msra.mxu0 0
        %3013 = vmatprep.subr.bf16.mxu0 0
        %3014 = vmatpush2.bf16.msra.mxu0 0
        %3015 = vmatprep.mubr.bf16.mxu0 0
        %3016 = vmatmul.mubr.bf16.gmra.mxu0 %v2972
        %v3017 = vpop.f32.mrf.mxu0
        %v3018 = vadd.f32 0.0, %v3017
        %v3019 = vpop.f32.mrf.mxu0
        %v3020 = vpop.f32.mrf.mxu0
        %v3021 = vadd.f32 0.0, %v3020
        %v3022 = vpop.f32.mrf.mxu0
        %3023 = vmatprep.mubr.bf16.mxu0 0
        %3024 = vmatmul.mubr.bf16.gmra.mxu0 %v2975
        %v3025 = vpop.f32.mrf.mxu0
        %v3026 = vadd.f32 0.0, %v3025
        %v3027 = vpop.f32.mrf.mxu0
        %v3028 = vpop.f32.mrf.mxu0
        %v3029 = vadd.f32 0.0, %v3028
        %v3030 = vpop.f32.mrf.mxu0
        %3031 = vmatprep.mubr.bf16.mxu0 0
        %3032 = vmatmul.mubr.bf16.gmra.mxu0 %v2978
        %v3033 = vpop.f32.mrf.mxu0
        %v3034 = vadd.f32 0.0, %v3033
        %v3035 = vpop.f32.mrf.mxu0
        %v3036 = vpop.f32.mrf.mxu0
        %v3037 = vadd.f32 0.0, %v3036
        %v3038 = vpop.f32.mrf.mxu0
        %3039 = vmatprep.mubr.bf16.mxu0 0
        %3040 = vmatmul.mubr.bf16.gmra.mxu0 %v2981
        %v3041 = vpop.f32.mrf.mxu0
        %v3042 = vadd.f32 0.0, %v3041
        %v3043 = vpop.f32.mrf.mxu0
        %v3044 = vpop.f32.mrf.mxu0
        %v3045 = vadd.f32 0.0, %v3044
        %v3046 = vpop.f32.mrf.mxu0
        %3047 = vdwg.mxu0
        %v3049 = vsel %vm578, %v2959, 0
        %v3052 = vsel %vm578, %v2960, 0
        %v3055 = vsel %vm578, %v2961, 0
        %v3058 = vsel %vm578, %v2962, 0
        %3060 = vmatprep.subr.bf16.mxu0 0
        %3061 = vmatpush1.bf16.msra.mxu0 0
        %3062 = vmatprep.subr.bf16.mxu0 0
        %3063 = vmatpush1.bf16.msra.mxu0 0
        %3064 = vmatprep.subr.bf16.mxu0 0
        %3065 = vmatpush1.bf16.msra.mxu0 0
        %3066 = vmatprep.subr.bf16.mxu0 0
        %3067 = vmatpush1.bf16.msra.mxu0 0
        %3068 = vmatprep.subr.bf16.mxu0 0
        %3069 = vmatpush1.bf16.msra.mxu0 %v2334
        %3070 = vmatprep.subr.bf16.mxu0 0
        %3071 = vmatpush1.bf16.msra.mxu0 %v2333
        %3072 = vmatprep.subr.bf16.mxu0 0
        %3073 = vmatpush1.bf16.msra.mxu0 %v2332
        %3074 = vmatprep.subr.bf16.mxu0 0
        %3075 = vmatpush1.bf16.msra.mxu0 %v2331
        %3076 = vmatprep.subr.bf16.mxu0 0
        %3077 = vmatpush2.bf16.msra.mxu0 0
        %3078 = vmatprep.subr.bf16.mxu0 0
        %3079 = vmatpush2.bf16.msra.mxu0 0
        %3080 = vmatprep.subr.bf16.mxu0 0
        %3081 = vmatpush2.bf16.msra.mxu0 0
        %3082 = vmatprep.subr.bf16.mxu0 0
        %3083 = vmatpush2.bf16.msra.mxu0 0
        %3084 = vmatprep.subr.bf16.mxu0 0
        %3085 = vmatpush2.bf16.msra.mxu0 0
        %3086 = vmatprep.subr.bf16.mxu0 0
        %3087 = vmatpush2.bf16.msra.mxu0 0
        %3088 = vmatprep.subr.bf16.mxu0 0
        %3089 = vmatpush2.bf16.msra.mxu0 0
        %3090 = vmatprep.subr.bf16.mxu0 0
        %3091 = vmatpush2.bf16.msra.mxu0 0
        %3092 = vmatprep.mubr.bf16.mxu0 0
        %3093 = vmatmul.mubr.bf16.gmra.mxu0 %v3049
        %v3094 = vpop.f32.mrf.mxu0
        %v3095 = vadd.f32 0.0, %v3094
        %v3096 = vpop.f32.mrf.mxu0
        %v3097 = vpop.f32.mrf.mxu0
        %v3098 = vadd.f32 0.0, %v3097
        %v3099 = vpop.f32.mrf.mxu0
        %3100 = vmatprep.mubr.bf16.mxu0 0
        %3101 = vmatmul.mubr.bf16.gmra.mxu0 %v3052
        %v3102 = vpop.f32.mrf.mxu0
        %v3103 = vadd.f32 0.0, %v3102
        %v3104 = vpop.f32.mrf.mxu0
        %v3105 = vpop.f32.mrf.mxu0
        %v3106 = vadd.f32 0.0, %v3105
        %v3107 = vpop.f32.mrf.mxu0
        %3108 = vmatprep.mubr.bf16.mxu0 0
        %3109 = vmatmul.mubr.bf16.gmra.mxu0 %v3055
        %v3110 = vpop.f32.mrf.mxu0
        %v3111 = vadd.f32 0.0, %v3110
        %v3112 = vpop.f32.mrf.mxu0
        %v3113 = vpop.f32.mrf.mxu0
        %v3114 = vadd.f32 0.0, %v3113
        %v3115 = vpop.f32.mrf.mxu0
        %3116 = vmatprep.mubr.bf16.mxu0 0
        %3117 = vmatmul.mubr.bf16.gmra.mxu0 %v3058
        %v3118 = vpop.f32.mrf.mxu0
        %v3119 = vadd.f32 0.0, %v3118
        %v3120 = vpop.f32.mrf.mxu0
        %v3121 = vpop.f32.mrf.mxu0
        %v3122 = vadd.f32 0.0, %v3121
        %v3123 = vpop.f32.mrf.mxu0
        %3124 = vdwg.mxu0
        %v3126 = vsel %vm578, %v2963, 0
        %v3129 = vsel %vm578, %v2964, 0
        %v3132 = vsel %vm578, %v2965, 0
        %v3135 = vsel %vm578, %v2966, 0
        %3137 = vmatprep.subr.bf16.mxu0 0
        %3138 = vmatpush1.bf16.msra.mxu0 0
        %3139 = vmatprep.subr.bf16.mxu0 0
        %3140 = vmatpush1.bf16.msra.mxu0 0
        %3141 = vmatprep.subr.bf16.mxu0 0
        %3142 = vmatpush1.bf16.msra.mxu0 0
        %3143 = vmatprep.subr.bf16.mxu0 0
        %3144 = vmatpush1.bf16.msra.mxu0 0
        %3145 = vmatprep.subr.bf16.mxu0 0
        %3146 = vmatpush1.bf16.msra.mxu0 %v2338
        %3147 = vmatprep.subr.bf16.mxu0 0
        %3148 = vmatpush1.bf16.msra.mxu0 %v2337
        %3149 = vmatprep.subr.bf16.mxu0 0
        %3150 = vmatpush1.bf16.msra.mxu0 %v2336
        %3151 = vmatprep.subr.bf16.mxu0 0
        %3152 = vmatpush1.bf16.msra.mxu0 %v2335
        %3153 = vmatprep.subr.bf16.mxu0 0
        %3154 = vmatpush2.bf16.msra.mxu0 0
        %3155 = vmatprep.subr.bf16.mxu0 0
        %3156 = vmatpush2.bf16.msra.mxu0 0
        %3157 = vmatprep.subr.bf16.mxu0 0
        %3158 = vmatpush2.bf16.msra.mxu0 0
        %3159 = vmatprep.subr.bf16.mxu0 0
        %3160 = vmatpush2.bf16.msra.mxu0 0
        %3161 = vmatprep.subr.bf16.mxu0 0
        %3162 = vmatpush2.bf16.msra.mxu0 0
        %3163 = vmatprep.subr.bf16.mxu0 0
        %3164 = vmatpush2.bf16.msra.mxu0 0
        %3165 = vmatprep.subr.bf16.mxu0 0
        %3166 = vmatpush2.bf16.msra.mxu0 0
        %3167 = vmatprep.subr.bf16.mxu0 0
        %3168 = vmatpush2.bf16.msra.mxu0 0
        %3169 = vmatprep.mubr.bf16.mxu0 0
        %3170 = vmatmul.mubr.bf16.gmra.mxu0 %v3126
        %v3171 = vpop.f32.mrf.mxu0
        %v3172 = vadd.f32 0.0, %v3171
        %v3173 = vpop.f32.mrf.mxu0
        %v3174 = vpop.f32.mrf.mxu0
        %v3175 = vadd.f32 0.0, %v3174
        %v3176 = vpop.f32.mrf.mxu0
        %3177 = vmatprep.mubr.bf16.mxu0 0
        %3178 = vmatmul.mubr.bf16.gmra.mxu0 %v3129
        %v3179 = vpop.f32.mrf.mxu0
        %v3180 = vadd.f32 0.0, %v3179
        %v3181 = vpop.f32.mrf.mxu0
        %v3182 = vpop.f32.mrf.mxu0
        %v3183 = vadd.f32 0.0, %v3182
        %v3184 = vpop.f32.mrf.mxu0
        %3185 = vmatprep.mubr.bf16.mxu0 0
        %3186 = vmatmul.mubr.bf16.gmra.mxu0 %v3132
        %v3187 = vpop.f32.mrf.mxu0
        %v3188 = vadd.f32 0.0, %v3187
        %v3189 = vpop.f32.mrf.mxu0
        %v3190 = vpop.f32.mrf.mxu0
        %v3191 = vadd.f32 0.0, %v3190
        %v3192 = vpop.f32.mrf.mxu0
        %3193 = vmatprep.mubr.bf16.mxu0 0
        %3194 = vmatmul.mubr.bf16.gmra.mxu0 %v3135
        %v3195 = vpop.f32.mrf.mxu0
        %v3196 = vadd.f32 0.0, %v3195
        %v3197 = vpop.f32.mrf.mxu0
        %v3198 = vpop.f32.mrf.mxu0
        %v3199 = vadd.f32 0.0, %v3198
        %v3200 = vpop.f32.mrf.mxu0
        %3201 = vdwg.mxu0
        %v3203 = vsel %vm578, %v2967, 0
        %v3206 = vsel %vm578, %v2968, 0
        %v3209 = vsel %vm578, %v2969, 0
        %v3212 = vsel %vm578, %v2970, 0
        %3214 = vmatprep.subr.bf16.mxu0 0
        %3215 = vmatpush1.bf16.msra.mxu0 0
        %3216 = vmatprep.subr.bf16.mxu0 0
        %3217 = vmatpush1.bf16.msra.mxu0 0
        %3218 = vmatprep.subr.bf16.mxu0 0
        %3219 = vmatpush1.bf16.msra.mxu0 0
        %3220 = vmatprep.subr.bf16.mxu0 0
        %3221 = vmatpush1.bf16.msra.mxu0 0
        %3222 = vmatprep.subr.bf16.mxu0 0
        %3223 = vmatpush1.bf16.msra.mxu0 %v2342
        %3224 = vmatprep.subr.bf16.mxu0 0
        %3225 = vmatpush1.bf16.msra.mxu0 %v2341
        %3226 = vmatprep.subr.bf16.mxu0 0
        %3227 = vmatpush1.bf16.msra.mxu0 %v2340
        %3228 = vmatprep.subr.bf16.mxu0 0
        %3229 = vmatpush1.bf16.msra.mxu0 %v2339
        %3230 = vmatprep.subr.bf16.mxu0 0
        %3231 = vmatpush2.bf16.msra.mxu0 0
        %3232 = vmatprep.subr.bf16.mxu0 0
        %3233 = vmatpush2.bf16.msra.mxu0 0
        %3234 = vmatprep.subr.bf16.mxu0 0
        %3235 = vmatpush2.bf16.msra.mxu0 0
        %3236 = vmatprep.subr.bf16.mxu0 0
        %3237 = vmatpush2.bf16.msra.mxu0 0
        %3238 = vmatprep.subr.bf16.mxu0 0
        %3239 = vmatpush2.bf16.msra.mxu0 0
        %3240 = vmatprep.subr.bf16.mxu0 0
        %3241 = vmatpush2.bf16.msra.mxu0 0
        %3242 = vmatprep.subr.bf16.mxu0 0
        %3243 = vmatpush2.bf16.msra.mxu0 0
        %3244 = vmatprep.subr.bf16.mxu0 0
        %3245 = vmatpush2.bf16.msra.mxu0 0
        %3246 = vmatprep.mubr.bf16.mxu0 0
        %3247 = vmatmul.mubr.bf16.gmra.mxu0 %v3203
        %v3248 = vpop.f32.mrf.mxu0
        %v3249 = vadd.f32 0.0, %v3248
        %v3250 = vpop.f32.mrf.mxu0
        %v3251 = vpop.f32.mrf.mxu0
        %v3252 = vadd.f32 0.0, %v3251
        %v3253 = vpop.f32.mrf.mxu0
        %3254 = vmatprep.mubr.bf16.mxu0 0
        %3255 = vmatmul.mubr.bf16.gmra.mxu0 %v3206
        %v3256 = vpop.f32.mrf.mxu0
        %v3257 = vadd.f32 0.0, %v3256
        %v3258 = vpop.f32.mrf.mxu0
        %v3259 = vpop.f32.mrf.mxu0
        %v3260 = vadd.f32 0.0, %v3259
        %v3261 = vpop.f32.mrf.mxu0
        %3262 = vmatprep.mubr.bf16.mxu0 0
        %3263 = vmatmul.mubr.bf16.gmra.mxu0 %v3209
        %v3264 = vpop.f32.mrf.mxu0
        %v3265 = vadd.f32 0.0, %v3264
        %v3266 = vpop.f32.mrf.mxu0
        %v3267 = vpop.f32.mrf.mxu0
        %v3268 = vadd.f32 0.0, %v3267
        %v3269 = vpop.f32.mrf.mxu0
        %3270 = vmatprep.mubr.bf16.mxu0 0
        %3271 = vmatmul.mubr.bf16.gmra.mxu0 %v3212
        %v3272 = vpop.f32.mrf.mxu0
        %v3273 = vadd.f32 0.0, %v3272
        %v3274 = vpop.f32.mrf.mxu0
        %v3275 = vpop.f32.mrf.mxu0
        %v3276 = vadd.f32 0.0, %v3275
        %v3277 = vpop.f32.mrf.mxu0
        %3278 = vdwg.mxu0
        %v3280 = vsel %vm578, %v2289, 0
        %v3283 = vsel %vm578, %v2290, 0
        %v3286 = vsel %vm578, %v2291, 0
        %v3289 = vsel %vm578, %v2292, 0
        %3291 = vmatprep.subr.bf16.mxu0 0
        %3292 = vmatpush1.bf16.msra.mxu0 0
        %3293 = vmatprep.subr.bf16.mxu0 0
        %3294 = vmatpush1.bf16.msra.mxu0 0
        %3295 = vmatprep.subr.bf16.mxu0 0
        %3296 = vmatpush1.bf16.msra.mxu0 0
        %3297 = vmatprep.subr.bf16.mxu0 0
        %3298 = vmatpush1.bf16.msra.mxu0 0
        %3299 = vmatprep.subr.bf16.mxu0 0
        %3300 = vmatpush1.bf16.msra.mxu0 %v1664
        %3301 = vmatprep.subr.bf16.mxu0 0
        %3302 = vmatpush1.bf16.msra.mxu0 %v1663
        %3303 = vmatprep.subr.bf16.mxu0 0
        %3304 = vmatpush1.bf16.msra.mxu0 %v1662
        %3305 = vmatprep.subr.bf16.mxu0 0
        %3306 = vmatpush1.bf16.msra.mxu0 %v1661
        %3307 = vmatprep.subr.bf16.mxu0 0
        %3308 = vmatpush2.bf16.msra.mxu0 0
        %3309 = vmatprep.subr.bf16.mxu0 0
        %3310 = vmatpush2.bf16.msra.mxu0 0
        %3311 = vmatprep.subr.bf16.mxu0 0
        %3312 = vmatpush2.bf16.msra.mxu0 0
        %3313 = vmatprep.subr.bf16.mxu0 0
        %3314 = vmatpush2.bf16.msra.mxu0 0
        %3315 = vmatprep.subr.bf16.mxu0 0
        %3316 = vmatpush2.bf16.msra.mxu0 0
        %3317 = vmatprep.subr.bf16.mxu0 0
        %3318 = vmatpush2.bf16.msra.mxu0 0
        %3319 = vmatprep.subr.bf16.mxu0 0
        %3320 = vmatpush2.bf16.msra.mxu0 0
        %3321 = vmatprep.subr.bf16.mxu0 0
        %3322 = vmatpush2.bf16.msra.mxu0 0
        %3323 = vmatprep.mubr.bf16.mxu0 0
        %3324 = vmatmul.mubr.bf16.gmra.mxu0 %v3280
        %v3325 = vpop.f32.mrf.mxu0
        %v3326 = vadd.f32 %v3018, %v3325
        %v3327 = vpop.f32.mrf.mxu0
        %v3328 = vpop.f32.mrf.mxu0
        %v3329 = vadd.f32 %v3021, %v3328
        %v3330 = vpop.f32.mrf.mxu0
        %3331 = vmatprep.mubr.bf16.mxu0 0
        %3332 = vmatmul.mubr.bf16.gmra.mxu0 %v3283
        %v3333 = vpop.f32.mrf.mxu0
        %v3334 = vadd.f32 %v3026, %v3333
        %v3335 = vpop.f32.mrf.mxu0
        %v3336 = vpop.f32.mrf.mxu0
        %v3337 = vadd.f32 %v3029, %v3336
        %v3338 = vpop.f32.mrf.mxu0
        %3339 = vmatprep.mubr.bf16.mxu0 0
        %3340 = vmatmul.mubr.bf16.gmra.mxu0 %v3286
        %v3341 = vpop.f32.mrf.mxu0
        %v3342 = vadd.f32 %v3034, %v3341
        %v3343 = vpop.f32.mrf.mxu0
        %v3344 = vpop.f32.mrf.mxu0
        %v3345 = vadd.f32 %v3037, %v3344
        %v3346 = vpop.f32.mrf.mxu0
        %3347 = vmatprep.mubr.bf16.mxu0 0
        %3348 = vmatmul.mubr.bf16.gmra.mxu0 %v3289
        %v3349 = vpop.f32.mrf.mxu0
        %v3350 = vadd.f32 %v3042, %v3349
        %v3351 = vpop.f32.mrf.mxu0
        %v3352 = vpop.f32.mrf.mxu0
        %v3353 = vadd.f32 %v3045, %v3352
        %v3354 = vpop.f32.mrf.mxu0
        %3355 = vdwg.mxu0
        %v3357 = vsel %vm578, %v2293, 0
        %v3360 = vsel %vm578, %v2294, 0
        %v3363 = vsel %vm578, %v2295, 0
        %v3366 = vsel %vm578, %v2296, 0
        %3368 = vmatprep.subr.bf16.mxu0 0
        %3369 = vmatpush1.bf16.msra.mxu0 0
        %3370 = vmatprep.subr.bf16.mxu0 0
        %3371 = vmatpush1.bf16.msra.mxu0 0
        %3372 = vmatprep.subr.bf16.mxu0 0
        %3373 = vmatpush1.bf16.msra.mxu0 0
        %3374 = vmatprep.subr.bf16.mxu0 0
        %3375 = vmatpush1.bf16.msra.mxu0 0
        %3376 = vmatprep.subr.bf16.mxu0 0
        %3377 = vmatpush1.bf16.msra.mxu0 %v1668
        %3378 = vmatprep.subr.bf16.mxu0 0
        %3379 = vmatpush1.bf16.msra.mxu0 %v1667
        %3380 = vmatprep.subr.bf16.mxu0 0
        %3381 = vmatpush1.bf16.msra.mxu0 %v1666
        %3382 = vmatprep.subr.bf16.mxu0 0
        %3383 = vmatpush1.bf16.msra.mxu0 %v1665
        %3384 = vmatprep.subr.bf16.mxu0 0
        %3385 = vmatpush2.bf16.msra.mxu0 0
        %3386 = vmatprep.subr.bf16.mxu0 0
        %3387 = vmatpush2.bf16.msra.mxu0 0
        %3388 = vmatprep.subr.bf16.mxu0 0
        %3389 = vmatpush2.bf16.msra.mxu0 0
        %3390 = vmatprep.subr.bf16.mxu0 0
        %3391 = vmatpush2.bf16.msra.mxu0 0
        %3392 = vmatprep.subr.bf16.mxu0 0
        %3393 = vmatpush2.bf16.msra.mxu0 0
        %3394 = vmatprep.subr.bf16.mxu0 0
        %3395 = vmatpush2.bf16.msra.mxu0 0
        %3396 = vmatprep.subr.bf16.mxu0 0
        %3397 = vmatpush2.bf16.msra.mxu0 0
        %3398 = vmatprep.subr.bf16.mxu0 0
        %3399 = vmatpush2.bf16.msra.mxu0 0
        %3400 = vmatprep.mubr.bf16.mxu0 0
        %3401 = vmatmul.mubr.bf16.gmra.mxu0 %v3357
        %v3402 = vpop.f32.mrf.mxu0
        %v3403 = vadd.f32 %v3095, %v3402
        %v3404 = vpop.f32.mrf.mxu0
        %v3405 = vpop.f32.mrf.mxu0
        %v3406 = vadd.f32 %v3098, %v3405
        %v3407 = vpop.f32.mrf.mxu0
        %3408 = vmatprep.mubr.bf16.mxu0 0
        %3409 = vmatmul.mubr.bf16.gmra.mxu0 %v3360
        %v3410 = vpop.f32.mrf.mxu0
        %v3411 = vadd.f32 %v3103, %v3410
        %v3412 = vpop.f32.mrf.mxu0
        %v3413 = vpop.f32.mrf.mxu0
        %v3414 = vadd.f32 %v3106, %v3413
        %v3415 = vpop.f32.mrf.mxu0
        %3416 = vmatprep.mubr.bf16.mxu0 0
        %3417 = vmatmul.mubr.bf16.gmra.mxu0 %v3363
        %v3418 = vpop.f32.mrf.mxu0
        %v3419 = vadd.f32 %v3111, %v3418
        %v3420 = vpop.f32.mrf.mxu0
        %v3421 = vpop.f32.mrf.mxu0
        %v3422 = vadd.f32 %v3114, %v3421
        %v3423 = vpop.f32.mrf.mxu0
        %3424 = vmatprep.mubr.bf16.mxu0 0
        %3425 = vmatmul.mubr.bf16.gmra.mxu0 %v3366
        %v3426 = vpop.f32.mrf.mxu0
        %v3427 = vadd.f32 %v3119, %v3426
        %v3428 = vpop.f32.mrf.mxu0
        %v3429 = vpop.f32.mrf.mxu0
        %v3430 = vadd.f32 %v3122, %v3429
        %v3431 = vpop.f32.mrf.mxu0
        %3432 = vdwg.mxu0
        %v3434 = vsel %vm578, %v2297, 0
        %v3437 = vsel %vm578, %v2298, 0
        %v3440 = vsel %vm578, %v2299, 0
        %v3443 = vsel %vm578, %v2300, 0
        %3445 = vmatprep.subr.bf16.mxu0 0
        %3446 = vmatpush1.bf16.msra.mxu0 0
        %3447 = vmatprep.subr.bf16.mxu0 0
        %3448 = vmatpush1.bf16.msra.mxu0 0
        %3449 = vmatprep.subr.bf16.mxu0 0
        %3450 = vmatpush1.bf16.msra.mxu0 0
        %3451 = vmatprep.subr.bf16.mxu0 0
        %3452 = vmatpush1.bf16.msra.mxu0 0
        %3453 = vmatprep.subr.bf16.mxu0 0
        %3454 = vmatpush1.bf16.msra.mxu0 %v1672
        %3455 = vmatprep.subr.bf16.mxu0 0
        %3456 = vmatpush1.bf16.msra.mxu0 %v1671
        %3457 = vmatprep.subr.bf16.mxu0 0
        %3458 = vmatpush1.bf16.msra.mxu0 %v1670
        %3459 = vmatprep.subr.bf16.mxu0 0
        %3460 = vmatpush1.bf16.msra.mxu0 %v1669
        %3461 = vmatprep.subr.bf16.mxu0 0
        %3462 = vmatpush2.bf16.msra.mxu0 0
        %3463 = vmatprep.subr.bf16.mxu0 0
        %3464 = vmatpush2.bf16.msra.mxu0 0
        %3465 = vmatprep.subr.bf16.mxu0 0
        %3466 = vmatpush2.bf16.msra.mxu0 0
        %3467 = vmatprep.subr.bf16.mxu0 0
        %3468 = vmatpush2.bf16.msra.mxu0 0
        %3469 = vmatprep.subr.bf16.mxu0 0
        %3470 = vmatpush2.bf16.msra.mxu0 0
        %3471 = vmatprep.subr.bf16.mxu0 0
        %3472 = vmatpush2.bf16.msra.mxu0 0
        %3473 = vmatprep.subr.bf16.mxu0 0
        %3474 = vmatpush2.bf16.msra.mxu0 0
        %3475 = vmatprep.subr.bf16.mxu0 0
        %3476 = vmatpush2.bf16.msra.mxu0 0
        %3477 = vmatprep.mubr.bf16.mxu0 0
        %3478 = vmatmul.mubr.bf16.gmra.mxu0 %v3434
        %v3479 = vpop.f32.mrf.mxu0
        %v3480 = vadd.f32 %v3172, %v3479
        %v3481 = vpop.f32.mrf.mxu0
        %v3482 = vpop.f32.mrf.mxu0
        %v3483 = vadd.f32 %v3175, %v3482
        %v3484 = vpop.f32.mrf.mxu0
        %3485 = vmatprep.mubr.bf16.mxu0 0
        %3486 = vmatmul.mubr.bf16.gmra.mxu0 %v3437
        %v3487 = vpop.f32.mrf.mxu0
        %v3488 = vadd.f32 %v3180, %v3487
        %v3489 = vpop.f32.mrf.mxu0
        %v3490 = vpop.f32.mrf.mxu0
        %v3491 = vadd.f32 %v3183, %v3490
        %v3492 = vpop.f32.mrf.mxu0
        %3493 = vmatprep.mubr.bf16.mxu0 0
        %3494 = vmatmul.mubr.bf16.gmra.mxu0 %v3440
        %v3495 = vpop.f32.mrf.mxu0
        %v3496 = vadd.f32 %v3188, %v3495
        %v3497 = vpop.f32.mrf.mxu0
        %v3498 = vpop.f32.mrf.mxu0
        %v3499 = vadd.f32 %v3191, %v3498
        %v3500 = vpop.f32.mrf.mxu0
        %3501 = vmatprep.mubr.bf16.mxu0 0
        %3502 = vmatmul.mubr.bf16.gmra.mxu0 %v3443
        %v3503 = vpop.f32.mrf.mxu0
        %v3504 = vadd.f32 %v3196, %v3503
        %v3505 = vpop.f32.mrf.mxu0
        %v3506 = vpop.f32.mrf.mxu0
        %v3507 = vadd.f32 %v3199, %v3506
        %v3508 = vpop.f32.mrf.mxu0
        %3509 = vdwg.mxu0
        %v3511 = vsel %vm578, %v2301, 0
        %v3514 = vsel %vm578, %v2302, 0
        %v3517 = vsel %vm578, %v2303, 0
        %v3520 = vsel %vm578, %v2304, 0
        %3522 = vmatprep.subr.bf16.mxu0 0
        %3523 = vmatpush1.bf16.msra.mxu0 0
        %3524 = vmatprep.subr.bf16.mxu0 0
        %3525 = vmatpush1.bf16.msra.mxu0 0
        %3526 = vmatprep.subr.bf16.mxu0 0
        %3527 = vmatpush1.bf16.msra.mxu0 0
        %3528 = vmatprep.subr.bf16.mxu0 0
        %3529 = vmatpush1.bf16.msra.mxu0 0
        %3530 = vmatprep.subr.bf16.mxu0 0
        %3531 = vmatpush1.bf16.msra.mxu0 %v1676
        %3532 = vmatprep.subr.bf16.mxu0 0
        %3533 = vmatpush1.bf16.msra.mxu0 %v1675
        %3534 = vmatprep.subr.bf16.mxu0 0
        %3535 = vmatpush1.bf16.msra.mxu0 %v1674
        %3536 = vmatprep.subr.bf16.mxu0 0
        %3537 = vmatpush1.bf16.msra.mxu0 %v1673
        %3538 = vmatprep.subr.bf16.mxu0 0
        %3539 = vmatpush2.bf16.msra.mxu0 0
        %3540 = vmatprep.subr.bf16.mxu0 0
        %3541 = vmatpush2.bf16.msra.mxu0 0
        %3542 = vmatprep.subr.bf16.mxu0 0
        %3543 = vmatpush2.bf16.msra.mxu0 0
        %3544 = vmatprep.subr.bf16.mxu0 0
        %3545 = vmatpush2.bf16.msra.mxu0 0
        %3546 = vmatprep.subr.bf16.mxu0 0
        %3547 = vmatpush2.bf16.msra.mxu0 0
        %3548 = vmatprep.subr.bf16.mxu0 0
        %3549 = vmatpush2.bf16.msra.mxu0 0
        %3550 = vmatprep.subr.bf16.mxu0 0
        %3551 = vmatpush2.bf16.msra.mxu0 0
        %3552 = vmatprep.subr.bf16.mxu0 0
        %3553 = vmatpush2.bf16.msra.mxu0 0
        %3554 = vmatprep.mubr.bf16.mxu0 0
        %3555 = vmatmul.mubr.bf16.gmra.mxu0 %v3511
        %v3556 = vpop.f32.mrf.mxu0
        %v3557 = vadd.f32 %v3249, %v3556
        %v3558 = vpop.f32.mrf.mxu0
        %v3559 = vpop.f32.mrf.mxu0
        %v3560 = vadd.f32 %v3252, %v3559
        %v3561 = vpop.f32.mrf.mxu0
        %3562 = vmatprep.mubr.bf16.mxu0 0
        %3563 = vmatmul.mubr.bf16.gmra.mxu0 %v3514
        %v3564 = vpop.f32.mrf.mxu0
        %v3565 = vadd.f32 %v3257, %v3564
        %v3566 = vpop.f32.mrf.mxu0
        %v3567 = vpop.f32.mrf.mxu0
        %v3568 = vadd.f32 %v3260, %v3567
        %v3569 = vpop.f32.mrf.mxu0
        %3570 = vmatprep.mubr.bf16.mxu0 0
        %3571 = vmatmul.mubr.bf16.gmra.mxu0 %v3517
        %v3572 = vpop.f32.mrf.mxu0
        %v3573 = vadd.f32 %v3265, %v3572
        %v3574 = vpop.f32.mrf.mxu0
        %v3575 = vpop.f32.mrf.mxu0
        %v3576 = vadd.f32 %v3268, %v3575
        %v3577 = vpop.f32.mrf.mxu0
        %3578 = vmatprep.mubr.bf16.mxu0 0
        %3579 = vmatmul.mubr.bf16.gmra.mxu0 %v3520
        %v3580 = vpop.f32.mrf.mxu0
        %v3581 = vadd.f32 %v3273, %v3580
        %v3582 = vpop.f32.mrf.mxu0
        %v3583 = vpop.f32.mrf.mxu0
        %v3584 = vadd.f32 %v3276, %v3583
        %v3585 = vpop.f32.mrf.mxu0
        %3586 = vdwg.mxu0
        %vm3587 = vcmp.ge.s32.totalorder %v1638, 16
        %vm3588 = vcmp.lt.s32.totalorder %v1638, 24
        %vm3589 = vmand %vm3587, %vm3588
        %v3590 = vsel %vm3589, 1, 0
        %v3591 = vcvt.s32.f32 %v3590
        %v3592 = vpack.c.bf16 %v3591, %v3591
        %v3593 = vmul.bf16 %v1605, %v3592
        %v3594 = vmul.bf16 %v1606, %v3592
        %v3595 = vmul.bf16 %v1607, %v3592
        %v3596 = vmul.bf16 %v1608, %v3592
        %v3597 = vmul.bf16 %v1609, %v3592
        %v3598 = vmul.bf16 %v1610, %v3592
        %v3599 = vmul.bf16 %v1611, %v3592
        %v3600 = vmul.bf16 %v1612, %v3592
        %v3601 = vmul.bf16 %v1613, %v3592
        %v3602 = vmul.bf16 %v1614, %v3592
        %v3603 = vmul.bf16 %v1615, %v3592
        %v3604 = vmul.bf16 %v1616, %v3592
        %v3605 = vmul.bf16 %v1617, %v3592
        %v3606 = vmul.bf16 %v1618, %v3592
        %v3607 = vmul.bf16 %v1619, %v3592
        %v3608 = vmul.bf16 %v1620, %v3592
        %v3609 = vmul.bf16 %v1621, %v3592
        %v3610 = vmul.bf16 %v1622, %v3592
        %v3611 = vmul.bf16 %v1623, %v3592
        %v3612 = vmul.bf16 %v1624, %v3592
        %v3613 = vmul.bf16 %v1625, %v3592
        %v3614 = vmul.bf16 %v1626, %v3592
        %v3615 = vmul.bf16 %v1627, %v3592
        %v3616 = vmul.bf16 %v1628, %v3592
        %v3617 = vmul.bf16 %v1629, %v3592
        %v3618 = vmul.bf16 %v1630, %v3592
        %v3619 = vmul.bf16 %v1631, %v3592
        %v3620 = vmul.bf16 %v1632, %v3592
        %v3621 = vmul.bf16 %v1633, %v3592
        %v3622 = vmul.bf16 %v1634, %v3592
        %v3623 = vmul.bf16 %v1635, %v3592
        %v3624 = vmul.bf16 %v1636, %v3592
        %3625 = vmatprep.subr.bf16.mxu0 0
        %3626 = vmatpush1.bf16.xpose.msra.mxu0 0
        %3627 = vmatprep.subr.bf16.mxu0 0
        %3628 = vmatpush1.bf16.xpose.msra.mxu0 0
        %3629 = vmatprep.subr.bf16.mxu0 0
        %3630 = vmatpush1.bf16.xpose.msra.mxu0 0
        %3631 = vmatprep.subr.bf16.mxu0 0
        %3632 = vmatpush1.bf16.xpose.msra.mxu0 0
        %3633 = vmatprep.subr.bf16.mxu0 0
        %3634 = vmatpush1.bf16.xpose.msra.mxu0 %v3596
        %3635 = vmatprep.subr.bf16.mxu0 0
        %3636 = vmatpush1.bf16.xpose.msra.mxu0 %v3595
        %3637 = vmatprep.subr.bf16.mxu0 0
        %3638 = vmatpush1.bf16.xpose.msra.mxu0 %v3594
        %3639 = vmatprep.subr.bf16.mxu0 0
        %3640 = vmatpush1.bf16.xpose.msra.mxu0 %v3593
        %3641 = vmatprep.subr.bf16.mxu0 0
        %3642 = vmatpush2.bf16.xpose.msra.mxu0 0
        %3643 = vmatprep.subr.bf16.mxu0 0
        %3644 = vmatpush2.bf16.xpose.msra.mxu0 0
        %3645 = vmatprep.subr.bf16.mxu0 0
        %3646 = vmatpush2.bf16.xpose.msra.mxu0 0
        %3647 = vmatprep.subr.bf16.mxu0 0
        %3648 = vmatpush2.bf16.xpose.msra.mxu0 0
        %3649 = vmatprep.subr.bf16.mxu0 0
        %3650 = vmatpush2.bf16.xpose.msra.mxu0 0
        %3651 = vmatprep.subr.bf16.mxu0 0
        %3652 = vmatpush2.bf16.xpose.msra.mxu0 0
        %3653 = vmatprep.subr.bf16.mxu0 0
        %3654 = vmatpush2.bf16.xpose.msra.mxu0 0
        %3655 = vmatprep.subr.bf16.mxu0 0
        %3656 = vmatpush2.bf16.xpose.msra.mxu0 0
        %3657 = vmatprep.mubr.bf16.mxu0 0
        %3658 = vmatmul.mubr.bf16.gmra.mxu0 %v1589
        %v3659 = vpop.f32.mrf.mxu0
        %v3660 = vadd.f32 0.0, %v3659
        %v3661 = vpop.f32.mrf.mxu0
        %v3662 = vpop.f32.mrf.mxu0
        %v3663 = vadd.f32 0.0, %v3662
        %v3664 = vpop.f32.mrf.mxu0
        %3665 = vmatprep.mubr.bf16.mxu0 0
        %3666 = vmatmul.mubr.bf16.gmra.mxu0 %v1590
        %v3667 = vpop.f32.mrf.mxu0
        %v3668 = vadd.f32 0.0, %v3667
        %v3669 = vpop.f32.mrf.mxu0
        %v3670 = vpop.f32.mrf.mxu0
        %v3671 = vadd.f32 0.0, %v3670
        %v3672 = vpop.f32.mrf.mxu0
        %3673 = vmatprep.mubr.bf16.mxu0 0
        %3674 = vmatmul.mubr.bf16.gmra.mxu0 %v1591
        %v3675 = vpop.f32.mrf.mxu0
        %v3676 = vadd.f32 0.0, %v3675
        %v3677 = vpop.f32.mrf.mxu0
        %v3678 = vpop.f32.mrf.mxu0
        %v3679 = vadd.f32 0.0, %v3678
        %v3680 = vpop.f32.mrf.mxu0
        %3681 = vmatprep.mubr.bf16.mxu0 0
        %3682 = vmatmul.mubr.bf16.gmra.mxu0 %v1592
        %v3683 = vpop.f32.mrf.mxu0
        %v3684 = vadd.f32 0.0, %v3683
        %v3685 = vpop.f32.mrf.mxu0
        %v3686 = vpop.f32.mrf.mxu0
        %v3687 = vadd.f32 0.0, %v3686
        %v3688 = vpop.f32.mrf.mxu0
        %3689 = vdwg.mxu0
        %3690 = vmatprep.subr.bf16.mxu0 0
        %3691 = vmatpush1.bf16.xpose.msra.mxu0 0
        %3692 = vmatprep.subr.bf16.mxu0 0
        %3693 = vmatpush1.bf16.xpose.msra.mxu0 0
        %3694 = vmatprep.subr.bf16.mxu0 0
        %3695 = vmatpush1.bf16.xpose.msra.mxu0 0
        %3696 = vmatprep.subr.bf16.mxu0 0
        %3697 = vmatpush1.bf16.xpose.msra.mxu0 0
        %3698 = vmatprep.subr.bf16.mxu0 0
        %3699 = vmatpush1.bf16.xpose.msra.mxu0 %v3600
        %3700 = vmatprep.subr.bf16.mxu0 0
        %3701 = vmatpush1.bf16.xpose.msra.mxu0 %v3599
        %3702 = vmatprep.subr.bf16.mxu0 0
        %3703 = vmatpush1.bf16.xpose.msra.mxu0 %v3598
        %3704 = vmatprep.subr.bf16.mxu0 0
        %3705 = vmatpush1.bf16.xpose.msra.mxu0 %v3597
        %3706 = vmatprep.subr.bf16.mxu0 0
        %3707 = vmatpush2.bf16.xpose.msra.mxu0 0
        %3708 = vmatprep.subr.bf16.mxu0 0
        %3709 = vmatpush2.bf16.xpose.msra.mxu0 0
        %3710 = vmatprep.subr.bf16.mxu0 0
        %3711 = vmatpush2.bf16.xpose.msra.mxu0 0
        %3712 = vmatprep.subr.bf16.mxu0 0
        %3713 = vmatpush2.bf16.xpose.msra.mxu0 0
        %3714 = vmatprep.subr.bf16.mxu0 0
        %3715 = vmatpush2.bf16.xpose.msra.mxu0 0
        %3716 = vmatprep.subr.bf16.mxu0 0
        %3717 = vmatpush2.bf16.xpose.msra.mxu0 0
        %3718 = vmatprep.subr.bf16.mxu0 0
        %3719 = vmatpush2.bf16.xpose.msra.mxu0 0
        %3720 = vmatprep.subr.bf16.mxu0 0
        %3721 = vmatpush2.bf16.xpose.msra.mxu0 0
        %3722 = vmatprep.mubr.bf16.mxu0 0
        %3723 = vmatmul.mubr.bf16.gmra.mxu0 %v1593
        %v3724 = vpop.f32.mrf.mxu0
        %v3725 = vadd.f32 0.0, %v3724
        %v3726 = vpop.f32.mrf.mxu0
        %v3727 = vpop.f32.mrf.mxu0
        %v3728 = vadd.f32 0.0, %v3727
        %v3729 = vpop.f32.mrf.mxu0
        %3730 = vmatprep.mubr.bf16.mxu0 0
        %3731 = vmatmul.mubr.bf16.gmra.mxu0 %v1594
        %v3732 = vpop.f32.mrf.mxu0
        %v3733 = vadd.f32 0.0, %v3732
        %v3734 = vpop.f32.mrf.mxu0
        %v3735 = vpop.f32.mrf.mxu0
        %v3736 = vadd.f32 0.0, %v3735
        %v3737 = vpop.f32.mrf.mxu0
        %3738 = vmatprep.mubr.bf16.mxu0 0
        %3739 = vmatmul.mubr.bf16.gmra.mxu0 %v1595
        %v3740 = vpop.f32.mrf.mxu0
        %v3741 = vadd.f32 0.0, %v3740
        %v3742 = vpop.f32.mrf.mxu0
        %v3743 = vpop.f32.mrf.mxu0
        %v3744 = vadd.f32 0.0, %v3743
        %v3745 = vpop.f32.mrf.mxu0
        %3746 = vmatprep.mubr.bf16.mxu0 0
        %3747 = vmatmul.mubr.bf16.gmra.mxu0 %v1596
        %v3748 = vpop.f32.mrf.mxu0
        %v3749 = vadd.f32 0.0, %v3748
        %v3750 = vpop.f32.mrf.mxu0
        %v3751 = vpop.f32.mrf.mxu0
        %v3752 = vadd.f32 0.0, %v3751
        %v3753 = vpop.f32.mrf.mxu0
        %3754 = vdwg.mxu0
        %3755 = vmatprep.subr.bf16.mxu0 0
        %3756 = vmatpush1.bf16.xpose.msra.mxu0 0
        %3757 = vmatprep.subr.bf16.mxu0 0
        %3758 = vmatpush1.bf16.xpose.msra.mxu0 0
        %3759 = vmatprep.subr.bf16.mxu0 0
        %3760 = vmatpush1.bf16.xpose.msra.mxu0 0
        %3761 = vmatprep.subr.bf16.mxu0 0
        %3762 = vmatpush1.bf16.xpose.msra.mxu0 0
        %3763 = vmatprep.subr.bf16.mxu0 0
        %3764 = vmatpush1.bf16.xpose.msra.mxu0 %v3604
        %3765 = vmatprep.subr.bf16.mxu0 0
        %3766 = vmatpush1.bf16.xpose.msra.mxu0 %v3603
        %3767 = vmatprep.subr.bf16.mxu0 0
        %3768 = vmatpush1.bf16.xpose.msra.mxu0 %v3602
        %3769 = vmatprep.subr.bf16.mxu0 0
        %3770 = vmatpush1.bf16.xpose.msra.mxu0 %v3601
        %3771 = vmatprep.subr.bf16.mxu0 0
        %3772 = vmatpush2.bf16.xpose.msra.mxu0 0
        %3773 = vmatprep.subr.bf16.mxu0 0
        %3774 = vmatpush2.bf16.xpose.msra.mxu0 0
        %3775 = vmatprep.subr.bf16.mxu0 0
        %3776 = vmatpush2.bf16.xpose.msra.mxu0 0
        %3777 = vmatprep.subr.bf16.mxu0 0
        %3778 = vmatpush2.bf16.xpose.msra.mxu0 0
        %3779 = vmatprep.subr.bf16.mxu0 0
        %3780 = vmatpush2.bf16.xpose.msra.mxu0 0
        %3781 = vmatprep.subr.bf16.mxu0 0
        %3782 = vmatpush2.bf16.xpose.msra.mxu0 0
        %3783 = vmatprep.subr.bf16.mxu0 0
        %3784 = vmatpush2.bf16.xpose.msra.mxu0 0
        %3785 = vmatprep.subr.bf16.mxu0 0
        %3786 = vmatpush2.bf16.xpose.msra.mxu0 0
        %3787 = vmatprep.mubr.bf16.mxu0 0
        %3788 = vmatmul.mubr.bf16.gmra.mxu0 %v1597
        %v3789 = vpop.f32.mrf.mxu0
        %v3790 = vadd.f32 0.0, %v3789
        %v3791 = vpop.f32.mrf.mxu0
        %v3792 = vpop.f32.mrf.mxu0
        %v3793 = vadd.f32 0.0, %v3792
        %v3794 = vpop.f32.mrf.mxu0
        %3795 = vmatprep.mubr.bf16.mxu0 0
        %3796 = vmatmul.mubr.bf16.gmra.mxu0 %v1598
        %v3797 = vpop.f32.mrf.mxu0
        %v3798 = vadd.f32 0.0, %v3797
        %v3799 = vpop.f32.mrf.mxu0
        %v3800 = vpop.f32.mrf.mxu0
        %v3801 = vadd.f32 0.0, %v3800
        %v3802 = vpop.f32.mrf.mxu0
        %3803 = vmatprep.mubr.bf16.mxu0 0
        %3804 = vmatmul.mubr.bf16.gmra.mxu0 %v1599
        %v3805 = vpop.f32.mrf.mxu0
        %v3806 = vadd.f32 0.0, %v3805
        %v3807 = vpop.f32.mrf.mxu0
        %v3808 = vpop.f32.mrf.mxu0
        %v3809 = vadd.f32 0.0, %v3808
        %v3810 = vpop.f32.mrf.mxu0
        %3811 = vmatprep.mubr.bf16.mxu0 0
        %3812 = vmatmul.mubr.bf16.gmra.mxu0 %v1600
        %v3813 = vpop.f32.mrf.mxu0
        %v3814 = vadd.f32 0.0, %v3813
        %v3815 = vpop.f32.mrf.mxu0
        %v3816 = vpop.f32.mrf.mxu0
        %v3817 = vadd.f32 0.0, %v3816
        %v3818 = vpop.f32.mrf.mxu0
        %3819 = vdwg.mxu0
        %3820 = vmatprep.subr.bf16.mxu0 0
        %3821 = vmatpush1.bf16.xpose.msra.mxu0 0
        %3822 = vmatprep.subr.bf16.mxu0 0
        %3823 = vmatpush1.bf16.xpose.msra.mxu0 0
        %3824 = vmatprep.subr.bf16.mxu0 0
        %3825 = vmatpush1.bf16.xpose.msra.mxu0 0
        %3826 = vmatprep.subr.bf16.mxu0 0
        %3827 = vmatpush1.bf16.xpose.msra.mxu0 0
        %3828 = vmatprep.subr.bf16.mxu0 0
        %3829 = vmatpush1.bf16.xpose.msra.mxu0 %v3608
        %3830 = vmatprep.subr.bf16.mxu0 0
        %3831 = vmatpush1.bf16.xpose.msra.mxu0 %v3607
        %3832 = vmatprep.subr.bf16.mxu0 0
        %3833 = vmatpush1.bf16.xpose.msra.mxu0 %v3606
        %3834 = vmatprep.subr.bf16.mxu0 0
        %3835 = vmatpush1.bf16.xpose.msra.mxu0 %v3605
        %3836 = vmatprep.subr.bf16.mxu0 0
        %3837 = vmatpush2.bf16.xpose.msra.mxu0 0
        %3838 = vmatprep.subr.bf16.mxu0 0
        %3839 = vmatpush2.bf16.xpose.msra.mxu0 0
        %3840 = vmatprep.subr.bf16.mxu0 0
        %3841 = vmatpush2.bf16.xpose.msra.mxu0 0
        %3842 = vmatprep.subr.bf16.mxu0 0
        %3843 = vmatpush2.bf16.xpose.msra.mxu0 0
        %3844 = vmatprep.subr.bf16.mxu0 0
        %3845 = vmatpush2.bf16.xpose.msra.mxu0 0
        %3846 = vmatprep.subr.bf16.mxu0 0
        %3847 = vmatpush2.bf16.xpose.msra.mxu0 0
        %3848 = vmatprep.subr.bf16.mxu0 0
        %3849 = vmatpush2.bf16.xpose.msra.mxu0 0
        %3850 = vmatprep.subr.bf16.mxu0 0
        %3851 = vmatpush2.bf16.xpose.msra.mxu0 0
        %3852 = vmatprep.mubr.bf16.mxu0 0
        %3853 = vmatmul.mubr.bf16.gmra.mxu0 %v1601
        %v3854 = vpop.f32.mrf.mxu0
        %v3855 = vadd.f32 0.0, %v3854
        %v3856 = vpop.f32.mrf.mxu0
        %v3857 = vpop.f32.mrf.mxu0
        %v3858 = vadd.f32 0.0, %v3857
        %v3859 = vpop.f32.mrf.mxu0
        %3860 = vmatprep.mubr.bf16.mxu0 0
        %3861 = vmatmul.mubr.bf16.gmra.mxu0 %v1602
        %v3862 = vpop.f32.mrf.mxu0
        %v3863 = vadd.f32 0.0, %v3862
        %v3864 = vpop.f32.mrf.mxu0
        %v3865 = vpop.f32.mrf.mxu0
        %v3866 = vadd.f32 0.0, %v3865
        %v3867 = vpop.f32.mrf.mxu0
        %3868 = vmatprep.mubr.bf16.mxu0 0
        %3869 = vmatmul.mubr.bf16.gmra.mxu0 %v1603
        %v3870 = vpop.f32.mrf.mxu0
        %v3871 = vadd.f32 0.0, %v3870
        %v3872 = vpop.f32.mrf.mxu0
        %v3873 = vpop.f32.mrf.mxu0
        %v3874 = vadd.f32 0.0, %v3873
        %v3875 = vpop.f32.mrf.mxu0
        %3876 = vmatprep.mubr.bf16.mxu0 0
        %3877 = vmatmul.mubr.bf16.gmra.mxu0 %v1604
        %v3878 = vpop.f32.mrf.mxu0
        %v3879 = vadd.f32 0.0, %v3878
        %v3880 = vpop.f32.mrf.mxu0
        %v3881 = vpop.f32.mrf.mxu0
        %v3882 = vadd.f32 0.0, %v3881
        %v3883 = vpop.f32.mrf.mxu0
        %3884 = vdwg.mxu0
        %v3885 = vsel %vm578, %v3660, -inf
        %3886 = vmax.xlane.f32.xlu0 %v3885
        %v3887 = vpop.xlane.xlu0 %3886
        %v3888 = vsel %vm578, %v3663, -inf
        %3889 = vmax.xlane.f32.xlu0 %v3888
        %v3890 = vpop.xlane.xlu0 %3889
        %v3891 = vsel %vm578, %v3668, -inf
        %3892 = vmax.xlane.f32.xlu0 %v3891
        %v3893 = vpop.xlane.xlu0 %3892
        %v3894 = vsel %vm578, %v3671, -inf
        %3895 = vmax.xlane.f32.xlu0 %v3894
        %v3896 = vpop.xlane.xlu0 %3895
        %v3897 = vsel %vm578, %v3676, -inf
        %3898 = vmax.xlane.f32.xlu0 %v3897
        %v3899 = vpop.xlane.xlu0 %3898
        %v3900 = vsel %vm578, %v3679, -inf
        %3901 = vmax.xlane.f32.xlu0 %v3900
        %v3902 = vpop.xlane.xlu0 %3901
        %v3903 = vsel %vm578, %v3684, -inf
        %3904 = vmax.xlane.f32.xlu0 %v3903
        %v3905 = vpop.xlane.xlu0 %3904
        %v3906 = vsel %vm578, %v3687, -inf
        %3907 = vmax.xlane.f32.xlu0 %v3906
        %v3908 = vpop.xlane.xlu0 %3907
        %v3909 = vsel %vm578, %v3725, -inf
        %3910 = vmax.xlane.f32.xlu0 %v3909
        %v3911 = vpop.xlane.xlu0 %3910
        %v3912 = vsel %vm578, %v3728, -inf
        %3913 = vmax.xlane.f32.xlu0 %v3912
        %v3914 = vpop.xlane.xlu0 %3913
        %v3915 = vsel %vm578, %v3733, -inf
        %3916 = vmax.xlane.f32.xlu0 %v3915
        %v3917 = vpop.xlane.xlu0 %3916
        %v3918 = vsel %vm578, %v3736, -inf
        %3919 = vmax.xlane.f32.xlu0 %v3918
        %v3920 = vpop.xlane.xlu0 %3919
        %v3921 = vsel %vm578, %v3741, -inf
        %3922 = vmax.xlane.f32.xlu0 %v3921
        %v3923 = vpop.xlane.xlu0 %3922
        %v3924 = vsel %vm578, %v3744, -inf
        %3925 = vmax.xlane.f32.xlu0 %v3924
        %v3926 = vpop.xlane.xlu0 %3925
        %v3927 = vsel %vm578, %v3749, -inf
        %3928 = vmax.xlane.f32.xlu0 %v3927
        %v3929 = vpop.xlane.xlu0 %3928
        %v3930 = vsel %vm578, %v3752, -inf
        %3931 = vmax.xlane.f32.xlu0 %v3930
        %v3932 = vpop.xlane.xlu0 %3931
        %v3933 = vsel %vm578, %v3790, -inf
        %3934 = vmax.xlane.f32.xlu0 %v3933
        %v3935 = vpop.xlane.xlu0 %3934
        %v3936 = vsel %vm578, %v3793, -inf
        %3937 = vmax.xlane.f32.xlu0 %v3936
        %v3938 = vpop.xlane.xlu0 %3937
        %v3939 = vsel %vm578, %v3798, -inf
        %3940 = vmax.xlane.f32.xlu0 %v3939
        %v3941 = vpop.xlane.xlu0 %3940
        %v3942 = vsel %vm578, %v3801, -inf
        %3943 = vmax.xlane.f32.xlu0 %v3942
        %v3944 = vpop.xlane.xlu0 %3943
        %v3945 = vsel %vm578, %v3806, -inf
        %3946 = vmax.xlane.f32.xlu0 %v3945
        %v3947 = vpop.xlane.xlu0 %3946
        %v3948 = vsel %vm578, %v3809, -inf
        %3949 = vmax.xlane.f32.xlu0 %v3948
        %v3950 = vpop.xlane.xlu0 %3949
        %v3951 = vsel %vm578, %v3814, -inf
        %3952 = vmax.xlane.f32.xlu0 %v3951
        %v3953 = vpop.xlane.xlu0 %3952
        %v3954 = vsel %vm578, %v3817, -inf
        %3955 = vmax.xlane.f32.xlu0 %v3954
        %v3956 = vpop.xlane.xlu0 %3955
        %v3957 = vsel %vm578, %v3855, -inf
        %3958 = vmax.xlane.f32.xlu0 %v3957
        %v3959 = vpop.xlane.xlu0 %3958
        %v3960 = vsel %vm578, %v3858, -inf
        %3961 = vmax.xlane.f32.xlu0 %v3960
        %v3962 = vpop.xlane.xlu0 %3961
        %v3963 = vsel %vm578, %v3863, -inf
        %3964 = vmax.xlane.f32.xlu0 %v3963
        %v3965 = vpop.xlane.xlu0 %3964
        %v3966 = vsel %vm578, %v3866, -inf
        %3967 = vmax.xlane.f32.xlu0 %v3966
        %v3968 = vpop.xlane.xlu0 %3967
        %v3969 = vsel %vm578, %v3871, -inf
        %3970 = vmax.xlane.f32.xlu0 %v3969
        %v3971 = vpop.xlane.xlu0 %3970
        %v3972 = vsel %vm578, %v3874, -inf
        %3973 = vmax.xlane.f32.xlu0 %v3972
        %v3974 = vpop.xlane.xlu0 %3973
        %v3975 = vsel %vm578, %v3879, -inf
        %3976 = vmax.xlane.f32.xlu0 %v3975
        %v3977 = vpop.xlane.xlu0 %3976
        %v3978 = vsel %vm578, %v3882, -inf
        %3979 = vmax.xlane.f32.xlu0 %v3978
        %v3980 = vpop.xlane.xlu0 %3979
        %v3981 = vsub.f32 %v3660, %v3887
        %v3982 = vsub.f32 %v3663, %v3890
        %v3983 = vsub.f32 %v3668, %v3893
        %v3984 = vsub.f32 %v3671, %v3896
        %v3985 = vsub.f32 %v3676, %v3899
        %v3986 = vsub.f32 %v3679, %v3902
        %v3987 = vsub.f32 %v3684, %v3905
        %v3988 = vsub.f32 %v3687, %v3908
        %v3989 = vsub.f32 %v3725, %v3911
        %v3990 = vsub.f32 %v3728, %v3914
        %v3991 = vsub.f32 %v3733, %v3917
        %v3992 = vsub.f32 %v3736, %v3920
        %v3993 = vsub.f32 %v3741, %v3923
        %v3994 = vsub.f32 %v3744, %v3926
        %v3995 = vsub.f32 %v3749, %v3929
        %v3996 = vsub.f32 %v3752, %v3932
        %v3997 = vsub.f32 %v3790, %v3935
        %v3998 = vsub.f32 %v3793, %v3938
        %v3999 = vsub.f32 %v3798, %v3941
        %v4000 = vsub.f32 %v3801, %v3944
        %v4001 = vsub.f32 %v3806, %v3947
        %v4002 = vsub.f32 %v3809, %v3950
        %v4003 = vsub.f32 %v3814, %v3953
        %v4004 = vsub.f32 %v3817, %v3956
        %v4005 = vsub.f32 %v3855, %v3959
        %v4006 = vsub.f32 %v3858, %v3962
        %v4007 = vsub.f32 %v3863, %v3965
        %v4008 = vsub.f32 %v3866, %v3968
        %v4009 = vsub.f32 %v3871, %v3971
        %v4010 = vsub.f32 %v3874, %v3974
        %v4011 = vsub.f32 %v3879, %v3977
        %v4012 = vsub.f32 %v3882, %v3980
        %v4013 = vmul.f32 %v3981, 1.442695
        %v4014 = vpow.pop %v4013
        %v4015 = vmul.f32 %v3982, 1.442695
        %v4016 = vpow.pop %v4015
        %v4017 = vmul.f32 %v3983, 1.442695
        %v4018 = vpow.pop %v4017
        %v4019 = vmul.f32 %v3984, 1.442695
        %v4020 = vpow.pop %v4019
        %v4021 = vmul.f32 %v3985, 1.442695
        %v4022 = vpow.pop %v4021
        %v4023 = vmul.f32 %v3986, 1.442695
        %v4024 = vpow.pop %v4023
        %v4025 = vmul.f32 %v3987, 1.442695
        %v4026 = vpow.pop %v4025
        %v4027 = vmul.f32 %v3988, 1.442695
        %v4028 = vpow.pop %v4027
        %v4029 = vmul.f32 %v3989, 1.442695
        %v4030 = vpow.pop %v4029
        %v4031 = vmul.f32 %v3990, 1.442695
        %v4032 = vpow.pop %v4031
        %v4033 = vmul.f32 %v3991, 1.442695
        %v4034 = vpow.pop %v4033
        %v4035 = vmul.f32 %v3992, 1.442695
        %v4036 = vpow.pop %v4035
        %v4037 = vmul.f32 %v3993, 1.442695
        %v4038 = vpow.pop %v4037
        %v4039 = vmul.f32 %v3994, 1.442695
        %v4040 = vpow.pop %v4039
        %v4041 = vmul.f32 %v3995, 1.442695
        %v4042 = vpow.pop %v4041
        %v4043 = vmul.f32 %v3996, 1.442695
        %v4044 = vpow.pop %v4043
        %v4045 = vmul.f32 %v3997, 1.442695
        %v4046 = vpow.pop %v4045
        %v4047 = vmul.f32 %v3998, 1.442695
        %v4048 = vpow.pop %v4047
        %v4049 = vmul.f32 %v3999, 1.442695
        %v4050 = vpow.pop %v4049
        %v4051 = vmul.f32 %v4000, 1.442695
        %v4052 = vpow.pop %v4051
        %v4053 = vmul.f32 %v4001, 1.442695
        %v4054 = vpow.pop %v4053
        %v4055 = vmul.f32 %v4002, 1.442695
        %v4056 = vpow.pop %v4055
        %v4057 = vmul.f32 %v4003, 1.442695
        %v4058 = vpow.pop %v4057
        %v4059 = vmul.f32 %v4004, 1.442695
        %v4060 = vpow.pop %v4059
        %v4061 = vmul.f32 %v4005, 1.442695
        %v4062 = vpow.pop %v4061
        %v4063 = vmul.f32 %v4006, 1.442695
        %v4064 = vpow.pop %v4063
        %v4065 = vmul.f32 %v4007, 1.442695
        %v4066 = vpow.pop %v4065
        %v4067 = vmul.f32 %v4008, 1.442695
        %v4068 = vpow.pop %v4067
        %v4069 = vmul.f32 %v4009, 1.442695
        %v4070 = vpow.pop %v4069
        %v4071 = vmul.f32 %v4010, 1.442695
        %v4072 = vpow.pop %v4071
        %v4073 = vmul.f32 %v4011, 1.442695
        %v4074 = vpow.pop %v4073
        %v4075 = vmul.f32 %v4012, 1.442695
        %v4076 = vpow.pop %v4075
        %v4077 = vsel %vm578, %v4014, 0.0
        %4078 = vadd.xlane.f32.xlu0 %v4077
        %v4079 = vpop.xlane.xlu0 %4078
        %v4080 = vsel %vm578, %v4016, 0.0
        %4081 = vadd.xlane.f32.xlu0 %v4080
        %v4082 = vpop.xlane.xlu0 %4081
        %v4083 = vsel %vm578, %v4018, 0.0
        %4084 = vadd.xlane.f32.xlu0 %v4083
        %v4085 = vpop.xlane.xlu0 %4084
        %v4086 = vsel %vm578, %v4020, 0.0
        %4087 = vadd.xlane.f32.xlu0 %v4086
        %v4088 = vpop.xlane.xlu0 %4087
        %v4089 = vsel %vm578, %v4022, 0.0
        %4090 = vadd.xlane.f32.xlu0 %v4089
        %v4091 = vpop.xlane.xlu0 %4090
        %v4092 = vsel %vm578, %v4024, 0.0
        %4093 = vadd.xlane.f32.xlu0 %v4092
        %v4094 = vpop.xlane.xlu0 %4093
        %v4095 = vsel %vm578, %v4026, 0.0
        %4096 = vadd.xlane.f32.xlu0 %v4095
        %v4097 = vpop.xlane.xlu0 %4096
        %v4098 = vsel %vm578, %v4028, 0.0
        %4099 = vadd.xlane.f32.xlu0 %v4098
        %v4100 = vpop.xlane.xlu0 %4099
        %v4101 = vsel %vm578, %v4030, 0.0
        %4102 = vadd.xlane.f32.xlu0 %v4101
        %v4103 = vpop.xlane.xlu0 %4102
        %v4104 = vsel %vm578, %v4032, 0.0
        %4105 = vadd.xlane.f32.xlu0 %v4104
        %v4106 = vpop.xlane.xlu0 %4105
        %v4107 = vsel %vm578, %v4034, 0.0
        %4108 = vadd.xlane.f32.xlu0 %v4107
        %v4109 = vpop.xlane.xlu0 %4108
        %v4110 = vsel %vm578, %v4036, 0.0
        %4111 = vadd.xlane.f32.xlu0 %v4110
        %v4112 = vpop.xlane.xlu0 %4111
        %v4113 = vsel %vm578, %v4038, 0.0
        %4114 = vadd.xlane.f32.xlu0 %v4113
        %v4115 = vpop.xlane.xlu0 %4114
        %v4116 = vsel %vm578, %v4040, 0.0
        %4117 = vadd.xlane.f32.xlu0 %v4116
        %v4118 = vpop.xlane.xlu0 %4117
        %v4119 = vsel %vm578, %v4042, 0.0
        %4120 = vadd.xlane.f32.xlu0 %v4119
        %v4121 = vpop.xlane.xlu0 %4120
        %v4122 = vsel %vm578, %v4044, 0.0
        %4123 = vadd.xlane.f32.xlu0 %v4122
        %v4124 = vpop.xlane.xlu0 %4123
        %v4125 = vsel %vm578, %v4046, 0.0
        %4126 = vadd.xlane.f32.xlu0 %v4125
        %v4127 = vpop.xlane.xlu0 %4126
        %v4128 = vsel %vm578, %v4048, 0.0
        %4129 = vadd.xlane.f32.xlu0 %v4128
        %v4130 = vpop.xlane.xlu0 %4129
        %v4131 = vsel %vm578, %v4050, 0.0
        %4132 = vadd.xlane.f32.xlu0 %v4131
        %v4133 = vpop.xlane.xlu0 %4132
        %v4134 = vsel %vm578, %v4052, 0.0
        %4135 = vadd.xlane.f32.xlu0 %v4134
        %v4136 = vpop.xlane.xlu0 %4135
        %v4137 = vsel %vm578, %v4054, 0.0
        %4138 = vadd.xlane.f32.xlu0 %v4137
        %v4139 = vpop.xlane.xlu0 %4138
        %v4140 = vsel %vm578, %v4056, 0.0
        %4141 = vadd.xlane.f32.xlu0 %v4140
        %v4142 = vpop.xlane.xlu0 %4141
        %v4143 = vsel %vm578, %v4058, 0.0
        %4144 = vadd.xlane.f32.xlu0 %v4143
        %v4145 = vpop.xlane.xlu0 %4144
        %v4146 = vsel %vm578, %v4060, 0.0
        %4147 = vadd.xlane.f32.xlu0 %v4146
        %v4148 = vpop.xlane.xlu0 %4147
        %v4149 = vsel %vm578, %v4062, 0.0
        %4150 = vadd.xlane.f32.xlu0 %v4149
        %v4151 = vpop.xlane.xlu0 %4150
        %v4152 = vsel %vm578, %v4064, 0.0
        %4153 = vadd.xlane.f32.xlu0 %v4152
        %v4154 = vpop.xlane.xlu0 %4153
        %v4155 = vsel %vm578, %v4066, 0.0
        %4156 = vadd.xlane.f32.xlu0 %v4155
        %v4157 = vpop.xlane.xlu0 %4156
        %v4158 = vsel %vm578, %v4068, 0.0
        %4159 = vadd.xlane.f32.xlu0 %v4158
        %v4160 = vpop.xlane.xlu0 %4159
        %v4161 = vsel %vm578, %v4070, 0.0
        %4162 = vadd.xlane.f32.xlu0 %v4161
        %v4163 = vpop.xlane.xlu0 %4162
        %v4164 = vsel %vm578, %v4072, 0.0
        %4165 = vadd.xlane.f32.xlu0 %v4164
        %v4166 = vpop.xlane.xlu0 %4165
        %v4167 = vsel %vm578, %v4074, 0.0
        %4168 = vadd.xlane.f32.xlu0 %v4167
        %v4169 = vpop.xlane.xlu0 %4168
        %v4170 = vsel %vm578, %v4076, 0.0
        %4171 = vadd.xlane.f32.xlu0 %v4170
        %v4172 = vpop.xlane.xlu0 %4171
        %v4173 = vrcp.pop %v4079
        %v4174 = vrcp.pop %v4082
        %v4175 = vrcp.pop %v4085
        %v4176 = vrcp.pop %v4088
        %v4177 = vrcp.pop %v4091
        %v4178 = vrcp.pop %v4094
        %v4179 = vrcp.pop %v4097
        %v4180 = vrcp.pop %v4100
        %v4181 = vrcp.pop %v4103
        %v4182 = vrcp.pop %v4106
        %v4183 = vrcp.pop %v4109
        %v4184 = vrcp.pop %v4112
        %v4185 = vrcp.pop %v4115
        %v4186 = vrcp.pop %v4118
        %v4187 = vrcp.pop %v4121
        %v4188 = vrcp.pop %v4124
        %v4189 = vrcp.pop %v4127
        %v4190 = vrcp.pop %v4130
        %v4191 = vrcp.pop %v4133
        %v4192 = vrcp.pop %v4136
        %v4193 = vrcp.pop %v4139
        %v4194 = vrcp.pop %v4142
        %v4195 = vrcp.pop %v4145
        %v4196 = vrcp.pop %v4148
        %v4197 = vrcp.pop %v4151
        %v4198 = vrcp.pop %v4154
        %v4199 = vrcp.pop %v4157
        %v4200 = vrcp.pop %v4160
        %v4201 = vrcp.pop %v4163
        %v4202 = vrcp.pop %v4166
        %v4203 = vrcp.pop %v4169
        %v4204 = vrcp.pop %v4172
        %v4205 = vmul.f32 %v4014, %v4173
        %v4206 = vmul.f32 %v4016, %v4174
        %v4207 = vmul.f32 %v4018, %v4175
        %v4208 = vmul.f32 %v4020, %v4176
        %v4209 = vmul.f32 %v4022, %v4177
        %v4210 = vmul.f32 %v4024, %v4178
        %v4211 = vmul.f32 %v4026, %v4179
        %v4212 = vmul.f32 %v4028, %v4180
        %v4213 = vmul.f32 %v4030, %v4181
        %v4214 = vmul.f32 %v4032, %v4182
        %v4215 = vmul.f32 %v4034, %v4183
        %v4216 = vmul.f32 %v4036, %v4184
        %v4217 = vmul.f32 %v4038, %v4185
        %v4218 = vmul.f32 %v4040, %v4186
        %v4219 = vmul.f32 %v4042, %v4187
        %v4220 = vmul.f32 %v4044, %v4188
        %v4221 = vmul.f32 %v4046, %v4189
        %v4222 = vmul.f32 %v4048, %v4190
        %v4223 = vmul.f32 %v4050, %v4191
        %v4224 = vmul.f32 %v4052, %v4192
        %v4225 = vmul.f32 %v4054, %v4193
        %v4226 = vmul.f32 %v4056, %v4194
        %v4227 = vmul.f32 %v4058, %v4195
        %v4228 = vmul.f32 %v4060, %v4196
        %v4229 = vmul.f32 %v4062, %v4197
        %v4230 = vmul.f32 %v4064, %v4198
        %v4231 = vmul.f32 %v4066, %v4199
        %v4232 = vmul.f32 %v4068, %v4200
        %v4233 = vmul.f32 %v4070, %v4201
        %v4234 = vmul.f32 %v4072, %v4202
        %v4235 = vmul.f32 %v4074, %v4203
        %v4236 = vmul.f32 %v4076, %v4204
        %v4237 = vpack.c.bf16 %v4206, %v4205
        %v4238 = vpack.c.bf16 %v4208, %v4207
        %v4239 = vpack.c.bf16 %v4210, %v4209
        %v4240 = vpack.c.bf16 %v4212, %v4211
        %v4241 = vpack.c.bf16 %v4214, %v4213
        %v4242 = vpack.c.bf16 %v4216, %v4215
        %v4243 = vpack.c.bf16 %v4218, %v4217
        %v4244 = vpack.c.bf16 %v4220, %v4219
        %v4245 = vpack.c.bf16 %v4222, %v4221
        %v4246 = vpack.c.bf16 %v4224, %v4223
        %v4247 = vpack.c.bf16 %v4226, %v4225
        %v4248 = vpack.c.bf16 %v4228, %v4227
        %v4249 = vpack.c.bf16 %v4230, %v4229
        %v4250 = vpack.c.bf16 %v4232, %v4231
        %v4251 = vpack.c.bf16 %v4234, %v4233
        %v4252 = vpack.c.bf16 %v4236, %v4235
        %v4254 = vsel %vm578, %v4237, 0
        %v4257 = vsel %vm578, %v4238, 0
        %v4260 = vsel %vm578, %v4239, 0
        %v4263 = vsel %vm578, %v4240, 0
        %4265 = vmatprep.subr.bf16.mxu0 0
        %4266 = vmatpush1.bf16.msra.mxu0 0
        %4267 = vmatprep.subr.bf16.mxu0 0
        %4268 = vmatpush1.bf16.msra.mxu0 0
        %4269 = vmatprep.subr.bf16.mxu0 0
        %4270 = vmatpush1.bf16.msra.mxu0 0
        %4271 = vmatprep.subr.bf16.mxu0 0
        %4272 = vmatpush1.bf16.msra.mxu0 0
        %4273 = vmatprep.subr.bf16.mxu0 0
        %4274 = vmatpush1.bf16.msra.mxu0 %v3612
        %4275 = vmatprep.subr.bf16.mxu0 0
        %4276 = vmatpush1.bf16.msra.mxu0 %v3611
        %4277 = vmatprep.subr.bf16.mxu0 0
        %4278 = vmatpush1.bf16.msra.mxu0 %v3610
        %4279 = vmatprep.subr.bf16.mxu0 0
        %4280 = vmatpush1.bf16.msra.mxu0 %v3609
        %4281 = vmatprep.subr.bf16.mxu0 0
        %4282 = vmatpush2.bf16.msra.mxu0 0
        %4283 = vmatprep.subr.bf16.mxu0 0
        %4284 = vmatpush2.bf16.msra.mxu0 0
        %4285 = vmatprep.subr.bf16.mxu0 0
        %4286 = vmatpush2.bf16.msra.mxu0 0
        %4287 = vmatprep.subr.bf16.mxu0 0
        %4288 = vmatpush2.bf16.msra.mxu0 0
        %4289 = vmatprep.subr.bf16.mxu0 0
        %4290 = vmatpush2.bf16.msra.mxu0 0
        %4291 = vmatprep.subr.bf16.mxu0 0
        %4292 = vmatpush2.bf16.msra.mxu0 0
        %4293 = vmatprep.subr.bf16.mxu0 0
        %4294 = vmatpush2.bf16.msra.mxu0 0
        %4295 = vmatprep.subr.bf16.mxu0 0
        %4296 = vmatpush2.bf16.msra.mxu0 0
        %4297 = vmatprep.mubr.bf16.mxu0 0
        %4298 = vmatmul.mubr.bf16.gmra.mxu0 %v4254
        %v4299 = vpop.f32.mrf.mxu0
        %v4300 = vadd.f32 0.0, %v4299
        %v4301 = vpop.f32.mrf.mxu0
        %v4302 = vpop.f32.mrf.mxu0
        %v4303 = vadd.f32 0.0, %v4302
        %v4304 = vpop.f32.mrf.mxu0
        %4305 = vmatprep.mubr.bf16.mxu0 0
        %4306 = vmatmul.mubr.bf16.gmra.mxu0 %v4257
        %v4307 = vpop.f32.mrf.mxu0
        %v4308 = vadd.f32 0.0, %v4307
        %v4309 = vpop.f32.mrf.mxu0
        %v4310 = vpop.f32.mrf.mxu0
        %v4311 = vadd.f32 0.0, %v4310
        %v4312 = vpop.f32.mrf.mxu0
        %4313 = vmatprep.mubr.bf16.mxu0 0
        %4314 = vmatmul.mubr.bf16.gmra.mxu0 %v4260
        %v4315 = vpop.f32.mrf.mxu0
        %v4316 = vadd.f32 0.0, %v4315
        %v4317 = vpop.f32.mrf.mxu0
        %v4318 = vpop.f32.mrf.mxu0
        %v4319 = vadd.f32 0.0, %v4318
        %v4320 = vpop.f32.mrf.mxu0
        %4321 = vmatprep.mubr.bf16.mxu0 0
        %4322 = vmatmul.mubr.bf16.gmra.mxu0 %v4263
        %v4323 = vpop.f32.mrf.mxu0
        %v4324 = vadd.f32 0.0, %v4323
        %v4325 = vpop.f32.mrf.mxu0
        %v4326 = vpop.f32.mrf.mxu0
        %v4327 = vadd.f32 0.0, %v4326
        %v4328 = vpop.f32.mrf.mxu0
        %4329 = vdwg.mxu0
        %v4331 = vsel %vm578, %v4241, 0
        %v4334 = vsel %vm578, %v4242, 0
        %v4337 = vsel %vm578, %v4243, 0
        %v4340 = vsel %vm578, %v4244, 0
        %4342 = vmatprep.subr.bf16.mxu0 0
        %4343 = vmatpush1.bf16.msra.mxu0 0
        %4344 = vmatprep.subr.bf16.mxu0 0
        %4345 = vmatpush1.bf16.msra.mxu0 0
        %4346 = vmatprep.subr.bf16.mxu0 0
        %4347 = vmatpush1.bf16.msra.mxu0 0
        %4348 = vmatprep.subr.bf16.mxu0 0
        %4349 = vmatpush1.bf16.msra.mxu0 0
        %4350 = vmatprep.subr.bf16.mxu0 0
        %4351 = vmatpush1.bf16.msra.mxu0 %v3616
        %4352 = vmatprep.subr.bf16.mxu0 0
        %4353 = vmatpush1.bf16.msra.mxu0 %v3615
        %4354 = vmatprep.subr.bf16.mxu0 0
        %4355 = vmatpush1.bf16.msra.mxu0 %v3614
        %4356 = vmatprep.subr.bf16.mxu0 0
        %4357 = vmatpush1.bf16.msra.mxu0 %v3613
        %4358 = vmatprep.subr.bf16.mxu0 0
        %4359 = vmatpush2.bf16.msra.mxu0 0
        %4360 = vmatprep.subr.bf16.mxu0 0
        %4361 = vmatpush2.bf16.msra.mxu0 0
        %4362 = vmatprep.subr.bf16.mxu0 0
        %4363 = vmatpush2.bf16.msra.mxu0 0
        %4364 = vmatprep.subr.bf16.mxu0 0
        %4365 = vmatpush2.bf16.msra.mxu0 0
        %4366 = vmatprep.subr.bf16.mxu0 0
        %4367 = vmatpush2.bf16.msra.mxu0 0
        %4368 = vmatprep.subr.bf16.mxu0 0
        %4369 = vmatpush2.bf16.msra.mxu0 0
        %4370 = vmatprep.subr.bf16.mxu0 0
        %4371 = vmatpush2.bf16.msra.mxu0 0
        %4372 = vmatprep.subr.bf16.mxu0 0
        %4373 = vmatpush2.bf16.msra.mxu0 0
        %4374 = vmatprep.mubr.bf16.mxu0 0
        %4375 = vmatmul.mubr.bf16.gmra.mxu0 %v4331
        %v4376 = vpop.f32.mrf.mxu0
        %v4377 = vadd.f32 0.0, %v4376
        %v4378 = vpop.f32.mrf.mxu0
        %v4379 = vpop.f32.mrf.mxu0
        %v4380 = vadd.f32 0.0, %v4379
        %v4381 = vpop.f32.mrf.mxu0
        %4382 = vmatprep.mubr.bf16.mxu0 0
        %4383 = vmatmul.mubr.bf16.gmra.mxu0 %v4334
        %v4384 = vpop.f32.mrf.mxu0
        %v4385 = vadd.f32 0.0, %v4384
        %v4386 = vpop.f32.mrf.mxu0
        %v4387 = vpop.f32.mrf.mxu0
        %v4388 = vadd.f32 0.0, %v4387
        %v4389 = vpop.f32.mrf.mxu0
        %4390 = vmatprep.mubr.bf16.mxu0 0
        %4391 = vmatmul.mubr.bf16.gmra.mxu0 %v4337
        %v4392 = vpop.f32.mrf.mxu0
        %v4393 = vadd.f32 0.0, %v4392
        %v4394 = vpop.f32.mrf.mxu0
        %v4395 = vpop.f32.mrf.mxu0
        %v4396 = vadd.f32 0.0, %v4395
        %v4397 = vpop.f32.mrf.mxu0
        %4398 = vmatprep.mubr.bf16.mxu0 0
        %4399 = vmatmul.mubr.bf16.gmra.mxu0 %v4340
        %v4400 = vpop.f32.mrf.mxu0
        %v4401 = vadd.f32 0.0, %v4400
        %v4402 = vpop.f32.mrf.mxu0
        %v4403 = vpop.f32.mrf.mxu0
        %v4404 = vadd.f32 0.0, %v4403
        %v4405 = vpop.f32.mrf.mxu0
        %4406 = vdwg.mxu0
        %v4408 = vsel %vm578, %v4245, 0
        %v4411 = vsel %vm578, %v4246, 0
        %v4414 = vsel %vm578, %v4247, 0
        %v4417 = vsel %vm578, %v4248, 0
        %4419 = vmatprep.subr.bf16.mxu0 0
        %4420 = vmatpush1.bf16.msra.mxu0 0
        %4421 = vmatprep.subr.bf16.mxu0 0
        %4422 = vmatpush1.bf16.msra.mxu0 0
        %4423 = vmatprep.subr.bf16.mxu0 0
        %4424 = vmatpush1.bf16.msra.mxu0 0
        %4425 = vmatprep.subr.bf16.mxu0 0
        %4426 = vmatpush1.bf16.msra.mxu0 0
        %4427 = vmatprep.subr.bf16.mxu0 0
        %4428 = vmatpush1.bf16.msra.mxu0 %v3620
        %4429 = vmatprep.subr.bf16.mxu0 0
        %4430 = vmatpush1.bf16.msra.mxu0 %v3619
        %4431 = vmatprep.subr.bf16.mxu0 0
        %4432 = vmatpush1.bf16.msra.mxu0 %v3618
        %4433 = vmatprep.subr.bf16.mxu0 0
        %4434 = vmatpush1.bf16.msra.mxu0 %v3617
        %4435 = vmatprep.subr.bf16.mxu0 0
        %4436 = vmatpush2.bf16.msra.mxu0 0
        %4437 = vmatprep.subr.bf16.mxu0 0
        %4438 = vmatpush2.bf16.msra.mxu0 0
        %4439 = vmatprep.subr.bf16.mxu0 0
        %4440 = vmatpush2.bf16.msra.mxu0 0
        %4441 = vmatprep.subr.bf16.mxu0 0
        %4442 = vmatpush2.bf16.msra.mxu0 0
        %4443 = vmatprep.subr.bf16.mxu0 0
        %4444 = vmatpush2.bf16.msra.mxu0 0
        %4445 = vmatprep.subr.bf16.mxu0 0
        %4446 = vmatpush2.bf16.msra.mxu0 0
        %4447 = vmatprep.subr.bf16.mxu0 0
        %4448 = vmatpush2.bf16.msra.mxu0 0
        %4449 = vmatprep.subr.bf16.mxu0 0
        %4450 = vmatpush2.bf16.msra.mxu0 0
        %4451 = vmatprep.mubr.bf16.mxu0 0
        %4452 = vmatmul.mubr.bf16.gmra.mxu0 %v4408
        %v4453 = vpop.f32.mrf.mxu0
        %v4454 = vadd.f32 0.0, %v4453
        %v4455 = vpop.f32.mrf.mxu0
        %v4456 = vpop.f32.mrf.mxu0
        %v4457 = vadd.f32 0.0, %v4456
        %v4458 = vpop.f32.mrf.mxu0
        %4459 = vmatprep.mubr.bf16.mxu0 0
        %4460 = vmatmul.mubr.bf16.gmra.mxu0 %v4411
        %v4461 = vpop.f32.mrf.mxu0
        %v4462 = vadd.f32 0.0, %v4461
        %v4463 = vpop.f32.mrf.mxu0
        %v4464 = vpop.f32.mrf.mxu0
        %v4465 = vadd.f32 0.0, %v4464
        %v4466 = vpop.f32.mrf.mxu0
        %4467 = vmatprep.mubr.bf16.mxu0 0
        %4468 = vmatmul.mubr.bf16.gmra.mxu0 %v4414
        %v4469 = vpop.f32.mrf.mxu0
        %v4470 = vadd.f32 0.0, %v4469
        %v4471 = vpop.f32.mrf.mxu0
        %v4472 = vpop.f32.mrf.mxu0
        %v4473 = vadd.f32 0.0, %v4472
        %v4474 = vpop.f32.mrf.mxu0
        %4475 = vmatprep.mubr.bf16.mxu0 0
        %4476 = vmatmul.mubr.bf16.gmra.mxu0 %v4417
        %v4477 = vpop.f32.mrf.mxu0
        %v4478 = vadd.f32 0.0, %v4477
        %v4479 = vpop.f32.mrf.mxu0
        %v4480 = vpop.f32.mrf.mxu0
        %v4481 = vadd.f32 0.0, %v4480
        %v4482 = vpop.f32.mrf.mxu0
        %4483 = vdwg.mxu0
        %v4485 = vsel %vm578, %v4249, 0
        %v4488 = vsel %vm578, %v4250, 0
        %v4491 = vsel %vm578, %v4251, 0
        %v4494 = vsel %vm578, %v4252, 0
        %4496 = vmatprep.subr.bf16.mxu0 0
        %4497 = vmatpush1.bf16.msra.mxu0 0
        %4498 = vmatprep.subr.bf16.mxu0 0
        %4499 = vmatpush1.bf16.msra.mxu0 0
        %4500 = vmatprep.subr.bf16.mxu0 0
        %4501 = vmatpush1.bf16.msra.mxu0 0
        %4502 = vmatprep.subr.bf16.mxu0 0
        %4503 = vmatpush1.bf16.msra.mxu0 0
        %4504 = vmatprep.subr.bf16.mxu0 0
        %4505 = vmatpush1.bf16.msra.mxu0 %v3624
        %4506 = vmatprep.subr.bf16.mxu0 0
        %4507 = vmatpush1.bf16.msra.mxu0 %v3623
        %4508 = vmatprep.subr.bf16.mxu0 0
        %4509 = vmatpush1.bf16.msra.mxu0 %v3622
        %4510 = vmatprep.subr.bf16.mxu0 0
        %4511 = vmatpush1.bf16.msra.mxu0 %v3621
        %4512 = vmatprep.subr.bf16.mxu0 0
        %4513 = vmatpush2.bf16.msra.mxu0 0
        %4514 = vmatprep.subr.bf16.mxu0 0
        %4515 = vmatpush2.bf16.msra.mxu0 0
        %4516 = vmatprep.subr.bf16.mxu0 0
        %4517 = vmatpush2.bf16.msra.mxu0 0
        %4518 = vmatprep.subr.bf16.mxu0 0
        %4519 = vmatpush2.bf16.msra.mxu0 0
        %4520 = vmatprep.subr.bf16.mxu0 0
        %4521 = vmatpush2.bf16.msra.mxu0 0
        %4522 = vmatprep.subr.bf16.mxu0 0
        %4523 = vmatpush2.bf16.msra.mxu0 0
        %4524 = vmatprep.subr.bf16.mxu0 0
        %4525 = vmatpush2.bf16.msra.mxu0 0
        %4526 = vmatprep.subr.bf16.mxu0 0
        %4527 = vmatpush2.bf16.msra.mxu0 0
        %4528 = vmatprep.mubr.bf16.mxu0 0
        %4529 = vmatmul.mubr.bf16.gmra.mxu0 %v4485
        %v4530 = vpop.f32.mrf.mxu0
        %v4531 = vadd.f32 0.0, %v4530
        %v4532 = vpop.f32.mrf.mxu0
        %v4533 = vpop.f32.mrf.mxu0
        %v4534 = vadd.f32 0.0, %v4533
        %v4535 = vpop.f32.mrf.mxu0
        %4536 = vmatprep.mubr.bf16.mxu0 0
        %4537 = vmatmul.mubr.bf16.gmra.mxu0 %v4488
        %v4538 = vpop.f32.mrf.mxu0
        %v4539 = vadd.f32 0.0, %v4538
        %v4540 = vpop.f32.mrf.mxu0
        %v4541 = vpop.f32.mrf.mxu0
        %v4542 = vadd.f32 0.0, %v4541
        %v4543 = vpop.f32.mrf.mxu0
        %4544 = vmatprep.mubr.bf16.mxu0 0
        %4545 = vmatmul.mubr.bf16.gmra.mxu0 %v4491
        %v4546 = vpop.f32.mrf.mxu0
        %v4547 = vadd.f32 0.0, %v4546
        %v4548 = vpop.f32.mrf.mxu0
        %v4549 = vpop.f32.mrf.mxu0
        %v4550 = vadd.f32 0.0, %v4549
        %v4551 = vpop.f32.mrf.mxu0
        %4552 = vmatprep.mubr.bf16.mxu0 0
        %4553 = vmatmul.mubr.bf16.gmra.mxu0 %v4494
        %v4554 = vpop.f32.mrf.mxu0
        %v4555 = vadd.f32 0.0, %v4554
        %v4556 = vpop.f32.mrf.mxu0
        %v4557 = vpop.f32.mrf.mxu0
        %v4558 = vadd.f32 0.0, %v4557
        %v4559 = vpop.f32.mrf.mxu0
        %4560 = vdwg.mxu0
        %v4561 = vadd.f32 %v3326, %v4300
        %v4562 = vadd.f32 %v3329, %v4303
        %v4563 = vadd.f32 %v3334, %v4308
        %v4564 = vadd.f32 %v3337, %v4311
        %v4565 = vadd.f32 %v3342, %v4316
        %v4566 = vadd.f32 %v3345, %v4319
        %v4567 = vadd.f32 %v3350, %v4324
        %v4568 = vadd.f32 %v3353, %v4327
        %v4569 = vadd.f32 %v3403, %v4377
        %v4570 = vadd.f32 %v3406, %v4380
        %v4571 = vadd.f32 %v3411, %v4385
        %v4572 = vadd.f32 %v3414, %v4388
        %v4573 = vadd.f32 %v3419, %v4393
        %v4574 = vadd.f32 %v3422, %v4396
        %v4575 = vadd.f32 %v3427, %v4401
        %v4576 = vadd.f32 %v3430, %v4404
        %v4577 = vadd.f32 %v3480, %v4454
        %v4578 = vadd.f32 %v3483, %v4457
        %v4579 = vadd.f32 %v3488, %v4462
        %v4580 = vadd.f32 %v3491, %v4465
        %v4581 = vadd.f32 %v3496, %v4470
        %v4582 = vadd.f32 %v3499, %v4473
        %v4583 = vadd.f32 %v3504, %v4478
        %v4584 = vadd.f32 %v3507, %v4481
        %v4585 = vadd.f32 %v3557, %v4531
        %v4586 = vadd.f32 %v3560, %v4534
        %v4587 = vadd.f32 %v3565, %v4539
        %v4588 = vadd.f32 %v3568, %v4542
        %v4589 = vadd.f32 %v3573, %v4547
        %v4590 = vadd.f32 %v3576, %v4550
        %v4591 = vadd.f32 %v3581, %v4555
        %v4592 = vadd.f32 %v3584, %v4558
        %vm4593 = vcmp.ge.s32.totalorder %v1638, 24
        %vm4594 = vcmp.lt.s32.totalorder %v1638, 32
        %vm4595 = vmand %vm4593, %vm4594
        %v4596 = vsel %vm4595, 1, 0
        %v4597 = vcvt.s32.f32 %v4596
        %v4598 = vpack.c.bf16 %v4597, %v4597
        %v4599 = vmul.bf16 %v1605, %v4598
        %v4600 = vmul.bf16 %v1606, %v4598
        %v4601 = vmul.bf16 %v1607, %v4598
        %v4602 = vmul.bf16 %v1608, %v4598
        %v4603 = vmul.bf16 %v1609, %v4598
        %v4604 = vmul.bf16 %v1610, %v4598
        %v4605 = vmul.bf16 %v1611, %v4598
        %v4606 = vmul.bf16 %v1612, %v4598
        %v4607 = vmul.bf16 %v1613, %v4598
        %v4608 = vmul.bf16 %v1614, %v4598
        %v4609 = vmul.bf16 %v1615, %v4598
        %v4610 = vmul.bf16 %v1616, %v4598
        %v4611 = vmul.bf16 %v1617, %v4598
        %v4612 = vmul.bf16 %v1618, %v4598
        %v4613 = vmul.bf16 %v1619, %v4598
        %v4614 = vmul.bf16 %v1620, %v4598
        %v4615 = vmul.bf16 %v1621, %v4598
        %v4616 = vmul.bf16 %v1622, %v4598
        %v4617 = vmul.bf16 %v1623, %v4598
        %v4618 = vmul.bf16 %v1624, %v4598
        %v4619 = vmul.bf16 %v1625, %v4598
        %v4620 = vmul.bf16 %v1626, %v4598
        %v4621 = vmul.bf16 %v1627, %v4598
        %v4622 = vmul.bf16 %v1628, %v4598
        %v4623 = vmul.bf16 %v1629, %v4598
        %v4624 = vmul.bf16 %v1630, %v4598
        %v4625 = vmul.bf16 %v1631, %v4598
        %v4626 = vmul.bf16 %v1632, %v4598
        %v4627 = vmul.bf16 %v1633, %v4598
        %v4628 = vmul.bf16 %v1634, %v4598
        %v4629 = vmul.bf16 %v1635, %v4598
        %v4630 = vmul.bf16 %v1636, %v4598
        %4631 = vmatprep.subr.bf16.mxu0 0
        %4632 = vmatpush1.bf16.xpose.msra.mxu0 0
        %4633 = vmatprep.subr.bf16.mxu0 0
        %4634 = vmatpush1.bf16.xpose.msra.mxu0 0
        %4635 = vmatprep.subr.bf16.mxu0 0
        %4636 = vmatpush1.bf16.xpose.msra.mxu0 0
        %4637 = vmatprep.subr.bf16.mxu0 0
        %4638 = vmatpush1.bf16.xpose.msra.mxu0 0
        %4639 = vmatprep.subr.bf16.mxu0 0
        %4640 = vmatpush1.bf16.xpose.msra.mxu0 %v4602
        %4641 = vmatprep.subr.bf16.mxu0 0
        %4642 = vmatpush1.bf16.xpose.msra.mxu0 %v4601
        %4643 = vmatprep.subr.bf16.mxu0 0
        %4644 = vmatpush1.bf16.xpose.msra.mxu0 %v4600
        %4645 = vmatprep.subr.bf16.mxu0 0
        %4646 = vmatpush1.bf16.xpose.msra.mxu0 %v4599
        %4647 = vmatprep.subr.bf16.mxu0 0
        %4648 = vmatpush2.bf16.xpose.msra.mxu0 0
        %4649 = vmatprep.subr.bf16.mxu0 0
        %4650 = vmatpush2.bf16.xpose.msra.mxu0 0
        %4651 = vmatprep.subr.bf16.mxu0 0
        %4652 = vmatpush2.bf16.xpose.msra.mxu0 0
        %4653 = vmatprep.subr.bf16.mxu0 0
        %4654 = vmatpush2.bf16.xpose.msra.mxu0 0
        %4655 = vmatprep.subr.bf16.mxu0 0
        %4656 = vmatpush2.bf16.xpose.msra.mxu0 0
        %4657 = vmatprep.subr.bf16.mxu0 0
        %4658 = vmatpush2.bf16.xpose.msra.mxu0 0
        %4659 = vmatprep.subr.bf16.mxu0 0
        %4660 = vmatpush2.bf16.xpose.msra.mxu0 0
        %4661 = vmatprep.subr.bf16.mxu0 0
        %4662 = vmatpush2.bf16.xpose.msra.mxu0 0
        %4663 = vmatprep.mubr.bf16.mxu0 0
        %4664 = vmatmul.mubr.bf16.gmra.mxu0 %v1589
        %v4665 = vpop.f32.mrf.mxu0
        %v4666 = vadd.f32 0.0, %v4665
        %v4667 = vpop.f32.mrf.mxu0
        %v4668 = vpop.f32.mrf.mxu0
        %v4669 = vadd.f32 0.0, %v4668
        %v4670 = vpop.f32.mrf.mxu0
        %4671 = vmatprep.mubr.bf16.mxu0 0
        %4672 = vmatmul.mubr.bf16.gmra.mxu0 %v1590
        %v4673 = vpop.f32.mrf.mxu0
        %v4674 = vadd.f32 0.0, %v4673
        %v4675 = vpop.f32.mrf.mxu0
        %v4676 = vpop.f32.mrf.mxu0
        %v4677 = vadd.f32 0.0, %v4676
        %v4678 = vpop.f32.mrf.mxu0
        %4679 = vmatprep.mubr.bf16.mxu0 0
        %4680 = vmatmul.mubr.bf16.gmra.mxu0 %v1591
        %v4681 = vpop.f32.mrf.mxu0
        %v4682 = vadd.f32 0.0, %v4681
        %v4683 = vpop.f32.mrf.mxu0
        %v4684 = vpop.f32.mrf.mxu0
        %v4685 = vadd.f32 0.0, %v4684
        %v4686 = vpop.f32.mrf.mxu0
        %4687 = vmatprep.mubr.bf16.mxu0 0
        %4688 = vmatmul.mubr.bf16.gmra.mxu0 %v1592
        %v4689 = vpop.f32.mrf.mxu0
        %v4690 = vadd.f32 0.0, %v4689
        %v4691 = vpop.f32.mrf.mxu0
        %v4692 = vpop.f32.mrf.mxu0
        %v4693 = vadd.f32 0.0, %v4692
        %v4694 = vpop.f32.mrf.mxu0
        %4695 = vdwg.mxu0
        %4696 = vmatprep.subr.bf16.mxu0 0
        %4697 = vmatpush1.bf16.xpose.msra.mxu0 0
        %4698 = vmatprep.subr.bf16.mxu0 0
        %4699 = vmatpush1.bf16.xpose.msra.mxu0 0
        %4700 = vmatprep.subr.bf16.mxu0 0
        %4701 = vmatpush1.bf16.xpose.msra.mxu0 0
        %4702 = vmatprep.subr.bf16.mxu0 0
        %4703 = vmatpush1.bf16.xpose.msra.mxu0 0
        %4704 = vmatprep.subr.bf16.mxu0 0
        %4705 = vmatpush1.bf16.xpose.msra.mxu0 %v4606
        %4706 = vmatprep.subr.bf16.mxu0 0
        %4707 = vmatpush1.bf16.xpose.msra.mxu0 %v4605
        %4708 = vmatprep.subr.bf16.mxu0 0
        %4709 = vmatpush1.bf16.xpose.msra.mxu0 %v4604
        %4710 = vmatprep.subr.bf16.mxu0 0
        %4711 = vmatpush1.bf16.xpose.msra.mxu0 %v4603
        %4712 = vmatprep.subr.bf16.mxu0 0
        %4713 = vmatpush2.bf16.xpose.msra.mxu0 0
        %4714 = vmatprep.subr.bf16.mxu0 0
        %4715 = vmatpush2.bf16.xpose.msra.mxu0 0
        %4716 = vmatprep.subr.bf16.mxu0 0
        %4717 = vmatpush2.bf16.xpose.msra.mxu0 0
        %4718 = vmatprep.subr.bf16.mxu0 0
        %4719 = vmatpush2.bf16.xpose.msra.mxu0 0
        %4720 = vmatprep.subr.bf16.mxu0 0
        %4721 = vmatpush2.bf16.xpose.msra.mxu0 0
        %4722 = vmatprep.subr.bf16.mxu0 0
        %4723 = vmatpush2.bf16.xpose.msra.mxu0 0
        %4724 = vmatprep.subr.bf16.mxu0 0
        %4725 = vmatpush2.bf16.xpose.msra.mxu0 0
        %4726 = vmatprep.subr.bf16.mxu0 0
        %4727 = vmatpush2.bf16.xpose.msra.mxu0 0
        %4728 = vmatprep.mubr.bf16.mxu0 0
        %4729 = vmatmul.mubr.bf16.gmra.mxu0 %v1593
        %v4730 = vpop.f32.mrf.mxu0
        %v4731 = vadd.f32 0.0, %v4730
        %v4732 = vpop.f32.mrf.mxu0
        %v4733 = vpop.f32.mrf.mxu0
        %v4734 = vadd.f32 0.0, %v4733
        %v4735 = vpop.f32.mrf.mxu0
        %4736 = vmatprep.mubr.bf16.mxu0 0
        %4737 = vmatmul.mubr.bf16.gmra.mxu0 %v1594
        %v4738 = vpop.f32.mrf.mxu0
        %v4739 = vadd.f32 0.0, %v4738
        %v4740 = vpop.f32.mrf.mxu0
        %v4741 = vpop.f32.mrf.mxu0
        %v4742 = vadd.f32 0.0, %v4741
        %v4743 = vpop.f32.mrf.mxu0
        %4744 = vmatprep.mubr.bf16.mxu0 0
        %4745 = vmatmul.mubr.bf16.gmra.mxu0 %v1595
        %v4746 = vpop.f32.mrf.mxu0
        %v4747 = vadd.f32 0.0, %v4746
        %v4748 = vpop.f32.mrf.mxu0
        %v4749 = vpop.f32.mrf.mxu0
        %v4750 = vadd.f32 0.0, %v4749
        %v4751 = vpop.f32.mrf.mxu0
        %4752 = vmatprep.mubr.bf16.mxu0 0
        %4753 = vmatmul.mubr.bf16.gmra.mxu0 %v1596
        %v4754 = vpop.f32.mrf.mxu0
        %v4755 = vadd.f32 0.0, %v4754
        %v4756 = vpop.f32.mrf.mxu0
        %v4757 = vpop.f32.mrf.mxu0
        %v4758 = vadd.f32 0.0, %v4757
        %v4759 = vpop.f32.mrf.mxu0
        %4760 = vdwg.mxu0
        %4761 = vmatprep.subr.bf16.mxu0 0
        %4762 = vmatpush1.bf16.xpose.msra.mxu0 0
        %4763 = vmatprep.subr.bf16.mxu0 0
        %4764 = vmatpush1.bf16.xpose.msra.mxu0 0
        %4765 = vmatprep.subr.bf16.mxu0 0
        %4766 = vmatpush1.bf16.xpose.msra.mxu0 0
        %4767 = vmatprep.subr.bf16.mxu0 0
        %4768 = vmatpush1.bf16.xpose.msra.mxu0 0
        %4769 = vmatprep.subr.bf16.mxu0 0
        %4770 = vmatpush1.bf16.xpose.msra.mxu0 %v4610
        %4771 = vmatprep.subr.bf16.mxu0 0
        %4772 = vmatpush1.bf16.xpose.msra.mxu0 %v4609
        %4773 = vmatprep.subr.bf16.mxu0 0
        %4774 = vmatpush1.bf16.xpose.msra.mxu0 %v4608
        %4775 = vmatprep.subr.bf16.mxu0 0
        %4776 = vmatpush1.bf16.xpose.msra.mxu0 %v4607
        %4777 = vmatprep.subr.bf16.mxu0 0
        %4778 = vmatpush2.bf16.xpose.msra.mxu0 0
        %4779 = vmatprep.subr.bf16.mxu0 0
        %4780 = vmatpush2.bf16.xpose.msra.mxu0 0
        %4781 = vmatprep.subr.bf16.mxu0 0
        %4782 = vmatpush2.bf16.xpose.msra.mxu0 0
        %4783 = vmatprep.subr.bf16.mxu0 0
        %4784 = vmatpush2.bf16.xpose.msra.mxu0 0
        %4785 = vmatprep.subr.bf16.mxu0 0
        %4786 = vmatpush2.bf16.xpose.msra.mxu0 0
        %4787 = vmatprep.subr.bf16.mxu0 0
        %4788 = vmatpush2.bf16.xpose.msra.mxu0 0
        %4789 = vmatprep.subr.bf16.mxu0 0
        %4790 = vmatpush2.bf16.xpose.msra.mxu0 0
        %4791 = vmatprep.subr.bf16.mxu0 0
        %4792 = vmatpush2.bf16.xpose.msra.mxu0 0
        %4793 = vmatprep.mubr.bf16.mxu0 0
        %4794 = vmatmul.mubr.bf16.gmra.mxu0 %v1597
        %v4795 = vpop.f32.mrf.mxu0
        %v4796 = vadd.f32 0.0, %v4795
        %v4797 = vpop.f32.mrf.mxu0
        %v4798 = vpop.f32.mrf.mxu0
        %v4799 = vadd.f32 0.0, %v4798
        %v4800 = vpop.f32.mrf.mxu0
        %4801 = vmatprep.mubr.bf16.mxu0 0
        %4802 = vmatmul.mubr.bf16.gmra.mxu0 %v1598
        %v4803 = vpop.f32.mrf.mxu0
        %v4804 = vadd.f32 0.0, %v4803
        %v4805 = vpop.f32.mrf.mxu0
        %v4806 = vpop.f32.mrf.mxu0
        %v4807 = vadd.f32 0.0, %v4806
        %v4808 = vpop.f32.mrf.mxu0
        %4809 = vmatprep.mubr.bf16.mxu0 0
        %4810 = vmatmul.mubr.bf16.gmra.mxu0 %v1599
        %v4811 = vpop.f32.mrf.mxu0
        %v4812 = vadd.f32 0.0, %v4811
        %v4813 = vpop.f32.mrf.mxu0
        %v4814 = vpop.f32.mrf.mxu0
        %v4815 = vadd.f32 0.0, %v4814
        %v4816 = vpop.f32.mrf.mxu0
        %4817 = vmatprep.mubr.bf16.mxu0 0
        %4818 = vmatmul.mubr.bf16.gmra.mxu0 %v1600
        %v4819 = vpop.f32.mrf.mxu0
        %v4820 = vadd.f32 0.0, %v4819
        %v4821 = vpop.f32.mrf.mxu0
        %v4822 = vpop.f32.mrf.mxu0
        %v4823 = vadd.f32 0.0, %v4822
        %v4824 = vpop.f32.mrf.mxu0
        %4825 = vdwg.mxu0
        %4826 = vmatprep.subr.bf16.mxu0 0
        %4827 = vmatpush1.bf16.xpose.msra.mxu0 0
        %4828 = vmatprep.subr.bf16.mxu0 0
        %4829 = vmatpush1.bf16.xpose.msra.mxu0 0
        %4830 = vmatprep.subr.bf16.mxu0 0
        %4831 = vmatpush1.bf16.xpose.msra.mxu0 0
        %4832 = vmatprep.subr.bf16.mxu0 0
        %4833 = vmatpush1.bf16.xpose.msra.mxu0 0
        %4834 = vmatprep.subr.bf16.mxu0 0
        %4835 = vmatpush1.bf16.xpose.msra.mxu0 %v4614
        %4836 = vmatprep.subr.bf16.mxu0 0
        %4837 = vmatpush1.bf16.xpose.msra.mxu0 %v4613
        %4838 = vmatprep.subr.bf16.mxu0 0
        %4839 = vmatpush1.bf16.xpose.msra.mxu0 %v4612
        %4840 = vmatprep.subr.bf16.mxu0 0
        %4841 = vmatpush1.bf16.xpose.msra.mxu0 %v4611
        %4842 = vmatprep.subr.bf16.mxu0 0
        %4843 = vmatpush2.bf16.xpose.msra.mxu0 0
        %4844 = vmatprep.subr.bf16.mxu0 0
        %4845 = vmatpush2.bf16.xpose.msra.mxu0 0
        %4846 = vmatprep.subr.bf16.mxu0 0
        %4847 = vmatpush2.bf16.xpose.msra.mxu0 0
        %4848 = vmatprep.subr.bf16.mxu0 0
        %4849 = vmatpush2.bf16.xpose.msra.mxu0 0
        %4850 = vmatprep.subr.bf16.mxu0 0
        %4851 = vmatpush2.bf16.xpose.msra.mxu0 0
        %4852 = vmatprep.subr.bf16.mxu0 0
        %4853 = vmatpush2.bf16.xpose.msra.mxu0 0
        %4854 = vmatprep.subr.bf16.mxu0 0
        %4855 = vmatpush2.bf16.xpose.msra.mxu0 0
        %4856 = vmatprep.subr.bf16.mxu0 0
        %4857 = vmatpush2.bf16.xpose.msra.mxu0 0
        %4858 = vmatprep.mubr.bf16.mxu0 0
        %4859 = vmatmul.mubr.bf16.gmra.mxu0 %v1601
        %v4860 = vpop.f32.mrf.mxu0
        %v4861 = vadd.f32 0.0, %v4860
        %v4862 = vpop.f32.mrf.mxu0
        %v4863 = vpop.f32.mrf.mxu0
        %v4864 = vadd.f32 0.0, %v4863
        %v4865 = vpop.f32.mrf.mxu0
        %4866 = vmatprep.mubr.bf16.mxu0 0
        %4867 = vmatmul.mubr.bf16.gmra.mxu0 %v1602
        %v4868 = vpop.f32.mrf.mxu0
        %v4869 = vadd.f32 0.0, %v4868
        %v4870 = vpop.f32.mrf.mxu0
        %v4871 = vpop.f32.mrf.mxu0
        %v4872 = vadd.f32 0.0, %v4871
        %v4873 = vpop.f32.mrf.mxu0
        %4874 = vmatprep.mubr.bf16.mxu0 0
        %4875 = vmatmul.mubr.bf16.gmra.mxu0 %v1603
        %v4876 = vpop.f32.mrf.mxu0
        %v4877 = vadd.f32 0.0, %v4876
        %v4878 = vpop.f32.mrf.mxu0
        %v4879 = vpop.f32.mrf.mxu0
        %v4880 = vadd.f32 0.0, %v4879
        %v4881 = vpop.f32.mrf.mxu0
        %4882 = vmatprep.mubr.bf16.mxu0 0
        %4883 = vmatmul.mubr.bf16.gmra.mxu0 %v1604
        %v4884 = vpop.f32.mrf.mxu0
        %v4885 = vadd.f32 0.0, %v4884
        %v4886 = vpop.f32.mrf.mxu0
        %v4887 = vpop.f32.mrf.mxu0
        %v4888 = vadd.f32 0.0, %v4887
        %v4889 = vpop.f32.mrf.mxu0
        %4890 = vdwg.mxu0
        %v4891 = vsel %vm578, %v4666, -inf
        %4892 = vmax.xlane.f32.xlu0 %v4891
        %v4893 = vpop.xlane.xlu0 %4892
        %v4894 = vsel %vm578, %v4669, -inf
        %4895 = vmax.xlane.f32.xlu0 %v4894
        %v4896 = vpop.xlane.xlu0 %4895
        %v4897 = vsel %vm578, %v4674, -inf
        %4898 = vmax.xlane.f32.xlu0 %v4897
        %v4899 = vpop.xlane.xlu0 %4898
        %v4900 = vsel %vm578, %v4677, -inf
        %4901 = vmax.xlane.f32.xlu0 %v4900
        %v4902 = vpop.xlane.xlu0 %4901
        %v4903 = vsel %vm578, %v4682, -inf
        %4904 = vmax.xlane.f32.xlu0 %v4903
        %v4905 = vpop.xlane.xlu0 %4904
        %v4906 = vsel %vm578, %v4685, -inf
        %4907 = vmax.xlane.f32.xlu0 %v4906
        %v4908 = vpop.xlane.xlu0 %4907
        %v4909 = vsel %vm578, %v4690, -inf
        %4910 = vmax.xlane.f32.xlu0 %v4909
        %v4911 = vpop.xlane.xlu0 %4910
        %v4912 = vsel %vm578, %v4693, -inf
        %4913 = vmax.xlane.f32.xlu0 %v4912
        %v4914 = vpop.xlane.xlu0 %4913
        %v4915 = vsel %vm578, %v4731, -inf
        %4916 = vmax.xlane.f32.xlu0 %v4915
        %v4917 = vpop.xlane.xlu0 %4916
        %v4918 = vsel %vm578, %v4734, -inf
        %4919 = vmax.xlane.f32.xlu0 %v4918
        %v4920 = vpop.xlane.xlu0 %4919
        %v4921 = vsel %vm578, %v4739, -inf
        %4922 = vmax.xlane.f32.xlu0 %v4921
        %v4923 = vpop.xlane.xlu0 %4922
        %v4924 = vsel %vm578, %v4742, -inf
        %4925 = vmax.xlane.f32.xlu0 %v4924
        %v4926 = vpop.xlane.xlu0 %4925
        %v4927 = vsel %vm578, %v4747, -inf
        %4928 = vmax.xlane.f32.xlu0 %v4927
        %v4929 = vpop.xlane.xlu0 %4928
        %v4930 = vsel %vm578, %v4750, -inf
        %4931 = vmax.xlane.f32.xlu0 %v4930
        %v4932 = vpop.xlane.xlu0 %4931
        %v4933 = vsel %vm578, %v4755, -inf
        %4934 = vmax.xlane.f32.xlu0 %v4933
        %v4935 = vpop.xlane.xlu0 %4934
        %v4936 = vsel %vm578, %v4758, -inf
        %4937 = vmax.xlane.f32.xlu0 %v4936
        %v4938 = vpop.xlane.xlu0 %4937
        %v4939 = vsel %vm578, %v4796, -inf
        %4940 = vmax.xlane.f32.xlu0 %v4939
        %v4941 = vpop.xlane.xlu0 %4940
        %v4942 = vsel %vm578, %v4799, -inf
        %4943 = vmax.xlane.f32.xlu0 %v4942
        %v4944 = vpop.xlane.xlu0 %4943
        %v4945 = vsel %vm578, %v4804, -inf
        %4946 = vmax.xlane.f32.xlu0 %v4945
        %v4947 = vpop.xlane.xlu0 %4946
        %v4948 = vsel %vm578, %v4807, -inf
        %4949 = vmax.xlane.f32.xlu0 %v4948
        %v4950 = vpop.xlane.xlu0 %4949
        %v4951 = vsel %vm578, %v4812, -inf
        %4952 = vmax.xlane.f32.xlu0 %v4951
        %v4953 = vpop.xlane.xlu0 %4952
        %v4954 = vsel %vm578, %v4815, -inf
        %4955 = vmax.xlane.f32.xlu0 %v4954
        %v4956 = vpop.xlane.xlu0 %4955
        %v4957 = vsel %vm578, %v4820, -inf
        %4958 = vmax.xlane.f32.xlu0 %v4957
        %v4959 = vpop.xlane.xlu0 %4958
        %v4960 = vsel %vm578, %v4823, -inf
        %4961 = vmax.xlane.f32.xlu0 %v4960
        %v4962 = vpop.xlane.xlu0 %4961
        %v4963 = vsel %vm578, %v4861, -inf
        %4964 = vmax.xlane.f32.xlu0 %v4963
        %v4965 = vpop.xlane.xlu0 %4964
        %v4966 = vsel %vm578, %v4864, -inf
        %4967 = vmax.xlane.f32.xlu0 %v4966
        %v4968 = vpop.xlane.xlu0 %4967
        %v4969 = vsel %vm578, %v4869, -inf
        %4970 = vmax.xlane.f32.xlu0 %v4969
        %v4971 = vpop.xlane.xlu0 %4970
        %v4972 = vsel %vm578, %v4872, -inf
        %4973 = vmax.xlane.f32.xlu0 %v4972
        %v4974 = vpop.xlane.xlu0 %4973
        %v4975 = vsel %vm578, %v4877, -inf
        %4976 = vmax.xlane.f32.xlu0 %v4975
        %v4977 = vpop.xlane.xlu0 %4976
        %v4978 = vsel %vm578, %v4880, -inf
        %4979 = vmax.xlane.f32.xlu0 %v4978
        %v4980 = vpop.xlane.xlu0 %4979
        %v4981 = vsel %vm578, %v4885, -inf
        %4982 = vmax.xlane.f32.xlu0 %v4981
        %v4983 = vpop.xlane.xlu0 %4982
        %v4984 = vsel %vm578, %v4888, -inf
        %4985 = vmax.xlane.f32.xlu0 %v4984
        %v4986 = vpop.xlane.xlu0 %4985
        %v4987 = vsub.f32 %v4666, %v4893
        %v4988 = vsub.f32 %v4669, %v4896
        %v4989 = vsub.f32 %v4674, %v4899
        %v4990 = vsub.f32 %v4677, %v4902
        %v4991 = vsub.f32 %v4682, %v4905
        %v4992 = vsub.f32 %v4685, %v4908
        %v4993 = vsub.f32 %v4690, %v4911
        %v4994 = vsub.f32 %v4693, %v4914
        %v4995 = vsub.f32 %v4731, %v4917
        %v4996 = vsub.f32 %v4734, %v4920
        %v4997 = vsub.f32 %v4739, %v4923
        %v4998 = vsub.f32 %v4742, %v4926
        %v4999 = vsub.f32 %v4747, %v4929
        %v5000 = vsub.f32 %v4750, %v4932
        %v5001 = vsub.f32 %v4755, %v4935
        %v5002 = vsub.f32 %v4758, %v4938
        %v5003 = vsub.f32 %v4796, %v4941
        %v5004 = vsub.f32 %v4799, %v4944
        %v5005 = vsub.f32 %v4804, %v4947
        %v5006 = vsub.f32 %v4807, %v4950
        %v5007 = vsub.f32 %v4812, %v4953
        %v5008 = vsub.f32 %v4815, %v4956
        %v5009 = vsub.f32 %v4820, %v4959
        %v5010 = vsub.f32 %v4823, %v4962
        %v5011 = vsub.f32 %v4861, %v4965
        %v5012 = vsub.f32 %v4864, %v4968
        %v5013 = vsub.f32 %v4869, %v4971
        %v5014 = vsub.f32 %v4872, %v4974
        %v5015 = vsub.f32 %v4877, %v4977
        %v5016 = vsub.f32 %v4880, %v4980
        %v5017 = vsub.f32 %v4885, %v4983
        %v5018 = vsub.f32 %v4888, %v4986
        %v5019 = vmul.f32 %v4987, 1.442695
        %v5020 = vpow.pop %v5019
        %v5021 = vmul.f32 %v4988, 1.442695
        %v5022 = vpow.pop %v5021
        %v5023 = vmul.f32 %v4989, 1.442695
        %v5024 = vpow.pop %v5023
        %v5025 = vmul.f32 %v4990, 1.442695
        %v5026 = vpow.pop %v5025
        %v5027 = vmul.f32 %v4991, 1.442695
        %v5028 = vpow.pop %v5027
        %v5029 = vmul.f32 %v4992, 1.442695
        %v5030 = vpow.pop %v5029
        %v5031 = vmul.f32 %v4993, 1.442695
        %v5032 = vpow.pop %v5031
        %v5033 = vmul.f32 %v4994, 1.442695
        %v5034 = vpow.pop %v5033
        %v5035 = vmul.f32 %v4995, 1.442695
        %v5036 = vpow.pop %v5035
        %v5037 = vmul.f32 %v4996, 1.442695
        %v5038 = vpow.pop %v5037
        %v5039 = vmul.f32 %v4997, 1.442695
        %v5040 = vpow.pop %v5039
        %v5041 = vmul.f32 %v4998, 1.442695
        %v5042 = vpow.pop %v5041
        %v5043 = vmul.f32 %v4999, 1.442695
        %v5044 = vpow.pop %v5043
        %v5045 = vmul.f32 %v5000, 1.442695
        %v5046 = vpow.pop %v5045
        %v5047 = vmul.f32 %v5001, 1.442695
        %v5048 = vpow.pop %v5047
        %v5049 = vmul.f32 %v5002, 1.442695
        %v5050 = vpow.pop %v5049
        %v5051 = vmul.f32 %v5003, 1.442695
        %v5052 = vpow.pop %v5051
        %v5053 = vmul.f32 %v5004, 1.442695
        %v5054 = vpow.pop %v5053
        %v5055 = vmul.f32 %v5005, 1.442695
        %v5056 = vpow.pop %v5055
        %v5057 = vmul.f32 %v5006, 1.442695
        %v5058 = vpow.pop %v5057
        %v5059 = vmul.f32 %v5007, 1.442695
        %v5060 = vpow.pop %v5059
        %v5061 = vmul.f32 %v5008, 1.442695
        %v5062 = vpow.pop %v5061
        %v5063 = vmul.f32 %v5009, 1.442695
        %v5064 = vpow.pop %v5063
        %v5065 = vmul.f32 %v5010, 1.442695
        %v5066 = vpow.pop %v5065
        %v5067 = vmul.f32 %v5011, 1.442695
        %v5068 = vpow.pop %v5067
        %v5069 = vmul.f32 %v5012, 1.442695
        %v5070 = vpow.pop %v5069
        %v5071 = vmul.f32 %v5013, 1.442695
        %v5072 = vpow.pop %v5071
        %v5073 = vmul.f32 %v5014, 1.442695
        %v5074 = vpow.pop %v5073
        %v5075 = vmul.f32 %v5015, 1.442695
        %v5076 = vpow.pop %v5075
        %v5077 = vmul.f32 %v5016, 1.442695
        %v5078 = vpow.pop %v5077
        %v5079 = vmul.f32 %v5017, 1.442695
        %v5080 = vpow.pop %v5079
        %v5081 = vmul.f32 %v5018, 1.442695
        %v5082 = vpow.pop %v5081
        %v5083 = vsel %vm578, %v5020, 0.0
        %5084 = vadd.xlane.f32.xlu0 %v5083
        %v5085 = vpop.xlane.xlu0 %5084
        %v5086 = vsel %vm578, %v5022, 0.0
        %5087 = vadd.xlane.f32.xlu0 %v5086
        %v5088 = vpop.xlane.xlu0 %5087
        %v5089 = vsel %vm578, %v5024, 0.0
        %5090 = vadd.xlane.f32.xlu0 %v5089
        %v5091 = vpop.xlane.xlu0 %5090
        %v5092 = vsel %vm578, %v5026, 0.0
        %5093 = vadd.xlane.f32.xlu0 %v5092
        %v5094 = vpop.xlane.xlu0 %5093
        %v5095 = vsel %vm578, %v5028, 0.0
        %5096 = vadd.xlane.f32.xlu0 %v5095
        %v5097 = vpop.xlane.xlu0 %5096
        %v5098 = vsel %vm578, %v5030, 0.0
        %5099 = vadd.xlane.f32.xlu0 %v5098
        %v5100 = vpop.xlane.xlu0 %5099
        %v5101 = vsel %vm578, %v5032, 0.0
        %5102 = vadd.xlane.f32.xlu0 %v5101
        %v5103 = vpop.xlane.xlu0 %5102
        %v5104 = vsel %vm578, %v5034, 0.0
        %5105 = vadd.xlane.f32.xlu0 %v5104
        %v5106 = vpop.xlane.xlu0 %5105
        %v5107 = vsel %vm578, %v5036, 0.0
        %5108 = vadd.xlane.f32.xlu0 %v5107
        %v5109 = vpop.xlane.xlu0 %5108
        %v5110 = vsel %vm578, %v5038, 0.0
        %5111 = vadd.xlane.f32.xlu0 %v5110
        %v5112 = vpop.xlane.xlu0 %5111
        %v5113 = vsel %vm578, %v5040, 0.0
        %5114 = vadd.xlane.f32.xlu0 %v5113
        %v5115 = vpop.xlane.xlu0 %5114
        %v5116 = vsel %vm578, %v5042, 0.0
        %5117 = vadd.xlane.f32.xlu0 %v5116
        %v5118 = vpop.xlane.xlu0 %5117
        %v5119 = vsel %vm578, %v5044, 0.0
        %5120 = vadd.xlane.f32.xlu0 %v5119
        %v5121 = vpop.xlane.xlu0 %5120
        %v5122 = vsel %vm578, %v5046, 0.0
        %5123 = vadd.xlane.f32.xlu0 %v5122
        %v5124 = vpop.xlane.xlu0 %5123
        %v5125 = vsel %vm578, %v5048, 0.0
        %5126 = vadd.xlane.f32.xlu0 %v5125
        %v5127 = vpop.xlane.xlu0 %5126
        %v5128 = vsel %vm578, %v5050, 0.0
        %5129 = vadd.xlane.f32.xlu0 %v5128
        %v5130 = vpop.xlane.xlu0 %5129
        %v5131 = vsel %vm578, %v5052, 0.0
        %5132 = vadd.xlane.f32.xlu0 %v5131
        %v5133 = vpop.xlane.xlu0 %5132
        %v5134 = vsel %vm578, %v5054, 0.0
        %5135 = vadd.xlane.f32.xlu0 %v5134
        %v5136 = vpop.xlane.xlu0 %5135
        %v5137 = vsel %vm578, %v5056, 0.0
        %5138 = vadd.xlane.f32.xlu0 %v5137
        %v5139 = vpop.xlane.xlu0 %5138
        %v5140 = vsel %vm578, %v5058, 0.0
        %5141 = vadd.xlane.f32.xlu0 %v5140
        %v5142 = vpop.xlane.xlu0 %5141
        %v5143 = vsel %vm578, %v5060, 0.0
        %5144 = vadd.xlane.f32.xlu0 %v5143
        %v5145 = vpop.xlane.xlu0 %5144
        %v5146 = vsel %vm578, %v5062, 0.0
        %5147 = vadd.xlane.f32.xlu0 %v5146
        %v5148 = vpop.xlane.xlu0 %5147
        %v5149 = vsel %vm578, %v5064, 0.0
        %5150 = vadd.xlane.f32.xlu0 %v5149
        %v5151 = vpop.xlane.xlu0 %5150
        %v5152 = vsel %vm578, %v5066, 0.0
        %5153 = vadd.xlane.f32.xlu0 %v5152
        %v5154 = vpop.xlane.xlu0 %5153
        %v5155 = vsel %vm578, %v5068, 0.0
        %5156 = vadd.xlane.f32.xlu0 %v5155
        %v5157 = vpop.xlane.xlu0 %5156
        %v5158 = vsel %vm578, %v5070, 0.0
        %5159 = vadd.xlane.f32.xlu0 %v5158
        %v5160 = vpop.xlane.xlu0 %5159
        %v5161 = vsel %vm578, %v5072, 0.0
        %5162 = vadd.xlane.f32.xlu0 %v5161
        %v5163 = vpop.xlane.xlu0 %5162
        %v5164 = vsel %vm578, %v5074, 0.0
        %5165 = vadd.xlane.f32.xlu0 %v5164
        %v5166 = vpop.xlane.xlu0 %5165
        %v5167 = vsel %vm578, %v5076, 0.0
        %5168 = vadd.xlane.f32.xlu0 %v5167
        %v5169 = vpop.xlane.xlu0 %5168
        %v5170 = vsel %vm578, %v5078, 0.0
        %5171 = vadd.xlane.f32.xlu0 %v5170
        %v5172 = vpop.xlane.xlu0 %5171
        %v5173 = vsel %vm578, %v5080, 0.0
        %5174 = vadd.xlane.f32.xlu0 %v5173
        %v5175 = vpop.xlane.xlu0 %5174
        %v5176 = vsel %vm578, %v5082, 0.0
        %5177 = vadd.xlane.f32.xlu0 %v5176
        %v5178 = vpop.xlane.xlu0 %5177
        %v5179 = vrcp.pop %v5085
        %v5180 = vrcp.pop %v5088
        %v5181 = vrcp.pop %v5091
        %v5182 = vrcp.pop %v5094
        %v5183 = vrcp.pop %v5097
        %v5184 = vrcp.pop %v5100
        %v5185 = vrcp.pop %v5103
        %v5186 = vrcp.pop %v5106
        %v5187 = vrcp.pop %v5109
        %v5188 = vrcp.pop %v5112
        %v5189 = vrcp.pop %v5115
        %v5190 = vrcp.pop %v5118
        %v5191 = vrcp.pop %v5121
        %v5192 = vrcp.pop %v5124
        %v5193 = vrcp.pop %v5127
        %v5194 = vrcp.pop %v5130
        %v5195 = vrcp.pop %v5133
        %v5196 = vrcp.pop %v5136
        %v5197 = vrcp.pop %v5139
        %v5198 = vrcp.pop %v5142
        %v5199 = vrcp.pop %v5145
        %v5200 = vrcp.pop %v5148
        %v5201 = vrcp.pop %v5151
        %v5202 = vrcp.pop %v5154
        %v5203 = vrcp.pop %v5157
        %v5204 = vrcp.pop %v5160
        %v5205 = vrcp.pop %v5163
        %v5206 = vrcp.pop %v5166
        %v5207 = vrcp.pop %v5169
        %v5208 = vrcp.pop %v5172
        %v5209 = vrcp.pop %v5175
        %v5210 = vrcp.pop %v5178
        %v5211 = vmul.f32 %v5020, %v5179
        %v5212 = vmul.f32 %v5022, %v5180
        %v5213 = vmul.f32 %v5024, %v5181
        %v5214 = vmul.f32 %v5026, %v5182
        %v5215 = vmul.f32 %v5028, %v5183
        %v5216 = vmul.f32 %v5030, %v5184
        %v5217 = vmul.f32 %v5032, %v5185
        %v5218 = vmul.f32 %v5034, %v5186
        %v5219 = vmul.f32 %v5036, %v5187
        %v5220 = vmul.f32 %v5038, %v5188
        %v5221 = vmul.f32 %v5040, %v5189
        %v5222 = vmul.f32 %v5042, %v5190
        %v5223 = vmul.f32 %v5044, %v5191
        %v5224 = vmul.f32 %v5046, %v5192
        %v5225 = vmul.f32 %v5048, %v5193
        %v5226 = vmul.f32 %v5050, %v5194
        %v5227 = vmul.f32 %v5052, %v5195
        %v5228 = vmul.f32 %v5054, %v5196
        %v5229 = vmul.f32 %v5056, %v5197
        %v5230 = vmul.f32 %v5058, %v5198
        %v5231 = vmul.f32 %v5060, %v5199
        %v5232 = vmul.f32 %v5062, %v5200
        %v5233 = vmul.f32 %v5064, %v5201
        %v5234 = vmul.f32 %v5066, %v5202
        %v5235 = vmul.f32 %v5068, %v5203
        %v5236 = vmul.f32 %v5070, %v5204
        %v5237 = vmul.f32 %v5072, %v5205
        %v5238 = vmul.f32 %v5074, %v5206
        %v5239 = vmul.f32 %v5076, %v5207
        %v5240 = vmul.f32 %v5078, %v5208
        %v5241 = vmul.f32 %v5080, %v5209
        %v5242 = vmul.f32 %v5082, %v5210
        %v5243 = vpack.c.bf16 %v5212, %v5211
        %v5244 = vpack.c.bf16 %v5214, %v5213
        %v5245 = vpack.c.bf16 %v5216, %v5215
        %v5246 = vpack.c.bf16 %v5218, %v5217
        %v5247 = vpack.c.bf16 %v5220, %v5219
        %v5248 = vpack.c.bf16 %v5222, %v5221
        %v5249 = vpack.c.bf16 %v5224, %v5223
        %v5250 = vpack.c.bf16 %v5226, %v5225
        %v5251 = vpack.c.bf16 %v5228, %v5227
        %v5252 = vpack.c.bf16 %v5230, %v5229
        %v5253 = vpack.c.bf16 %v5232, %v5231
        %v5254 = vpack.c.bf16 %v5234, %v5233
        %v5255 = vpack.c.bf16 %v5236, %v5235
        %v5256 = vpack.c.bf16 %v5238, %v5237
        %v5257 = vpack.c.bf16 %v5240, %v5239
        %v5258 = vpack.c.bf16 %v5242, %v5241
        %v5260 = vsel %vm578, %v5243, 0
        %v5263 = vsel %vm578, %v5244, 0
        %v5266 = vsel %vm578, %v5245, 0
        %v5269 = vsel %vm578, %v5246, 0
        %5271 = vmatprep.subr.bf16.mxu0 0
        %5272 = vmatpush1.bf16.msra.mxu0 0
        %5273 = vmatprep.subr.bf16.mxu0 0
        %5274 = vmatpush1.bf16.msra.mxu0 0
        %5275 = vmatprep.subr.bf16.mxu0 0
        %5276 = vmatpush1.bf16.msra.mxu0 0
        %5277 = vmatprep.subr.bf16.mxu0 0
        %5278 = vmatpush1.bf16.msra.mxu0 0
        %5279 = vmatprep.subr.bf16.mxu0 0
        %5280 = vmatpush1.bf16.msra.mxu0 %v4618
        %5281 = vmatprep.subr.bf16.mxu0 0
        %5282 = vmatpush1.bf16.msra.mxu0 %v4617
        %5283 = vmatprep.subr.bf16.mxu0 0
        %5284 = vmatpush1.bf16.msra.mxu0 %v4616
        %5285 = vmatprep.subr.bf16.mxu0 0
        %5286 = vmatpush1.bf16.msra.mxu0 %v4615
        %5287 = vmatprep.subr.bf16.mxu0 0
        %5288 = vmatpush2.bf16.msra.mxu0 0
        %5289 = vmatprep.subr.bf16.mxu0 0
        %5290 = vmatpush2.bf16.msra.mxu0 0
        %5291 = vmatprep.subr.bf16.mxu0 0
        %5292 = vmatpush2.bf16.msra.mxu0 0
        %5293 = vmatprep.subr.bf16.mxu0 0
        %5294 = vmatpush2.bf16.msra.mxu0 0
        %5295 = vmatprep.subr.bf16.mxu0 0
        %5296 = vmatpush2.bf16.msra.mxu0 0
        %5297 = vmatprep.subr.bf16.mxu0 0
        %5298 = vmatpush2.bf16.msra.mxu0 0
        %5299 = vmatprep.subr.bf16.mxu0 0
        %5300 = vmatpush2.bf16.msra.mxu0 0
        %5301 = vmatprep.subr.bf16.mxu0 0
        %5302 = vmatpush2.bf16.msra.mxu0 0
        %5303 = vmatprep.mubr.bf16.mxu0 0
        %5304 = vmatmul.mubr.bf16.gmra.mxu0 %v5260
        %v5305 = vpop.f32.mrf.mxu0
        %v5306 = vadd.f32 0.0, %v5305
        %v5307 = vpop.f32.mrf.mxu0
        %v5308 = vpop.f32.mrf.mxu0
        %v5309 = vadd.f32 0.0, %v5308
        %v5310 = vpop.f32.mrf.mxu0
        %5311 = vmatprep.mubr.bf16.mxu0 0
        %5312 = vmatmul.mubr.bf16.gmra.mxu0 %v5263
        %v5313 = vpop.f32.mrf.mxu0
        %v5314 = vadd.f32 0.0, %v5313
        %v5315 = vpop.f32.mrf.mxu0
        %v5316 = vpop.f32.mrf.mxu0
        %v5317 = vadd.f32 0.0, %v5316
        %v5318 = vpop.f32.mrf.mxu0
        %5319 = vmatprep.mubr.bf16.mxu0 0
        %5320 = vmatmul.mubr.bf16.gmra.mxu0 %v5266
        %v5321 = vpop.f32.mrf.mxu0
        %v5322 = vadd.f32 0.0, %v5321
        %v5323 = vpop.f32.mrf.mxu0
        %v5324 = vpop.f32.mrf.mxu0
        %v5325 = vadd.f32 0.0, %v5324
        %v5326 = vpop.f32.mrf.mxu0
        %5327 = vmatprep.mubr.bf16.mxu0 0
        %5328 = vmatmul.mubr.bf16.gmra.mxu0 %v5269
        %v5329 = vpop.f32.mrf.mxu0
        %v5330 = vadd.f32 0.0, %v5329
        %v5331 = vpop.f32.mrf.mxu0
        %v5332 = vpop.f32.mrf.mxu0
        %v5333 = vadd.f32 0.0, %v5332
        %v5334 = vpop.f32.mrf.mxu0
        %5335 = vdwg.mxu0
        %v5337 = vsel %vm578, %v5247, 0
        %v5340 = vsel %vm578, %v5248, 0
        %v5343 = vsel %vm578, %v5249, 0
        %v5346 = vsel %vm578, %v5250, 0
        %5348 = vmatprep.subr.bf16.mxu0 0
        %5349 = vmatpush1.bf16.msra.mxu0 0
        %5350 = vmatprep.subr.bf16.mxu0 0
        %5351 = vmatpush1.bf16.msra.mxu0 0
        %5352 = vmatprep.subr.bf16.mxu0 0
        %5353 = vmatpush1.bf16.msra.mxu0 0
        %5354 = vmatprep.subr.bf16.mxu0 0
        %5355 = vmatpush1.bf16.msra.mxu0 0
        %5356 = vmatprep.subr.bf16.mxu0 0
        %5357 = vmatpush1.bf16.msra.mxu0 %v4622
        %5358 = vmatprep.subr.bf16.mxu0 0
        %5359 = vmatpush1.bf16.msra.mxu0 %v4621
        %5360 = vmatprep.subr.bf16.mxu0 0
        %5361 = vmatpush1.bf16.msra.mxu0 %v4620
        %5362 = vmatprep.subr.bf16.mxu0 0
        %5363 = vmatpush1.bf16.msra.mxu0 %v4619
        %5364 = vmatprep.subr.bf16.mxu0 0
        %5365 = vmatpush2.bf16.msra.mxu0 0
        %5366 = vmatprep.subr.bf16.mxu0 0
        %5367 = vmatpush2.bf16.msra.mxu0 0
        %5368 = vmatprep.subr.bf16.mxu0 0
        %5369 = vmatpush2.bf16.msra.mxu0 0
        %5370 = vmatprep.subr.bf16.mxu0 0
        %5371 = vmatpush2.bf16.msra.mxu0 0
        %5372 = vmatprep.subr.bf16.mxu0 0
        %5373 = vmatpush2.bf16.msra.mxu0 0
        %5374 = vmatprep.subr.bf16.mxu0 0
        %5375 = vmatpush2.bf16.msra.mxu0 0
        %5376 = vmatprep.subr.bf16.mxu0 0
        %5377 = vmatpush2.bf16.msra.mxu0 0
        %5378 = vmatprep.subr.bf16.mxu0 0
        %5379 = vmatpush2.bf16.msra.mxu0 0
        %5380 = vmatprep.mubr.bf16.mxu0 0
        %5381 = vmatmul.mubr.bf16.gmra.mxu0 %v5337
        %v5382 = vpop.f32.mrf.mxu0
        %v5383 = vadd.f32 0.0, %v5382
        %v5384 = vpop.f32.mrf.mxu0
        %v5385 = vpop.f32.mrf.mxu0
        %v5386 = vadd.f32 0.0, %v5385
        %v5387 = vpop.f32.mrf.mxu0
        %5388 = vmatprep.mubr.bf16.mxu0 0
        %5389 = vmatmul.mubr.bf16.gmra.mxu0 %v5340
        %v5390 = vpop.f32.mrf.mxu0
        %v5391 = vadd.f32 0.0, %v5390
        %v5392 = vpop.f32.mrf.mxu0
        %v5393 = vpop.f32.mrf.mxu0
        %v5394 = vadd.f32 0.0, %v5393
        %v5395 = vpop.f32.mrf.mxu0
        %5396 = vmatprep.mubr.bf16.mxu0 0
        %5397 = vmatmul.mubr.bf16.gmra.mxu0 %v5343
        %v5398 = vpop.f32.mrf.mxu0
        %v5399 = vadd.f32 0.0, %v5398
        %v5400 = vpop.f32.mrf.mxu0
        %v5401 = vpop.f32.mrf.mxu0
        %v5402 = vadd.f32 0.0, %v5401
        %v5403 = vpop.f32.mrf.mxu0
        %5404 = vmatprep.mubr.bf16.mxu0 0
        %5405 = vmatmul.mubr.bf16.gmra.mxu0 %v5346
        %v5406 = vpop.f32.mrf.mxu0
        %v5407 = vadd.f32 0.0, %v5406
        %v5408 = vpop.f32.mrf.mxu0
        %v5409 = vpop.f32.mrf.mxu0
        %v5410 = vadd.f32 0.0, %v5409
        %v5411 = vpop.f32.mrf.mxu0
        %5412 = vdwg.mxu0
        %v5414 = vsel %vm578, %v5251, 0
        %v5417 = vsel %vm578, %v5252, 0
        %v5420 = vsel %vm578, %v5253, 0
        %v5423 = vsel %vm578, %v5254, 0
        %5425 = vmatprep.subr.bf16.mxu0 0
        %5426 = vmatpush1.bf16.msra.mxu0 0
        %5427 = vmatprep.subr.bf16.mxu0 0
        %5428 = vmatpush1.bf16.msra.mxu0 0
        %5429 = vmatprep.subr.bf16.mxu0 0
        %5430 = vmatpush1.bf16.msra.mxu0 0
        %5431 = vmatprep.subr.bf16.mxu0 0
        %5432 = vmatpush1.bf16.msra.mxu0 0
        %5433 = vmatprep.subr.bf16.mxu0 0
        %5434 = vmatpush1.bf16.msra.mxu0 %v4626
        %5435 = vmatprep.subr.bf16.mxu0 0
        %5436 = vmatpush1.bf16.msra.mxu0 %v4625
        %5437 = vmatprep.subr.bf16.mxu0 0
        %5438 = vmatpush1.bf16.msra.mxu0 %v4624
        %5439 = vmatprep.subr.bf16.mxu0 0
        %5440 = vmatpush1.bf16.msra.mxu0 %v4623
        %5441 = vmatprep.subr.bf16.mxu0 0
        %5442 = vmatpush2.bf16.msra.mxu0 0
        %5443 = vmatprep.subr.bf16.mxu0 0
        %5444 = vmatpush2.bf16.msra.mxu0 0
        %5445 = vmatprep.subr.bf16.mxu0 0
        %5446 = vmatpush2.bf16.msra.mxu0 0
        %5447 = vmatprep.subr.bf16.mxu0 0
        %5448 = vmatpush2.bf16.msra.mxu0 0
        %5449 = vmatprep.subr.bf16.mxu0 0
        %5450 = vmatpush2.bf16.msra.mxu0 0
        %5451 = vmatprep.subr.bf16.mxu0 0
        %5452 = vmatpush2.bf16.msra.mxu0 0
        %5453 = vmatprep.subr.bf16.mxu0 0
        %5454 = vmatpush2.bf16.msra.mxu0 0
        %5455 = vmatprep.subr.bf16.mxu0 0
        %5456 = vmatpush2.bf16.msra.mxu0 0
        %5457 = vmatprep.mubr.bf16.mxu0 0
        %5458 = vmatmul.mubr.bf16.gmra.mxu0 %v5414
        %v5459 = vpop.f32.mrf.mxu0
        %v5460 = vadd.f32 0.0, %v5459
        %v5461 = vpop.f32.mrf.mxu0
        %v5462 = vpop.f32.mrf.mxu0
        %v5463 = vadd.f32 0.0, %v5462
        %v5464 = vpop.f32.mrf.mxu0
        %5465 = vmatprep.mubr.bf16.mxu0 0
        %5466 = vmatmul.mubr.bf16.gmra.mxu0 %v5417
        %v5467 = vpop.f32.mrf.mxu0
        %v5468 = vadd.f32 0.0, %v5467
        %v5469 = vpop.f32.mrf.mxu0
        %v5470 = vpop.f32.mrf.mxu0
        %v5471 = vadd.f32 0.0, %v5470
        %v5472 = vpop.f32.mrf.mxu0
        %5473 = vmatprep.mubr.bf16.mxu0 0
        %5474 = vmatmul.mubr.bf16.gmra.mxu0 %v5420
        %v5475 = vpop.f32.mrf.mxu0
        %v5476 = vadd.f32 0.0, %v5475
        %v5477 = vpop.f32.mrf.mxu0
        %v5478 = vpop.f32.mrf.mxu0
        %v5479 = vadd.f32 0.0, %v5478
        %v5480 = vpop.f32.mrf.mxu0
        %5481 = vmatprep.mubr.bf16.mxu0 0
        %5482 = vmatmul.mubr.bf16.gmra.mxu0 %v5423
        %v5483 = vpop.f32.mrf.mxu0
        %v5484 = vadd.f32 0.0, %v5483
        %v5485 = vpop.f32.mrf.mxu0
        %v5486 = vpop.f32.mrf.mxu0
        %v5487 = vadd.f32 0.0, %v5486
        %v5488 = vpop.f32.mrf.mxu0
        %5489 = vdwg.mxu0
        %v5491 = vsel %vm578, %v5255, 0
        %v5494 = vsel %vm578, %v5256, 0
        %v5497 = vsel %vm578, %v5257, 0
        %v5500 = vsel %vm578, %v5258, 0
        %5502 = vmatprep.subr.bf16.mxu0 0
        %5503 = vmatpush1.bf16.msra.mxu0 0
        %5504 = vmatprep.subr.bf16.mxu0 0
        %5505 = vmatpush1.bf16.msra.mxu0 0
        %5506 = vmatprep.subr.bf16.mxu0 0
        %5507 = vmatpush1.bf16.msra.mxu0 0
        %5508 = vmatprep.subr.bf16.mxu0 0
        %5509 = vmatpush1.bf16.msra.mxu0 0
        %5510 = vmatprep.subr.bf16.mxu0 0
        %5511 = vmatpush1.bf16.msra.mxu0 %v4630
        %5512 = vmatprep.subr.bf16.mxu0 0
        %5513 = vmatpush1.bf16.msra.mxu0 %v4629
        %5514 = vmatprep.subr.bf16.mxu0 0
        %5515 = vmatpush1.bf16.msra.mxu0 %v4628
        %5516 = vmatprep.subr.bf16.mxu0 0
        %5517 = vmatpush1.bf16.msra.mxu0 %v4627
        %5518 = vmatprep.subr.bf16.mxu0 0
        %5519 = vmatpush2.bf16.msra.mxu0 0
        %5520 = vmatprep.subr.bf16.mxu0 0
        %5521 = vmatpush2.bf16.msra.mxu0 0
        %5522 = vmatprep.subr.bf16.mxu0 0
        %5523 = vmatpush2.bf16.msra.mxu0 0
        %5524 = vmatprep.subr.bf16.mxu0 0
        %5525 = vmatpush2.bf16.msra.mxu0 0
        %5526 = vmatprep.subr.bf16.mxu0 0
        %5527 = vmatpush2.bf16.msra.mxu0 0
        %5528 = vmatprep.subr.bf16.mxu0 0
        %5529 = vmatpush2.bf16.msra.mxu0 0
        %5530 = vmatprep.subr.bf16.mxu0 0
        %5531 = vmatpush2.bf16.msra.mxu0 0
        %5532 = vmatprep.subr.bf16.mxu0 0
        %5533 = vmatpush2.bf16.msra.mxu0 0
        %5534 = vmatprep.mubr.bf16.mxu0 0
        %5535 = vmatmul.mubr.bf16.gmra.mxu0 %v5491
        %v5536 = vpop.f32.mrf.mxu0
        %v5537 = vadd.f32 0.0, %v5536
        %v5538 = vpop.f32.mrf.mxu0
        %v5539 = vpop.f32.mrf.mxu0
        %v5540 = vadd.f32 0.0, %v5539
        %v5541 = vpop.f32.mrf.mxu0
        %5542 = vmatprep.mubr.bf16.mxu0 0
        %5543 = vmatmul.mubr.bf16.gmra.mxu0 %v5494
        %v5544 = vpop.f32.mrf.mxu0
        %v5545 = vadd.f32 0.0, %v5544
        %v5546 = vpop.f32.mrf.mxu0
        %v5547 = vpop.f32.mrf.mxu0
        %v5548 = vadd.f32 0.0, %v5547
        %v5549 = vpop.f32.mrf.mxu0
        %5550 = vmatprep.mubr.bf16.mxu0 0
        %5551 = vmatmul.mubr.bf16.gmra.mxu0 %v5497
        %v5552 = vpop.f32.mrf.mxu0
        %v5553 = vadd.f32 0.0, %v5552
        %v5554 = vpop.f32.mrf.mxu0
        %v5555 = vpop.f32.mrf.mxu0
        %v5556 = vadd.f32 0.0, %v5555
        %v5557 = vpop.f32.mrf.mxu0
        %5558 = vmatprep.mubr.bf16.mxu0 0
        %5559 = vmatmul.mubr.bf16.gmra.mxu0 %v5500
        %v5560 = vpop.f32.mrf.mxu0
        %v5561 = vadd.f32 0.0, %v5560
        %v5562 = vpop.f32.mrf.mxu0
        %v5563 = vpop.f32.mrf.mxu0
        %v5564 = vadd.f32 0.0, %v5563
        %v5565 = vpop.f32.mrf.mxu0
        %5566 = vdwg.mxu0
        %v5567 = vadd.f32 %v4561, %v5306
        %v5568 = vadd.f32 %v4562, %v5309
        %v5569 = vadd.f32 %v4563, %v5314
        %v5570 = vadd.f32 %v4564, %v5317
        %v5571 = vadd.f32 %v4565, %v5322
        %v5572 = vadd.f32 %v4566, %v5325
        %v5573 = vadd.f32 %v4567, %v5330
        %v5574 = vadd.f32 %v4568, %v5333
        %v5575 = vadd.f32 %v4569, %v5383
        %v5576 = vadd.f32 %v4570, %v5386
        %v5577 = vadd.f32 %v4571, %v5391
        %v5578 = vadd.f32 %v4572, %v5394
        %v5579 = vadd.f32 %v4573, %v5399
        %v5580 = vadd.f32 %v4574, %v5402
        %v5581 = vadd.f32 %v4575, %v5407
        %v5582 = vadd.f32 %v4576, %v5410
        %v5583 = vadd.f32 %v4577, %v5460
        %v5584 = vadd.f32 %v4578, %v5463
        %v5585 = vadd.f32 %v4579, %v5468
        %v5586 = vadd.f32 %v4580, %v5471
        %v5587 = vadd.f32 %v4581, %v5476
        %v5588 = vadd.f32 %v4582, %v5479
        %v5589 = vadd.f32 %v4583, %v5484
        %v5590 = vadd.f32 %v4584, %v5487
        %v5591 = vadd.f32 %v4585, %v5537
        %v5592 = vadd.f32 %v4586, %v5540
        %v5593 = vadd.f32 %v4587, %v5545
        %v5594 = vadd.f32 %v4588, %v5548
        %v5595 = vadd.f32 %v4589, %v5553
        %v5596 = vadd.f32 %v4590, %v5556
        %v5597 = vadd.f32 %v4591, %v5561
        %v5598 = vadd.f32 %v4592, %v5564
        %v5599 = vpack.c.bf16 %v5568, %v5567
        %v5600 = vpack.c.bf16 %v5570, %v5569
        %v5601 = vpack.c.bf16 %v5572, %v5571
        %v5602 = vpack.c.bf16 %v5574, %v5573
        %v5603 = vpack.c.bf16 %v5576, %v5575
        %v5604 = vpack.c.bf16 %v5578, %v5577
        %v5605 = vpack.c.bf16 %v5580, %v5579
        %v5606 = vpack.c.bf16 %v5582, %v5581
        %v5607 = vpack.c.bf16 %v5584, %v5583
        %v5608 = vpack.c.bf16 %v5586, %v5585
        %v5609 = vpack.c.bf16 %v5588, %v5587
        %v5610 = vpack.c.bf16 %v5590, %v5589
        %v5611 = vpack.c.bf16 %v5592, %v5591
        %v5612 = vpack.c.bf16 %v5594, %v5593
        %v5613 = vpack.c.bf16 %v5596, %v5595
        %v5614 = vpack.c.bf16 %v5598, %v5597
        %v5615 = vld [vmem:[#allocation10] sm:$0xf]
        %v5616 = vld [vmem:[#allocation10 + $0x4] sm:$0xf]
        %v5617 = vld [vmem:[#allocation10 + $0x8] sm:$0xf]
        %v5618 = vld [vmem:[#allocation10 + $0xc] sm:$0xf]
        %v5619 = vld [vmem:[#allocation10 + $0x10] sm:$0xf]
        %v5620 = vld [vmem:[#allocation10 + $0x14] sm:$0xf]
        %v5621 = vld [vmem:[#allocation10 + $0x18] sm:$0xf]
        %v5622 = vld [vmem:[#allocation10 + $0x1c] sm:$0xf]
        %v5623 = vld [vmem:[#allocation10 + $0x20] sm:$0xf]
        %v5624 = vld [vmem:[#allocation10 + $0x24] sm:$0xf]
        %v5625 = vld [vmem:[#allocation10 + $0x28] sm:$0xf]
        %v5626 = vld [vmem:[#allocation10 + $0x2c] sm:$0xf]
        %v5627 = vld [vmem:[#allocation10 + $0x30] sm:$0xf]
        %v5628 = vld [vmem:[#allocation10 + $0x34] sm:$0xf]
        %v5629 = vld [vmem:[#allocation10 + $0x38] sm:$0xf]
        %v5630 = vld [vmem:[#allocation10 + $0x3c] sm:$0xf]
        %v5631 = vld [vmem:[%s6] sm:$0x1]
        %v5633 = vlaneseq
        %v5634 = vshrl.u32 %v5633, 7
        %v5635 = vsub.s32 0, %v5634
        %v5636 = vrot.slane %v5631, %v5635
        %v5654 = vunpack.c.l.b16 %v5615
        %v5655 = vunpack.c.l.b16 %v5616
        %v5656 = vunpack.c.l.b16 %v5617
        %v5657 = vunpack.c.l.b16 %v5618
        %v5658 = vunpack.c.l.b16 %v5619
        %v5659 = vunpack.c.l.b16 %v5620
        %v5660 = vunpack.c.l.b16 %v5621
        %v5661 = vunpack.c.l.b16 %v5622
        %v5662 = vunpack.c.l.b16 %v5623
        %v5663 = vunpack.c.l.b16 %v5624
        %v5664 = vunpack.c.l.b16 %v5625
        %v5665 = vunpack.c.l.b16 %v5626
        %v5666 = vunpack.c.l.b16 %v5627
        %v5667 = vunpack.c.l.b16 %v5628
        %v5668 = vunpack.c.l.b16 %v5629
        %v5669 = vunpack.c.l.b16 %v5630
        %v5670 = vpack.c.b16 %v5655, %v5654
        %v5671 = vpack.c.b16 %v5657, %v5656
        %v5672 = vpack.c.b16 %v5659, %v5658
        %v5673 = vpack.c.b16 %v5661, %v5660
        %v5674 = vpack.c.b16 %v5663, %v5662
        %v5675 = vpack.c.b16 %v5665, %v5664
        %v5676 = vpack.c.b16 %v5667, %v5666
        %v5677 = vpack.c.b16 %v5669, %v5668
        %5686 = vmatprep.subr.bf16.mxu0 0
        %5687 = vmatpush1.bf16.msra.mxu0 %v5677
        %5688 = vmatprep.subr.bf16.mxu0 0
        %5689 = vmatpush1.bf16.msra.mxu0 %v5676
        %5690 = vmatprep.subr.bf16.mxu0 0
        %5691 = vmatpush1.bf16.msra.mxu0 %v5675
        %5692 = vmatprep.subr.bf16.mxu0 0
        %5693 = vmatpush1.bf16.msra.mxu0 %v5674
        %5694 = vmatprep.subr.bf16.mxu0 0
        %5695 = vmatpush1.bf16.msra.mxu0 %v5673
        %5696 = vmatprep.subr.bf16.mxu0 0
        %5697 = vmatpush1.bf16.msra.mxu0 %v5672
        %5698 = vmatprep.subr.bf16.mxu0 0
        %5699 = vmatpush1.bf16.msra.mxu0 %v5671
        %5700 = vmatprep.subr.bf16.mxu0 0
        %5701 = vmatpush1.bf16.msra.mxu0 %v5670
        %5702 = vmatprep.subr.bf16.mxu0 0
        %5703 = vmatpush2.bf16.msra.mxu0 0
        %5704 = vmatprep.subr.bf16.mxu0 0
        %5705 = vmatpush2.bf16.msra.mxu0 0
        %5706 = vmatprep.subr.bf16.mxu0 0
        %5707 = vmatpush2.bf16.msra.mxu0 0
        %5708 = vmatprep.subr.bf16.mxu0 0
        %5709 = vmatpush2.bf16.msra.mxu0 0
        %5710 = vmatprep.subr.bf16.mxu0 0
        %5711 = vmatpush2.bf16.msra.mxu0 0
        %5712 = vmatprep.subr.bf16.mxu0 0
        %5713 = vmatpush2.bf16.msra.mxu0 0
        %5714 = vmatprep.subr.bf16.mxu0 0
        %5715 = vmatpush2.bf16.msra.mxu0 0
        %5716 = vmatprep.subr.bf16.mxu0 0
        %5717 = vmatpush2.bf16.msra.mxu0 0
        %5718 = vmatprep.mubr.bf16.mxu0 0
        %5719 = vmatmul.mubr.bf16.gmra.mxu0 %v5599
        %v5720 = vpop.f32.mrf.mxu0
        %v5721 = vadd.f32 %v5636, %v5720
        %v5722 = vpop.f32.mrf.mxu0
        %v5723 = vpop.f32.mrf.mxu0
        %v5724 = vadd.f32 %v5636, %v5723
        %v5725 = vpop.f32.mrf.mxu0
        %5726 = vmatprep.mubr.bf16.mxu0 0
        %5727 = vmatmul.mubr.bf16.gmra.mxu0 %v5600
        %v5728 = vpop.f32.mrf.mxu0
        %v5729 = vadd.f32 %v5636, %v5728
        %v5730 = vpop.f32.mrf.mxu0
        %v5731 = vpop.f32.mrf.mxu0
        %v5732 = vadd.f32 %v5636, %v5731
        %v5733 = vpop.f32.mrf.mxu0
        %5734 = vmatprep.mubr.bf16.mxu0 0
        %5735 = vmatmul.mubr.bf16.gmra.mxu0 %v5601
        %v5736 = vpop.f32.mrf.mxu0
        %v5737 = vadd.f32 %v5636, %v5736
        %v5738 = vpop.f32.mrf.mxu0
        %v5739 = vpop.f32.mrf.mxu0
        %v5740 = vadd.f32 %v5636, %v5739
        %v5741 = vpop.f32.mrf.mxu0
        %5742 = vmatprep.mubr.bf16.mxu0 0
        %5743 = vmatmul.mubr.bf16.gmra.mxu0 %v5602
        %v5744 = vpop.f32.mrf.mxu0
        %v5745 = vadd.f32 %v5636, %v5744
        %v5746 = vpop.f32.mrf.mxu0
        %v5747 = vpop.f32.mrf.mxu0
        %v5748 = vadd.f32 %v5636, %v5747
        %v5749 = vpop.f32.mrf.mxu0
        %5750 = vmatprep.mubr.bf16.mxu0 0
        %5751 = vmatmul.mubr.bf16.gmra.mxu0 %v5603
        %v5752 = vpop.f32.mrf.mxu0
        %v5753 = vadd.f32 %v5636, %v5752
        %v5754 = vpop.f32.mrf.mxu0
        %v5755 = vpop.f32.mrf.mxu0
        %v5756 = vadd.f32 %v5636, %v5755
        %v5757 = vpop.f32.mrf.mxu0
        %5758 = vmatprep.mubr.bf16.mxu0 0
        %5759 = vmatmul.mubr.bf16.gmra.mxu0 %v5604
        %v5760 = vpop.f32.mrf.mxu0
        %v5761 = vadd.f32 %v5636, %v5760
        %v5762 = vpop.f32.mrf.mxu0
        %v5763 = vpop.f32.mrf.mxu0
        %v5764 = vadd.f32 %v5636, %v5763
        %v5765 = vpop.f32.mrf.mxu0
        %5766 = vmatprep.mubr.bf16.mxu0 0
        %5767 = vmatmul.mubr.bf16.gmra.mxu0 %v5605
        %v5768 = vpop.f32.mrf.mxu0
        %v5769 = vadd.f32 %v5636, %v5768
        %v5770 = vpop.f32.mrf.mxu0
        %v5771 = vpop.f32.mrf.mxu0
        %v5772 = vadd.f32 %v5636, %v5771
        %v5773 = vpop.f32.mrf.mxu0
        %5774 = vmatprep.mubr.bf16.mxu0 0
        %5775 = vmatmul.mubr.bf16.gmra.mxu0 %v5606
        %v5776 = vpop.f32.mrf.mxu0
        %v5777 = vadd.f32 %v5636, %v5776
        %v5778 = vpop.f32.mrf.mxu0
        %v5779 = vpop.f32.mrf.mxu0
        %v5780 = vadd.f32 %v5636, %v5779
        %v5781 = vpop.f32.mrf.mxu0
        %5782 = vmatprep.mubr.bf16.mxu0 0
        %5783 = vmatmul.mubr.bf16.gmra.mxu0 %v5607
        %v5784 = vpop.f32.mrf.mxu0
        %v5785 = vadd.f32 %v5636, %v5784
        %v5786 = vpop.f32.mrf.mxu0
        %v5787 = vpop.f32.mrf.mxu0
        %v5788 = vadd.f32 %v5636, %v5787
        %v5789 = vpop.f32.mrf.mxu0
        %5790 = vmatprep.mubr.bf16.mxu0 0
        %5791 = vmatmul.mubr.bf16.gmra.mxu0 %v5608
        %v5792 = vpop.f32.mrf.mxu0
        %v5793 = vadd.f32 %v5636, %v5792
        %v5794 = vpop.f32.mrf.mxu0
        %v5795 = vpop.f32.mrf.mxu0
        %v5796 = vadd.f32 %v5636, %v5795
        %v5797 = vpop.f32.mrf.mxu0
        %5798 = vmatprep.mubr.bf16.mxu0 0
        %5799 = vmatmul.mubr.bf16.gmra.mxu0 %v5609
        %v5800 = vpop.f32.mrf.mxu0
        %v5801 = vadd.f32 %v5636, %v5800
        %v5802 = vpop.f32.mrf.mxu0
        %v5803 = vpop.f32.mrf.mxu0
        %v5804 = vadd.f32 %v5636, %v5803
        %v5805 = vpop.f32.mrf.mxu0
        %5806 = vmatprep.mubr.bf16.mxu0 0
        %5807 = vmatmul.mubr.bf16.gmra.mxu0 %v5610
        %v5808 = vpop.f32.mrf.mxu0
        %v5809 = vadd.f32 %v5636, %v5808
        %v5810 = vpop.f32.mrf.mxu0
        %v5811 = vpop.f32.mrf.mxu0
        %v5812 = vadd.f32 %v5636, %v5811
        %v5813 = vpop.f32.mrf.mxu0
        %5814 = vmatprep.mubr.bf16.mxu0 0
        %5815 = vmatmul.mubr.bf16.gmra.mxu0 %v5611
        %v5816 = vpop.f32.mrf.mxu0
        %v5817 = vadd.f32 %v5636, %v5816
        %v5818 = vpop.f32.mrf.mxu0
        %v5819 = vpop.f32.mrf.mxu0
        %v5820 = vadd.f32 %v5636, %v5819
        %v5821 = vpop.f32.mrf.mxu0
        %5822 = vmatprep.mubr.bf16.mxu0 0
        %5823 = vmatmul.mubr.bf16.gmra.mxu0 %v5612
        %v5824 = vpop.f32.mrf.mxu0
        %v5825 = vadd.f32 %v5636, %v5824
        %v5826 = vpop.f32.mrf.mxu0
        %v5827 = vpop.f32.mrf.mxu0
        %v5828 = vadd.f32 %v5636, %v5827
        %v5829 = vpop.f32.mrf.mxu0
        %5830 = vmatprep.mubr.bf16.mxu0 0
        %5831 = vmatmul.mubr.bf16.gmra.mxu0 %v5613
        %v5832 = vpop.f32.mrf.mxu0
        %v5833 = vadd.f32 %v5636, %v5832
        %v5834 = vpop.f32.mrf.mxu0
        %v5835 = vpop.f32.mrf.mxu0
        %v5836 = vadd.f32 %v5636, %v5835
        %v5837 = vpop.f32.mrf.mxu0
        %5838 = vmatprep.mubr.bf16.mxu0 0
        %5839 = vmatmul.mubr.bf16.gmra.mxu0 %v5614
        %v5840 = vpop.f32.mrf.mxu0
        %v5841 = vadd.f32 %v5636, %v5840
        %v5842 = vpop.f32.mrf.mxu0
        %v5843 = vpop.f32.mrf.mxu0
        %v5844 = vadd.f32 %v5636, %v5843
        %v5845 = vpop.f32.mrf.mxu0
        %5846 = vdwg.mxu0
        %v5847 = vadd.f32 %v546, %v5721
        %v5848 = vadd.f32 %v547, %v5724
        %v5849 = vadd.f32 %v548, %v5729
        %v5850 = vadd.f32 %v549, %v5732
        %v5851 = vadd.f32 %v550, %v5737
        %v5852 = vadd.f32 %v551, %v5740
        %v5853 = vadd.f32 %v552, %v5745
        %v5854 = vadd.f32 %v553, %v5748
        %v5855 = vadd.f32 %v554, %v5753
        %v5856 = vadd.f32 %v555, %v5756
        %v5857 = vadd.f32 %v556, %v5761
        %v5858 = vadd.f32 %v557, %v5764
        %v5859 = vadd.f32 %v558, %v5769
        %v5860 = vadd.f32 %v559, %v5772
        %v5861 = vadd.f32 %v560, %v5777
        %v5862 = vadd.f32 %v561, %v5780
        %v5863 = vadd.f32 %v562, %v5785
        %v5864 = vadd.f32 %v563, %v5788
        %v5865 = vadd.f32 %v564, %v5793
        %v5866 = vadd.f32 %v565, %v5796
        %v5867 = vadd.f32 %v566, %v5801
        %v5868 = vadd.f32 %v567, %v5804
        %v5869 = vadd.f32 %v568, %v5809
        %v5870 = vadd.f32 %v569, %v5812
        %v5871 = vadd.f32 %v570, %v5817
        %v5872 = vadd.f32 %v571, %v5820
        %v5873 = vadd.f32 %v572, %v5825
        %v5874 = vadd.f32 %v573, %v5828
        %v5875 = vadd.f32 %v574, %v5833
        %v5876 = vadd.f32 %v575, %v5836
        %v5877 = vadd.f32 %v576, %v5841
        %v5878 = vadd.f32 %v577, %v5844
        %v5879 = vsel %vm578, %v5847, 0.0
        %5880 = vadd.xlane.f32.xlu0 %v5879
        %v5881 = vpop.xlane.xlu0 %5880
        %v5882 = vsel %vm578, %v5848, 0.0
        %5883 = vadd.xlane.f32.xlu0 %v5882
        %v5884 = vpop.xlane.xlu0 %5883
        %v5885 = vsel %vm578, %v5849, 0.0
        %5886 = vadd.xlane.f32.xlu0 %v5885
        %v5887 = vpop.xlane.xlu0 %5886
        %v5888 = vsel %vm578, %v5850, 0.0
        %5889 = vadd.xlane.f32.xlu0 %v5888
        %v5890 = vpop.xlane.xlu0 %5889
        %v5891 = vsel %vm578, %v5851, 0.0
        %5892 = vadd.xlane.f32.xlu0 %v5891
        %v5893 = vpop.xlane.xlu0 %5892
        %v5894 = vsel %vm578, %v5852, 0.0
        %5895 = vadd.xlane.f32.xlu0 %v5894
        %v5896 = vpop.xlane.xlu0 %5895
        %v5897 = vsel %vm578, %v5853, 0.0
        %5898 = vadd.xlane.f32.xlu0 %v5897
        %v5899 = vpop.xlane.xlu0 %5898
        %v5900 = vsel %vm578, %v5854, 0.0
        %5901 = vadd.xlane.f32.xlu0 %v5900
        %v5902 = vpop.xlane.xlu0 %5901
        %v5903 = vsel %vm578, %v5855, 0.0
        %5904 = vadd.xlane.f32.xlu0 %v5903
        %v5905 = vpop.xlane.xlu0 %5904
        %v5906 = vsel %vm578, %v5856, 0.0
        %5907 = vadd.xlane.f32.xlu0 %v5906
        %v5908 = vpop.xlane.xlu0 %5907
        %v5909 = vsel %vm578, %v5857, 0.0
        %5910 = vadd.xlane.f32.xlu0 %v5909
        %v5911 = vpop.xlane.xlu0 %5910
        %v5912 = vsel %vm578, %v5858, 0.0
        %5913 = vadd.xlane.f32.xlu0 %v5912
        %v5914 = vpop.xlane.xlu0 %5913
        %v5915 = vsel %vm578, %v5859, 0.0
        %5916 = vadd.xlane.f32.xlu0 %v5915
        %v5917 = vpop.xlane.xlu0 %5916
        %v5918 = vsel %vm578, %v5860, 0.0
        %5919 = vadd.xlane.f32.xlu0 %v5918
        %v5920 = vpop.xlane.xlu0 %5919
        %v5921 = vsel %vm578, %v5861, 0.0
        %5922 = vadd.xlane.f32.xlu0 %v5921
        %v5923 = vpop.xlane.xlu0 %5922
        %v5924 = vsel %vm578, %v5862, 0.0
        %5925 = vadd.xlane.f32.xlu0 %v5924
        %v5926 = vpop.xlane.xlu0 %5925
        %v5927 = vsel %vm578, %v5863, 0.0
        %5928 = vadd.xlane.f32.xlu0 %v5927
        %v5929 = vpop.xlane.xlu0 %5928
        %v5930 = vsel %vm578, %v5864, 0.0
        %5931 = vadd.xlane.f32.xlu0 %v5930
        %v5932 = vpop.xlane.xlu0 %5931
        %v5933 = vsel %vm578, %v5865, 0.0
        %5934 = vadd.xlane.f32.xlu0 %v5933
        %v5935 = vpop.xlane.xlu0 %5934
        %v5936 = vsel %vm578, %v5866, 0.0
        %5937 = vadd.xlane.f32.xlu0 %v5936
        %v5938 = vpop.xlane.xlu0 %5937
        %v5939 = vsel %vm578, %v5867, 0.0
        %5940 = vadd.xlane.f32.xlu0 %v5939
        %v5941 = vpop.xlane.xlu0 %5940
        %v5942 = vsel %vm578, %v5868, 0.0
        %5943 = vadd.xlane.f32.xlu0 %v5942
        %v5944 = vpop.xlane.xlu0 %5943
        %v5945 = vsel %vm578, %v5869, 0.0
        %5946 = vadd.xlane.f32.xlu0 %v5945
        %v5947 = vpop.xlane.xlu0 %5946
        %v5948 = vsel %vm578, %v5870, 0.0
        %5949 = vadd.xlane.f32.xlu0 %v5948
        %v5950 = vpop.xlane.xlu0 %5949
        %v5951 = vsel %vm578, %v5871, 0.0
        %5952 = vadd.xlane.f32.xlu0 %v5951
        %v5953 = vpop.xlane.xlu0 %5952
        %v5954 = vsel %vm578, %v5872, 0.0
        %5955 = vadd.xlane.f32.xlu0 %v5954
        %v5956 = vpop.xlane.xlu0 %5955
        %v5957 = vsel %vm578, %v5873, 0.0
        %5958 = vadd.xlane.f32.xlu0 %v5957
        %v5959 = vpop.xlane.xlu0 %5958
        %v5960 = vsel %vm578, %v5874, 0.0
        %5961 = vadd.xlane.f32.xlu0 %v5960
        %v5962 = vpop.xlane.xlu0 %5961
        %v5963 = vsel %vm578, %v5875, 0.0
        %5964 = vadd.xlane.f32.xlu0 %v5963
        %v5965 = vpop.xlane.xlu0 %5964
        %v5966 = vsel %vm578, %v5876, 0.0
        %5967 = vadd.xlane.f32.xlu0 %v5966
        %v5968 = vpop.xlane.xlu0 %5967
        %v5969 = vsel %vm578, %v5877, 0.0
        %5970 = vadd.xlane.f32.xlu0 %v5969
        %v5971 = vpop.xlane.xlu0 %5970
        %v5972 = vsel %vm578, %v5878, 0.0
        %5973 = vadd.xlane.f32.xlu0 %v5972
        %v5974 = vpop.xlane.xlu0 %5973
        %v5975 = vmul.f32 %v5881, %v675
        %v5976 = vmul.f32 %v5884, %v675
        %v5977 = vmul.f32 %v5887, %v675
        %v5978 = vmul.f32 %v5890, %v675
        %v5979 = vmul.f32 %v5893, %v675
        %v5980 = vmul.f32 %v5896, %v675
        %v5981 = vmul.f32 %v5899, %v675
        %v5982 = vmul.f32 %v5902, %v675
        %v5983 = vmul.f32 %v5905, %v675
        %v5984 = vmul.f32 %v5908, %v675
        %v5985 = vmul.f32 %v5911, %v675
        %v5986 = vmul.f32 %v5914, %v675
        %v5987 = vmul.f32 %v5917, %v675
        %v5988 = vmul.f32 %v5920, %v675
        %v5989 = vmul.f32 %v5923, %v675
        %v5990 = vmul.f32 %v5926, %v675
        %v5991 = vmul.f32 %v5929, %v675
        %v5992 = vmul.f32 %v5932, %v675
        %v5993 = vmul.f32 %v5935, %v675
        %v5994 = vmul.f32 %v5938, %v675
        %v5995 = vmul.f32 %v5941, %v675
        %v5996 = vmul.f32 %v5944, %v675
        %v5997 = vmul.f32 %v5947, %v675
        %v5998 = vmul.f32 %v5950, %v675
        %v5999 = vmul.f32 %v5953, %v675
        %v6000 = vmul.f32 %v5956, %v675
        %v6001 = vmul.f32 %v5959, %v675
        %v6002 = vmul.f32 %v5962, %v675
        %v6003 = vmul.f32 %v5965, %v675
        %v6004 = vmul.f32 %v5968, %v675
        %v6005 = vmul.f32 %v5971, %v675
        %v6006 = vmul.f32 %v5974, %v675
        %v6007 = vsub.f32 %v5847, %v5975
        %v6008 = vsub.f32 %v5848, %v5976
        %v6009 = vsub.f32 %v5849, %v5977
        %v6010 = vsub.f32 %v5850, %v5978
        %v6011 = vsub.f32 %v5851, %v5979
        %v6012 = vsub.f32 %v5852, %v5980
        %v6013 = vsub.f32 %v5853, %v5981
        %v6014 = vsub.f32 %v5854, %v5982
        %v6015 = vsub.f32 %v5855, %v5983
        %v6016 = vsub.f32 %v5856, %v5984
        %v6017 = vsub.f32 %v5857, %v5985
        %v6018 = vsub.f32 %v5858, %v5986
        %v6019 = vsub.f32 %v5859, %v5987
        %v6020 = vsub.f32 %v5860, %v5988
        %v6021 = vsub.f32 %v5861, %v5989
        %v6022 = vsub.f32 %v5862, %v5990
        %v6023 = vsub.f32 %v5863, %v5991
        %v6024 = vsub.f32 %v5864, %v5992
        %v6025 = vsub.f32 %v5865, %v5993
        %v6026 = vsub.f32 %v5866, %v5994
        %v6027 = vsub.f32 %v5867, %v5995
        %v6028 = vsub.f32 %v5868, %v5996
        %v6029 = vsub.f32 %v5869, %v5997
        %v6030 = vsub.f32 %v5870, %v5998
        %v6031 = vsub.f32 %v5871, %v5999
        %v6032 = vsub.f32 %v5872, %v6000
        %v6033 = vsub.f32 %v5873, %v6001
        %v6034 = vsub.f32 %v5874, %v6002
        %v6035 = vsub.f32 %v5875, %v6003
        %v6036 = vsub.f32 %v5876, %v6004
        %v6037 = vsub.f32 %v5877, %v6005
        %v6038 = vsub.f32 %v5878, %v6006
        %v6039 = vmul.f32 %v6007, %v6007
        %v6040 = vmul.f32 %v6008, %v6008
        %v6041 = vmul.f32 %v6009, %v6009
        %v6042 = vmul.f32 %v6010, %v6010
        %v6043 = vmul.f32 %v6011, %v6011
        %v6044 = vmul.f32 %v6012, %v6012
        %v6045 = vmul.f32 %v6013, %v6013
        %v6046 = vmul.f32 %v6014, %v6014
        %v6047 = vmul.f32 %v6015, %v6015
        %v6048 = vmul.f32 %v6016, %v6016
        %v6049 = vmul.f32 %v6017, %v6017
        %v6050 = vmul.f32 %v6018, %v6018
        %v6051 = vmul.f32 %v6019, %v6019
        %v6052 = vmul.f32 %v6020, %v6020
        %v6053 = vmul.f32 %v6021, %v6021
        %v6054 = vmul.f32 %v6022, %v6022
        %v6055 = vmul.f32 %v6023, %v6023
        %v6056 = vmul.f32 %v6024, %v6024
        %v6057 = vmul.f32 %v6025, %v6025
        %v6058 = vmul.f32 %v6026, %v6026
        %v6059 = vmul.f32 %v6027, %v6027
        %v6060 = vmul.f32 %v6028, %v6028
        %v6061 = vmul.f32 %v6029, %v6029
        %v6062 = vmul.f32 %v6030, %v6030
        %v6063 = vmul.f32 %v6031, %v6031
        %v6064 = vmul.f32 %v6032, %v6032
        %v6065 = vmul.f32 %v6033, %v6033
        %v6066 = vmul.f32 %v6034, %v6034
        %v6067 = vmul.f32 %v6035, %v6035
        %v6068 = vmul.f32 %v6036, %v6036
        %v6069 = vmul.f32 %v6037, %v6037
        %v6070 = vmul.f32 %v6038, %v6038
        %v6071 = vsel %vm578, %v6039, 0.0
        %6072 = vadd.xlane.f32.xlu0 %v6071
        %v6073 = vpop.xlane.xlu0 %6072
        %v6074 = vsel %vm578, %v6040, 0.0
        %6075 = vadd.xlane.f32.xlu0 %v6074
        %v6076 = vpop.xlane.xlu0 %6075
        %v6077 = vsel %vm578, %v6041, 0.0
        %6078 = vadd.xlane.f32.xlu0 %v6077
        %v6079 = vpop.xlane.xlu0 %6078
        %v6080 = vsel %vm578, %v6042, 0.0
        %6081 = vadd.xlane.f32.xlu0 %v6080
        %v6082 = vpop.xlane.xlu0 %6081
        %v6083 = vsel %vm578, %v6043, 0.0
        %6084 = vadd.xlane.f32.xlu0 %v6083
        %v6085 = vpop.xlane.xlu0 %6084
        %v6086 = vsel %vm578, %v6044, 0.0
        %6087 = vadd.xlane.f32.xlu0 %v6086
        %v6088 = vpop.xlane.xlu0 %6087
        %v6089 = vsel %vm578, %v6045, 0.0
        %6090 = vadd.xlane.f32.xlu0 %v6089
        %v6091 = vpop.xlane.xlu0 %6090
        %v6092 = vsel %vm578, %v6046, 0.0
        %6093 = vadd.xlane.f32.xlu0 %v6092
        %v6094 = vpop.xlane.xlu0 %6093
        %v6095 = vsel %vm578, %v6047, 0.0
        %6096 = vadd.xlane.f32.xlu0 %v6095
        %v6097 = vpop.xlane.xlu0 %6096
        %v6098 = vsel %vm578, %v6048, 0.0
        %6099 = vadd.xlane.f32.xlu0 %v6098
        %v6100 = vpop.xlane.xlu0 %6099
        %v6101 = vsel %vm578, %v6049, 0.0
        %6102 = vadd.xlane.f32.xlu0 %v6101
        %v6103 = vpop.xlane.xlu0 %6102
        %v6104 = vsel %vm578, %v6050, 0.0
        %6105 = vadd.xlane.f32.xlu0 %v6104
        %v6106 = vpop.xlane.xlu0 %6105
        %v6107 = vsel %vm578, %v6051, 0.0
        %6108 = vadd.xlane.f32.xlu0 %v6107
        %v6109 = vpop.xlane.xlu0 %6108
        %v6110 = vsel %vm578, %v6052, 0.0
        %6111 = vadd.xlane.f32.xlu0 %v6110
        %v6112 = vpop.xlane.xlu0 %6111
        %v6113 = vsel %vm578, %v6053, 0.0
        %6114 = vadd.xlane.f32.xlu0 %v6113
        %v6115 = vpop.xlane.xlu0 %6114
        %v6116 = vsel %vm578, %v6054, 0.0
        %6117 = vadd.xlane.f32.xlu0 %v6116
        %v6118 = vpop.xlane.xlu0 %6117
        %v6119 = vsel %vm578, %v6055, 0.0
        %6120 = vadd.xlane.f32.xlu0 %v6119
        %v6121 = vpop.xlane.xlu0 %6120
        %v6122 = vsel %vm578, %v6056, 0.0
        %6123 = vadd.xlane.f32.xlu0 %v6122
        %v6124 = vpop.xlane.xlu0 %6123
        %v6125 = vsel %vm578, %v6057, 0.0
        %6126 = vadd.xlane.f32.xlu0 %v6125
        %v6127 = vpop.xlane.xlu0 %6126
        %v6128 = vsel %vm578, %v6058, 0.0
        %6129 = vadd.xlane.f32.xlu0 %v6128
        %v6130 = vpop.xlane.xlu0 %6129
        %v6131 = vsel %vm578, %v6059, 0.0
        %6132 = vadd.xlane.f32.xlu0 %v6131
        %v6133 = vpop.xlane.xlu0 %6132
        %v6134 = vsel %vm578, %v6060, 0.0
        %6135 = vadd.xlane.f32.xlu0 %v6134
        %v6136 = vpop.xlane.xlu0 %6135
        %v6137 = vsel %vm578, %v6061, 0.0
        %6138 = vadd.xlane.f32.xlu0 %v6137
        %v6139 = vpop.xlane.xlu0 %6138
        %v6140 = vsel %vm578, %v6062, 0.0
        %6141 = vadd.xlane.f32.xlu0 %v6140
        %v6142 = vpop.xlane.xlu0 %6141
        %v6143 = vsel %vm578, %v6063, 0.0
        %6144 = vadd.xlane.f32.xlu0 %v6143
        %v6145 = vpop.xlane.xlu0 %6144
        %v6146 = vsel %vm578, %v6064, 0.0
        %6147 = vadd.xlane.f32.xlu0 %v6146
        %v6148 = vpop.xlane.xlu0 %6147
        %v6149 = vsel %vm578, %v6065, 0.0
        %6150 = vadd.xlane.f32.xlu0 %v6149
        %v6151 = vpop.xlane.xlu0 %6150
        %v6152 = vsel %vm578, %v6066, 0.0
        %6153 = vadd.xlane.f32.xlu0 %v6152
        %v6154 = vpop.xlane.xlu0 %6153
        %v6155 = vsel %vm578, %v6067, 0.0
        %6156 = vadd.xlane.f32.xlu0 %v6155
        %v6157 = vpop.xlane.xlu0 %6156
        %v6158 = vsel %vm578, %v6068, 0.0
        %6159 = vadd.xlane.f32.xlu0 %v6158
        %v6160 = vpop.xlane.xlu0 %6159
        %v6161 = vsel %vm578, %v6069, 0.0
        %6162 = vadd.xlane.f32.xlu0 %v6161
        %v6163 = vpop.xlane.xlu0 %6162
        %v6164 = vsel %vm578, %v6070, 0.0
        %6165 = vadd.xlane.f32.xlu0 %v6164
        %v6166 = vpop.xlane.xlu0 %6165
        %v6167 = vmul.f32 %v6073, %v675
        %v6168 = vmul.f32 %v6076, %v675
        %v6169 = vmul.f32 %v6079, %v675
        %v6170 = vmul.f32 %v6082, %v675
        %v6171 = vmul.f32 %v6085, %v675
        %v6172 = vmul.f32 %v6088, %v675
        %v6173 = vmul.f32 %v6091, %v675
        %v6174 = vmul.f32 %v6094, %v675
        %v6175 = vmul.f32 %v6097, %v675
        %v6176 = vmul.f32 %v6100, %v675
        %v6177 = vmul.f32 %v6103, %v675
        %v6178 = vmul.f32 %v6106, %v675
        %v6179 = vmul.f32 %v6109, %v675
        %v6180 = vmul.f32 %v6112, %v675
        %v6181 = vmul.f32 %v6115, %v675
        %v6182 = vmul.f32 %v6118, %v675
        %v6183 = vmul.f32 %v6121, %v675
        %v6184 = vmul.f32 %v6124, %v675
        %v6185 = vmul.f32 %v6127, %v675
        %v6186 = vmul.f32 %v6130, %v675
        %v6187 = vmul.f32 %v6133, %v675
        %v6188 = vmul.f32 %v6136, %v675
        %v6189 = vmul.f32 %v6139, %v675
        %v6190 = vmul.f32 %v6142, %v675
        %v6191 = vmul.f32 %v6145, %v675
        %v6192 = vmul.f32 %v6148, %v675
        %v6193 = vmul.f32 %v6151, %v675
        %v6194 = vmul.f32 %v6154, %v675
        %v6195 = vmul.f32 %v6157, %v675
        %v6196 = vmul.f32 %v6160, %v675
        %v6197 = vmul.f32 %v6163, %v675
        %v6198 = vmul.f32 %v6166, %v675
        %v6199 = vadd.f32 %v6167, 1e-05
        %v6200 = vadd.f32 %v6168, 1e-05
        %v6201 = vadd.f32 %v6169, 1e-05
        %v6202 = vadd.f32 %v6170, 1e-05
        %v6203 = vadd.f32 %v6171, 1e-05
        %v6204 = vadd.f32 %v6172, 1e-05
        %v6205 = vadd.f32 %v6173, 1e-05
        %v6206 = vadd.f32 %v6174, 1e-05
        %v6207 = vadd.f32 %v6175, 1e-05
        %v6208 = vadd.f32 %v6176, 1e-05
        %v6209 = vadd.f32 %v6177, 1e-05
        %v6210 = vadd.f32 %v6178, 1e-05
        %v6211 = vadd.f32 %v6179, 1e-05
        %v6212 = vadd.f32 %v6180, 1e-05
        %v6213 = vadd.f32 %v6181, 1e-05
        %v6214 = vadd.f32 %v6182, 1e-05
        %v6215 = vadd.f32 %v6183, 1e-05
        %v6216 = vadd.f32 %v6184, 1e-05
        %v6217 = vadd.f32 %v6185, 1e-05
        %v6218 = vadd.f32 %v6186, 1e-05
        %v6219 = vadd.f32 %v6187, 1e-05
        %v6220 = vadd.f32 %v6188, 1e-05
        %v6221 = vadd.f32 %v6189, 1e-05
        %v6222 = vadd.f32 %v6190, 1e-05
        %v6223 = vadd.f32 %v6191, 1e-05
        %v6224 = vadd.f32 %v6192, 1e-05
        %v6225 = vadd.f32 %v6193, 1e-05
        %v6226 = vadd.f32 %v6194, 1e-05
        %v6227 = vadd.f32 %v6195, 1e-05
        %v6228 = vadd.f32 %v6196, 1e-05
        %v6229 = vadd.f32 %v6197, 1e-05
        %v6230 = vadd.f32 %v6198, 1e-05
        %v6231 = vrsqrt.pop %v6199
        %v6232 = vrsqrt.pop %v6200
        %v6233 = vrsqrt.pop %v6201
        %v6234 = vrsqrt.pop %v6202
        %v6235 = vrsqrt.pop %v6203
        %v6236 = vrsqrt.pop %v6204
        %v6237 = vrsqrt.pop %v6205
        %v6238 = vrsqrt.pop %v6206
        %v6239 = vrsqrt.pop %v6207
        %v6240 = vrsqrt.pop %v6208
        %v6241 = vrsqrt.pop %v6209
        %v6242 = vrsqrt.pop %v6210
        %v6243 = vrsqrt.pop %v6211
        %v6244 = vrsqrt.pop %v6212
        %v6245 = vrsqrt.pop %v6213
        %v6246 = vrsqrt.pop %v6214
        %v6247 = vrsqrt.pop %v6215
        %v6248 = vrsqrt.pop %v6216
        %v6249 = vrsqrt.pop %v6217
        %v6250 = vrsqrt.pop %v6218
        %v6251 = vrsqrt.pop %v6219
        %v6252 = vrsqrt.pop %v6220
        %v6253 = vrsqrt.pop %v6221
        %v6254 = vrsqrt.pop %v6222
        %v6255 = vrsqrt.pop %v6223
        %v6256 = vrsqrt.pop %v6224
        %v6257 = vrsqrt.pop %v6225
        %v6258 = vrsqrt.pop %v6226
        %v6259 = vrsqrt.pop %v6227
        %v6260 = vrsqrt.pop %v6228
        %v6261 = vrsqrt.pop %v6229
        %v6262 = vrsqrt.pop %v6230
        %v6263 = vmul.f32 %v6007, %v6231
        %v6264 = vmul.f32 %v6008, %v6232
        %v6265 = vmul.f32 %v6009, %v6233
        %v6266 = vmul.f32 %v6010, %v6234
        %v6267 = vmul.f32 %v6011, %v6235
        %v6268 = vmul.f32 %v6012, %v6236
        %v6269 = vmul.f32 %v6013, %v6237
        %v6270 = vmul.f32 %v6014, %v6238
        %v6271 = vmul.f32 %v6015, %v6239
        %v6272 = vmul.f32 %v6016, %v6240
        %v6273 = vmul.f32 %v6017, %v6241
        %v6274 = vmul.f32 %v6018, %v6242
        %v6275 = vmul.f32 %v6019, %v6243
        %v6276 = vmul.f32 %v6020, %v6244
        %v6277 = vmul.f32 %v6021, %v6245
        %v6278 = vmul.f32 %v6022, %v6246
        %v6279 = vmul.f32 %v6023, %v6247
        %v6280 = vmul.f32 %v6024, %v6248
        %v6281 = vmul.f32 %v6025, %v6249
        %v6282 = vmul.f32 %v6026, %v6250
        %v6283 = vmul.f32 %v6027, %v6251
        %v6284 = vmul.f32 %v6028, %v6252
        %v6285 = vmul.f32 %v6029, %v6253
        %v6286 = vmul.f32 %v6030, %v6254
        %v6287 = vmul.f32 %v6031, %v6255
        %v6288 = vmul.f32 %v6032, %v6256
        %v6289 = vmul.f32 %v6033, %v6257
        %v6290 = vmul.f32 %v6034, %v6258
        %v6291 = vmul.f32 %v6035, %v6259
        %v6292 = vmul.f32 %v6036, %v6260
        %v6293 = vmul.f32 %v6037, %v6261
        %v6294 = vmul.f32 %v6038, %v6262
        %v6295 = vld [vmem:[%s7] sm:$0x1]
        %v6297 = vlaneseq
        %v6298 = vshrl.u32 %v6297, 7
        %v6299 = vsub.s32 0, %v6298
        %v6300 = vrot.slane %v6295, %v6299
        %v6302 = vmul.f32 %v6263, %v6300
        %v6303 = vmul.f32 %v6264, %v6300
        %v6304 = vmul.f32 %v6265, %v6300
        %v6305 = vmul.f32 %v6266, %v6300
        %v6306 = vmul.f32 %v6267, %v6300
        %v6307 = vmul.f32 %v6268, %v6300
        %v6308 = vmul.f32 %v6269, %v6300
        %v6309 = vmul.f32 %v6270, %v6300
        %v6310 = vmul.f32 %v6271, %v6300
        %v6311 = vmul.f32 %v6272, %v6300
        %v6312 = vmul.f32 %v6273, %v6300
        %v6313 = vmul.f32 %v6274, %v6300
        %v6314 = vmul.f32 %v6275, %v6300
        %v6315 = vmul.f32 %v6276, %v6300
        %v6316 = vmul.f32 %v6277, %v6300
        %v6317 = vmul.f32 %v6278, %v6300
        %v6318 = vmul.f32 %v6279, %v6300
        %v6319 = vmul.f32 %v6280, %v6300
        %v6320 = vmul.f32 %v6281, %v6300
        %v6321 = vmul.f32 %v6282, %v6300
        %v6322 = vmul.f32 %v6283, %v6300
        %v6323 = vmul.f32 %v6284, %v6300
        %v6324 = vmul.f32 %v6285, %v6300
        %v6325 = vmul.f32 %v6286, %v6300
        %v6326 = vmul.f32 %v6287, %v6300
        %v6327 = vmul.f32 %v6288, %v6300
        %v6328 = vmul.f32 %v6289, %v6300
        %v6329 = vmul.f32 %v6290, %v6300
        %v6330 = vmul.f32 %v6291, %v6300
        %v6331 = vmul.f32 %v6292, %v6300
        %v6332 = vmul.f32 %v6293, %v6300
        %v6333 = vmul.f32 %v6294, %v6300
        %v6334 = vld [vmem:[%s8] sm:$0x1]
        %v6336 = vlaneseq
        %v6337 = vshrl.u32 %v6336, 7
        %v6338 = vsub.s32 0, %v6337
        %v6339 = vrot.slane %v6334, %v6338
        %v6341 = vadd.f32 %v6302, %v6339
        %v6342 = vadd.f32 %v6303, %v6339
        %v6343 = vadd.f32 %v6304, %v6339
        %v6344 = vadd.f32 %v6305, %v6339
        %v6345 = vadd.f32 %v6306, %v6339
        %v6346 = vadd.f32 %v6307, %v6339
        %v6347 = vadd.f32 %v6308, %v6339
        %v6348 = vadd.f32 %v6309, %v6339
        %v6349 = vadd.f32 %v6310, %v6339
        %v6350 = vadd.f32 %v6311, %v6339
        %v6351 = vadd.f32 %v6312, %v6339
        %v6352 = vadd.f32 %v6313, %v6339
        %v6353 = vadd.f32 %v6314, %v6339
        %v6354 = vadd.f32 %v6315, %v6339
        %v6355 = vadd.f32 %v6316, %v6339
        %v6356 = vadd.f32 %v6317, %v6339
        %v6357 = vadd.f32 %v6318, %v6339
        %v6358 = vadd.f32 %v6319, %v6339
        %v6359 = vadd.f32 %v6320, %v6339
        %v6360 = vadd.f32 %v6321, %v6339
        %v6361 = vadd.f32 %v6322, %v6339
        %v6362 = vadd.f32 %v6323, %v6339
        %v6363 = vadd.f32 %v6324, %v6339
        %v6364 = vadd.f32 %v6325, %v6339
        %v6365 = vadd.f32 %v6326, %v6339
        %v6366 = vadd.f32 %v6327, %v6339
        %v6367 = vadd.f32 %v6328, %v6339
        %v6368 = vadd.f32 %v6329, %v6339
        %v6369 = vadd.f32 %v6330, %v6339
        %v6370 = vadd.f32 %v6331, %v6339
        %v6371 = vadd.f32 %v6332, %v6339
        %v6372 = vadd.f32 %v6333, %v6339
        %v6373 = vpack.c.bf16 %v6342, %v6341
        %v6374 = vpack.c.bf16 %v6344, %v6343
        %v6375 = vpack.c.bf16 %v6346, %v6345
        %v6376 = vpack.c.bf16 %v6348, %v6347
        %v6377 = vpack.c.bf16 %v6350, %v6349
        %v6378 = vpack.c.bf16 %v6352, %v6351
        %v6379 = vpack.c.bf16 %v6354, %v6353
        %v6380 = vpack.c.bf16 %v6356, %v6355
        %v6381 = vpack.c.bf16 %v6358, %v6357
        %v6382 = vpack.c.bf16 %v6360, %v6359
        %v6383 = vpack.c.bf16 %v6362, %v6361
        %v6384 = vpack.c.bf16 %v6364, %v6363
        %v6385 = vpack.c.bf16 %v6366, %v6365
        %v6386 = vpack.c.bf16 %v6368, %v6367
        %v6387 = vpack.c.bf16 %v6370, %v6369
        %v6388 = vpack.c.bf16 %v6372, %v6371
        %v6389 = vld [vmem:[#allocation11] sm:$0xf]
        %v6390 = vld [vmem:[#allocation11 + $0x4] sm:$0xf]
        %v6391 = vld [vmem:[#allocation11 + $0x8] sm:$0xf]
        %v6392 = vld [vmem:[#allocation11 + $0xc] sm:$0xf]
        %v6393 = vld [vmem:[#allocation11 + $0x10] sm:$0xf]
        %v6394 = vld [vmem:[#allocation11 + $0x14] sm:$0xf]
        %v6395 = vld [vmem:[#allocation11 + $0x18] sm:$0xf]
        %v6396 = vld [vmem:[#allocation11 + $0x1c] sm:$0xf]
        %v6397 = vld [vmem:[%s10] sm:$0x1]
        %v6399 = vlaneseq
        %v6400 = vshrl.u32 %v6399, 7
        %v6401 = vsub.s32 0, %v6400
        %v6402 = vrot.slane %v6397, %v6401
        %v6412 = vunpack.c.l.b16 %v6389
        %v6413 = vunpack.c.l.b16 %v6390
        %v6414 = vunpack.c.l.b16 %v6391
        %v6415 = vunpack.c.l.b16 %v6392
        %v6416 = vunpack.c.l.b16 %v6393
        %v6417 = vunpack.c.l.b16 %v6394
        %v6418 = vunpack.c.l.b16 %v6395
        %v6419 = vunpack.c.l.b16 %v6396
        %v6420 = vpack.c.b16 %v6413, %v6412
        %v6421 = vpack.c.b16 %v6415, %v6414
        %v6422 = vpack.c.b16 %v6417, %v6416
        %v6423 = vpack.c.b16 %v6419, %v6418
        %v6429 = vsel %vm578, %v6373, 0
        %v6432 = vsel %vm578, %v6374, 0
        %v6435 = vsel %vm578, %v6375, 0
        %v6438 = vsel %vm578, %v6376, 0
        %v6441 = vsel %vm578, %v6377, 0
        %v6444 = vsel %vm578, %v6378, 0
        %v6447 = vsel %vm578, %v6379, 0
        %v6450 = vsel %vm578, %v6380, 0
        %v6453 = vsel %vm578, %v6381, 0
        %v6456 = vsel %vm578, %v6382, 0
        %v6459 = vsel %vm578, %v6383, 0
        %v6462 = vsel %vm578, %v6384, 0
        %v6465 = vsel %vm578, %v6385, 0
        %v6468 = vsel %vm578, %v6386, 0
        %v6471 = vsel %vm578, %v6387, 0
        %v6474 = vsel %vm578, %v6388, 0
        %6476 = vmatprep.subr.bf16.mxu0 0
        %6477 = vmatpush1.bf16.msra.mxu0 0
        %6478 = vmatprep.subr.bf16.mxu0 0
        %6479 = vmatpush1.bf16.msra.mxu0 0
        %6480 = vmatprep.subr.bf16.mxu0 0
        %6481 = vmatpush1.bf16.msra.mxu0 0
        %6482 = vmatprep.subr.bf16.mxu0 0
        %6483 = vmatpush1.bf16.msra.mxu0 0
        %6484 = vmatprep.subr.bf16.mxu0 0
        %6485 = vmatpush1.bf16.msra.mxu0 %v6423
        %6486 = vmatprep.subr.bf16.mxu0 0
        %6487 = vmatpush1.bf16.msra.mxu0 %v6422
        %6488 = vmatprep.subr.bf16.mxu0 0
        %6489 = vmatpush1.bf16.msra.mxu0 %v6421
        %6490 = vmatprep.subr.bf16.mxu0 0
        %6491 = vmatpush1.bf16.msra.mxu0 %v6420
        %6492 = vmatprep.subr.bf16.mxu0 0
        %6493 = vmatpush2.bf16.msra.mxu0 0
        %6494 = vmatprep.subr.bf16.mxu0 0
        %6495 = vmatpush2.bf16.msra.mxu0 0
        %6496 = vmatprep.subr.bf16.mxu0 0
        %6497 = vmatpush2.bf16.msra.mxu0 0
        %6498 = vmatprep.subr.bf16.mxu0 0
        %6499 = vmatpush2.bf16.msra.mxu0 0
        %6500 = vmatprep.subr.bf16.mxu0 0
        %6501 = vmatpush2.bf16.msra.mxu0 0
        %6502 = vmatprep.subr.bf16.mxu0 0
        %6503 = vmatpush2.bf16.msra.mxu0 0
        %6504 = vmatprep.subr.bf16.mxu0 0
        %6505 = vmatpush2.bf16.msra.mxu0 0
        %6506 = vmatprep.subr.bf16.mxu0 0
        %6507 = vmatpush2.bf16.msra.mxu0 0
        %6508 = vmatprep.mubr.bf16.mxu0 0
        %6509 = vmatmul.mubr.bf16.gmra.mxu0 %v6429
        %v6510 = vpop.f32.mrf.mxu0
        %v6511 = vadd.f32 %v6402, %v6510
        %v6512 = vpop.f32.mrf.mxu0
        %v6513 = vpop.f32.mrf.mxu0
        %v6514 = vadd.f32 %v6402, %v6513
        %v6515 = vpop.f32.mrf.mxu0
        %6516 = vmatprep.mubr.bf16.mxu0 0
        %6517 = vmatmul.mubr.bf16.gmra.mxu0 %v6432
        %v6518 = vpop.f32.mrf.mxu0
        %v6519 = vadd.f32 %v6402, %v6518
        %v6520 = vpop.f32.mrf.mxu0
        %v6521 = vpop.f32.mrf.mxu0
        %v6522 = vadd.f32 %v6402, %v6521
        %v6523 = vpop.f32.mrf.mxu0
        %6524 = vmatprep.mubr.bf16.mxu0 0
        %6525 = vmatmul.mubr.bf16.gmra.mxu0 %v6435
        %v6526 = vpop.f32.mrf.mxu0
        %v6527 = vadd.f32 %v6402, %v6526
        %v6528 = vpop.f32.mrf.mxu0
        %v6529 = vpop.f32.mrf.mxu0
        %v6530 = vadd.f32 %v6402, %v6529
        %v6531 = vpop.f32.mrf.mxu0
        %6532 = vmatprep.mubr.bf16.mxu0 0
        %6533 = vmatmul.mubr.bf16.gmra.mxu0 %v6438
        %v6534 = vpop.f32.mrf.mxu0
        %v6535 = vadd.f32 %v6402, %v6534
        %v6536 = vpop.f32.mrf.mxu0
        %v6537 = vpop.f32.mrf.mxu0
        %v6538 = vadd.f32 %v6402, %v6537
        %v6539 = vpop.f32.mrf.mxu0
        %6540 = vmatprep.mubr.bf16.mxu0 0
        %6541 = vmatmul.mubr.bf16.gmra.mxu0 %v6441
        %v6542 = vpop.f32.mrf.mxu0
        %v6543 = vadd.f32 %v6402, %v6542
        %v6544 = vpop.f32.mrf.mxu0
        %v6545 = vpop.f32.mrf.mxu0
        %v6546 = vadd.f32 %v6402, %v6545
        %v6547 = vpop.f32.mrf.mxu0
        %6548 = vmatprep.mubr.bf16.mxu0 0
        %6549 = vmatmul.mubr.bf16.gmra.mxu0 %v6444
        %v6550 = vpop.f32.mrf.mxu0
        %v6551 = vadd.f32 %v6402, %v6550
        %v6552 = vpop.f32.mrf.mxu0
        %v6553 = vpop.f32.mrf.mxu0
        %v6554 = vadd.f32 %v6402, %v6553
        %v6555 = vpop.f32.mrf.mxu0
        %6556 = vmatprep.mubr.bf16.mxu0 0
        %6557 = vmatmul.mubr.bf16.gmra.mxu0 %v6447
        %v6558 = vpop.f32.mrf.mxu0
        %v6559 = vadd.f32 %v6402, %v6558
        %v6560 = vpop.f32.mrf.mxu0
        %v6561 = vpop.f32.mrf.mxu0
        %v6562 = vadd.f32 %v6402, %v6561
        %v6563 = vpop.f32.mrf.mxu0
        %6564 = vmatprep.mubr.bf16.mxu0 0
        %6565 = vmatmul.mubr.bf16.gmra.mxu0 %v6450
        %v6566 = vpop.f32.mrf.mxu0
        %v6567 = vadd.f32 %v6402, %v6566
        %v6568 = vpop.f32.mrf.mxu0
        %v6569 = vpop.f32.mrf.mxu0
        %v6570 = vadd.f32 %v6402, %v6569
        %v6571 = vpop.f32.mrf.mxu0
        %6572 = vmatprep.mubr.bf16.mxu0 0
        %6573 = vmatmul.mubr.bf16.gmra.mxu0 %v6453
        %v6574 = vpop.f32.mrf.mxu0
        %v6575 = vadd.f32 %v6402, %v6574
        %v6576 = vpop.f32.mrf.mxu0
        %v6577 = vpop.f32.mrf.mxu0
        %v6578 = vadd.f32 %v6402, %v6577
        %v6579 = vpop.f32.mrf.mxu0
        %6580 = vmatprep.mubr.bf16.mxu0 0
        %6581 = vmatmul.mubr.bf16.gmra.mxu0 %v6456
        %v6582 = vpop.f32.mrf.mxu0
        %v6583 = vadd.f32 %v6402, %v6582
        %v6584 = vpop.f32.mrf.mxu0
        %v6585 = vpop.f32.mrf.mxu0
        %v6586 = vadd.f32 %v6402, %v6585
        %v6587 = vpop.f32.mrf.mxu0
        %6588 = vmatprep.mubr.bf16.mxu0 0
        %6589 = vmatmul.mubr.bf16.gmra.mxu0 %v6459
        %v6590 = vpop.f32.mrf.mxu0
        %v6591 = vadd.f32 %v6402, %v6590
        %v6592 = vpop.f32.mrf.mxu0
        %v6593 = vpop.f32.mrf.mxu0
        %v6594 = vadd.f32 %v6402, %v6593
        %v6595 = vpop.f32.mrf.mxu0
        %6596 = vmatprep.mubr.bf16.mxu0 0
        %6597 = vmatmul.mubr.bf16.gmra.mxu0 %v6462
        %v6598 = vpop.f32.mrf.mxu0
        %v6599 = vadd.f32 %v6402, %v6598
        %v6600 = vpop.f32.mrf.mxu0
        %v6601 = vpop.f32.mrf.mxu0
        %v6602 = vadd.f32 %v6402, %v6601
        %v6603 = vpop.f32.mrf.mxu0
        %6604 = vmatprep.mubr.bf16.mxu0 0
        %6605 = vmatmul.mubr.bf16.gmra.mxu0 %v6465
        %v6606 = vpop.f32.mrf.mxu0
        %v6607 = vadd.f32 %v6402, %v6606
        %v6608 = vpop.f32.mrf.mxu0
        %v6609 = vpop.f32.mrf.mxu0
        %v6610 = vadd.f32 %v6402, %v6609
        %v6611 = vpop.f32.mrf.mxu0
        %6612 = vmatprep.mubr.bf16.mxu0 0
        %6613 = vmatmul.mubr.bf16.gmra.mxu0 %v6468
        %v6614 = vpop.f32.mrf.mxu0
        %v6615 = vadd.f32 %v6402, %v6614
        %v6616 = vpop.f32.mrf.mxu0
        %v6617 = vpop.f32.mrf.mxu0
        %v6618 = vadd.f32 %v6402, %v6617
        %v6619 = vpop.f32.mrf.mxu0
        %6620 = vmatprep.mubr.bf16.mxu0 0
        %6621 = vmatmul.mubr.bf16.gmra.mxu0 %v6471
        %v6622 = vpop.f32.mrf.mxu0
        %v6623 = vadd.f32 %v6402, %v6622
        %v6624 = vpop.f32.mrf.mxu0
        %v6625 = vpop.f32.mrf.mxu0
        %v6626 = vadd.f32 %v6402, %v6625
        %v6627 = vpop.f32.mrf.mxu0
        %6628 = vmatprep.mubr.bf16.mxu0 0
        %6629 = vmatmul.mubr.bf16.gmra.mxu0 %v6474
        %v6630 = vpop.f32.mrf.mxu0
        %v6631 = vadd.f32 %v6402, %v6630
        %v6632 = vpop.f32.mrf.mxu0
        %v6633 = vpop.f32.mrf.mxu0
        %v6634 = vadd.f32 %v6402, %v6633
        %v6635 = vpop.f32.mrf.mxu0
        %6636 = vdwg.mxu0
        %v6637 = vxor.u32 %v6511, 2147483648
        %v6638 = vxor.u32 %v6514, 2147483648
        %v6639 = vxor.u32 %v6519, 2147483648
        %v6640 = vxor.u32 %v6522, 2147483648
        %v6641 = vxor.u32 %v6527, 2147483648
        %v6642 = vxor.u32 %v6530, 2147483648
        %v6643 = vxor.u32 %v6535, 2147483648
        %v6644 = vxor.u32 %v6538, 2147483648
        %v6645 = vxor.u32 %v6543, 2147483648
        %v6646 = vxor.u32 %v6546, 2147483648
        %v6647 = vxor.u32 %v6551, 2147483648
        %v6648 = vxor.u32 %v6554, 2147483648
        %v6649 = vxor.u32 %v6559, 2147483648
        %v6650 = vxor.u32 %v6562, 2147483648
        %v6651 = vxor.u32 %v6567, 2147483648
        %v6652 = vxor.u32 %v6570, 2147483648
        %v6653 = vxor.u32 %v6575, 2147483648
        %v6654 = vxor.u32 %v6578, 2147483648
        %v6655 = vxor.u32 %v6583, 2147483648
        %v6656 = vxor.u32 %v6586, 2147483648
        %v6657 = vxor.u32 %v6591, 2147483648
        %v6658 = vxor.u32 %v6594, 2147483648
        %v6659 = vxor.u32 %v6599, 2147483648
        %v6660 = vxor.u32 %v6602, 2147483648
        %v6661 = vxor.u32 %v6607, 2147483648
        %v6662 = vxor.u32 %v6610, 2147483648
        %v6663 = vxor.u32 %v6615, 2147483648
        %v6664 = vxor.u32 %v6618, 2147483648
        %v6665 = vxor.u32 %v6623, 2147483648
        %v6666 = vxor.u32 %v6626, 2147483648
        %v6667 = vxor.u32 %v6631, 2147483648
        %v6668 = vxor.u32 %v6634, 2147483648
        %v6669 = vmul.f32 %v6637, 1.442695
        %v6670 = vpow.pop %v6669
        %v6671 = vmul.f32 %v6638, 1.442695
        %v6672 = vpow.pop %v6671
        %v6673 = vmul.f32 %v6639, 1.442695
        %v6674 = vpow.pop %v6673
        %v6675 = vmul.f32 %v6640, 1.442695
        %v6676 = vpow.pop %v6675
        %v6677 = vmul.f32 %v6641, 1.442695
        %v6678 = vpow.pop %v6677
        %v6679 = vmul.f32 %v6642, 1.442695
        %v6680 = vpow.pop %v6679
        %v6681 = vmul.f32 %v6643, 1.442695
        %v6682 = vpow.pop %v6681
        %v6683 = vmul.f32 %v6644, 1.442695
        %v6684 = vpow.pop %v6683
        %v6685 = vmul.f32 %v6645, 1.442695
        %v6686 = vpow.pop %v6685
        %v6687 = vmul.f32 %v6646, 1.442695
        %v6688 = vpow.pop %v6687
        %v6689 = vmul.f32 %v6647, 1.442695
        %v6690 = vpow.pop %v6689
        %v6691 = vmul.f32 %v6648, 1.442695
        %v6692 = vpow.pop %v6691
        %v6693 = vmul.f32 %v6649, 1.442695
        %v6694 = vpow.pop %v6693
        %v6695 = vmul.f32 %v6650, 1.442695
        %v6696 = vpow.pop %v6695
        %v6697 = vmul.f32 %v6651, 1.442695
        %v6698 = vpow.pop %v6697
        %v6699 = vmul.f32 %v6652, 1.442695
        %v6700 = vpow.pop %v6699
        %v6701 = vmul.f32 %v6653, 1.442695
        %v6702 = vpow.pop %v6701
        %v6703 = vmul.f32 %v6654, 1.442695
        %v6704 = vpow.pop %v6703
        %v6705 = vmul.f32 %v6655, 1.442695
        %v6706 = vpow.pop %v6705
        %v6707 = vmul.f32 %v6656, 1.442695
        %v6708 = vpow.pop %v6707
        %v6709 = vmul.f32 %v6657, 1.442695
        %v6710 = vpow.pop %v6709
        %v6711 = vmul.f32 %v6658, 1.442695
        %v6712 = vpow.pop %v6711
        %v6713 = vmul.f32 %v6659, 1.442695
        %v6714 = vpow.pop %v6713
        %v6715 = vmul.f32 %v6660, 1.442695
        %v6716 = vpow.pop %v6715
        %v6717 = vmul.f32 %v6661, 1.442695
        %v6718 = vpow.pop %v6717
        %v6719 = vmul.f32 %v6662, 1.442695
        %v6720 = vpow.pop %v6719
        %v6721 = vmul.f32 %v6663, 1.442695
        %v6722 = vpow.pop %v6721
        %v6723 = vmul.f32 %v6664, 1.442695
        %v6724 = vpow.pop %v6723
        %v6725 = vmul.f32 %v6665, 1.442695
        %v6726 = vpow.pop %v6725
        %v6727 = vmul.f32 %v6666, 1.442695
        %v6728 = vpow.pop %v6727
        %v6729 = vmul.f32 %v6667, 1.442695
        %v6730 = vpow.pop %v6729
        %v6731 = vmul.f32 %v6668, 1.442695
        %v6732 = vpow.pop %v6731
        %v6733 = vadd.f32 %v6670, 1.0
        %v6734 = vadd.f32 %v6672, 1.0
        %v6735 = vadd.f32 %v6674, 1.0
        %v6736 = vadd.f32 %v6676, 1.0
        %v6737 = vadd.f32 %v6678, 1.0
        %v6738 = vadd.f32 %v6680, 1.0
        %v6739 = vadd.f32 %v6682, 1.0
        %v6740 = vadd.f32 %v6684, 1.0
        %v6741 = vadd.f32 %v6686, 1.0
        %v6742 = vadd.f32 %v6688, 1.0
        %v6743 = vadd.f32 %v6690, 1.0
        %v6744 = vadd.f32 %v6692, 1.0
        %v6745 = vadd.f32 %v6694, 1.0
        %v6746 = vadd.f32 %v6696, 1.0
        %v6747 = vadd.f32 %v6698, 1.0
        %v6748 = vadd.f32 %v6700, 1.0
        %v6749 = vadd.f32 %v6702, 1.0
        %v6750 = vadd.f32 %v6704, 1.0
        %v6751 = vadd.f32 %v6706, 1.0
        %v6752 = vadd.f32 %v6708, 1.0
        %v6753 = vadd.f32 %v6710, 1.0
        %v6754 = vadd.f32 %v6712, 1.0
        %v6755 = vadd.f32 %v6714, 1.0
        %v6756 = vadd.f32 %v6716, 1.0
        %v6757 = vadd.f32 %v6718, 1.0
        %v6758 = vadd.f32 %v6720, 1.0
        %v6759 = vadd.f32 %v6722, 1.0
        %v6760 = vadd.f32 %v6724, 1.0
        %v6761 = vadd.f32 %v6726, 1.0
        %v6762 = vadd.f32 %v6728, 1.0
        %v6763 = vadd.f32 %v6730, 1.0
        %v6764 = vadd.f32 %v6732, 1.0
        %v6765 = vrcp.pop %v6733
        %v6766 = vmul.f32 1.0, %v6765
        %v6767 = vrcp.pop %v6734
        %v6768 = vmul.f32 1.0, %v6767
        %v6769 = vrcp.pop %v6735
        %v6770 = vmul.f32 1.0, %v6769
        %v6771 = vrcp.pop %v6736
        %v6772 = vmul.f32 1.0, %v6771
        %v6773 = vrcp.pop %v6737
        %v6774 = vmul.f32 1.0, %v6773
        %v6775 = vrcp.pop %v6738
        %v6776 = vmul.f32 1.0, %v6775
        %v6777 = vrcp.pop %v6739
        %v6778 = vmul.f32 1.0, %v6777
        %v6779 = vrcp.pop %v6740
        %v6780 = vmul.f32 1.0, %v6779
        %v6781 = vrcp.pop %v6741
        %v6782 = vmul.f32 1.0, %v6781
        %v6783 = vrcp.pop %v6742
        %v6784 = vmul.f32 1.0, %v6783
        %v6785 = vrcp.pop %v6743
        %v6786 = vmul.f32 1.0, %v6785
        %v6787 = vrcp.pop %v6744
        %v6788 = vmul.f32 1.0, %v6787
        %v6789 = vrcp.pop %v6745
        %v6790 = vmul.f32 1.0, %v6789
        %v6791 = vrcp.pop %v6746
        %v6792 = vmul.f32 1.0, %v6791
        %v6793 = vrcp.pop %v6747
        %v6794 = vmul.f32 1.0, %v6793
        %v6795 = vrcp.pop %v6748
        %v6796 = vmul.f32 1.0, %v6795
        %v6797 = vrcp.pop %v6749
        %v6798 = vmul.f32 1.0, %v6797
        %v6799 = vrcp.pop %v6750
        %v6800 = vmul.f32 1.0, %v6799
        %v6801 = vrcp.pop %v6751
        %v6802 = vmul.f32 1.0, %v6801
        %v6803 = vrcp.pop %v6752
        %v6804 = vmul.f32 1.0, %v6803
        %v6805 = vrcp.pop %v6753
        %v6806 = vmul.f32 1.0, %v6805
        %v6807 = vrcp.pop %v6754
        %v6808 = vmul.f32 1.0, %v6807
        %v6809 = vrcp.pop %v6755
        %v6810 = vmul.f32 1.0, %v6809
        %v6811 = vrcp.pop %v6756
        %v6812 = vmul.f32 1.0, %v6811
        %v6813 = vrcp.pop %v6757
        %v6814 = vmul.f32 1.0, %v6813
        %v6815 = vrcp.pop %v6758
        %v6816 = vmul.f32 1.0, %v6815
        %v6817 = vrcp.pop %v6759
        %v6818 = vmul.f32 1.0, %v6817
        %v6819 = vrcp.pop %v6760
        %v6820 = vmul.f32 1.0, %v6819
        %v6821 = vrcp.pop %v6761
        %v6822 = vmul.f32 1.0, %v6821
        %v6823 = vrcp.pop %v6762
        %v6824 = vmul.f32 1.0, %v6823
        %v6825 = vrcp.pop %v6763
        %v6826 = vmul.f32 1.0, %v6825
        %v6827 = vrcp.pop %v6764
        %v6828 = vmul.f32 1.0, %v6827
        %v6829 = vmul.f32 %v6511, %v6766
        %v6830 = vmul.f32 %v6514, %v6768
        %v6831 = vmul.f32 %v6519, %v6770
        %v6832 = vmul.f32 %v6522, %v6772
        %v6833 = vmul.f32 %v6527, %v6774
        %v6834 = vmul.f32 %v6530, %v6776
        %v6835 = vmul.f32 %v6535, %v6778
        %v6836 = vmul.f32 %v6538, %v6780
        %v6837 = vmul.f32 %v6543, %v6782
        %v6838 = vmul.f32 %v6546, %v6784
        %v6839 = vmul.f32 %v6551, %v6786
        %v6840 = vmul.f32 %v6554, %v6788
        %v6841 = vmul.f32 %v6559, %v6790
        %v6842 = vmul.f32 %v6562, %v6792
        %v6843 = vmul.f32 %v6567, %v6794
        %v6844 = vmul.f32 %v6570, %v6796
        %v6845 = vmul.f32 %v6575, %v6798
        %v6846 = vmul.f32 %v6578, %v6800
        %v6847 = vmul.f32 %v6583, %v6802
        %v6848 = vmul.f32 %v6586, %v6804
        %v6849 = vmul.f32 %v6591, %v6806
        %v6850 = vmul.f32 %v6594, %v6808
        %v6851 = vmul.f32 %v6599, %v6810
        %v6852 = vmul.f32 %v6602, %v6812
        %v6853 = vmul.f32 %v6607, %v6814
        %v6854 = vmul.f32 %v6610, %v6816
        %v6855 = vmul.f32 %v6615, %v6818
        %v6856 = vmul.f32 %v6618, %v6820
        %v6857 = vmul.f32 %v6623, %v6822
        %v6858 = vmul.f32 %v6626, %v6824
        %v6859 = vmul.f32 %v6631, %v6826
        %v6860 = vmul.f32 %v6634, %v6828
        %v6861 = vpack.c.bf16 %v6830, %v6829
        %v6862 = vpack.c.bf16 %v6832, %v6831
        %v6863 = vpack.c.bf16 %v6834, %v6833
        %v6864 = vpack.c.bf16 %v6836, %v6835
        %v6865 = vpack.c.bf16 %v6838, %v6837
        %v6866 = vpack.c.bf16 %v6840, %v6839
        %v6867 = vpack.c.bf16 %v6842, %v6841
        %v6868 = vpack.c.bf16 %v6844, %v6843
        %v6869 = vpack.c.bf16 %v6846, %v6845
        %v6870 = vpack.c.bf16 %v6848, %v6847
        %v6871 = vpack.c.bf16 %v6850, %v6849
        %v6872 = vpack.c.bf16 %v6852, %v6851
        %v6873 = vpack.c.bf16 %v6854, %v6853
        %v6874 = vpack.c.bf16 %v6856, %v6855
        %v6875 = vpack.c.bf16 %v6858, %v6857
        %v6876 = vpack.c.bf16 %v6860, %v6859
        %v6877 = vld [vmem:[#allocation13] sm:$0xf]
        %v6878 = vld [vmem:[#allocation13 + $0x4] sm:$0xf]
        %v6879 = vld [vmem:[#allocation13 + $0x8] sm:$0xf]
        %v6880 = vld [vmem:[#allocation13 + $0xc] sm:$0xf]
        %v6881 = vld [vmem:[#allocation13 + $0x10] sm:$0xf]
        %v6882 = vld [vmem:[#allocation13 + $0x14] sm:$0xf]
        %v6883 = vld [vmem:[#allocation13 + $0x18] sm:$0xf]
        %v6884 = vld [vmem:[#allocation13 + $0x1c] sm:$0xf]
        %v6885 = vld [vmem:[#allocation13 + $0x20] sm:$0xf]
        %v6886 = vld [vmem:[#allocation13 + $0x24] sm:$0xf]
        %v6887 = vld [vmem:[#allocation13 + $0x28] sm:$0xf]
        %v6888 = vld [vmem:[#allocation13 + $0x2c] sm:$0xf]
        %v6889 = vld [vmem:[#allocation13 + $0x30] sm:$0xf]
        %v6890 = vld [vmem:[#allocation13 + $0x34] sm:$0xf]
        %v6891 = vld [vmem:[#allocation13 + $0x38] sm:$0xf]
        %v6892 = vld [vmem:[#allocation13 + $0x3c] sm:$0xf]
        %v6893 = vld [vmem:[%s12] sm:$0x1]
        %v6895 = vlaneseq
        %v6896 = vshrl.u32 %v6895, 7
        %v6897 = vsub.s32 0, %v6896
        %v6898 = vrot.slane %v6893, %v6897
        %v6916 = vunpack.c.l.b16 %v6877
        %v6917 = vunpack.c.l.b16 %v6878
        %v6918 = vunpack.c.l.b16 %v6879
        %v6919 = vunpack.c.l.b16 %v6880
        %v6920 = vunpack.c.l.b16 %v6881
        %v6921 = vunpack.c.l.b16 %v6882
        %v6922 = vunpack.c.l.b16 %v6883
        %v6923 = vunpack.c.l.b16 %v6884
        %v6924 = vunpack.c.l.b16 %v6885
        %v6925 = vunpack.c.l.b16 %v6886
        %v6926 = vunpack.c.l.b16 %v6887
        %v6927 = vunpack.c.l.b16 %v6888
        %v6928 = vunpack.c.l.b16 %v6889
        %v6929 = vunpack.c.l.b16 %v6890
        %v6930 = vunpack.c.l.b16 %v6891
        %v6931 = vunpack.c.l.b16 %v6892
        %v6932 = vpack.c.b16 %v6917, %v6916
        %v6933 = vpack.c.b16 %v6919, %v6918
        %v6934 = vpack.c.b16 %v6921, %v6920
        %v6935 = vpack.c.b16 %v6923, %v6922
        %v6936 = vpack.c.b16 %v6925, %v6924
        %v6937 = vpack.c.b16 %v6927, %v6926
        %v6938 = vpack.c.b16 %v6929, %v6928
        %v6939 = vpack.c.b16 %v6931, %v6930
        %6948 = vmatprep.subr.bf16.mxu0 0
        %6949 = vmatpush1.bf16.msra.mxu0 %v6939
        %6950 = vmatprep.subr.bf16.mxu0 0
        %6951 = vmatpush1.bf16.msra.mxu0 %v6938
        %6952 = vmatprep.subr.bf16.mxu0 0
        %6953 = vmatpush1.bf16.msra.mxu0 %v6937
        %6954 = vmatprep.subr.bf16.mxu0 0
        %6955 = vmatpush1.bf16.msra.mxu0 %v6936
        %6956 = vmatprep.subr.bf16.mxu0 0
        %6957 = vmatpush1.bf16.msra.mxu0 %v6935
        %6958 = vmatprep.subr.bf16.mxu0 0
        %6959 = vmatpush1.bf16.msra.mxu0 %v6934
        %6960 = vmatprep.subr.bf16.mxu0 0
        %6961 = vmatpush1.bf16.msra.mxu0 %v6933
        %6962 = vmatprep.subr.bf16.mxu0 0
        %6963 = vmatpush1.bf16.msra.mxu0 %v6932
        %6964 = vmatprep.subr.bf16.mxu0 0
        %6965 = vmatpush2.bf16.msra.mxu0 0
        %6966 = vmatprep.subr.bf16.mxu0 0
        %6967 = vmatpush2.bf16.msra.mxu0 0
        %6968 = vmatprep.subr.bf16.mxu0 0
        %6969 = vmatpush2.bf16.msra.mxu0 0
        %6970 = vmatprep.subr.bf16.mxu0 0
        %6971 = vmatpush2.bf16.msra.mxu0 0
        %6972 = vmatprep.subr.bf16.mxu0 0
        %6973 = vmatpush2.bf16.msra.mxu0 0
        %6974 = vmatprep.subr.bf16.mxu0 0
        %6975 = vmatpush2.bf16.msra.mxu0 0
        %6976 = vmatprep.subr.bf16.mxu0 0
        %6977 = vmatpush2.bf16.msra.mxu0 0
        %6978 = vmatprep.subr.bf16.mxu0 0
        %6979 = vmatpush2.bf16.msra.mxu0 0
        %6980 = vmatprep.mubr.bf16.mxu0 0
        %6981 = vmatmul.mubr.bf16.gmra.mxu0 %v6861
        %v6982 = vpop.f32.mrf.mxu0
        %v6983 = vadd.f32 %v6898, %v6982
        %v6984 = vpop.f32.mrf.mxu0
        %v6985 = vpop.f32.mrf.mxu0
        %v6986 = vadd.f32 %v6898, %v6985
        %v6987 = vpop.f32.mrf.mxu0
        %6988 = vmatprep.mubr.bf16.mxu0 0
        %6989 = vmatmul.mubr.bf16.gmra.mxu0 %v6862
        %v6990 = vpop.f32.mrf.mxu0
        %v6991 = vadd.f32 %v6898, %v6990
        %v6992 = vpop.f32.mrf.mxu0
        %v6993 = vpop.f32.mrf.mxu0
        %v6994 = vadd.f32 %v6898, %v6993
        %v6995 = vpop.f32.mrf.mxu0
        %6996 = vmatprep.mubr.bf16.mxu0 0
        %6997 = vmatmul.mubr.bf16.gmra.mxu0 %v6863
        %v6998 = vpop.f32.mrf.mxu0
        %v6999 = vadd.f32 %v6898, %v6998
        %v7000 = vpop.f32.mrf.mxu0
        %v7001 = vpop.f32.mrf.mxu0
        %v7002 = vadd.f32 %v6898, %v7001
        %v7003 = vpop.f32.mrf.mxu0
        %7004 = vmatprep.mubr.bf16.mxu0 0
        %7005 = vmatmul.mubr.bf16.gmra.mxu0 %v6864
        %v7006 = vpop.f32.mrf.mxu0
        %v7007 = vadd.f32 %v6898, %v7006
        %v7008 = vpop.f32.mrf.mxu0
        %v7009 = vpop.f32.mrf.mxu0
        %v7010 = vadd.f32 %v6898, %v7009
        %v7011 = vpop.f32.mrf.mxu0
        %7012 = vmatprep.mubr.bf16.mxu0 0
        %7013 = vmatmul.mubr.bf16.gmra.mxu0 %v6865
        %v7014 = vpop.f32.mrf.mxu0
        %v7015 = vadd.f32 %v6898, %v7014
        %v7016 = vpop.f32.mrf.mxu0
        %v7017 = vpop.f32.mrf.mxu0
        %v7018 = vadd.f32 %v6898, %v7017
        %v7019 = vpop.f32.mrf.mxu0
        %7020 = vmatprep.mubr.bf16.mxu0 0
        %7021 = vmatmul.mubr.bf16.gmra.mxu0 %v6866
        %v7022 = vpop.f32.mrf.mxu0
        %v7023 = vadd.f32 %v6898, %v7022
        %v7024 = vpop.f32.mrf.mxu0
        %v7025 = vpop.f32.mrf.mxu0
        %v7026 = vadd.f32 %v6898, %v7025
        %v7027 = vpop.f32.mrf.mxu0
        %7028 = vmatprep.mubr.bf16.mxu0 0
        %7029 = vmatmul.mubr.bf16.gmra.mxu0 %v6867
        %v7030 = vpop.f32.mrf.mxu0
        %v7031 = vadd.f32 %v6898, %v7030
        %v7032 = vpop.f32.mrf.mxu0
        %v7033 = vpop.f32.mrf.mxu0
        %v7034 = vadd.f32 %v6898, %v7033
        %v7035 = vpop.f32.mrf.mxu0
        %7036 = vmatprep.mubr.bf16.mxu0 0
        %7037 = vmatmul.mubr.bf16.gmra.mxu0 %v6868
        %v7038 = vpop.f32.mrf.mxu0
        %v7039 = vadd.f32 %v6898, %v7038
        %v7040 = vpop.f32.mrf.mxu0
        %v7041 = vpop.f32.mrf.mxu0
        %v7042 = vadd.f32 %v6898, %v7041
        %v7043 = vpop.f32.mrf.mxu0
        %7044 = vmatprep.mubr.bf16.mxu0 0
        %7045 = vmatmul.mubr.bf16.gmra.mxu0 %v6869
        %v7046 = vpop.f32.mrf.mxu0
        %v7047 = vadd.f32 %v6898, %v7046
        %v7048 = vpop.f32.mrf.mxu0
        %v7049 = vpop.f32.mrf.mxu0
        %v7050 = vadd.f32 %v6898, %v7049
        %v7051 = vpop.f32.mrf.mxu0
        %7052 = vmatprep.mubr.bf16.mxu0 0
        %7053 = vmatmul.mubr.bf16.gmra.mxu0 %v6870
        %v7054 = vpop.f32.mrf.mxu0
        %v7055 = vadd.f32 %v6898, %v7054
        %v7056 = vpop.f32.mrf.mxu0
        %v7057 = vpop.f32.mrf.mxu0
        %v7058 = vadd.f32 %v6898, %v7057
        %v7059 = vpop.f32.mrf.mxu0
        %7060 = vmatprep.mubr.bf16.mxu0 0
        %7061 = vmatmul.mubr.bf16.gmra.mxu0 %v6871
        %v7062 = vpop.f32.mrf.mxu0
        %v7063 = vadd.f32 %v6898, %v7062
        %v7064 = vpop.f32.mrf.mxu0
        %v7065 = vpop.f32.mrf.mxu0
        %v7066 = vadd.f32 %v6898, %v7065
        %v7067 = vpop.f32.mrf.mxu0
        %7068 = vmatprep.mubr.bf16.mxu0 0
        %7069 = vmatmul.mubr.bf16.gmra.mxu0 %v6872
        %v7070 = vpop.f32.mrf.mxu0
        %v7071 = vadd.f32 %v6898, %v7070
        %v7072 = vpop.f32.mrf.mxu0
        %v7073 = vpop.f32.mrf.mxu0
        %v7074 = vadd.f32 %v6898, %v7073
        %v7075 = vpop.f32.mrf.mxu0
        %7076 = vmatprep.mubr.bf16.mxu0 0
        %7077 = vmatmul.mubr.bf16.gmra.mxu0 %v6873
        %v7078 = vpop.f32.mrf.mxu0
        %v7079 = vadd.f32 %v6898, %v7078
        %v7080 = vpop.f32.mrf.mxu0
        %v7081 = vpop.f32.mrf.mxu0
        %v7082 = vadd.f32 %v6898, %v7081
        %v7083 = vpop.f32.mrf.mxu0
        %7084 = vmatprep.mubr.bf16.mxu0 0
        %7085 = vmatmul.mubr.bf16.gmra.mxu0 %v6874
        %v7086 = vpop.f32.mrf.mxu0
        %v7087 = vadd.f32 %v6898, %v7086
        %v7088 = vpop.f32.mrf.mxu0
        %v7089 = vpop.f32.mrf.mxu0
        %v7090 = vadd.f32 %v6898, %v7089
        %v7091 = vpop.f32.mrf.mxu0
        %7092 = vmatprep.mubr.bf16.mxu0 0
        %7093 = vmatmul.mubr.bf16.gmra.mxu0 %v6875
        %v7094 = vpop.f32.mrf.mxu0
        %v7095 = vadd.f32 %v6898, %v7094
        %v7096 = vpop.f32.mrf.mxu0
        %v7097 = vpop.f32.mrf.mxu0
        %v7098 = vadd.f32 %v6898, %v7097
        %v7099 = vpop.f32.mrf.mxu0
        %7100 = vmatprep.mubr.bf16.mxu0 0
        %7101 = vmatmul.mubr.bf16.gmra.mxu0 %v6876
        %v7102 = vpop.f32.mrf.mxu0
        %v7103 = vadd.f32 %v6898, %v7102
        %v7104 = vpop.f32.mrf.mxu0
        %v7105 = vpop.f32.mrf.mxu0
        %v7106 = vadd.f32 %v6898, %v7105
        %v7107 = vpop.f32.mrf.mxu0
        %7108 = vdwg.mxu0
        %v7109 = vadd.f32 %v5847, %v6983
        %v7110 = vadd.f32 %v5848, %v6986
        %v7111 = vadd.f32 %v5849, %v6991
        %v7112 = vadd.f32 %v5850, %v6994
        %v7113 = vadd.f32 %v5851, %v6999
        %v7114 = vadd.f32 %v5852, %v7002
        %v7115 = vadd.f32 %v5853, %v7007
        %v7116 = vadd.f32 %v5854, %v7010
        %v7117 = vadd.f32 %v5855, %v7015
        %v7118 = vadd.f32 %v5856, %v7018
        %v7119 = vadd.f32 %v5857, %v7023
        %v7120 = vadd.f32 %v5858, %v7026
        %v7121 = vadd.f32 %v5859, %v7031
        %v7122 = vadd.f32 %v5860, %v7034
        %v7123 = vadd.f32 %v5861, %v7039
        %v7124 = vadd.f32 %v5862, %v7042
        %v7125 = vadd.f32 %v5863, %v7047
        %v7126 = vadd.f32 %v5864, %v7050
        %v7127 = vadd.f32 %v5865, %v7055
        %v7128 = vadd.f32 %v5866, %v7058
        %v7129 = vadd.f32 %v5867, %v7063
        %v7130 = vadd.f32 %v5868, %v7066
        %v7131 = vadd.f32 %v5869, %v7071
        %v7132 = vadd.f32 %v5870, %v7074
        %v7133 = vadd.f32 %v5871, %v7079
        %v7134 = vadd.f32 %v5872, %v7082
        %v7135 = vadd.f32 %v5873, %v7087
        %v7136 = vadd.f32 %v5874, %v7090
        %v7137 = vadd.f32 %v5875, %v7095
        %v7138 = vadd.f32 %v5876, %v7098
        %v7139 = vadd.f32 %v5877, %v7103
        %v7140 = vadd.f32 %v5878, %v7106
        %7141 = vst.msk [vmem:[%s542] sm:$0xff] %vm578, %v7109
        %7142 = vst.msk [vmem:[%s542 + $0x8] sm:$0xff] %vm578, %v7110
        %7143 = vst.msk [vmem:[%s542 + $0x10] sm:$0xff] %vm578, %v7111
        %7144 = vst.msk [vmem:[%s542 + $0x18] sm:$0xff] %vm578, %v7112
        %7145 = vst.msk [vmem:[%s542 + $0x20] sm:$0xff] %vm578, %v7113
        %7146 = vst.msk [vmem:[%s542 + $0x28] sm:$0xff] %vm578, %v7114
        %7147 = vst.msk [vmem:[%s542 + $0x30] sm:$0xff] %vm578, %v7115
        %7148 = vst.msk [vmem:[%s542 + $0x38] sm:$0xff] %vm578, %v7116
        %7149 = vst.msk [vmem:[%s542 + $0x40] sm:$0xff] %vm578, %v7117
        %7150 = vst.msk [vmem:[%s542 + $0x48] sm:$0xff] %vm578, %v7118
        %7151 = vst.msk [vmem:[%s542 + $0x50] sm:$0xff] %vm578, %v7119
        %7152 = vst.msk [vmem:[%s542 + $0x58] sm:$0xff] %vm578, %v7120
        %7153 = vst.msk [vmem:[%s542 + $0x60] sm:$0xff] %vm578, %v7121
        %7154 = vst.msk [vmem:[%s542 + $0x68] sm:$0xff] %vm578, %v7122
        %7155 = vst.msk [vmem:[%s542 + $0x70] sm:$0xff] %vm578, %v7123
        %7156 = vst.msk [vmem:[%s542 + $0x78] sm:$0xff] %vm578, %v7124
        %7157 = vst.msk [vmem:[%s542 + $0x80] sm:$0xff] %vm578, %v7125
        %7158 = vst.msk [vmem:[%s542 + $0x88] sm:$0xff] %vm578, %v7126
        %7159 = vst.msk [vmem:[%s542 + $0x90] sm:$0xff] %vm578, %v7127
        %7160 = vst.msk [vmem:[%s542 + $0x98] sm:$0xff] %vm578, %v7128
        %7161 = vst.msk [vmem:[%s542 + $0xa0] sm:$0xff] %vm578, %v7129
        %7162 = vst.msk [vmem:[%s542 + $0xa8] sm:$0xff] %vm578, %v7130
        %7163 = vst.msk [vmem:[%s542 + $0xb0] sm:$0xff] %vm578, %v7131
        %7164 = vst.msk [vmem:[%s542 + $0xb8] sm:$0xff] %vm578, %v7132
        %7165 = vst.msk [vmem:[%s542 + $0xc0] sm:$0xff] %vm578, %v7133
        %7166 = vst.msk [vmem:[%s542 + $0xc8] sm:$0xff] %vm578, %v7134
        %7167 = vst.msk [vmem:[%s542 + $0xd0] sm:$0xff] %vm578, %v7135
        %7168 = vst.msk [vmem:[%s542 + $0xd8] sm:$0xff] %vm578, %v7136
        %7169 = vst.msk [vmem:[%s542 + $0xe0] sm:$0xff] %vm578, %v7137
        %7170 = vst.msk [vmem:[%s542 + $0xe8] sm:$0xff] %vm578, %v7138
        %7171 = vst.msk [vmem:[%s542 + $0xf0] sm:$0xff] %vm578, %v7139
        %7172 = vst.msk [vmem:[%s542 + $0xf8] sm:$0xff] %vm578, %v7140
        %s7173 = sand.u32 %s319, 1
        %s7174 = scalar_lea.sflag [#allocation4], %s7173
        %s7175 = sand.u32 %s319, 1
        %s7176 = smul.addr %s7175, 256
        %s7177 = scalar_lea.vmem [#allocation14], %s7176
        // Predicated region
        $region101: #{fwd.1} parent=71 // pred_check
          %p7178 = pneg %p329
        $region102: #{fwd.1} parent=71 // pred_check_branch
          %7180 = sbr.rel (%p7178) target = $region104
        $region103: #{fwd.1} parent=71 // pred_region
          %s7181 = smul.u32 4, %s33
          %s7183 = ssub.s32 4096, 4096
          %7184 = vsyncadd %s7174, %s7183
          %s7185 = smul.addr %s7181, 8
          %s7186 = smul.addr %s7185, 128
          %s7187 = scalar_lea.hbm %s13, %s7186
          %s7188 = sshll.u32 %s7177, 4
          %s7189 = int_to_ptr.vmem [resolvable:$true] %s7188
          %7194 = dma.vmem_to_hbm [thread:$0]  %s7189, 4096, %s7187, %s7174, 128, 128, 8
        $region104: #{fwd.1} parent=71 // pred_fallthru
          _
      $region72: #{fwd.1} parent=5 // pred_fallthru
        _
      %p7195 = scmp.le.s32.totalorder 2, %s28
      // Predicated region
      $region105: #{fwd.1} parent=5 // pred_check
        %p7196 = pneg %p7195
      $region106: #{fwd.1} parent=5 // pred_check_branch
        %7198 = sbr.rel (%p7196) target = $region108
      $region107: #{fwd.1} parent=5 // pred_region
        %s7199 = ssub.s32 %s28, 2
        // Predicated region
        $region109: #{fwd.1} parent=107 // pred_check
          %p7200 = pneg %p335
        $region110: #{fwd.1} parent=107 // pred_check_branch
          %7202 = sbr.rel (%p7200) target = $region112
        $region111: #{fwd.1} parent=107 // pred_region
          %s7203 = sand.u32 %s320, 1
          %s7204 = scalar_lea.sflag [#allocation4], %s7203
          %s7205 = sand.u32 %s320, 1
          %s7206 = smul.addr %s7205, 256
          %s7207 = scalar_lea.vmem [#allocation14], %s7206
          %7208 = dma.done %s7204, 4096
        $region112: #{fwd.1} parent=107 // pred_fallthru
          _
      $region108: #{fwd.1} parent=5 // pred_fallthru
        _
    $region6: #{fwd.1} parent=1 // loop_footer
      %s32 = sadd.s32 1, %s28
    $region7: #{fwd.1} parent=1 // loop_footer_branch
      %27 = sbr.rel target = $region3
    $region8: #{fwd.1} parent=1 // loop_exit
      _
    %7209 = vsyncpa [#allocation3], 1
    %s7210 = scalar_lea.sflag [#allocation3], 1
    %7211 = vsyncpa %s7210, 1
    %7212 = vsyncpa [#allocation6], 1
    %7213 = vsyncpa [#allocation9], 1
    %7214 = vsyncpa [#allocation12], 1
    %7215 = vsyncpa [#allocation4], 1
    %s7216 = scalar_lea.sflag [#allocation4], 1
    %7217 = vsyncpa %s7216, 1

</llo_original>
